<compile_context>
chip_gen: v7x
topology: tpu7x:2x2x1
jax: 0.10.0
libtpu: 0.0.40
codegen_flags: <defaults>
</compile_context>

<pallas_src>
import jax
import jax.numpy as jnp
import numpy as np
from jax import lax
from jax.experimental import pallas as pl
from jax.experimental.pallas import tpu as pltpu

C_IN, C_OUT, K = 4, 16, 3
H_IN, W_IN = 130, 66                      # -> conv (128, 64) -> pool (32, 16)
HC, WC = H_IN - K + 1, W_IN - K + 1       # 128, 64
PH, PW = HC // 4, WC // 4                 # 32, 16
POOL = 16                                 # 4x4 pool-window offsets
CELLS = PH * PW                           # 512 pooled spatial cells (lane axis)
TAP = K + 4 - 1                           # 6 distinct intra-window taps per axis
FEATS = TAP * TAP * C_IN                  # 144 resampled features
FEATS1 = FEATS + 1                        # +1 constant-one row (folded conv bias)
B_TILE = 8                                # images per grid step
N_CHUNKS = 4                              # 256 conv rows -> 4 chunks of 64
LN_EPS = 1e-5


def _fused_kernel(xs_ref, w_ref, g_ref, beta_ref, o_ref):
    g = g_ref[...]          # (1, 512) LayerNorm gamma (cell-major: ph*16+pw)
    beta = beta_ref[...]    # (1, 512) LayerNorm beta

    for b in range(B_TILE):                       # static unroll over the batch tile
        xsb = xs_ref[b]                           # (145, 512) bf16

        # Conv2d(4,16,3) (+bias) for all 16 pool offsets, chunked so at most a
        # (64,512) f32 intermediate is live; pool max folded into a running max.
        acc = None
        for p in range(N_CHUNKS):
            chunk = jnp.dot(w_ref[pl.ds(p * 64, 64), :], xsb,
                            preferred_element_type=jnp.float32)     # (64, 512)
            m = jnp.maximum(chunk[:32, :], chunk[32:, :])            # (32, 512)
            m = jnp.maximum(m[:16, :], m[16:, :])                    # (16, 512)
            acc = m if acc is None else jnp.maximum(acc, m)

        # Dropout2d(p=0.2): identity (eval/inference semantics).
        # TODO(synk): training-mode stochastic channel dropout intentionally omitted.
        v = jnp.clip(acc, 0.0, 6.0)                                  # ReLU6

        # LayerNorm([32,16]): normalize over the 512 cells per (image, channel)
        mean = jnp.mean(v, axis=1, keepdims=True)
        cen = v - mean
        var = jnp.mean(cen * cen, axis=1, keepdims=True)             # biased variance
        v = cen * lax.rsqrt(var + LN_EPS)
        v = v * g + beta

        # GELU (exact erf form, PyTorch default) then tanh; 512-lane unmasked store
        v = 0.5 * v * (1.0 + lax.erf(v * 0.7071067811865476))
        o_ref[b] = jnp.tanh(v)


@jax.jit
def model_tanh(x, conv_w, conv_b, ln_gamma, ln_beta):
    """x: (N, 4, 130, 66) NCHW float32 -> (N, 16, 32, 16) NCHW float32."""
    n = x.shape[0]

    # ---- glue: stride-4 resampling (shrunk im2col), minor dim = 512 cells.
    # xs[n, a*24 + b*4 + c, ph*16 + pw] = x[n, c, 4*ph + a, 4*pw + b]
    slabs = []
    for a in range(TAP):
        for b in range(TAP):
            slabs.append(x[:, :, a:a + 4 * (PH - 1) + 1:4,
                               b:b + 4 * (PW - 1) + 1:4])            # (N, 4, 32, 16)
    xs = jnp.stack(slabs, axis=1).reshape(n, FEATS, CELLS)           # (N, 144, 512)
    ones = jnp.ones((n, 1, CELLS), xs.dtype)                         # folded-bias row
    xs = jnp.concatenate([xs, ones], axis=1).astype(jnp.bfloat16)    # (N, 145, 512)
    # TODO(synk): fully fusing this resample into the kernel (memory_space=pl.ANY +
    # strided DMA repack) would remove the remaining xs HBM round trip.

    # pad batch to a multiple of B_TILE (padded images are all-zero; sliced off below)
    n_pad = pl.cdiv(n, B_TILE) * B_TILE
    if n_pad != n:
        xs = jnp.pad(xs, ((0, n_pad - n), (0, 0), (0, 0)))

    # ---- fused conv weights for all 16 pool offsets, plus bias column (K = 145):
    # w_all[(i*4+j)*16 + o, a*24 + b*4 + c] = conv_w[o, c, a-i, b-j] (0 outside 3x3)
    # w_all[(i*4+j)*16 + o, 144]            = conv_b[o]
    w_perm = jnp.transpose(conv_w, (0, 2, 3, 1))                     # (16, kh, kw, c)
    blocks = []
    for i in range(4):
        for j in range(4):
            blk = jnp.zeros((C_OUT, TAP, TAP, C_IN), conv_w.dtype)
            blk = blk.at[:, i:i + K, j:j + K, :].set(w_perm)
            blocks.append(blk.reshape(C_OUT, FEATS))
    w_feat = jnp.concatenate(blocks, axis=0)                         # (256, 144)
    bias_col = jnp.tile(conv_b, POOL).reshape(POOL * C_OUT, 1)       # (256, 1)
    w_all = jnp.concatenate([w_feat, bias_col], axis=1).astype(jnp.bfloat16)

    g_row = ln_gamma.reshape(1, CELLS)                               # (1, 512)
    beta_row = ln_beta.reshape(1, CELLS)

    out = pl.pallas_call(
        _fused_kernel,
        out_shape=jax.ShapeDtypeStruct((n_pad, C_OUT, CELLS), jnp.float32),
        grid_spec=pltpu.PrefetchScalarGridSpec(
            num_scalar_prefetch=0,
            grid=(n_pad // B_TILE,),
            in_specs=[
                pl.BlockSpec((B_TILE, FEATS1, CELLS), lambda i: (i, 0, 0)),
                pl.BlockSpec((POOL * C_OUT, FEATS1), lambda i: (0, 0)),
                pl.BlockSpec((1, CELLS), lambda i: (0, 0)),
                pl.BlockSpec((1, CELLS), lambda i: (0, 0)),
            ],
            out_specs=pl.BlockSpec((B_TILE, C_OUT, CELLS), lambda i: (i, 0, 0)),
        ),
        compiler_params=pltpu.CompilerParams(
            dimension_semantics=("parallel",),
            vmem_limit_bytes=8 * 1024 * 1024,   # ~3 MiB real footprint + headroom
        ),
    )(xs, w_all, g_row, beta_row)

    # back to PyTorch NCHW: pure reshape, no transpose
    return out[:n].reshape(n, C_OUT, PH, PW)


def _reference(x, conv_w, conv_b, ln_gamma, ln_beta):
    """Pure-JAX f32 reference of the PyTorch forward (eval-mode dropout)."""
    conv = lax.conv_general_dilated(
        x, conv_w, (1, 1), "VALID", dimension_numbers=("NCHW", "OIHW", "NCHW"))
    conv = conv + conv_b[None, :, None, None]
    pooled = lax.reduce_window(conv, -jnp.inf, lax.max,
                               (1, 1, 4, 4), (1, 1, 4, 4), "VALID")
    v = jnp.clip(pooled, 0.0, 6.0)
    mean = jnp.mean(v, axis=(2, 3), keepdims=True)
    var = jnp.mean((v - mean) ** 2, axis=(2, 3), keepdims=True)
    v = (v - mean) / jnp.sqrt(var + LN_EPS) * ln_gamma[None, None] + ln_beta[None, None]
    v = 0.5 * v * (1.0 + lax.erf(v / jnp.sqrt(2.0)))
    return jnp.tanh(v)


if __name__ == "__main__":
    key = jax.random.PRNGKey(0)
    kx, kw, kb, kg, ke = jax.random.split(key, 5)
    n = 12   # not a multiple of B_TILE: exercises batch padding + a 2-step grid
    x = jax.random.normal(kx, (n, C_IN, H_IN, W_IN), jnp.float32)
    conv_w = 0.1 * jax.random.normal(kw, (C_OUT, C_IN, K, K), jnp.float32)
    conv_b = 0.1 * jax.random.normal(kb, (C_OUT,), jnp.float32)
    ln_gamma = 1.0 + 0.1 * jax.random.normal(kg, (PH, PW), jnp.float32)
    ln_beta = 0.1 * jax.random.normal(ke, (PH, PW), jnp.float32)

    out = model_tanh(x, conv_w, conv_b, ln_gamma, ln_beta)
    jax.block_until_ready(out)

    ref = _reference(x, conv_w, conv_b, ln_gamma, ln_beta)
    # bf16 MXU operands vs. the all-f32 reference -> slightly looser tolerance
    np.testing.assert_allclose(np.asarray(out), np.asarray(ref), rtol=2e-2, atol=3e-2)
    assert out.shape == (n, C_OUT, PH, PW)
    print("KERNEL_OK")
</pallas_src>

<mosaic_0001>
module attributes {stable_mosaic.version = 11 : i64} {
  func.func @_fused_kernel(%arg0: i32, %arg1: memref<8x145x512xbf16, #tpu.memory_space<vmem>>, %arg2: memref<256x145xbf16, #tpu.memory_space<vmem>>, %arg3: memref<1x512xf32, #tpu.memory_space<vmem>>, %arg4: memref<1x512xf32, #tpu.memory_space<vmem>>, %arg5: memref<8x16x512xf32, #tpu.memory_space<vmem>>) attributes {dimension_semantics = [#tpu.dimension_semantics<parallel>], iteration_bounds = array<i64: 2>, scalar_prefetch = 0 : i64, scratch_operands = 0 : i64, tpu.core_type = #tpu.core_type<tc>, window_params = [{transform_indices = @transform_0, window_bounds = array<i64: 8, 145, 512>}, {pipeline_mode = #tpu.pipeline_mode<synchronous>, transform_indices = @transform_1, window_bounds = array<i64: 256, 145>}, {pipeline_mode = #tpu.pipeline_mode<synchronous>, transform_indices = @transform_2, window_bounds = array<i64: 1, 512>}, {pipeline_mode = #tpu.pipeline_mode<synchronous>, transform_indices = @transform_3, window_bounds = array<i64: 1, 512>}, {transform_indices = @transform_4, window_bounds = array<i64: 8, 16, 512>}]} {
    %c0 = arith.constant 0 : index
    %c0_0 = arith.constant 0 : index
    %0 = vector.load %arg3[%c0, %c0_0] : memref<1x512xf32, #tpu.memory_space<vmem>>, vector<1x512xf32>
    %c0_1 = arith.constant 0 : index
    %c0_2 = arith.constant 0 : index
    %1 = vector.load %arg4[%c0_1, %c0_2] : memref<1x512xf32, #tpu.memory_space<vmem>>, vector<1x512xf32>
    %c0_3 = arith.constant 0 : index
    %c0_4 = arith.constant 0 : index
    %c0_5 = arith.constant 0 : index
    %2 = vector.load %arg1[%c0_3, %c0_4, %c0_5] : memref<8x145x512xbf16, #tpu.memory_space<vmem>>, vector<1x145x512xbf16>
    %3 = vector.shape_cast %2 : vector<1x145x512xbf16> to vector<145x512xbf16>
    %c0_6 = arith.constant 0 : index
    %c0_7 = arith.constant 0 : index
    %4 = vector.load %arg2[%c0_6, %c0_7] : memref<256x145xbf16, #tpu.memory_space<vmem>>, vector<64x145xbf16>
    %cst = arith.constant dense<0.000000e+00> : vector<64x512xf32>
    %5 = tpu.matmul %4, %3, %cst {dimension_numbers = #tpu.dot_dimension_numbers<[1], [0], [0], [1], [0, 0, 1, 1], [], []>} : vector<64x145xbf16>, vector<145x512xbf16>, vector<64x512xf32> -> vector<64x512xf32>
    %6 = vector.extract_strided_slice %5 {offsets = [0, 0], sizes = [32, 512], strides = [1, 1]} : vector<64x512xf32> to vector<32x512xf32>
    %7 = vector.extract_strided_slice %5 {offsets = [32, 0], sizes = [32, 512], strides = [1, 1]} : vector<64x512xf32> to vector<32x512xf32>
    %8 = arith.maximumf %6, %7 : vector<32x512xf32>
    %9 = vector.extract_strided_slice %8 {offsets = [0, 0], sizes = [16, 512], strides = [1, 1]} : vector<32x512xf32> to vector<16x512xf32>
    %10 = vector.extract_strided_slice %8 {offsets = [16, 0], sizes = [16, 512], strides = [1, 1]} : vector<32x512xf32> to vector<16x512xf32>
    %11 = arith.maximumf %9, %10 : vector<16x512xf32>
    %c64 = arith.constant 64 : index
    %c0_8 = arith.constant 0 : index
    %12 = vector.load %arg2[%c64, %c0_8] : memref<256x145xbf16, #tpu.memory_space<vmem>>, vector<64x145xbf16>
    %cst_9 = arith.constant dense<0.000000e+00> : vector<64x512xf32>
    %13 = tpu.matmul %12, %3, %cst_9 {dimension_numbers = #tpu.dot_dimension_numbers<[1], [0], [0], [1], [0, 0, 1, 1], [], []>} : vector<64x145xbf16>, vector<145x512xbf16>, vector<64x512xf32> -> vector<64x512xf32>
    %14 = vector.extract_strided_slice %13 {offsets = [0, 0], sizes = [32, 512], strides = [1, 1]} : vector<64x512xf32> to vector<32x512xf32>
    %15 = vector.extract_strided_slice %13 {offsets = [32, 0], sizes = [32, 512], strides = [1, 1]} : vector<64x512xf32> to vector<32x512xf32>
    %16 = arith.maximumf %14, %15 : vector<32x512xf32>
    %17 = vector.extract_strided_slice %16 {offsets = [0, 0], sizes = [16, 512], strides = [1, 1]} : vector<32x512xf32> to vector<16x512xf32>
    %18 = vector.extract_strided_slice %16 {offsets = [16, 0], sizes = [16, 512], strides = [1, 1]} : vector<32x512xf32> to vector<16x512xf32>
    %19 = arith.maximumf %17, %18 : vector<16x512xf32>
    %20 = arith.maximumf %11, %19 : vector<16x512xf32>
    %c128 = arith.constant 128 : index
    %c0_10 = arith.constant 0 : index
    %21 = vector.load %arg2[%c128, %c0_10] : memref<256x145xbf16, #tpu.memory_space<vmem>>, vector<64x145xbf16>
    %cst_11 = arith.constant dense<0.000000e+00> : vector<64x512xf32>
    %22 = tpu.matmul %21, %3, %cst_11 {dimension_numbers = #tpu.dot_dimension_numbers<[1], [0], [0], [1], [0, 0, 1, 1], [], []>} : vector<64x145xbf16>, vector<145x512xbf16>, vector<64x512xf32> -> vector<64x512xf32>
    %23 = vector.extract_strided_slice %22 {offsets = [0, 0], sizes = [32, 512], strides = [1, 1]} : vector<64x512xf32> to vector<32x512xf32>
    %24 = vector.extract_strided_slice %22 {offsets = [32, 0], sizes = [32, 512], strides = [1, 1]} : vector<64x512xf32> to vector<32x512xf32>
    %25 = arith.maximumf %23, %24 : vector<32x512xf32>
    %26 = vector.extract_strided_slice %25 {offsets = [0, 0], sizes = [16, 512], strides = [1, 1]} : vector<32x512xf32> to vector<16x512xf32>
    %27 = vector.extract_strided_slice %25 {offsets = [16, 0], sizes = [16, 512], strides = [1, 1]} : vector<32x512xf32> to vector<16x512xf32>
    %28 = arith.maximumf %26, %27 : vector<16x512xf32>
    %29 = arith.maximumf %20, %28 : vector<16x512xf32>
    %c192 = arith.constant 192 : index
    %c0_12 = arith.constant 0 : index
    %30 = vector.load %arg2[%c192, %c0_12] : memref<256x145xbf16, #tpu.memory_space<vmem>>, vector<64x145xbf16>
    %cst_13 = arith.constant dense<0.000000e+00> : vector<64x512xf32>
    %31 = tpu.matmul %30, %3, %cst_13 {dimension_numbers = #tpu.dot_dimension_numbers<[1], [0], [0], [1], [0, 0, 1, 1], [], []>} : vector<64x145xbf16>, vector<145x512xbf16>, vector<64x512xf32> -> vector<64x512xf32>
    %32 = vector.extract_strided_slice %31 {offsets = [0, 0], sizes = [32, 512], strides = [1, 1]} : vector<64x512xf32> to vector<32x512xf32>
    %33 = vector.extract_strided_slice %31 {offsets = [32, 0], sizes = [32, 512], strides = [1, 1]} : vector<64x512xf32> to vector<32x512xf32>
    %34 = arith.maximumf %32, %33 : vector<32x512xf32>
    %35 = vector.extract_strided_slice %34 {offsets = [0, 0], sizes = [16, 512], strides = [1, 1]} : vector<32x512xf32> to vector<16x512xf32>
    %36 = vector.extract_strided_slice %34 {offsets = [16, 0], sizes = [16, 512], strides = [1, 1]} : vector<32x512xf32> to vector<16x512xf32>
    %37 = arith.maximumf %35, %36 : vector<16x512xf32>
    %38 = arith.maximumf %29, %37 : vector<16x512xf32>
    %cst_14 = arith.constant 0.000000e+00 : f32
    %cst_15 = arith.constant 6.000000e+00 : f32
    %39 = vector.broadcast %cst_14 : f32 to vector<16x512xf32>
    %40 = arith.maximumf %39, %38 : vector<16x512xf32>
    %41 = vector.broadcast %cst_15 : f32 to vector<16x512xf32>
    %42 = arith.minimumf %41, %40 : vector<16x512xf32>
    %cst_16 = arith.constant dense<0.000000e+00> : vector<16xf32>
    %43 = vector.multi_reduction <add>, %42, %cst_16 [1] : vector<16x512xf32> to vector<16xf32>
    %44 = vector.shape_cast %43 : vector<16xf32> to vector<16x1xf32>
    %cst_17 = arith.constant 5.120000e+02 : f32
    %45 = vector.broadcast %cst_17 : f32 to vector<16x1xf32>
    %46 = arith.divf %44, %45 : vector<16x1xf32>
    %47 = vector.broadcast %46 : vector<16x1xf32> to vector<16x512xf32>
    %48 = arith.subf %42, %47 : vector<16x512xf32>
    %49 = arith.mulf %48, %48 : vector<16x512xf32>
    %cst_18 = arith.constant dense<0.000000e+00> : vector<16xf32>
    %50 = vector.multi_reduction <add>, %49, %cst_18 [1] : vector<16x512xf32> to vector<16xf32>
    %51 = vector.shape_cast %50 : vector<16xf32> to vector<16x1xf32>
    %cst_19 = arith.constant 5.120000e+02 : f32
    %52 = vector.broadcast %cst_19 : f32 to vector<16x1xf32>
    %53 = arith.divf %51, %52 : vector<16x1xf32>
    %cst_20 = arith.constant 9.99999974E-6 : f32
    %54 = vector.broadcast %cst_20 : f32 to vector<16x1xf32>
    %55 = arith.addf %53, %54 : vector<16x1xf32>
    %56 = math.rsqrt %55 : vector<16x1xf32>
    %57 = vector.broadcast %56 : vector<16x1xf32> to vector<16x512xf32>
    %58 = arith.mulf %48, %57 : vector<16x512xf32>
    %59 = vector.broadcast %0 : vector<1x512xf32> to vector<16x512xf32>
    %60 = arith.mulf %58, %59 : vector<16x512xf32>
    %61 = vector.broadcast %1 : vector<1x512xf32> to vector<16x512xf32>
    %62 = arith.addf %60, %61 : vector<16x512xf32>
    %cst_21 = arith.constant 5.000000e-01 : f32
    %63 = vector.broadcast %cst_21 : f32 to vector<16x512xf32>
    %64 = arith.mulf %63, %62 : vector<16x512xf32>
    %cst_22 = arith.constant 0.707106769 : f32
    %65 = vector.broadcast %cst_22 : f32 to vector<16x512xf32>
    %66 = arith.mulf %62, %65 : vector<16x512xf32>
    %67 = math.erf %66 : vector<16x512xf32>
    %cst_23 = arith.constant 1.000000e+00 : f32
    %68 = vector.broadcast %cst_23 : f32 to vector<16x512xf32>
    %69 = arith.addf %68, %67 : vector<16x512xf32>
    %70 = arith.mulf %64, %69 : vector<16x512xf32>
    %71 = math.tanh %70 : vector<16x512xf32>
    %c0_24 = arith.constant 0 : index
    %c0_25 = arith.constant 0 : index
    %c0_26 = arith.constant 0 : index
    %72 = vector.load %arg5[%c0_24, %c0_25, %c0_26] : memref<8x16x512xf32, #tpu.memory_space<vmem>>, vector<1x16x512xf32>
    %73 = vector.shape_cast %72 : vector<1x16x512xf32> to vector<16x512xf32>
    %74 = vector.shape_cast %71 : vector<16x512xf32> to vector<1x16x512xf32>
    tpu.vector_store %arg5[%c0_24, %c0_25, %c0_26], %74 {strides = array<i32>} : memref<8x16x512xf32, #tpu.memory_space<vmem>>, vector<1x16x512xf32>,
    %c1 = arith.constant 1 : index
    %c0_27 = arith.constant 0 : index
    %c0_28 = arith.constant 0 : index
    %75 = vector.load %arg1[%c1, %c0_27, %c0_28] : memref<8x145x512xbf16, #tpu.memory_space<vmem>>, vector<1x145x512xbf16>
    %76 = vector.shape_cast %75 : vector<1x145x512xbf16> to vector<145x512xbf16>
    %c0_29 = arith.constant 0 : index
    %c0_30 = arith.constant 0 : index
    %77 = vector.load %arg2[%c0_29, %c0_30] : memref<256x145xbf16, #tpu.memory_space<vmem>>, vector<64x145xbf16>
    %cst_31 = arith.constant dense<0.000000e+00> : vector<64x512xf32>
    %78 = tpu.matmul %77, %76, %cst_31 {dimension_numbers = #tpu.dot_dimension_numbers<[1], [0], [0], [1], [0, 0, 1, 1], [], []>} : vector<64x145xbf16>, vector<145x512xbf16>, vector<64x512xf32> -> vector<64x512xf32>
    %79 = vector.extract_strided_slice %78 {offsets = [0, 0], sizes = [32, 512], strides = [1, 1]} : vector<64x512xf32> to vector<32x512xf32>
    %80 = vector.extract_strided_slice %78 {offsets = [32, 0], sizes = [32, 512], strides = [1, 1]} : vector<64x512xf32> to vector<32x512xf32>
    %81 = arith.maximumf %79, %80 : vector<32x512xf32>
    %82 = vector.extract_strided_slice %81 {offsets = [0, 0], sizes = [16, 512], strides = [1, 1]} : vector<32x512xf32> to vector<16x512xf32>
    %83 = vector.extract_strided_slice %81 {offsets = [16, 0], sizes = [16, 512], strides = [1, 1]} : vector<32x512xf32> to vector<16x512xf32>
    %84 = arith.maximumf %82, %83 : vector<16x512xf32>
    %c64_32 = arith.constant 64 : index
    %c0_33 = arith.constant 0 : index
    %85 = vector.load %arg2[%c64_32, %c0_33] : memref<256x145xbf16, #tpu.memory_space<vmem>>, vector<64x145xbf16>
    %cst_34 = arith.constant dense<0.000000e+00> : vector<64x512xf32>
    %86 = tpu.matmul %85, %76, %cst_34 {dimension_numbers = #tpu.dot_dimension_numbers<[1], [0], [0], [1], [0, 0, 1, 1], [], []>} : vector<64x145xbf16>, vector<145x512xbf16>, vector<64x512xf32> -> vector<64x512xf32>
    %87 = vector.extract_strided_slice %86 {offsets = [0, 0], sizes = [32, 512], strides = [1, 1]} : vector<64x512xf32> to vector<32x512xf32>
    %88 = vector.extract_strided_slice %86 {offsets = [32, 0], sizes = [32, 512], strides = [1, 1]} : vector<64x512xf32> to vector<32x512xf32>
    %89 = arith.maximumf %87, %88 : vector<32x512xf32>
    %90 = vector.extract_strided_slice %89 {offsets = [0, 0], sizes = [16, 512], strides = [1, 1]} : vector<32x512xf32> to vector<16x512xf32>
    %91 = vector.extract_strided_slice %89 {offsets = [16, 0], sizes = [16, 512], strides = [1, 1]} : vector<32x512xf32> to vector<16x512xf32>
    %92 = arith.maximumf %90, %91 : vector<16x512xf32>
    %93 = arith.maximumf %84, %92 : vector<16x512xf32>
    %c128_35 = arith.constant 128 : index
    %c0_36 = arith.constant 0 : index
    %94 = vector.load %arg2[%c128_35, %c0_36] : memref<256x145xbf16, #tpu.memory_space<vmem>>, vector<64x145xbf16>
    %cst_37 = arith.constant dense<0.000000e+00> : vector<64x512xf32>
    %95 = tpu.matmul %94, %76, %cst_37 {dimension_numbers = #tpu.dot_dimension_numbers<[1], [0], [0], [1], [0, 0, 1, 1], [], []>} : vector<64x145xbf16>, vector<145x512xbf16>, vector<64x512xf32> -> vector<64x512xf32>
    %96 = vector.extract_strided_slice %95 {offsets = [0, 0], sizes = [32, 512], strides = [1, 1]} : vector<64x512xf32> to vector<32x512xf32>
    %97 = vector.extract_strided_slice %95 {offsets = [32, 0], sizes = [32, 512], strides = [1, 1]} : vector<64x512xf32> to vector<32x512xf32>
    %98 = arith.maximumf %96, %97 : vector<32x512xf32>
    %99 = vector.extract_strided_slice %98 {offsets = [0, 0], sizes = [16, 512], strides = [1, 1]} : vector<32x512xf32> to vector<16x512xf32>
    %100 = vector.extract_strided_slice %98 {offsets = [16, 0], sizes = [16, 512], strides = [1, 1]} : vector<32x512xf32> to vector<16x512xf32>
    %101 = arith.maximumf %99, %100 : vector<16x512xf32>
    %102 = arith.maximumf %93, %101 : vector<16x512xf32>
    %c192_38 = arith.constant 192 : index
    %c0_39 = arith.constant 0 : index
    %103 = vector.load %arg2[%c192_38, %c0_39] : memref<256x145xbf16, #tpu.memory_space<vmem>>, vector<64x145xbf16>
    %cst_40 = arith.constant dense<0.000000e+00> : vector<64x512xf32>
    %104 = tpu.matmul %103, %76, %cst_40 {dimension_numbers = #tpu.dot_dimension_numbers<[1], [0], [0], [1], [0, 0, 1, 1], [], []>} : vector<64x145xbf16>, vector<145x512xbf16>, vector<64x512xf32> -> vector<64x512xf32>
    %105 = vector.extract_strided_slice %104 {offsets = [0, 0], sizes = [32, 512], strides = [1, 1]} : vector<64x512xf32> to vector<32x512xf32>
    %106 = vector.extract_strided_slice %104 {offsets = [32, 0], sizes = [32, 512], strides = [1, 1]} : vector<64x512xf32> to vector<32x512xf32>
    %107 = arith.maximumf %105, %106 : vector<32x512xf32>
    %108 = vector.extract_strided_slice %107 {offsets = [0, 0], sizes = [16, 512], strides = [1, 1]} : vector<32x512xf32> to vector<16x512xf32>
    %109 = vector.extract_strided_slice %107 {offsets = [16, 0], sizes = [16, 512], strides = [1, 1]} : vector<32x512xf32> to vector<16x512xf32>
    %110 = arith.maximumf %108, %109 : vector<16x512xf32>
    %111 = arith.maximumf %102, %110 : vector<16x512xf32>
    %cst_41 = arith.constant 0.000000e+00 : f32
    %cst_42 = arith.constant 6.000000e+00 : f32
    %112 = vector.broadcast %cst_41 : f32 to vector<16x512xf32>
    %113 = arith.maximumf %112, %111 : vector<16x512xf32>
    %114 = vector.broadcast %cst_42 : f32 to vector<16x512xf32>
    %115 = arith.minimumf %114, %113 : vector<16x512xf32>
    %cst_43 = arith.constant dense<0.000000e+00> : vector<16xf32>
    %116 = vector.multi_reduction <add>, %115, %cst_43 [1] : vector<16x512xf32> to vector<16xf32>
    %117 = vector.shape_cast %116 : vector<16xf32> to vector<16x1xf32>
    %cst_44 = arith.constant 5.120000e+02 : f32
    %118 = vector.broadcast %cst_44 : f32 to vector<16x1xf32>
    %119 = arith.divf %117, %118 : vector<16x1xf32>
    %120 = vector.broadcast %119 : vector<16x1xf32> to vector<16x512xf32>
    %121 = arith.subf %115, %120 : vector<16x512xf32>
    %122 = arith.mulf %121, %121 : vector<16x512xf32>
    %cst_45 = arith.constant dense<0.000000e+00> : vector<16xf32>
    %123 = vector.multi_reduction <add>, %122, %cst_45 [1] : vector<16x512xf32> to vector<16xf32>
    %124 = vector.shape_cast %123 : vector<16xf32> to vector<16x1xf32>
    %cst_46 = arith.constant 5.120000e+02 : f32
    %125 = vector.broadcast %cst_46 : f32 to vector<16x1xf32>
    %126 = arith.divf %124, %125 : vector<16x1xf32>
    %cst_47 = arith.constant 9.99999974E-6 : f32
    %127 = vector.broadcast %cst_47 : f32 to vector<16x1xf32>
    %128 = arith.addf %126, %127 : vector<16x1xf32>
    %129 = math.rsqrt %128 : vector<16x1xf32>
    %130 = vector.broadcast %129 : vector<16x1xf32> to vector<16x512xf32>
    %131 = arith.mulf %121, %130 : vector<16x512xf32>
    %132 = vector.broadcast %0 : vector<1x512xf32> to vector<16x512xf32>
    %133 = arith.mulf %131, %132 : vector<16x512xf32>
    %134 = vector.broadcast %1 : vector<1x512xf32> to vector<16x512xf32>
    %135 = arith.addf %133, %134 : vector<16x512xf32>
    %cst_48 = arith.constant 5.000000e-01 : f32
    %136 = vector.broadcast %cst_48 : f32 to vector<16x512xf32>
    %137 = arith.mulf %136, %135 : vector<16x512xf32>
    %cst_49 = arith.constant 0.707106769 : f32
    %138 = vector.broadcast %cst_49 : f32 to vector<16x512xf32>
    %139 = arith.mulf %135, %138 : vector<16x512xf32>
    %140 = math.erf %139 : vector<16x512xf32>
    %cst_50 = arith.constant 1.000000e+00 : f32
    %141 = vector.broadcast %cst_50 : f32 to vector<16x512xf32>
    %142 = arith.addf %141, %140 : vector<16x512xf32>
    %143 = arith.mulf %137, %142 : vector<16x512xf32>
    %144 = math.tanh %143 : vector<16x512xf32>
    %c1_51 = arith.constant 1 : index
    %c0_52 = arith.constant 0 : index
    %c0_53 = arith.constant 0 : index
    %145 = vector.load %arg5[%c1_51, %c0_52, %c0_53] : memref<8x16x512xf32, #tpu.memory_space<vmem>>, vector<1x16x512xf32>
    %146 = vector.shape_cast %145 : vector<1x16x512xf32> to vector<16x512xf32>
    %147 = vector.shape_cast %144 : vector<16x512xf32> to vector<1x16x512xf32>
    tpu.vector_store %arg5[%c1_51, %c0_52, %c0_53], %147 {strides = array<i32>} : memref<8x16x512xf32, #tpu.memory_space<vmem>>, vector<1x16x512xf32>,
    %c2 = arith.constant 2 : index
    %c0_54 = arith.constant 0 : index
    %c0_55 = arith.constant 0 : index
    %148 = vector.load %arg1[%c2, %c0_54, %c0_55] : memref<8x145x512xbf16, #tpu.memory_space<vmem>>, vector<1x145x512xbf16>
    %149 = vector.shape_cast %148 : vector<1x145x512xbf16> to vector<145x512xbf16>
    %c0_56 = arith.constant 0 : index
    %c0_57 = arith.constant 0 : index
    %150 = vector.load %arg2[%c0_56, %c0_57] : memref<256x145xbf16, #tpu.memory_space<vmem>>, vector<64x145xbf16>
    %cst_58 = arith.constant dense<0.000000e+00> : vector<64x512xf32>
    %151 = tpu.matmul %150, %149, %cst_58 {dimension_numbers = #tpu.dot_dimension_numbers<[1], [0], [0], [1], [0, 0, 1, 1], [], []>} : vector<64x145xbf16>, vector<145x512xbf16>, vector<64x512xf32> -> vector<64x512xf32>
    %152 = vector.extract_strided_slice %151 {offsets = [0, 0], sizes = [32, 512], strides = [1, 1]} : vector<64x512xf32> to vector<32x512xf32>
    %153 = vector.extract_strided_slice %151 {offsets = [32, 0], sizes = [32, 512], strides = [1, 1]} : vector<64x512xf32> to vector<32x512xf32>
    %154 = arith.maximumf %152, %153 : vector<32x512xf32>
    %155 = vector.extract_strided_slice %154 {offsets = [0, 0], sizes = [16, 512], strides = [1, 1]} : vector<32x512xf32> to vector<16x512xf32>
    %156 = vector.extract_strided_slice %154 {offsets = [16, 0], sizes = [16, 512], strides = [1, 1]} : vector<32x512xf32> to vector<16x512xf32>
    %157 = arith.maximumf %155, %156 : vector<16x512xf32>
    %c64_59 = arith.constant 64 : index
    %c0_60 = arith.constant 0 : index
    %158 = vector.load %arg2[%c64_59, %c0_60] : memref<256x145xbf16, #tpu.memory_space<vmem>>, vector<64x145xbf16>
    %cst_61 = arith.constant dense<0.000000e+00> : vector<64x512xf32>
    %159 = tpu.matmul %158, %149, %cst_61 {dimension_numbers = #tpu.dot_dimension_numbers<[1], [0], [0], [1], [0, 0, 1, 1], [], []>} : vector<64x145xbf16>, vector<145x512xbf16>, vector<64x512xf32> -> vector<64x512xf32>
    %160 = vector.extract_strided_slice %159 {offsets = [0, 0], sizes = [32, 512], strides = [1, 1]} : vector<64x512xf32> to vector<32x512xf32>
    %161 = vector.extract_strided_slice %159 {offsets = [32, 0], sizes = [32, 512], strides = [1, 1]} : vector<64x512xf32> to vector<32x512xf32>
    %162 = arith.maximumf %160, %161 : vector<32x512xf32>
    %163 = vector.extract_strided_slice %162 {offsets = [0, 0], sizes = [16, 512], strides = [1, 1]} : vector<32x512xf32> to vector<16x512xf32>
    %164 = vector.extract_strided_slice %162 {offsets = [16, 0], sizes = [16, 512], strides = [1, 1]} : vector<32x512xf32> to vector<16x512xf32>
    %165 = arith.maximumf %163, %164 : vector<16x512xf32>
    %166 = arith.maximumf %157, %165 : vector<16x512xf32>
    %c128_62 = arith.constant 128 : index
    %c0_63 = arith.constant 0 : index
    %167 = vector.load %arg2[%c128_62, %c0_63] : memref<256x145xbf16, #tpu.memory_space<vmem>>, vector<64x145xbf16>
    %cst_64 = arith.constant dense<0.000000e+00> : vector<64x512xf32>
    %168 = tpu.matmul %167, %149, %cst_64 {dimension_numbers = #tpu.dot_dimension_numbers<[1], [0], [0], [1], [0, 0, 1, 1], [], []>} : vector<64x145xbf16>, vector<145x512xbf16>, vector<64x512xf32> -> vector<64x512xf32>
    %169 = vector.extract_strided_slice %168 {offsets = [0, 0], sizes = [32, 512], strides = [1, 1]} : vector<64x512xf32> to vector<32x512xf32>
    %170 = vector.extract_strided_slice %168 {offsets = [32, 0], sizes = [32, 512], strides = [1, 1]} : vector<64x512xf32> to vector<32x512xf32>
    %171 = arith.maximumf %169, %170 : vector<32x512xf32>
    %172 = vector.extract_strided_slice %171 {offsets = [0, 0], sizes = [16, 512], strides = [1, 1]} : vector<32x512xf32> to vector<16x512xf32>
    %173 = vector.extract_strided_slice %171 {offsets = [16, 0], sizes = [16, 512], strides = [1, 1]} : vector<32x512xf32> to vector<16x512xf32>
    %174 = arith.maximumf %172, %173 : vector<16x512xf32>
    %175 = arith.maximumf %166, %174 : vector<16x512xf32>
    %c192_65 = arith.constant 192 : index
    %c0_66 = arith.constant 0 : index
    %176 = vector.load %arg2[%c192_65, %c0_66] : memref<256x145xbf16, #tpu.memory_space<vmem>>, vector<64x145xbf16>
    %cst_67 = arith.constant dense<0.000000e+00> : vector<64x512xf32>
    %177 = tpu.matmul %176, %149, %cst_67 {dimension_numbers = #tpu.dot_dimension_numbers<[1], [0], [0], [1], [0, 0, 1, 1], [], []>} : vector<64x145xbf16>, vector<145x512xbf16>, vector<64x512xf32> -> vector<64x512xf32>
    %178 = vector.extract_strided_slice %177 {offsets = [0, 0], sizes = [32, 512], strides = [1, 1]} : vector<64x512xf32> to vector<32x512xf32>
    %179 = vector.extract_strided_slice %177 {offsets = [32, 0], sizes = [32, 512], strides = [1, 1]} : vector<64x512xf32> to vector<32x512xf32>
    %180 = arith.maximumf %178, %179 : vector<32x512xf32>
    %181 = vector.extract_strided_slice %180 {offsets = [0, 0], sizes = [16, 512], strides = [1, 1]} : vector<32x512xf32> to vector<16x512xf32>
    %182 = vector.extract_strided_slice %180 {offsets = [16, 0], sizes = [16, 512], strides = [1, 1]} : vector<32x512xf32> to vector<16x512xf32>
    %183 = arith.maximumf %181, %182 : vector<16x512xf32>
    %184 = arith.maximumf %175, %183 : vector<16x512xf32>
    %cst_68 = arith.constant 0.000000e+00 : f32
    %cst_69 = arith.constant 6.000000e+00 : f32
    %185 = vector.broadcast %cst_68 : f32 to vector<16x512xf32>
    %186 = arith.maximumf %185, %184 : vector<16x512xf32>
    %187 = vector.broadcast %cst_69 : f32 to vector<16x512xf32>
    %188 = arith.minimumf %187, %186 : vector<16x512xf32>
    %cst_70 = arith.constant dense<0.000000e+00> : vector<16xf32>
    %189 = vector.multi_reduction <add>, %188, %cst_70 [1] : vector<16x512xf32> to vector<16xf32>
    %190 = vector.shape_cast %189 : vector<16xf32> to vector<16x1xf32>
    %cst_71 = arith.constant 5.120000e+02 : f32
    %191 = vector.broadcast %cst_71 : f32 to vector<16x1xf32>
    %192 = arith.divf %190, %191 : vector<16x1xf32>
    %193 = vector.broadcast %192 : vector<16x1xf32> to vector<16x512xf32>
    %194 = arith.subf %188, %193 : vector<16x512xf32>
    %195 = arith.mulf %194, %194 : vector<16x512xf32>
    %cst_72 = arith.constant dense<0.000000e+00> : vector<16xf32>
    %196 = vector.multi_reduction <add>, %195, %cst_72 [1] : vector<16x512xf32> to vector<16xf32>
    %197 = vector.shape_cast %196 : vector<16xf32> to vector<16x1xf32>
    %cst_73 = arith.constant 5.120000e+02 : f32
    %198 = vector.broadcast %cst_73 : f32 to vector<16x1xf32>
    %199 = arith.divf %197, %198 : vector<16x1xf32>
    %cst_74 = arith.constant 9.99999974E-6 : f32
    %200 = vector.broadcast %cst_74 : f32 to vector<16x1xf32>
    %201 = arith.addf %199, %200 : vector<16x1xf32>
    %202 = math.rsqrt %201 : vector<16x1xf32>
    %203 = vector.broadcast %202 : vector<16x1xf32> to vector<16x512xf32>
    %204 = arith.mulf %194, %203 : vector<16x512xf32>
    %205 = vector.broadcast %0 : vector<1x512xf32> to vector<16x512xf32>
    %206 = arith.mulf %204, %205 : vector<16x512xf32>
    %207 = vector.broadcast %1 : vector<1x512xf32> to vector<16x512xf32>
    %208 = arith.addf %206, %207 : vector<16x512xf32>
    %cst_75 = arith.constant 5.000000e-01 : f32
    %209 = vector.broadcast %cst_75 : f32 to vector<16x512xf32>
    %210 = arith.mulf %209, %208 : vector<16x512xf32>
    %cst_76 = arith.constant 0.707106769 : f32
    %211 = vector.broadcast %cst_76 : f32 to vector<16x512xf32>
    %212 = arith.mulf %208, %211 : vector<16x512xf32>
    %213 = math.erf %212 : vector<16x512xf32>
    %cst_77 = arith.constant 1.000000e+00 : f32
    %214 = vector.broadcast %cst_77 : f32 to vector<16x512xf32>
    %215 = arith.addf %214, %213 : vector<16x512xf32>
    %216 = arith.mulf %210, %215 : vector<16x512xf32>
    %217 = math.tanh %216 : vector<16x512xf32>
    %c2_78 = arith.constant 2 : index
    %c0_79 = arith.constant 0 : index
    %c0_80 = arith.constant 0 : index
    %218 = vector.load %arg5[%c2_78, %c0_79, %c0_80] : memref<8x16x512xf32, #tpu.memory_space<vmem>>, vector<1x16x512xf32>
    %219 = vector.shape_cast %218 : vector<1x16x512xf32> to vector<16x512xf32>
    %220 = vector.shape_cast %217 : vector<16x512xf32> to vector<1x16x512xf32>
    tpu.vector_store %arg5[%c2_78, %c0_79, %c0_80], %220 {strides = array<i32>} : memref<8x16x512xf32, #tpu.memory_space<vmem>>, vector<1x16x512xf32>,
    %c3 = arith.constant 3 : index
    %c0_81 = arith.constant 0 : index
    %c0_82 = arith.constant 0 : index
    %221 = vector.load %arg1[%c3, %c0_81, %c0_82] : memref<8x145x512xbf16, #tpu.memory_space<vmem>>, vector<1x145x512xbf16>
    %222 = vector.shape_cast %221 : vector<1x145x512xbf16> to vector<145x512xbf16>
    %c0_83 = arith.constant 0 : index
    %c0_84 = arith.constant 0 : index
    %223 = vector.load %arg2[%c0_83, %c0_84] : memref<256x145xbf16, #tpu.memory_space<vmem>>, vector<64x145xbf16>
    %cst_85 = arith.constant dense<0.000000e+00> : vector<64x512xf32>
    %224 = tpu.matmul %223, %222, %cst_85 {dimension_numbers = #tpu.dot_dimension_numbers<[1], [0], [0], [1], [0, 0, 1, 1], [], []>} : vector<64x145xbf16>, vector<145x512xbf16>, vector<64x512xf32> -> vector<64x512xf32>
    %225 = vector.extract_strided_slice %224 {offsets = [0, 0], sizes = [32, 512], strides = [1, 1]} : vector<64x512xf32> to vector<32x512xf32>
    %226 = vector.extract_strided_slice %224 {offsets = [32, 0], sizes = [32, 512], strides = [1, 1]} : vector<64x512xf32> to vector<32x512xf32>
    %227 = arith.maximumf %225, %226 : vector<32x512xf32>
    %228 = vector.extract_strided_slice %227 {offsets = [0, 0], sizes = [16, 512], strides = [1, 1]} : vector<32x512xf32> to vector<16x512xf32>
    %229 = vector.extract_strided_slice %227 {offsets = [16, 0], sizes = [16, 512], strides = [1, 1]} : vector<32x512xf32> to vector<16x512xf32>
    %230 = arith.maximumf %228, %229 : vector<16x512xf32>
    %c64_86 = arith.constant 64 : index
    %c0_87 = arith.constant 0 : index
    %231 = vector.load %arg2[%c64_86, %c0_87] : memref<256x145xbf16, #tpu.memory_space<vmem>>, vector<64x145xbf16>
    %cst_88 = arith.constant dense<0.000000e+00> : vector<64x512xf32>
    %232 = tpu.matmul %231, %222, %cst_88 {dimension_numbers = #tpu.dot_dimension_numbers<[1], [0], [0], [1], [0, 0, 1, 1], [], []>} : vector<64x145xbf16>, vector<145x512xbf16>, vector<64x512xf32> -> vector<64x512xf32>
    %233 = vector.extract_strided_slice %232 {offsets = [0, 0], sizes = [32, 512], strides = [1, 1]} : vector<64x512xf32> to vector<32x512xf32>
    %234 = vector.extract_strided_slice %232 {offsets = [32, 0], sizes = [32, 512], strides = [1, 1]} : vector<64x512xf32> to vector<32x512xf32>
    %235 = arith.maximumf %233, %234 : vector<32x512xf32>
    %236 = vector.extract_strided_slice %235 {offsets = [0, 0], sizes = [16, 512], strides = [1, 1]} : vector<32x512xf32> to vector<16x512xf32>
    %237 = vector.extract_strided_slice %235 {offsets = [16, 0], sizes = [16, 512], strides = [1, 1]} : vector<32x512xf32> to vector<16x512xf32>
    %238 = arith.maximumf %236, %237 : vector<16x512xf32>
    %239 = arith.maximumf %230, %238 : vector<16x512xf32>
    %c128_89 = arith.constant 128 : index
    %c0_90 = arith.constant 0 : index
    %240 = vector.load %arg2[%c128_89, %c0_90] : memref<256x145xbf16, #tpu.memory_space<vmem>>, vector<64x145xbf16>
    %cst_91 = arith.constant dense<0.000000e+00> : vector<64x512xf32>
    %241 = tpu.matmul %240, %222, %cst_91 {dimension_numbers = #tpu.dot_dimension_numbers<[1], [0], [0], [1], [0, 0, 1, 1], [], []>} : vector<64x145xbf16>, vector<145x512xbf16>, vector<64x512xf32> -> vector<64x512xf32>
    %242 = vector.extract_strided_slice %241 {offsets = [0, 0], sizes = [32, 512], strides = [1, 1]} : vector<64x512xf32> to vector<32x512xf32>
    %243 = vector.extract_strided_slice %241 {offsets = [32, 0], sizes = [32, 512], strides = [1, 1]} : vector<64x512xf32> to vector<32x512xf32>
    %244 = arith.maximumf %242, %243 : vector<32x512xf32>
    %245 = vector.extract_strided_slice %244 {offsets = [0, 0], sizes = [16, 512], strides = [1, 1]} : vector<32x512xf32> to vector<16x512xf32>
    %246 = vector.extract_strided_slice %244 {offsets = [16, 0], sizes = [16, 512], strides = [1, 1]} : vector<32x512xf32> to vector<16x512xf32>
    %247 = arith.maximumf %245, %246 : vector<16x512xf32>
    %248 = arith.maximumf %239, %247 : vector<16x512xf32>
    %c192_92 = arith.constant 192 : index
    %c0_93 = arith.constant 0 : index
    %249 = vector.load %arg2[%c192_92, %c0_93] : memref<256x145xbf16, #tpu.memory_space<vmem>>, vector<64x145xbf16>
    %cst_94 = arith.constant dense<0.000000e+00> : vector<64x512xf32>
    %250 = tpu.matmul %249, %222, %cst_94 {dimension_numbers = #tpu.dot_dimension_numbers<[1], [0], [0], [1], [0, 0, 1, 1], [], []>} : vector<64x145xbf16>, vector<145x512xbf16>, vector<64x512xf32> -> vector<64x512xf32>
    %251 = vector.extract_strided_slice %250 {offsets = [0, 0], sizes = [32, 512], strides = [1, 1]} : vector<64x512xf32> to vector<32x512xf32>
    %252 = vector.extract_strided_slice %250 {offsets = [32, 0], sizes = [32, 512], strides = [1, 1]} : vector<64x512xf32> to vector<32x512xf32>
    %253 = arith.maximumf %251, %252 : vector<32x512xf32>
    %254 = vector.extract_strided_slice %253 {offsets = [0, 0], sizes = [16, 512], strides = [1, 1]} : vector<32x512xf32> to vector<16x512xf32>
    %255 = vector.extract_strided_slice %253 {offsets = [16, 0], sizes = [16, 512], strides = [1, 1]} : vector<32x512xf32> to vector<16x512xf32>
    %256 = arith.maximumf %254, %255 : vector<16x512xf32>
    %257 = arith.maximumf %248, %256 : vector<16x512xf32>
    %cst_95 = arith.constant 0.000000e+00 : f32
    %cst_96 = arith.constant 6.000000e+00 : f32
    %258 = vector.broadcast %cst_95 : f32 to vector<16x512xf32>
    %259 = arith.maximumf %258, %257 : vector<16x512xf32>
    %260 = vector.broadcast %cst_96 : f32 to vector<16x512xf32>
    %261 = arith.minimumf %260, %259 : vector<16x512xf32>
    %cst_97 = arith.constant dense<0.000000e+00> : vector<16xf32>
    %262 = vector.multi_reduction <add>, %261, %cst_97 [1] : vector<16x512xf32> to vector<16xf32>
    %263 = vector.shape_cast %262 : vector<16xf32> to vector<16x1xf32>
    %cst_98 = arith.constant 5.120000e+02 : f32
    %264 = vector.broadcast %cst_98 : f32 to vector<16x1xf32>
    %265 = arith.divf %263, %264 : vector<16x1xf32>
    %266 = vector.broadcast %265 : vector<16x1xf32> to vector<16x512xf32>
    %267 = arith.subf %261, %266 : vector<16x512xf32>
    %268 = arith.mulf %267, %267 : vector<16x512xf32>
    %cst_99 = arith.constant dense<0.000000e+00> : vector<16xf32>
    %269 = vector.multi_reduction <add>, %268, %cst_99 [1] : vector<16x512xf32> to vector<16xf32>
    %270 = vector.shape_cast %269 : vector<16xf32> to vector<16x1xf32>
    %cst_100 = arith.constant 5.120000e+02 : f32
    %271 = vector.broadcast %cst_100 : f32 to vector<16x1xf32>
    %272 = arith.divf %270, %271 : vector<16x1xf32>
    %cst_101 = arith.constant 9.99999974E-6 : f32
    %273 = vector.broadcast %cst_101 : f32 to vector<16x1xf32>
    %274 = arith.addf %272, %273 : vector<16x1xf32>
    %275 = math.rsqrt %274 : vector<16x1xf32>
    %276 = vector.broadcast %275 : vector<16x1xf32> to vector<16x512xf32>
    %277 = arith.mulf %267, %276 : vector<16x512xf32>
    %278 = vector.broadcast %0 : vector<1x512xf32> to vector<16x512xf32>
    %279 = arith.mulf %277, %278 : vector<16x512xf32>
    %280 = vector.broadcast %1 : vector<1x512xf32> to vector<16x512xf32>
    %281 = arith.addf %279, %280 : vector<16x512xf32>
    %cst_102 = arith.constant 5.000000e-01 : f32
    %282 = vector.broadcast %cst_102 : f32 to vector<16x512xf32>
    %283 = arith.mulf %282, %281 : vector<16x512xf32>
    %cst_103 = arith.constant 0.707106769 : f32
    %284 = vector.broadcast %cst_103 : f32 to vector<16x512xf32>
    %285 = arith.mulf %281, %284 : vector<16x512xf32>
    %286 = math.erf %285 : vector<16x512xf32>
    %cst_104 = arith.constant 1.000000e+00 : f32
    %287 = vector.broadcast %cst_104 : f32 to vector<16x512xf32>
    %288 = arith.addf %287, %286 : vector<16x512xf32>
    %289 = arith.mulf %283, %288 : vector<16x512xf32>
    %290 = math.tanh %289 : vector<16x512xf32>
    %c3_105 = arith.constant 3 : index
    %c0_106 = arith.constant 0 : index
    %c0_107 = arith.constant 0 : index
    %291 = vector.load %arg5[%c3_105, %c0_106, %c0_107] : memref<8x16x512xf32, #tpu.memory_space<vmem>>, vector<1x16x512xf32>
    %292 = vector.shape_cast %291 : vector<1x16x512xf32> to vector<16x512xf32>
    %293 = vector.shape_cast %290 : vector<16x512xf32> to vector<1x16x512xf32>
    tpu.vector_store %arg5[%c3_105, %c0_106, %c0_107], %293 {strides = array<i32>} : memref<8x16x512xf32, #tpu.memory_space<vmem>>, vector<1x16x512xf32>,
    %c4 = arith.constant 4 : index
    %c0_108 = arith.constant 0 : index
    %c0_109 = arith.constant 0 : index
    %294 = vector.load %arg1[%c4, %c0_108, %c0_109] : memref<8x145x512xbf16, #tpu.memory_space<vmem>>, vector<1x145x512xbf16>
    %295 = vector.shape_cast %294 : vector<1x145x512xbf16> to vector<145x512xbf16>
    %c0_110 = arith.constant 0 : index
    %c0_111 = arith.constant 0 : index
    %296 = vector.load %arg2[%c0_110, %c0_111] : memref<256x145xbf16, #tpu.memory_space<vmem>>, vector<64x145xbf16>
    %cst_112 = arith.constant dense<0.000000e+00> : vector<64x512xf32>
    %297 = tpu.matmul %296, %295, %cst_112 {dimension_numbers = #tpu.dot_dimension_numbers<[1], [0], [0], [1], [0, 0, 1, 1], [], []>} : vector<64x145xbf16>, vector<145x512xbf16>, vector<64x512xf32> -> vector<64x512xf32>
    %298 = vector.extract_strided_slice %297 {offsets = [0, 0], sizes = [32, 512], strides = [1, 1]} : vector<64x512xf32> to vector<32x512xf32>
    %299 = vector.extract_strided_slice %297 {offsets = [32, 0], sizes = [32, 512], strides = [1, 1]} : vector<64x512xf32> to vector<32x512xf32>
    %300 = arith.maximumf %298, %299 : vector<32x512xf32>
    %301 = vector.extract_strided_slice %300 {offsets = [0, 0], sizes = [16, 512], strides = [1, 1]} : vector<32x512xf32> to vector<16x512xf32>
    %302 = vector.extract_strided_slice %300 {offsets = [16, 0], sizes = [16, 512], strides = [1, 1]} : vector<32x512xf32> to vector<16x512xf32>
    %303 = arith.maximumf %301, %302 : vector<16x512xf32>
    %c64_113 = arith.constant 64 : index
    %c0_114 = arith.constant 0 : index
    %304 = vector.load %arg2[%c64_113, %c0_114] : memref<256x145xbf16, #tpu.memory_space<vmem>>, vector<64x145xbf16>
    %cst_115 = arith.constant dense<0.000000e+00> : vector<64x512xf32>
    %305 = tpu.matmul %304, %295, %cst_115 {dimension_numbers = #tpu.dot_dimension_numbers<[1], [0], [0], [1], [0, 0, 1, 1], [], []>} : vector<64x145xbf16>, vector<145x512xbf16>, vector<64x512xf32> -> vector<64x512xf32>
    %306 = vector.extract_strided_slice %305 {offsets = [0, 0], sizes = [32, 512], strides = [1, 1]} : vector<64x512xf32> to vector<32x512xf32>
    %307 = vector.extract_strided_slice %305 {offsets = [32, 0], sizes = [32, 512], strides = [1, 1]} : vector<64x512xf32> to vector<32x512xf32>
    %308 = arith.maximumf %306, %307 : vector<32x512xf32>
    %309 = vector.extract_strided_slice %308 {offsets = [0, 0], sizes = [16, 512], strides = [1, 1]} : vector<32x512xf32> to vector<16x512xf32>
    %310 = vector.extract_strided_slice %308 {offsets = [16, 0], sizes = [16, 512], strides = [1, 1]} : vector<32x512xf32> to vector<16x512xf32>
    %311 = arith.maximumf %309, %310 : vector<16x512xf32>
    %312 = arith.maximumf %303, %311 : vector<16x512xf32>
    %c128_116 = arith.constant 128 : index
    %c0_117 = arith.constant 0 : index
    %313 = vector.load %arg2[%c128_116, %c0_117] : memref<256x145xbf16, #tpu.memory_space<vmem>>, vector<64x145xbf16>
    %cst_118 = arith.constant dense<0.000000e+00> : vector<64x512xf32>
    %314 = tpu.matmul %313, %295, %cst_118 {dimension_numbers = #tpu.dot_dimension_numbers<[1], [0], [0], [1], [0, 0, 1, 1], [], []>} : vector<64x145xbf16>, vector<145x512xbf16>, vector<64x512xf32> -> vector<64x512xf32>
    %315 = vector.extract_strided_slice %314 {offsets = [0, 0], sizes = [32, 512], strides = [1, 1]} : vector<64x512xf32> to vector<32x512xf32>
    %316 = vector.extract_strided_slice %314 {offsets = [32, 0], sizes = [32, 512], strides = [1, 1]} : vector<64x512xf32> to vector<32x512xf32>
    %317 = arith.maximumf %315, %316 : vector<32x512xf32>
    %318 = vector.extract_strided_slice %317 {offsets = [0, 0], sizes = [16, 512], strides = [1, 1]} : vector<32x512xf32> to vector<16x512xf32>
    %319 = vector.extract_strided_slice %317 {offsets = [16, 0], sizes = [16, 512], strides = [1, 1]} : vector<32x512xf32> to vector<16x512xf32>
    %320 = arith.maximumf %318, %319 : vector<16x512xf32>
    %321 = arith.maximumf %312, %320 : vector<16x512xf32>
    %c192_119 = arith.constant 192 : index
    %c0_120 = arith.constant 0 : index
    %322 = vector.load %arg2[%c192_119, %c0_120] : memref<256x145xbf16, #tpu.memory_space<vmem>>, vector<64x145xbf16>
    %cst_121 = arith.constant dense<0.000000e+00> : vector<64x512xf32>
    %323 = tpu.matmul %322, %295, %cst_121 {dimension_numbers = #tpu.dot_dimension_numbers<[1], [0], [0], [1], [0, 0, 1, 1], [], []>} : vector<64x145xbf16>, vector<145x512xbf16>, vector<64x512xf32> -> vector<64x512xf32>
    %324 = vector.extract_strided_slice %323 {offsets = [0, 0], sizes = [32, 512], strides = [1, 1]} : vector<64x512xf32> to vector<32x512xf32>
    %325 = vector.extract_strided_slice %323 {offsets = [32, 0], sizes = [32, 512], strides = [1, 1]} : vector<64x512xf32> to vector<32x512xf32>
    %326 = arith.maximumf %324, %325 : vector<32x512xf32>
    %327 = vector.extract_strided_slice %326 {offsets = [0, 0], sizes = [16, 512], strides = [1, 1]} : vector<32x512xf32> to vector<16x512xf32>
    %328 = vector.extract_strided_slice %326 {offsets = [16, 0], sizes = [16, 512], strides = [1, 1]} : vector<32x512xf32> to vector<16x512xf32>
    %329 = arith.maximumf %327, %328 : vector<16x512xf32>
    %330 = arith.maximumf %321, %329 : vector<16x512xf32>
    %cst_122 = arith.constant 0.000000e+00 : f32
    %cst_123 = arith.constant 6.000000e+00 : f32
    %331 = vector.broadcast %cst_122 : f32 to vector<16x512xf32>
    %332 = arith.maximumf %331, %330 : vector<16x512xf32>
    %333 = vector.broadcast %cst_123 : f32 to vector<16x512xf32>
    %334 = arith.minimumf %333, %332 : vector<16x512xf32>
    %cst_124 = arith.constant dense<0.000000e+00> : vector<16xf32>
    %335 = vector.multi_reduction <add>, %334, %cst_124 [1] : vector<16x512xf32> to vector<16xf32>
    %336 = vector.shape_cast %335 : vector<16xf32> to vector<16x1xf32>
    %cst_125 = arith.constant 5.120000e+02 : f32
    %337 = vector.broadcast %cst_125 : f32 to vector<16x1xf32>
    %338 = arith.divf %336, %337 : vector<16x1xf32>
    %339 = vector.broadcast %338 : vector<16x1xf32> to vector<16x512xf32>
    %340 = arith.subf %334, %339 : vector<16x512xf32>
    %341 = arith.mulf %340, %340 : vector<16x512xf32>
    %cst_126 = arith.constant dense<0.000000e+00> : vector<16xf32>
    %342 = vector.multi_reduction <add>, %341, %cst_126 [1] : vector<16x512xf32> to vector<16xf32>
    %343 = vector.shape_cast %342 : vector<16xf32> to vector<16x1xf32>
    %cst_127 = arith.constant 5.120000e+02 : f32
    %344 = vector.broadcast %cst_127 : f32 to vector<16x1xf32>
    %345 = arith.divf %343, %344 : vector<16x1xf32>
    %cst_128 = arith.constant 9.99999974E-6 : f32
    %346 = vector.broadcast %cst_128 : f32 to vector<16x1xf32>
    %347 = arith.addf %345, %346 : vector<16x1xf32>
    %348 = math.rsqrt %347 : vector<16x1xf32>
    %349 = vector.broadcast %348 : vector<16x1xf32> to vector<16x512xf32>
    %350 = arith.mulf %340, %349 : vector<16x512xf32>
    %351 = vector.broadcast %0 : vector<1x512xf32> to vector<16x512xf32>
    %352 = arith.mulf %350, %351 : vector<16x512xf32>
    %353 = vector.broadcast %1 : vector<1x512xf32> to vector<16x512xf32>
    %354 = arith.addf %352, %353 : vector<16x512xf32>
    %cst_129 = arith.constant 5.000000e-01 : f32
    %355 = vector.broadcast %cst_129 : f32 to vector<16x512xf32>
    %356 = arith.mulf %355, %354 : vector<16x512xf32>
    %cst_130 = arith.constant 0.707106769 : f32
    %357 = vector.broadcast %cst_130 : f32 to vector<16x512xf32>
    %358 = arith.mulf %354, %357 : vector<16x512xf32>
    %359 = math.erf %358 : vector<16x512xf32>
    %cst_131 = arith.constant 1.000000e+00 : f32
    %360 = vector.broadcast %cst_131 : f32 to vector<16x512xf32>
    %361 = arith.addf %360, %359 : vector<16x512xf32>
    %362 = arith.mulf %356, %361 : vector<16x512xf32>
    %363 = math.tanh %362 : vector<16x512xf32>
    %c4_132 = arith.constant 4 : index
    %c0_133 = arith.constant 0 : index
    %c0_134 = arith.constant 0 : index
    %364 = vector.load %arg5[%c4_132, %c0_133, %c0_134] : memref<8x16x512xf32, #tpu.memory_space<vmem>>, vector<1x16x512xf32>
    %365 = vector.shape_cast %364 : vector<1x16x512xf32> to vector<16x512xf32>
    %366 = vector.shape_cast %363 : vector<16x512xf32> to vector<1x16x512xf32>
    tpu.vector_store %arg5[%c4_132, %c0_133, %c0_134], %366 {strides = array<i32>} : memref<8x16x512xf32, #tpu.memory_space<vmem>>, vector<1x16x512xf32>,
    %c5 = arith.constant 5 : index
    %c0_135 = arith.constant 0 : index
    %c0_136 = arith.constant 0 : index
    %367 = vector.load %arg1[%c5, %c0_135, %c0_136] : memref<8x145x512xbf16, #tpu.memory_space<vmem>>, vector<1x145x512xbf16>
    %368 = vector.shape_cast %367 : vector<1x145x512xbf16> to vector<145x512xbf16>
    %c0_137 = arith.constant 0 : index
    %c0_138 = arith.constant 0 : index
    %369 = vector.load %arg2[%c0_137, %c0_138] : memref<256x145xbf16, #tpu.memory_space<vmem>>, vector<64x145xbf16>
    %cst_139 = arith.constant dense<0.000000e+00> : vector<64x512xf32>
    %370 = tpu.matmul %369, %368, %cst_139 {dimension_numbers = #tpu.dot_dimension_numbers<[1], [0], [0], [1], [0, 0, 1, 1], [], []>} : vector<64x145xbf16>, vector<145x512xbf16>, vector<64x512xf32> -> vector<64x512xf32>
    %371 = vector.extract_strided_slice %370 {offsets = [0, 0], sizes = [32, 512], strides = [1, 1]} : vector<64x512xf32> to vector<32x512xf32>
    %372 = vector.extract_strided_slice %370 {offsets = [32, 0], sizes = [32, 512], strides = [1, 1]} : vector<64x512xf32> to vector<32x512xf32>
    %373 = arith.maximumf %371, %372 : vector<32x512xf32>
    %374 = vector.extract_strided_slice %373 {offsets = [0, 0], sizes = [16, 512], strides = [1, 1]} : vector<32x512xf32> to vector<16x512xf32>
    %375 = vector.extract_strided_slice %373 {offsets = [16, 0], sizes = [16, 512], strides = [1, 1]} : vector<32x512xf32> to vector<16x512xf32>
    %376 = arith.maximumf %374, %375 : vector<16x512xf32>
    %c64_140 = arith.constant 64 : index
    %c0_141 = arith.constant 0 : index
    %377 = vector.load %arg2[%c64_140, %c0_141] : memref<256x145xbf16, #tpu.memory_space<vmem>>, vector<64x145xbf16>
    %cst_142 = arith.constant dense<0.000000e+00> : vector<64x512xf32>
    %378 = tpu.matmul %377, %368, %cst_142 {dimension_numbers = #tpu.dot_dimension_numbers<[1], [0], [0], [1], [0, 0, 1, 1], [], []>} : vector<64x145xbf16>, vector<145x512xbf16>, vector<64x512xf32> -> vector<64x512xf32>
    %379 = vector.extract_strided_slice %378 {offsets = [0, 0], sizes = [32, 512], strides = [1, 1]} : vector<64x512xf32> to vector<32x512xf32>
    %380 = vector.extract_strided_slice %378 {offsets = [32, 0], sizes = [32, 512], strides = [1, 1]} : vector<64x512xf32> to vector<32x512xf32>
    %381 = arith.maximumf %379, %380 : vector<32x512xf32>
    %382 = vector.extract_strided_slice %381 {offsets = [0, 0], sizes = [16, 512], strides = [1, 1]} : vector<32x512xf32> to vector<16x512xf32>
    %383 = vector.extract_strided_slice %381 {offsets = [16, 0], sizes = [16, 512], strides = [1, 1]} : vector<32x512xf32> to vector<16x512xf32>
    %384 = arith.maximumf %382, %383 : vector<16x512xf32>
    %385 = arith.maximumf %376, %384 : vector<16x512xf32>
    %c128_143 = arith.constant 128 : index
    %c0_144 = arith.constant 0 : index
    %386 = vector.load %arg2[%c128_143, %c0_144] : memref<256x145xbf16, #tpu.memory_space<vmem>>, vector<64x145xbf16>
    %cst_145 = arith.constant dense<0.000000e+00> : vector<64x512xf32>
    %387 = tpu.matmul %386, %368, %cst_145 {dimension_numbers = #tpu.dot_dimension_numbers<[1], [0], [0], [1], [0, 0, 1, 1], [], []>} : vector<64x145xbf16>, vector<145x512xbf16>, vector<64x512xf32> -> vector<64x512xf32>
    %388 = vector.extract_strided_slice %387 {offsets = [0, 0], sizes = [32, 512], strides = [1, 1]} : vector<64x512xf32> to vector<32x512xf32>
    %389 = vector.extract_strided_slice %387 {offsets = [32, 0], sizes = [32, 512], strides = [1, 1]} : vector<64x512xf32> to vector<32x512xf32>
    %390 = arith.maximumf %388, %389 : vector<32x512xf32>
    %391 = vector.extract_strided_slice %390 {offsets = [0, 0], sizes = [16, 512], strides = [1, 1]} : vector<32x512xf32> to vector<16x512xf32>
    %392 = vector.extract_strided_slice %390 {offsets = [16, 0], sizes = [16, 512], strides = [1, 1]} : vector<32x512xf32> to vector<16x512xf32>
    %393 = arith.maximumf %391, %392 : vector<16x512xf32>
    %394 = arith.maximumf %385, %393 : vector<16x512xf32>
    %c192_146 = arith.constant 192 : index
    %c0_147 = arith.constant 0 : index
    %395 = vector.load %arg2[%c192_146, %c0_147] : memref<256x145xbf16, #tpu.memory_space<vmem>>, vector<64x145xbf16>
    %cst_148 = arith.constant dense<0.000000e+00> : vector<64x512xf32>
    %396 = tpu.matmul %395, %368, %cst_148 {dimension_numbers = #tpu.dot_dimension_numbers<[1], [0], [0], [1], [0, 0, 1, 1], [], []>} : vector<64x145xbf16>, vector<145x512xbf16>, vector<64x512xf32> -> vector<64x512xf32>
    %397 = vector.extract_strided_slice %396 {offsets = [0, 0], sizes = [32, 512], strides = [1, 1]} : vector<64x512xf32> to vector<32x512xf32>
    %398 = vector.extract_strided_slice %396 {offsets = [32, 0], sizes = [32, 512], strides = [1, 1]} : vector<64x512xf32> to vector<32x512xf32>
    %399 = arith.maximumf %397, %398 : vector<32x512xf32>
    %400 = vector.extract_strided_slice %399 {offsets = [0, 0], sizes = [16, 512], strides = [1, 1]} : vector<32x512xf32> to vector<16x512xf32>
    %401 = vector.extract_strided_slice %399 {offsets = [16, 0], sizes = [16, 512], strides = [1, 1]} : vector<32x512xf32> to vector<16x512xf32>
    %402 = arith.maximumf %400, %401 : vector<16x512xf32>
    %403 = arith.maximumf %394, %402 : vector<16x512xf32>
    %cst_149 = arith.constant 0.000000e+00 : f32
    %cst_150 = arith.constant 6.000000e+00 : f32
    %404 = vector.broadcast %cst_149 : f32 to vector<16x512xf32>
    %405 = arith.maximumf %404, %403 : vector<16x512xf32>
    %406 = vector.broadcast %cst_150 : f32 to vector<16x512xf32>
    %407 = arith.minimumf %406, %405 : vector<16x512xf32>
    %cst_151 = arith.constant dense<0.000000e+00> : vector<16xf32>
    %408 = vector.multi_reduction <add>, %407, %cst_151 [1] : vector<16x512xf32> to vector<16xf32>
    %409 = vector.shape_cast %408 : vector<16xf32> to vector<16x1xf32>
    %cst_152 = arith.constant 5.120000e+02 : f32
    %410 = vector.broadcast %cst_152 : f32 to vector<16x1xf32>
    %411 = arith.divf %409, %410 : vector<16x1xf32>
    %412 = vector.broadcast %411 : vector<16x1xf32> to vector<16x512xf32>
    %413 = arith.subf %407, %412 : vector<16x512xf32>
    %414 = arith.mulf %413, %413 : vector<16x512xf32>
    %cst_153 = arith.constant dense<0.000000e+00> : vector<16xf32>
    %415 = vector.multi_reduction <add>, %414, %cst_153 [1] : vector<16x512xf32> to vector<16xf32>
    %416 = vector.shape_cast %415 : vector<16xf32> to vector<16x1xf32>
    %cst_154 = arith.constant 5.120000e+02 : f32
    %417 = vector.broadcast %cst_154 : f32 to vector<16x1xf32>
    %418 = arith.divf %416, %417 : vector<16x1xf32>
    %cst_155 = arith.constant 9.99999974E-6 : f32
    %419 = vector.broadcast %cst_155 : f32 to vector<16x1xf32>
    %420 = arith.addf %418, %419 : vector<16x1xf32>
    %421 = math.rsqrt %420 : vector<16x1xf32>
    %422 = vector.broadcast %421 : vector<16x1xf32> to vector<16x512xf32>
    %423 = arith.mulf %413, %422 : vector<16x512xf32>
    %424 = vector.broadcast %0 : vector<1x512xf32> to vector<16x512xf32>
    %425 = arith.mulf %423, %424 : vector<16x512xf32>
    %426 = vector.broadcast %1 : vector<1x512xf32> to vector<16x512xf32>
    %427 = arith.addf %425, %426 : vector<16x512xf32>
    %cst_156 = arith.constant 5.000000e-01 : f32
    %428 = vector.broadcast %cst_156 : f32 to vector<16x512xf32>
    %429 = arith.mulf %428, %427 : vector<16x512xf32>
    %cst_157 = arith.constant 0.707106769 : f32
    %430 = vector.broadcast %cst_157 : f32 to vector<16x512xf32>
    %431 = arith.mulf %427, %430 : vector<16x512xf32>
    %432 = math.erf %431 : vector<16x512xf32>
    %cst_158 = arith.constant 1.000000e+00 : f32
    %433 = vector.broadcast %cst_158 : f32 to vector<16x512xf32>
    %434 = arith.addf %433, %432 : vector<16x512xf32>
    %435 = arith.mulf %429, %434 : vector<16x512xf32>
    %436 = math.tanh %435 : vector<16x512xf32>
    %c5_159 = arith.constant 5 : index
    %c0_160 = arith.constant 0 : index
    %c0_161 = arith.constant 0 : index
    %437 = vector.load %arg5[%c5_159, %c0_160, %c0_161] : memref<8x16x512xf32, #tpu.memory_space<vmem>>, vector<1x16x512xf32>
    %438 = vector.shape_cast %437 : vector<1x16x512xf32> to vector<16x512xf32>
    %439 = vector.shape_cast %436 : vector<16x512xf32> to vector<1x16x512xf32>
    tpu.vector_store %arg5[%c5_159, %c0_160, %c0_161], %439 {strides = array<i32>} : memref<8x16x512xf32, #tpu.memory_space<vmem>>, vector<1x16x512xf32>,
    %c6 = arith.constant 6 : index
    %c0_162 = arith.constant 0 : index
    %c0_163 = arith.constant 0 : index
    %440 = vector.load %arg1[%c6, %c0_162, %c0_163] : memref<8x145x512xbf16, #tpu.memory_space<vmem>>, vector<1x145x512xbf16>
    %441 = vector.shape_cast %440 : vector<1x145x512xbf16> to vector<145x512xbf16>
    %c0_164 = arith.constant 0 : index
    %c0_165 = arith.constant 0 : index
    %442 = vector.load %arg2[%c0_164, %c0_165] : memref<256x145xbf16, #tpu.memory_space<vmem>>, vector<64x145xbf16>
    %cst_166 = arith.constant dense<0.000000e+00> : vector<64x512xf32>
    %443 = tpu.matmul %442, %441, %cst_166 {dimension_numbers = #tpu.dot_dimension_numbers<[1], [0], [0], [1], [0, 0, 1, 1], [], []>} : vector<64x145xbf16>, vector<145x512xbf16>, vector<64x512xf32> -> vector<64x512xf32>
    %444 = vector.extract_strided_slice %443 {offsets = [0, 0], sizes = [32, 512], strides = [1, 1]} : vector<64x512xf32> to vector<32x512xf32>
    %445 = vector.extract_strided_slice %443 {offsets = [32, 0], sizes = [32, 512], strides = [1, 1]} : vector<64x512xf32> to vector<32x512xf32>
    %446 = arith.maximumf %444, %445 : vector<32x512xf32>
    %447 = vector.extract_strided_slice %446 {offsets = [0, 0], sizes = [16, 512], strides = [1, 1]} : vector<32x512xf32> to vector<16x512xf32>
    %448 = vector.extract_strided_slice %446 {offsets = [16, 0], sizes = [16, 512], strides = [1, 1]} : vector<32x512xf32> to vector<16x512xf32>
    %449 = arith.maximumf %447, %448 : vector<16x512xf32>
    %c64_167 = arith.constant 64 : index
    %c0_168 = arith.constant 0 : index
    %450 = vector.load %arg2[%c64_167, %c0_168] : memref<256x145xbf16, #tpu.memory_space<vmem>>, vector<64x145xbf16>
    %cst_169 = arith.constant dense<0.000000e+00> : vector<64x512xf32>
    %451 = tpu.matmul %450, %441, %cst_169 {dimension_numbers = #tpu.dot_dimension_numbers<[1], [0], [0], [1], [0, 0, 1, 1], [], []>} : vector<64x145xbf16>, vector<145x512xbf16>, vector<64x512xf32> -> vector<64x512xf32>
    %452 = vector.extract_strided_slice %451 {offsets = [0, 0], sizes = [32, 512], strides = [1, 1]} : vector<64x512xf32> to vector<32x512xf32>
    %453 = vector.extract_strided_slice %451 {offsets = [32, 0], sizes = [32, 512], strides = [1, 1]} : vector<64x512xf32> to vector<32x512xf32>
    %454 = arith.maximumf %452, %453 : vector<32x512xf32>
    %455 = vector.extract_strided_slice %454 {offsets = [0, 0], sizes = [16, 512], strides = [1, 1]} : vector<32x512xf32> to vector<16x512xf32>
    %456 = vector.extract_strided_slice %454 {offsets = [16, 0], sizes = [16, 512], strides = [1, 1]} : vector<32x512xf32> to vector<16x512xf32>
    %457 = arith.maximumf %455, %456 : vector<16x512xf32>
    %458 = arith.maximumf %449, %457 : vector<16x512xf32>
    %c128_170 = arith.constant 128 : index
    %c0_171 = arith.constant 0 : index
    %459 = vector.load %arg2[%c128_170, %c0_171] : memref<256x145xbf16, #tpu.memory_space<vmem>>, vector<64x145xbf16>
    %cst_172 = arith.constant dense<0.000000e+00> : vector<64x512xf32>
    %460 = tpu.matmul %459, %441, %cst_172 {dimension_numbers = #tpu.dot_dimension_numbers<[1], [0], [0], [1], [0, 0, 1, 1], [], []>} : vector<64x145xbf16>, vector<145x512xbf16>, vector<64x512xf32> -> vector<64x512xf32>
    %461 = vector.extract_strided_slice %460 {offsets = [0, 0], sizes = [32, 512], strides = [1, 1]} : vector<64x512xf32> to vector<32x512xf32>
    %462 = vector.extract_strided_slice %460 {offsets = [32, 0], sizes = [32, 512], strides = [1, 1]} : vector<64x512xf32> to vector<32x512xf32>
    %463 = arith.maximumf %461, %462 : vector<32x512xf32>
    %464 = vector.extract_strided_slice %463 {offsets = [0, 0], sizes = [16, 512], strides = [1, 1]} : vector<32x512xf32> to vector<16x512xf32>
    %465 = vector.extract_strided_slice %463 {offsets = [16, 0], sizes = [16, 512], strides = [1, 1]} : vector<32x512xf32> to vector<16x512xf32>
    %466 = arith.maximumf %464, %465 : vector<16x512xf32>
    %467 = arith.maximumf %458, %466 : vector<16x512xf32>
    %c192_173 = arith.constant 192 : index
    %c0_174 = arith.constant 0 : index
    %468 = vector.load %arg2[%c192_173, %c0_174] : memref<256x145xbf16, #tpu.memory_space<vmem>>, vector<64x145xbf16>
    %cst_175 = arith.constant dense<0.000000e+00> : vector<64x512xf32>
    %469 = tpu.matmul %468, %441, %cst_175 {dimension_numbers = #tpu.dot_dimension_numbers<[1], [0], [0], [1], [0, 0, 1, 1], [], []>} : vector<64x145xbf16>, vector<145x512xbf16>, vector<64x512xf32> -> vector<64x512xf32>
    %470 = vector.extract_strided_slice %469 {offsets = [0, 0], sizes = [32, 512], strides = [1, 1]} : vector<64x512xf32> to vector<32x512xf32>
    %471 = vector.extract_strided_slice %469 {offsets = [32, 0], sizes = [32, 512], strides = [1, 1]} : vector<64x512xf32> to vector<32x512xf32>
    %472 = arith.maximumf %470, %471 : vector<32x512xf32>
    %473 = vector.extract_strided_slice %472 {offsets = [0, 0], sizes = [16, 512], strides = [1, 1]} : vector<32x512xf32> to vector<16x512xf32>
    %474 = vector.extract_strided_slice %472 {offsets = [16, 0], sizes = [16, 512], strides = [1, 1]} : vector<32x512xf32> to vector<16x512xf32>
    %475 = arith.maximumf %473, %474 : vector<16x512xf32>
    %476 = arith.maximumf %467, %475 : vector<16x512xf32>
    %cst_176 = arith.constant 0.000000e+00 : f32
    %cst_177 = arith.constant 6.000000e+00 : f32
    %477 = vector.broadcast %cst_176 : f32 to vector<16x512xf32>
    %478 = arith.maximumf %477, %476 : vector<16x512xf32>
    %479 = vector.broadcast %cst_177 : f32 to vector<16x512xf32>
    %480 = arith.minimumf %479, %478 : vector<16x512xf32>
    %cst_178 = arith.constant dense<0.000000e+00> : vector<16xf32>
    %481 = vector.multi_reduction <add>, %480, %cst_178 [1] : vector<16x512xf32> to vector<16xf32>
    %482 = vector.shape_cast %481 : vector<16xf32> to vector<16x1xf32>
    %cst_179 = arith.constant 5.120000e+02 : f32
    %483 = vector.broadcast %cst_179 : f32 to vector<16x1xf32>
    %484 = arith.divf %482, %483 : vector<16x1xf32>
    %485 = vector.broadcast %484 : vector<16x1xf32> to vector<16x512xf32>
    %486 = arith.subf %480, %485 : vector<16x512xf32>
    %487 = arith.mulf %486, %486 : vector<16x512xf32>
    %cst_180 = arith.constant dense<0.000000e+00> : vector<16xf32>
    %488 = vector.multi_reduction <add>, %487, %cst_180 [1] : vector<16x512xf32> to vector<16xf32>
    %489 = vector.shape_cast %488 : vector<16xf32> to vector<16x1xf32>
    %cst_181 = arith.constant 5.120000e+02 : f32
    %490 = vector.broadcast %cst_181 : f32 to vector<16x1xf32>
    %491 = arith.divf %489, %490 : vector<16x1xf32>
    %cst_182 = arith.constant 9.99999974E-6 : f32
    %492 = vector.broadcast %cst_182 : f32 to vector<16x1xf32>
    %493 = arith.addf %491, %492 : vector<16x1xf32>
    %494 = math.rsqrt %493 : vector<16x1xf32>
    %495 = vector.broadcast %494 : vector<16x1xf32> to vector<16x512xf32>
    %496 = arith.mulf %486, %495 : vector<16x512xf32>
    %497 = vector.broadcast %0 : vector<1x512xf32> to vector<16x512xf32>
    %498 = arith.mulf %496, %497 : vector<16x512xf32>
    %499 = vector.broadcast %1 : vector<1x512xf32> to vector<16x512xf32>
    %500 = arith.addf %498, %499 : vector<16x512xf32>
    %cst_183 = arith.constant 5.000000e-01 : f32
    %501 = vector.broadcast %cst_183 : f32 to vector<16x512xf32>
    %502 = arith.mulf %501, %500 : vector<16x512xf32>
    %cst_184 = arith.constant 0.707106769 : f32
    %503 = vector.broadcast %cst_184 : f32 to vector<16x512xf32>
    %504 = arith.mulf %500, %503 : vector<16x512xf32>
    %505 = math.erf %504 : vector<16x512xf32>
    %cst_185 = arith.constant 1.000000e+00 : f32
    %506 = vector.broadcast %cst_185 : f32 to vector<16x512xf32>
    %507 = arith.addf %506, %505 : vector<16x512xf32>
    %508 = arith.mulf %502, %507 : vector<16x512xf32>
    %509 = math.tanh %508 : vector<16x512xf32>
    %c6_186 = arith.constant 6 : index
    %c0_187 = arith.constant 0 : index
    %c0_188 = arith.constant 0 : index
    %510 = vector.load %arg5[%c6_186, %c0_187, %c0_188] : memref<8x16x512xf32, #tpu.memory_space<vmem>>, vector<1x16x512xf32>
    %511 = vector.shape_cast %510 : vector<1x16x512xf32> to vector<16x512xf32>
    %512 = vector.shape_cast %509 : vector<16x512xf32> to vector<1x16x512xf32>
    tpu.vector_store %arg5[%c6_186, %c0_187, %c0_188], %512 {strides = array<i32>} : memref<8x16x512xf32, #tpu.memory_space<vmem>>, vector<1x16x512xf32>,
    %c7 = arith.constant 7 : index
    %c0_189 = arith.constant 0 : index
    %c0_190 = arith.constant 0 : index
    %513 = vector.load %arg1[%c7, %c0_189, %c0_190] : memref<8x145x512xbf16, #tpu.memory_space<vmem>>, vector<1x145x512xbf16>
    %514 = vector.shape_cast %513 : vector<1x145x512xbf16> to vector<145x512xbf16>
    %c0_191 = arith.constant 0 : index
    %c0_192 = arith.constant 0 : index
    %515 = vector.load %arg2[%c0_191, %c0_192] : memref<256x145xbf16, #tpu.memory_space<vmem>>, vector<64x145xbf16>
    %cst_193 = arith.constant dense<0.000000e+00> : vector<64x512xf32>
    %516 = tpu.matmul %515, %514, %cst_193 {dimension_numbers = #tpu.dot_dimension_numbers<[1], [0], [0], [1], [0, 0, 1, 1], [], []>} : vector<64x145xbf16>, vector<145x512xbf16>, vector<64x512xf32> -> vector<64x512xf32>
    %517 = vector.extract_strided_slice %516 {offsets = [0, 0], sizes = [32, 512], strides = [1, 1]} : vector<64x512xf32> to vector<32x512xf32>
    %518 = vector.extract_strided_slice %516 {offsets = [32, 0], sizes = [32, 512], strides = [1, 1]} : vector<64x512xf32> to vector<32x512xf32>
    %519 = arith.maximumf %517, %518 : vector<32x512xf32>
    %520 = vector.extract_strided_slice %519 {offsets = [0, 0], sizes = [16, 512], strides = [1, 1]} : vector<32x512xf32> to vector<16x512xf32>
    %521 = vector.extract_strided_slice %519 {offsets = [16, 0], sizes = [16, 512], strides = [1, 1]} : vector<32x512xf32> to vector<16x512xf32>
    %522 = arith.maximumf %520, %521 : vector<16x512xf32>
    %c64_194 = arith.constant 64 : index
    %c0_195 = arith.constant 0 : index
    %523 = vector.load %arg2[%c64_194, %c0_195] : memref<256x145xbf16, #tpu.memory_space<vmem>>, vector<64x145xbf16>
    %cst_196 = arith.constant dense<0.000000e+00> : vector<64x512xf32>
    %524 = tpu.matmul %523, %514, %cst_196 {dimension_numbers = #tpu.dot_dimension_numbers<[1], [0], [0], [1], [0, 0, 1, 1], [], []>} : vector<64x145xbf16>, vector<145x512xbf16>, vector<64x512xf32> -> vector<64x512xf32>
    %525 = vector.extract_strided_slice %524 {offsets = [0, 0], sizes = [32, 512], strides = [1, 1]} : vector<64x512xf32> to vector<32x512xf32>
    %526 = vector.extract_strided_slice %524 {offsets = [32, 0], sizes = [32, 512], strides = [1, 1]} : vector<64x512xf32> to vector<32x512xf32>
    %527 = arith.maximumf %525, %526 : vector<32x512xf32>
    %528 = vector.extract_strided_slice %527 {offsets = [0, 0], sizes = [16, 512], strides = [1, 1]} : vector<32x512xf32> to vector<16x512xf32>
    %529 = vector.extract_strided_slice %527 {offsets = [16, 0], sizes = [16, 512], strides = [1, 1]} : vector<32x512xf32> to vector<16x512xf32>
    %530 = arith.maximumf %528, %529 : vector<16x512xf32>
    %531 = arith.maximumf %522, %530 : vector<16x512xf32>
    %c128_197 = arith.constant 128 : index
    %c0_198 = arith.constant 0 : index
    %532 = vector.load %arg2[%c128_197, %c0_198] : memref<256x145xbf16, #tpu.memory_space<vmem>>, vector<64x145xbf16>
    %cst_199 = arith.constant dense<0.000000e+00> : vector<64x512xf32>
    %533 = tpu.matmul %532, %514, %cst_199 {dimension_numbers = #tpu.dot_dimension_numbers<[1], [0], [0], [1], [0, 0, 1, 1], [], []>} : vector<64x145xbf16>, vector<145x512xbf16>, vector<64x512xf32> -> vector<64x512xf32>
    %534 = vector.extract_strided_slice %533 {offsets = [0, 0], sizes = [32, 512], strides = [1, 1]} : vector<64x512xf32> to vector<32x512xf32>
    %535 = vector.extract_strided_slice %533 {offsets = [32, 0], sizes = [32, 512], strides = [1, 1]} : vector<64x512xf32> to vector<32x512xf32>
    %536 = arith.maximumf %534, %535 : vector<32x512xf32>
    %537 = vector.extract_strided_slice %536 {offsets = [0, 0], sizes = [16, 512], strides = [1, 1]} : vector<32x512xf32> to vector<16x512xf32>
    %538 = vector.extract_strided_slice %536 {offsets = [16, 0], sizes = [16, 512], strides = [1, 1]} : vector<32x512xf32> to vector<16x512xf32>
    %539 = arith.maximumf %537, %538 : vector<16x512xf32>
    %540 = arith.maximumf %531, %539 : vector<16x512xf32>
    %c192_200 = arith.constant 192 : index
    %c0_201 = arith.constant 0 : index
    %541 = vector.load %arg2[%c192_200, %c0_201] : memref<256x145xbf16, #tpu.memory_space<vmem>>, vector<64x145xbf16>
    %cst_202 = arith.constant dense<0.000000e+00> : vector<64x512xf32>
    %542 = tpu.matmul %541, %514, %cst_202 {dimension_numbers = #tpu.dot_dimension_numbers<[1], [0], [0], [1], [0, 0, 1, 1], [], []>} : vector<64x145xbf16>, vector<145x512xbf16>, vector<64x512xf32> -> vector<64x512xf32>
    %543 = vector.extract_strided_slice %542 {offsets = [0, 0], sizes = [32, 512], strides = [1, 1]} : vector<64x512xf32> to vector<32x512xf32>
    %544 = vector.extract_strided_slice %542 {offsets = [32, 0], sizes = [32, 512], strides = [1, 1]} : vector<64x512xf32> to vector<32x512xf32>
    %545 = arith.maximumf %543, %544 : vector<32x512xf32>
    %546 = vector.extract_strided_slice %545 {offsets = [0, 0], sizes = [16, 512], strides = [1, 1]} : vector<32x512xf32> to vector<16x512xf32>
    %547 = vector.extract_strided_slice %545 {offsets = [16, 0], sizes = [16, 512], strides = [1, 1]} : vector<32x512xf32> to vector<16x512xf32>
    %548 = arith.maximumf %546, %547 : vector<16x512xf32>
    %549 = arith.maximumf %540, %548 : vector<16x512xf32>
    %cst_203 = arith.constant 0.000000e+00 : f32
    %cst_204 = arith.constant 6.000000e+00 : f32
    %550 = vector.broadcast %cst_203 : f32 to vector<16x512xf32>
    %551 = arith.maximumf %550, %549 : vector<16x512xf32>
    %552 = vector.broadcast %cst_204 : f32 to vector<16x512xf32>
    %553 = arith.minimumf %552, %551 : vector<16x512xf32>
    %cst_205 = arith.constant dense<0.000000e+00> : vector<16xf32>
    %554 = vector.multi_reduction <add>, %553, %cst_205 [1] : vector<16x512xf32> to vector<16xf32>
    %555 = vector.shape_cast %554 : vector<16xf32> to vector<16x1xf32>
    %cst_206 = arith.constant 5.120000e+02 : f32
    %556 = vector.broadcast %cst_206 : f32 to vector<16x1xf32>
    %557 = arith.divf %555, %556 : vector<16x1xf32>
    %558 = vector.broadcast %557 : vector<16x1xf32> to vector<16x512xf32>
    %559 = arith.subf %553, %558 : vector<16x512xf32>
    %560 = arith.mulf %559, %559 : vector<16x512xf32>
    %cst_207 = arith.constant dense<0.000000e+00> : vector<16xf32>
    %561 = vector.multi_reduction <add>, %560, %cst_207 [1] : vector<16x512xf32> to vector<16xf32>
    %562 = vector.shape_cast %561 : vector<16xf32> to vector<16x1xf32>
    %cst_208 = arith.constant 5.120000e+02 : f32
    %563 = vector.broadcast %cst_208 : f32 to vector<16x1xf32>
    %564 = arith.divf %562, %563 : vector<16x1xf32>
    %cst_209 = arith.constant 9.99999974E-6 : f32
    %565 = vector.broadcast %cst_209 : f32 to vector<16x1xf32>
    %566 = arith.addf %564, %565 : vector<16x1xf32>
    %567 = math.rsqrt %566 : vector<16x1xf32>
    %568 = vector.broadcast %567 : vector<16x1xf32> to vector<16x512xf32>
    %569 = arith.mulf %559, %568 : vector<16x512xf32>
    %570 = vector.broadcast %0 : vector<1x512xf32> to vector<16x512xf32>
    %571 = arith.mulf %569, %570 : vector<16x512xf32>
    %572 = vector.broadcast %1 : vector<1x512xf32> to vector<16x512xf32>
    %573 = arith.addf %571, %572 : vector<16x512xf32>
    %cst_210 = arith.constant 5.000000e-01 : f32
    %574 = vector.broadcast %cst_210 : f32 to vector<16x512xf32>
    %575 = arith.mulf %574, %573 : vector<16x512xf32>
    %cst_211 = arith.constant 0.707106769 : f32
    %576 = vector.broadcast %cst_211 : f32 to vector<16x512xf32>
    %577 = arith.mulf %573, %576 : vector<16x512xf32>
    %578 = math.erf %577 : vector<16x512xf32>
    %cst_212 = arith.constant 1.000000e+00 : f32
    %579 = vector.broadcast %cst_212 : f32 to vector<16x512xf32>
    %580 = arith.addf %579, %578 : vector<16x512xf32>
    %581 = arith.mulf %575, %580 : vector<16x512xf32>
    %582 = math.tanh %581 : vector<16x512xf32>
    %c7_213 = arith.constant 7 : index
    %c0_214 = arith.constant 0 : index
    %c0_215 = arith.constant 0 : index
    %583 = vector.load %arg5[%c7_213, %c0_214, %c0_215] : memref<8x16x512xf32, #tpu.memory_space<vmem>>, vector<1x16x512xf32>
    %584 = vector.shape_cast %583 : vector<1x16x512xf32> to vector<16x512xf32>
    %585 = vector.shape_cast %582 : vector<16x512xf32> to vector<1x16x512xf32>
    tpu.vector_store %arg5[%c7_213, %c0_214, %c0_215], %585 {strides = array<i32>} : memref<8x16x512xf32, #tpu.memory_space<vmem>>, vector<1x16x512xf32>,
    return
  }
  func.func @transform_0(%arg0: i32) -> (i32, i32, i32) {
    %c0_i32 = arith.constant 0 : i32
    %c0_i32_0 = arith.constant 0 : i32
    %c0_i32_1 = arith.constant 0 : i32
    return %arg0, %c0_i32, %c0_i32_0 : i32, i32, i32
  }
  func.func @transform_1(%arg0: i32) -> (i32, i32) {
    %c0_i32 = arith.constant 0 : i32
    %c0_i32_0 = arith.constant 0 : i32
    %c0_i32_1 = arith.constant 0 : i32
    return %c0_i32, %c0_i32_0 : i32, i32
  }
  func.func @transform_2(%arg0: i32) -> (i32, i32) {
    %c0_i32 = arith.constant 0 : i32
    %c0_i32_0 = arith.constant 0 : i32
    %c0_i32_1 = arith.constant 0 : i32
    return %c0_i32, %c0_i32_0 : i32, i32
  }
  func.func @transform_3(%arg0: i32) -> (i32, i32) {
    %c0_i32 = arith.constant 0 : i32
    %c0_i32_0 = arith.constant 0 : i32
    %c0_i32_1 = arith.constant 0 : i32
    return %c0_i32, %c0_i32_0 : i32, i32
  }
  func.func @transform_4(%arg0: i32) -> (i32, i32, i32) {
    %c0_i32 = arith.constant 0 : i32
    %c0_i32_0 = arith.constant 0 : i32
    %c0_i32_1 = arith.constant 0 : i32
    return %arg0, %c0_i32, %c0_i32_0 : i32, i32, i32
  }
}

</mosaic_0001>

<llo_original>
// kernel: tile.1
$region0: #{tile.1}
  %s0 = inlined_call_operand.vmem [shape: bf16[16,16], index: 0, kind: input, shape index: {}]
  %s1 = inlined_call_operand.vmem [shape: bf16[256,1], index: 1, kind: output, shape index: {}]
  $region1: #{tile.1} parent=0
    #allocation0 [shape = 'u8[131072]{0}', space=vmem, size = 0x20000, scoped, tag = 'scoped mem for output reshape']
    #allocation1 [shape = 'u8[8192]{0}', space=vmem, size = 0x2000, scoped, tag = 'scoped mem for input reshape']
    %s3 = smul.u32 4, 2
    %s4 = sshllo.u32 0, %s3
    %s5 = scalar_lea.vmem %s0, 4
    %s6 = sshrl.u32 %s4, 1
    %s7 = sor.u32 %s4, %s6
    %s8 = sand.u32 %s7, 85
    %s9 = sshrl.u32 %s8, 1
    %s10 = sor.u32 %s8, %s9
    %s11 = sand.u32 51, %s10
    %s12 = sshrl.u32 %s11, 2
    %s13 = sor.u32 %s11, %s12
    %s14 = sand.u32 15, %s13
    %v15 = vld [vmem:[%s5] sm:%s14]
    %v16 = vunpack.c.l.bf16 %v15
    %v17 = vunpack.c.h.bf16 %v15
    %s18 = scalar_lea.vmem [#allocation1], 8
    %19 = vst [vmem:[%s18] sm:%s4] %v16
    %s20 = sshrl.u32 %s4, 1
    %s21 = sor.u32 %s4, %s20
    %s22 = sand.u32 %s21, 85
    %s23 = sshrl.u32 %s22, 1
    %s24 = sor.u32 %s22, %s23
    %s25 = sand.u32 51, %s24
    %s26 = sshrl.u32 %s25, 2
    %s27 = sor.u32 %s25, %s26
    %s28 = sand.u32 15, %s27
    %v29 = vld [vmem:[%s0] sm:%s28]
    %v30 = vunpack.c.l.bf16 %v29
    %v31 = vunpack.c.h.bf16 %v29
    %32 = vst [vmem:[#allocation1] sm:%s4] %v30
    %v33 = vld [vmem:[#allocation1] sm:$0xff]
    %vm34 = vcmask 7168
    %35 = vst.msk [vmem:[#allocation0] ss:$16 sm:$0x3] %vm34, %v33
    %36 = vst.msk [vmem:[#allocation0] ss:$16 sm:$0xc] %vm34, %v33
    %37 = vst.msk [vmem:[#allocation0] ss:$16 sm:$0x30] %vm34, %v33
    %38 = vst.msk [vmem:[#allocation0] ss:$16 sm:$0xc0] %vm34, %v33
    %s39 = scalar_lea.vmem [#allocation1], 8
    %v40 = vld [vmem:[%s39] sm:$0xff]
    %vm41 = vcmask 7168
    %s42 = scalar_lea.vmem [#allocation0], 128
    %43 = vst.msk [vmem:[%s42] ss:$16 sm:$0x3] %vm41, %v40
    %s44 = scalar_lea.vmem [#allocation0], 128
    %45 = vst.msk [vmem:[%s44] ss:$16 sm:$0xc] %vm41, %v40
    %s46 = scalar_lea.vmem [#allocation0], 128
    %47 = vst.msk [vmem:[%s46] ss:$16 sm:$0x30] %vm41, %v40
    %s48 = scalar_lea.vmem [#allocation0], 128
    %49 = vst.msk [vmem:[%s48] ss:$16 sm:$0xc0] %vm41, %v40
    %v50 = vld [vmem:[#allocation1] sm:$0xff]
    %51 = vrot.lane.b32.xlu0 %v50, 127
    %v52 = vpop.permute.xlu0 %51
    %vm53 = vcmask 7168
    %s54 = scalar_lea.vmem [#allocation0], 1
    %55 = vst.msk [vmem:[%s54] ss:$16 sm:$0x3] %vm53, %v52
    %s56 = scalar_lea.vmem [#allocation0], 1
    %57 = vst.msk [vmem:[%s56] ss:$16 sm:$0xc] %vm53, %v52
    %s58 = scalar_lea.vmem [#allocation0], 1
    %59 = vst.msk [vmem:[%s58] ss:$16 sm:$0x30] %vm53, %v52
    %s60 = scalar_lea.vmem [#allocation0], 1
    %61 = vst.msk [vmem:[%s60] ss:$16 sm:$0xc0] %vm53, %v52
    %s62 = scalar_lea.vmem [#allocation1], 8
    %v63 = vld [vmem:[%s62] sm:$0xff]
    %64 = vrot.lane.b32.xlu0 %v63, 127
    %v65 = vpop.permute.xlu0 %64
    %vm66 = vcmask 7168
    %s67 = scalar_lea.vmem [#allocation0], 129
    %68 = vst.msk [vmem:[%s67] ss:$16 sm:$0x3] %vm66, %v65
    %s69 = scalar_lea.vmem [#allocation0], 129
    %70 = vst.msk [vmem:[%s69] ss:$16 sm:$0xc] %vm66, %v65
    %s71 = scalar_lea.vmem [#allocation0], 129
    %72 = vst.msk [vmem:[%s71] ss:$16 sm:$0x30] %vm66, %v65
    %s73 = scalar_lea.vmem [#allocation0], 129
    %74 = vst.msk [vmem:[%s73] ss:$16 sm:$0xc0] %vm66, %v65
    %v75 = vld [vmem:[#allocation1] sm:$0xff]
    %76 = vrot.lane.b32.xlu0 %v75, 126
    %v77 = vpop.permute.xlu0 %76
    %vm78 = vcmask 7168
    %s79 = scalar_lea.vmem [#allocation0], 2
    %80 = vst.msk [vmem:[%s79] ss:$16 sm:$0x3] %vm78, %v77
    %s81 = scalar_lea.vmem [#allocation0], 2
    %82 = vst.msk [vmem:[%s81] ss:$16 sm:$0xc] %vm78, %v77
    %s83 = scalar_lea.vmem [#allocation0], 2
    %84 = vst.msk [vmem:[%s83] ss:$16 sm:$0x30] %vm78, %v77
    %s85 = scalar_lea.vmem [#allocation0], 2
    %86 = vst.msk [vmem:[%s85] ss:$16 sm:$0xc0] %vm78, %v77
    %s87 = scalar_lea.vmem [#allocation1], 8
    %v88 = vld [vmem:[%s87] sm:$0xff]
    %89 = vrot.lane.b32.xlu0 %v88, 126
    %v90 = vpop.permute.xlu0 %89
    %vm91 = vcmask 7168
    %s92 = scalar_lea.vmem [#allocation0], 130
    %93 = vst.msk [vmem:[%s92] ss:$16 sm:$0x3] %vm91, %v90
    %s94 = scalar_lea.vmem [#allocation0], 130
    %95 = vst.msk [vmem:[%s94] ss:$16 sm:$0xc] %vm91, %v90
    %s96 = scalar_lea.vmem [#allocation0], 130
    %97 = vst.msk [vmem:[%s96] ss:$16 sm:$0x30] %vm91, %v90
    %s98 = scalar_lea.vmem [#allocation0], 130
    %99 = vst.msk [vmem:[%s98] ss:$16 sm:$0xc0] %vm91, %v90
    %v100 = vld [vmem:[#allocation1] sm:$0xff]
    %101 = vrot.lane.b32.xlu0 %v100, 125
    %v102 = vpop.permute.xlu0 %101
    %vm103 = vcmask 7168
    %s104 = scalar_lea.vmem [#allocation0], 3
    %105 = vst.msk [vmem:[%s104] ss:$16 sm:$0x3] %vm103, %v102
    %s106 = scalar_lea.vmem [#allocation0], 3
    %107 = vst.msk [vmem:[%s106] ss:$16 sm:$0xc] %vm103, %v102
    %s108 = scalar_lea.vmem [#allocation0], 3
    %109 = vst.msk [vmem:[%s108] ss:$16 sm:$0x30] %vm103, %v102
    %s110 = scalar_lea.vmem [#allocation0], 3
    %111 = vst.msk [vmem:[%s110] ss:$16 sm:$0xc0] %vm103, %v102
    %s112 = scalar_lea.vmem [#allocation1], 8
    %v113 = vld [vmem:[%s112] sm:$0xff]
    %114 = vrot.lane.b32.xlu0 %v113, 125
    %v115 = vpop.permute.xlu0 %114
    %vm116 = vcmask 7168
    %s117 = scalar_lea.vmem [#allocation0], 131
    %118 = vst.msk [vmem:[%s117] ss:$16 sm:$0x3] %vm116, %v115
    %s119 = scalar_lea.vmem [#allocation0], 131
    %120 = vst.msk [vmem:[%s119] ss:$16 sm:$0xc] %vm116, %v115
    %s121 = scalar_lea.vmem [#allocation0], 131
    %122 = vst.msk [vmem:[%s121] ss:$16 sm:$0x30] %vm116, %v115
    %s123 = scalar_lea.vmem [#allocation0], 131
    %124 = vst.msk [vmem:[%s123] ss:$16 sm:$0xc0] %vm116, %v115
    %v125 = vld [vmem:[#allocation1] sm:$0xff]
    %126 = vrot.lane.b32.xlu0 %v125, 124
    %v127 = vpop.permute.xlu0 %126
    %vm128 = vcmask 7168
    %s129 = scalar_lea.vmem [#allocation0], 4
    %130 = vst.msk [vmem:[%s129] ss:$16 sm:$0x3] %vm128, %v127
    %s131 = scalar_lea.vmem [#allocation0], 4
    %132 = vst.msk [vmem:[%s131] ss:$16 sm:$0xc] %vm128, %v127
    %s133 = scalar_lea.vmem [#allocation0], 4
    %134 = vst.msk [vmem:[%s133] ss:$16 sm:$0x30] %vm128, %v127
    %s135 = scalar_lea.vmem [#allocation0], 4
    %136 = vst.msk [vmem:[%s135] ss:$16 sm:$0xc0] %vm128, %v127
    %s137 = scalar_lea.vmem [#allocation1], 8
    %v138 = vld [vmem:[%s137] sm:$0xff]
    %139 = vrot.lane.b32.xlu0 %v138, 124
    %v140 = vpop.permute.xlu0 %139
    %vm141 = vcmask 7168
    %s142 = scalar_lea.vmem [#allocation0], 132
    %143 = vst.msk [vmem:[%s142] ss:$16 sm:$0x3] %vm141, %v140
    %s144 = scalar_lea.vmem [#allocation0], 132
    %145 = vst.msk [vmem:[%s144] ss:$16 sm:$0xc] %vm141, %v140
    %s146 = scalar_lea.vmem [#allocation0], 132
    %147 = vst.msk [vmem:[%s146] ss:$16 sm:$0x30] %vm141, %v140
    %s148 = scalar_lea.vmem [#allocation0], 132
    %149 = vst.msk [vmem:[%s148] ss:$16 sm:$0xc0] %vm141, %v140
    %v150 = vld [vmem:[#allocation1] sm:$0xff]
    %151 = vrot.lane.b32.xlu0 %v150, 123
    %v152 = vpop.permute.xlu0 %151
    %vm153 = vcmask 7168
    %s154 = scalar_lea.vmem [#allocation0], 5
    %155 = vst.msk [vmem:[%s154] ss:$16 sm:$0x3] %vm153, %v152
    %s156 = scalar_lea.vmem [#allocation0], 5
    %157 = vst.msk [vmem:[%s156] ss:$16 sm:$0xc] %vm153, %v152
    %s158 = scalar_lea.vmem [#allocation0], 5
    %159 = vst.msk [vmem:[%s158] ss:$16 sm:$0x30] %vm153, %v152
    %s160 = scalar_lea.vmem [#allocation0], 5
    %161 = vst.msk [vmem:[%s160] ss:$16 sm:$0xc0] %vm153, %v152
    %s162 = scalar_lea.vmem [#allocation1], 8
    %v163 = vld [vmem:[%s162] sm:$0xff]
    %164 = vrot.lane.b32.xlu0 %v163, 123
    %v165 = vpop.permute.xlu0 %164
    %vm166 = vcmask 7168
    %s167 = scalar_lea.vmem [#allocation0], 133
    %168 = vst.msk [vmem:[%s167] ss:$16 sm:$0x3] %vm166, %v165
    %s169 = scalar_lea.vmem [#allocation0], 133
    %170 = vst.msk [vmem:[%s169] ss:$16 sm:$0xc] %vm166, %v165
    %s171 = scalar_lea.vmem [#allocation0], 133
    %172 = vst.msk [vmem:[%s171] ss:$16 sm:$0x30] %vm166, %v165
    %s173 = scalar_lea.vmem [#allocation0], 133
    %174 = vst.msk [vmem:[%s173] ss:$16 sm:$0xc0] %vm166, %v165
    %v175 = vld [vmem:[#allocation1] sm:$0xff]
    %176 = vrot.lane.b32.xlu0 %v175, 122
    %v177 = vpop.permute.xlu0 %176
    %vm178 = vcmask 7168
    %s179 = scalar_lea.vmem [#allocation0], 6
    %180 = vst.msk [vmem:[%s179] ss:$16 sm:$0x3] %vm178, %v177
    %s181 = scalar_lea.vmem [#allocation0], 6
    %182 = vst.msk [vmem:[%s181] ss:$16 sm:$0xc] %vm178, %v177
    %s183 = scalar_lea.vmem [#allocation0], 6
    %184 = vst.msk [vmem:[%s183] ss:$16 sm:$0x30] %vm178, %v177
    %s185 = scalar_lea.vmem [#allocation0], 6
    %186 = vst.msk [vmem:[%s185] ss:$16 sm:$0xc0] %vm178, %v177
    %s187 = scalar_lea.vmem [#allocation1], 8
    %v188 = vld [vmem:[%s187] sm:$0xff]
    %189 = vrot.lane.b32.xlu0 %v188, 122
    %v190 = vpop.permute.xlu0 %189
    %vm191 = vcmask 7168
    %s192 = scalar_lea.vmem [#allocation0], 134
    %193 = vst.msk [vmem:[%s192] ss:$16 sm:$0x3] %vm191, %v190
    %s194 = scalar_lea.vmem [#allocation0], 134
    %195 = vst.msk [vmem:[%s194] ss:$16 sm:$0xc] %vm191, %v190
    %s196 = scalar_lea.vmem [#allocation0], 134
    %197 = vst.msk [vmem:[%s196] ss:$16 sm:$0x30] %vm191, %v190
    %s198 = scalar_lea.vmem [#allocation0], 134
    %199 = vst.msk [vmem:[%s198] ss:$16 sm:$0xc0] %vm191, %v190
    %v200 = vld [vmem:[#allocation1] sm:$0xff]
    %201 = vrot.lane.b32.xlu0 %v200, 121
    %v202 = vpop.permute.xlu0 %201
    %vm203 = vcmask 7168
    %s204 = scalar_lea.vmem [#allocation0], 7
    %205 = vst.msk [vmem:[%s204] ss:$16 sm:$0x3] %vm203, %v202
    %s206 = scalar_lea.vmem [#allocation0], 7
    %207 = vst.msk [vmem:[%s206] ss:$16 sm:$0xc] %vm203, %v202
    %s208 = scalar_lea.vmem [#allocation0], 7
    %209 = vst.msk [vmem:[%s208] ss:$16 sm:$0x30] %vm203, %v202
    %s210 = scalar_lea.vmem [#allocation0], 7
    %211 = vst.msk [vmem:[%s210] ss:$16 sm:$0xc0] %vm203, %v202
    %s212 = scalar_lea.vmem [#allocation1], 8
    %v213 = vld [vmem:[%s212] sm:$0xff]
    %214 = vrot.lane.b32.xlu0 %v213, 121
    %v215 = vpop.permute.xlu0 %214
    %vm216 = vcmask 7168
    %s217 = scalar_lea.vmem [#allocation0], 135
    %218 = vst.msk [vmem:[%s217] ss:$16 sm:$0x3] %vm216, %v215
    %s219 = scalar_lea.vmem [#allocation0], 135
    %220 = vst.msk [vmem:[%s219] ss:$16 sm:$0xc] %vm216, %v215
    %s221 = scalar_lea.vmem [#allocation0], 135
    %222 = vst.msk [vmem:[%s221] ss:$16 sm:$0x30] %vm216, %v215
    %s223 = scalar_lea.vmem [#allocation0], 135
    %224 = vst.msk [vmem:[%s223] ss:$16 sm:$0xc0] %vm216, %v215
    %v225 = vld [vmem:[#allocation1] sm:$0xff]
    %226 = vrot.lane.b32.xlu0 %v225, 120
    %v227 = vpop.permute.xlu0 %226
    %vm228 = vcmask 7168
    %s229 = scalar_lea.vmem [#allocation0], 8
    %230 = vst.msk [vmem:[%s229] ss:$16 sm:$0x3] %vm228, %v227
    %s231 = scalar_lea.vmem [#allocation0], 8
    %232 = vst.msk [vmem:[%s231] ss:$16 sm:$0xc] %vm228, %v227
    %s233 = scalar_lea.vmem [#allocation0], 8
    %234 = vst.msk [vmem:[%s233] ss:$16 sm:$0x30] %vm228, %v227
    %s235 = scalar_lea.vmem [#allocation0], 8
    %236 = vst.msk [vmem:[%s235] ss:$16 sm:$0xc0] %vm228, %v227
    %s237 = scalar_lea.vmem [#allocation1], 8
    %v238 = vld [vmem:[%s237] sm:$0xff]
    %239 = vrot.lane.b32.xlu0 %v238, 120
    %v240 = vpop.permute.xlu0 %239
    %vm241 = vcmask 7168
    %s242 = scalar_lea.vmem [#allocation0], 136
    %243 = vst.msk [vmem:[%s242] ss:$16 sm:$0x3] %vm241, %v240
    %s244 = scalar_lea.vmem [#allocation0], 136
    %245 = vst.msk [vmem:[%s244] ss:$16 sm:$0xc] %vm241, %v240
    %s246 = scalar_lea.vmem [#allocation0], 136
    %247 = vst.msk [vmem:[%s246] ss:$16 sm:$0x30] %vm241, %v240
    %s248 = scalar_lea.vmem [#allocation0], 136
    %249 = vst.msk [vmem:[%s248] ss:$16 sm:$0xc0] %vm241, %v240
    %v250 = vld [vmem:[#allocation1] sm:$0xff]
    %251 = vrot.lane.b32.xlu0 %v250, 119
    %v252 = vpop.permute.xlu0 %251
    %vm253 = vcmask 7168
    %s254 = scalar_lea.vmem [#allocation0], 9
    %255 = vst.msk [vmem:[%s254] ss:$16 sm:$0x3] %vm253, %v252
    %s256 = scalar_lea.vmem [#allocation0], 9
    %257 = vst.msk [vmem:[%s256] ss:$16 sm:$0xc] %vm253, %v252
    %s258 = scalar_lea.vmem [#allocation0], 9
    %259 = vst.msk [vmem:[%s258] ss:$16 sm:$0x30] %vm253, %v252
    %s260 = scalar_lea.vmem [#allocation0], 9
    %261 = vst.msk [vmem:[%s260] ss:$16 sm:$0xc0] %vm253, %v252
    %s262 = scalar_lea.vmem [#allocation1], 8
    %v263 = vld [vmem:[%s262] sm:$0xff]
    %264 = vrot.lane.b32.xlu0 %v263, 119
    %v265 = vpop.permute.xlu0 %264
    %vm266 = vcmask 7168
    %s267 = scalar_lea.vmem [#allocation0], 137
    %268 = vst.msk [vmem:[%s267] ss:$16 sm:$0x3] %vm266, %v265
    %s269 = scalar_lea.vmem [#allocation0], 137
    %270 = vst.msk [vmem:[%s269] ss:$16 sm:$0xc] %vm266, %v265
    %s271 = scalar_lea.vmem [#allocation0], 137
    %272 = vst.msk [vmem:[%s271] ss:$16 sm:$0x30] %vm266, %v265
    %s273 = scalar_lea.vmem [#allocation0], 137
    %274 = vst.msk [vmem:[%s273] ss:$16 sm:$0xc0] %vm266, %v265
    %v275 = vld [vmem:[#allocation1] sm:$0xff]
    %276 = vrot.lane.b32.xlu0 %v275, 118
    %v277 = vpop.permute.xlu0 %276
    %vm278 = vcmask 7168
    %s279 = scalar_lea.vmem [#allocation0], 10
    %280 = vst.msk [vmem:[%s279] ss:$16 sm:$0x3] %vm278, %v277
    %s281 = scalar_lea.vmem [#allocation0], 10
    %282 = vst.msk [vmem:[%s281] ss:$16 sm:$0xc] %vm278, %v277
    %s283 = scalar_lea.vmem [#allocation0], 10
    %284 = vst.msk [vmem:[%s283] ss:$16 sm:$0x30] %vm278, %v277
    %s285 = scalar_lea.vmem [#allocation0], 10
    %286 = vst.msk [vmem:[%s285] ss:$16 sm:$0xc0] %vm278, %v277
    %s287 = scalar_lea.vmem [#allocation1], 8
    %v288 = vld [vmem:[%s287] sm:$0xff]
    %289 = vrot.lane.b32.xlu0 %v288, 118
    %v290 = vpop.permute.xlu0 %289
    %vm291 = vcmask 7168
    %s292 = scalar_lea.vmem [#allocation0], 138
    %293 = vst.msk [vmem:[%s292] ss:$16 sm:$0x3] %vm291, %v290
    %s294 = scalar_lea.vmem [#allocation0], 138
    %295 = vst.msk [vmem:[%s294] ss:$16 sm:$0xc] %vm291, %v290
    %s296 = scalar_lea.vmem [#allocation0], 138
    %297 = vst.msk [vmem:[%s296] ss:$16 sm:$0x30] %vm291, %v290
    %s298 = scalar_lea.vmem [#allocation0], 138
    %299 = vst.msk [vmem:[%s298] ss:$16 sm:$0xc0] %vm291, %v290
    %v300 = vld [vmem:[#allocation1] sm:$0xff]
    %301 = vrot.lane.b32.xlu0 %v300, 117
    %v302 = vpop.permute.xlu0 %301
    %vm303 = vcmask 7168
    %s304 = scalar_lea.vmem [#allocation0], 11
    %305 = vst.msk [vmem:[%s304] ss:$16 sm:$0x3] %vm303, %v302
    %s306 = scalar_lea.vmem [#allocation0], 11
    %307 = vst.msk [vmem:[%s306] ss:$16 sm:$0xc] %vm303, %v302
    %s308 = scalar_lea.vmem [#allocation0], 11
    %309 = vst.msk [vmem:[%s308] ss:$16 sm:$0x30] %vm303, %v302
    %s310 = scalar_lea.vmem [#allocation0], 11
    %311 = vst.msk [vmem:[%s310] ss:$16 sm:$0xc0] %vm303, %v302
    %s312 = scalar_lea.vmem [#allocation1], 8
    %v313 = vld [vmem:[%s312] sm:$0xff]
    %314 = vrot.lane.b32.xlu0 %v313, 117
    %v315 = vpop.permute.xlu0 %314
    %vm316 = vcmask 7168
    %s317 = scalar_lea.vmem [#allocation0], 139
    %318 = vst.msk [vmem:[%s317] ss:$16 sm:$0x3] %vm316, %v315
    %s319 = scalar_lea.vmem [#allocation0], 139
    %320 = vst.msk [vmem:[%s319] ss:$16 sm:$0xc] %vm316, %v315
    %s321 = scalar_lea.vmem [#allocation0], 139
    %322 = vst.msk [vmem:[%s321] ss:$16 sm:$0x30] %vm316, %v315
    %s323 = scalar_lea.vmem [#allocation0], 139
    %324 = vst.msk [vmem:[%s323] ss:$16 sm:$0xc0] %vm316, %v315
    %v325 = vld [vmem:[#allocation1] sm:$0xff]
    %326 = vrot.lane.b32.xlu0 %v325, 116
    %v327 = vpop.permute.xlu0 %326
    %vm328 = vcmask 7168
    %s329 = scalar_lea.vmem [#allocation0], 12
    %330 = vst.msk [vmem:[%s329] ss:$16 sm:$0x3] %vm328, %v327
    %s331 = scalar_lea.vmem [#allocation0], 12
    %332 = vst.msk [vmem:[%s331] ss:$16 sm:$0xc] %vm328, %v327
    %s333 = scalar_lea.vmem [#allocation0], 12
    %334 = vst.msk [vmem:[%s333] ss:$16 sm:$0x30] %vm328, %v327
    %s335 = scalar_lea.vmem [#allocation0], 12
    %336 = vst.msk [vmem:[%s335] ss:$16 sm:$0xc0] %vm328, %v327
    %s337 = scalar_lea.vmem [#allocation1], 8
    %v338 = vld [vmem:[%s337] sm:$0xff]
    %339 = vrot.lane.b32.xlu0 %v338, 116
    %v340 = vpop.permute.xlu0 %339
    %vm341 = vcmask 7168
    %s342 = scalar_lea.vmem [#allocation0], 140
    %343 = vst.msk [vmem:[%s342] ss:$16 sm:$0x3] %vm341, %v340
    %s344 = scalar_lea.vmem [#allocation0], 140
    %345 = vst.msk [vmem:[%s344] ss:$16 sm:$0xc] %vm341, %v340
    %s346 = scalar_lea.vmem [#allocation0], 140
    %347 = vst.msk [vmem:[%s346] ss:$16 sm:$0x30] %vm341, %v340
    %s348 = scalar_lea.vmem [#allocation0], 140
    %349 = vst.msk [vmem:[%s348] ss:$16 sm:$0xc0] %vm341, %v340
    %v350 = vld [vmem:[#allocation1] sm:$0xff]
    %351 = vrot.lane.b32.xlu0 %v350, 115
    %v352 = vpop.permute.xlu0 %351
    %vm353 = vcmask 7168
    %s354 = scalar_lea.vmem [#allocation0], 13
    %355 = vst.msk [vmem:[%s354] ss:$16 sm:$0x3] %vm353, %v352
    %s356 = scalar_lea.vmem [#allocation0], 13
    %357 = vst.msk [vmem:[%s356] ss:$16 sm:$0xc] %vm353, %v352
    %s358 = scalar_lea.vmem [#allocation0], 13
    %359 = vst.msk [vmem:[%s358] ss:$16 sm:$0x30] %vm353, %v352
    %s360 = scalar_lea.vmem [#allocation0], 13
    %361 = vst.msk [vmem:[%s360] ss:$16 sm:$0xc0] %vm353, %v352
    %s362 = scalar_lea.vmem [#allocation1], 8
    %v363 = vld [vmem:[%s362] sm:$0xff]
    %364 = vrot.lane.b32.xlu0 %v363, 115
    %v365 = vpop.permute.xlu0 %364
    %vm366 = vcmask 7168
    %s367 = scalar_lea.vmem [#allocation0], 141
    %368 = vst.msk [vmem:[%s367] ss:$16 sm:$0x3] %vm366, %v365
    %s369 = scalar_lea.vmem [#allocation0], 141
    %370 = vst.msk [vmem:[%s369] ss:$16 sm:$0xc] %vm366, %v365
    %s371 = scalar_lea.vmem [#allocation0], 141
    %372 = vst.msk [vmem:[%s371] ss:$16 sm:$0x30] %vm366, %v365
    %s373 = scalar_lea.vmem [#allocation0], 141
    %374 = vst.msk [vmem:[%s373] ss:$16 sm:$0xc0] %vm366, %v365
    %v375 = vld [vmem:[#allocation1] sm:$0xff]
    %376 = vrot.lane.b32.xlu0 %v375, 114
    %v377 = vpop.permute.xlu0 %376
    %vm378 = vcmask 7168
    %s379 = scalar_lea.vmem [#allocation0], 14
    %380 = vst.msk [vmem:[%s379] ss:$16 sm:$0x3] %vm378, %v377
    %s381 = scalar_lea.vmem [#allocation0], 14
    %382 = vst.msk [vmem:[%s381] ss:$16 sm:$0xc] %vm378, %v377
    %s383 = scalar_lea.vmem [#allocation0], 14
    %384 = vst.msk [vmem:[%s383] ss:$16 sm:$0x30] %vm378, %v377
    %s385 = scalar_lea.vmem [#allocation0], 14
    %386 = vst.msk [vmem:[%s385] ss:$16 sm:$0xc0] %vm378, %v377
    %s387 = scalar_lea.vmem [#allocation1], 8
    %v388 = vld [vmem:[%s387] sm:$0xff]
    %389 = vrot.lane.b32.xlu0 %v388, 114
    %v390 = vpop.permute.xlu0 %389
    %vm391 = vcmask 7168
    %s392 = scalar_lea.vmem [#allocation0], 142
    %393 = vst.msk [vmem:[%s392] ss:$16 sm:$0x3] %vm391, %v390
    %s394 = scalar_lea.vmem [#allocation0], 142
    %395 = vst.msk [vmem:[%s394] ss:$16 sm:$0xc] %vm391, %v390
    %s396 = scalar_lea.vmem [#allocation0], 142
    %397 = vst.msk [vmem:[%s396] ss:$16 sm:$0x30] %vm391, %v390
    %s398 = scalar_lea.vmem [#allocation0], 142
    %399 = vst.msk [vmem:[%s398] ss:$16 sm:$0xc0] %vm391, %v390
    %v400 = vld [vmem:[#allocation1] sm:$0xff]
    %401 = vrot.lane.b32.xlu0 %v400, 113
    %v402 = vpop.permute.xlu0 %401
    %vm403 = vcmask 7168
    %s404 = scalar_lea.vmem [#allocation0], 15
    %405 = vst.msk [vmem:[%s404] ss:$16 sm:$0x3] %vm403, %v402
    %s406 = scalar_lea.vmem [#allocation0], 15
    %407 = vst.msk [vmem:[%s406] ss:$16 sm:$0xc] %vm403, %v402
    %s408 = scalar_lea.vmem [#allocation0], 15
    %409 = vst.msk [vmem:[%s408] ss:$16 sm:$0x30] %vm403, %v402
    %s410 = scalar_lea.vmem [#allocation0], 15
    %411 = vst.msk [vmem:[%s410] ss:$16 sm:$0xc0] %vm403, %v402
    %s412 = scalar_lea.vmem [#allocation1], 8
    %v413 = vld [vmem:[%s412] sm:$0xff]
    %414 = vrot.lane.b32.xlu0 %v413, 113
    %v415 = vpop.permute.xlu0 %414
    %vm416 = vcmask 7168
    %s417 = scalar_lea.vmem [#allocation0], 143
    %418 = vst.msk [vmem:[%s417] ss:$16 sm:$0x3] %vm416, %v415
    %s419 = scalar_lea.vmem [#allocation0], 143
    %420 = vst.msk [vmem:[%s419] ss:$16 sm:$0xc] %vm416, %v415
    %s421 = scalar_lea.vmem [#allocation0], 143
    %422 = vst.msk [vmem:[%s421] ss:$16 sm:$0x30] %vm416, %v415
    %s423 = scalar_lea.vmem [#allocation0], 143
    %424 = vst.msk [vmem:[%s423] ss:$16 sm:$0xc0] %vm416, %v415
    %s426 = smul.u32 4, 2
    %s427 = sshllo.u32 0, %s426
    %s428 = sshrl.u32 %s426, 1
    %v429 = vld [vmem:[#allocation0] sm:%s427]
    %v430 = vpack.c.bf16 0.0, %v429
    %s431 = sshllo.u32 0, %s428
    %432 = vst [vmem:[%s1] sm:%s431] %v430
    %s433 = scalar_lea.vmem [#allocation0], 8
    %v434 = vld [vmem:[%s433] sm:%s427]
    %v435 = vpack.c.bf16 0.0, %v434
    %s436 = sshllo.u32 0, %s428
    %s437 = scalar_lea.vmem %s1, 4
    %438 = vst [vmem:[%s437] sm:%s436] %v435
    %s439 = scalar_lea.vmem [#allocation0], 16
    %v440 = vld [vmem:[%s439] sm:%s427]
    %v441 = vpack.c.bf16 0.0, %v440
    %s442 = sshllo.u32 0, %s428
    %s443 = smul.addr 4, 2
    %s444 = scalar_lea.vmem %s1, %s443
    %445 = vst [vmem:[%s444] sm:%s442] %v441
    %s446 = scalar_lea.vmem [#allocation0], 24
    %v447 = vld [vmem:[%s446] sm:%s427]
    %v448 = vpack.c.bf16 0.0, %v447
    %s449 = sshllo.u32 0, %s428
    %s450 = smul.addr 4, 3
    %s451 = scalar_lea.vmem %s1, %s450
    %452 = vst [vmem:[%s451] sm:%s449] %v448
    %s453 = scalar_lea.vmem [#allocation0], 32
    %v454 = vld [vmem:[%s453] sm:%s427]
    %v455 = vpack.c.bf16 0.0, %v454
    %s456 = sshllo.u32 0, %s428
    %s457 = smul.addr 4, 4
    %s458 = scalar_lea.vmem %s1, %s457
    %459 = vst [vmem:[%s458] sm:%s456] %v455
    %s460 = scalar_lea.vmem [#allocation0], 40
    %v461 = vld [vmem:[%s460] sm:%s427]
    %v462 = vpack.c.bf16 0.0, %v461
    %s463 = sshllo.u32 0, %s428
    %s464 = smul.addr 4, 5
    %s465 = scalar_lea.vmem %s1, %s464
    %466 = vst [vmem:[%s465] sm:%s463] %v462
    %s467 = scalar_lea.vmem [#allocation0], 48
    %v468 = vld [vmem:[%s467] sm:%s427]
    %v469 = vpack.c.bf16 0.0, %v468
    %s470 = sshllo.u32 0, %s428
    %s471 = smul.addr 4, 6
    %s472 = scalar_lea.vmem %s1, %s471
    %473 = vst [vmem:[%s472] sm:%s470] %v469
    %s474 = scalar_lea.vmem [#allocation0], 56
    %v475 = vld [vmem:[%s474] sm:%s427]
    %v476 = vpack.c.bf16 0.0, %v475
    %s477 = sshllo.u32 0, %s428
    %s478 = smul.addr 4, 7
    %s479 = scalar_lea.vmem %s1, %s478
    %480 = vst [vmem:[%s479] sm:%s477] %v476
    %s481 = scalar_lea.vmem [#allocation0], 64
    %v482 = vld [vmem:[%s481] sm:%s427]
    %v483 = vpack.c.bf16 0.0, %v482
    %s484 = sshllo.u32 0, %s428
    %s485 = smul.addr 4, 8
    %s486 = scalar_lea.vmem %s1, %s485
    %487 = vst [vmem:[%s486] sm:%s484] %v483
    %s488 = scalar_lea.vmem [#allocation0], 72
    %v489 = vld [vmem:[%s488] sm:%s427]
    %v490 = vpack.c.bf16 0.0, %v489
    %s491 = sshllo.u32 0, %s428
    %s492 = smul.addr 4, 9
    %s493 = scalar_lea.vmem %s1, %s492
    %494 = vst [vmem:[%s493] sm:%s491] %v490
    %s495 = scalar_lea.vmem [#allocation0], 80
    %v496 = vld [vmem:[%s495] sm:%s427]
    %v497 = vpack.c.bf16 0.0, %v496
    %s498 = sshllo.u32 0, %s428
    %s499 = smul.addr 4, 10
    %s500 = scalar_lea.vmem %s1, %s499
    %501 = vst [vmem:[%s500] sm:%s498] %v497
    %s502 = scalar_lea.vmem [#allocation0], 88
    %v503 = vld [vmem:[%s502] sm:%s427]
    %v504 = vpack.c.bf16 0.0, %v503
    %s505 = sshllo.u32 0, %s428
    %s506 = smul.addr 4, 11
    %s507 = scalar_lea.vmem %s1, %s506
    %508 = vst [vmem:[%s507] sm:%s505] %v504
    %s509 = scalar_lea.vmem [#allocation0], 96
    %v510 = vld [vmem:[%s509] sm:%s427]
    %v511 = vpack.c.bf16 0.0, %v510
    %s512 = sshllo.u32 0, %s428
    %s513 = smul.addr 4, 12
    %s514 = scalar_lea.vmem %s1, %s513
    %515 = vst [vmem:[%s514] sm:%s512] %v511
    %s516 = scalar_lea.vmem [#allocation0], 104
    %v517 = vld [vmem:[%s516] sm:%s427]
    %v518 = vpack.c.bf16 0.0, %v517
    %s519 = sshllo.u32 0, %s428
    %s520 = smul.addr 4, 13
    %s521 = scalar_lea.vmem %s1, %s520
    %522 = vst [vmem:[%s521] sm:%s519] %v518
    %s523 = scalar_lea.vmem [#allocation0], 112
    %v524 = vld [vmem:[%s523] sm:%s427]
    %v525 = vpack.c.bf16 0.0, %v524
    %s526 = sshllo.u32 0, %s428
    %s527 = smul.addr 4, 14
    %s528 = scalar_lea.vmem %s1, %s527
    %529 = vst [vmem:[%s528] sm:%s526] %v525
    %s530 = scalar_lea.vmem [#allocation0], 120
    %v531 = vld [vmem:[%s530] sm:%s427]
    %v532 = vpack.c.bf16 0.0, %v531
    %s533 = sshllo.u32 0, %s428
    %s534 = smul.addr 4, 15
    %s535 = scalar_lea.vmem %s1, %s534
    %536 = vst [vmem:[%s535] sm:%s533] %v532
    %s537 = scalar_lea.vmem [#allocation0], 128
    %v538 = vld [vmem:[%s537] sm:%s427]
    %v539 = vpack.c.bf16 0.0, %v538
    %s540 = sshllo.u32 0, %s428
    %s541 = smul.addr 4, 16
    %s542 = scalar_lea.vmem %s1, %s541
    %543 = vst [vmem:[%s542] sm:%s540] %v539
    %s544 = scalar_lea.vmem [#allocation0], 136
    %v545 = vld [vmem:[%s544] sm:%s427]
    %v546 = vpack.c.bf16 0.0, %v545
    %s547 = sshllo.u32 0, %s428
    %s548 = smul.addr 4, 17
    %s549 = scalar_lea.vmem %s1, %s548
    %550 = vst [vmem:[%s549] sm:%s547] %v546
    %s551 = scalar_lea.vmem [#allocation0], 144
    %v552 = vld [vmem:[%s551] sm:%s427]
    %v553 = vpack.c.bf16 0.0, %v552
    %s554 = sshllo.u32 0, %s428
    %s555 = smul.addr 4, 18
    %s556 = scalar_lea.vmem %s1, %s555
    %557 = vst [vmem:[%s556] sm:%s554] %v553
    %s558 = scalar_lea.vmem [#allocation0], 152
    %v559 = vld [vmem:[%s558] sm:%s427]
    %v560 = vpack.c.bf16 0.0, %v559
    %s561 = sshllo.u32 0, %s428
    %s562 = smul.addr 4, 19
    %s563 = scalar_lea.vmem %s1, %s562
    %564 = vst [vmem:[%s563] sm:%s561] %v560
    %s565 = scalar_lea.vmem [#allocation0], 160
    %v566 = vld [vmem:[%s565] sm:%s427]
    %v567 = vpack.c.bf16 0.0, %v566
    %s568 = sshllo.u32 0, %s428
    %s569 = smul.addr 4, 20
    %s570 = scalar_lea.vmem %s1, %s569
    %571 = vst [vmem:[%s570] sm:%s568] %v567
    %s572 = scalar_lea.vmem [#allocation0], 168
    %v573 = vld [vmem:[%s572] sm:%s427]
    %v574 = vpack.c.bf16 0.0, %v573
    %s575 = sshllo.u32 0, %s428
    %s576 = smul.addr 4, 21
    %s577 = scalar_lea.vmem %s1, %s576
    %578 = vst [vmem:[%s577] sm:%s575] %v574
    %s579 = scalar_lea.vmem [#allocation0], 176
    %v580 = vld [vmem:[%s579] sm:%s427]
    %v581 = vpack.c.bf16 0.0, %v580
    %s582 = sshllo.u32 0, %s428
    %s583 = smul.addr 4, 22
    %s584 = scalar_lea.vmem %s1, %s583
    %585 = vst [vmem:[%s584] sm:%s582] %v581
    %s586 = scalar_lea.vmem [#allocation0], 184
    %v587 = vld [vmem:[%s586] sm:%s427]
    %v588 = vpack.c.bf16 0.0, %v587
    %s589 = sshllo.u32 0, %s428
    %s590 = smul.addr 4, 23
    %s591 = scalar_lea.vmem %s1, %s590
    %592 = vst [vmem:[%s591] sm:%s589] %v588
    %s593 = scalar_lea.vmem [#allocation0], 192
    %v594 = vld [vmem:[%s593] sm:%s427]
    %v595 = vpack.c.bf16 0.0, %v594
    %s596 = sshllo.u32 0, %s428
    %s597 = smul.addr 4, 24
    %s598 = scalar_lea.vmem %s1, %s597
    %599 = vst [vmem:[%s598] sm:%s596] %v595
    %s600 = scalar_lea.vmem [#allocation0], 200
    %v601 = vld [vmem:[%s600] sm:%s427]
    %v602 = vpack.c.bf16 0.0, %v601
    %s603 = sshllo.u32 0, %s428
    %s604 = smul.addr 4, 25
    %s605 = scalar_lea.vmem %s1, %s604
    %606 = vst [vmem:[%s605] sm:%s603] %v602
    %s607 = scalar_lea.vmem [#allocation0], 208
    %v608 = vld [vmem:[%s607] sm:%s427]
    %v609 = vpack.c.bf16 0.0, %v608
    %s610 = sshllo.u32 0, %s428
    %s611 = smul.addr 4, 26
    %s612 = scalar_lea.vmem %s1, %s611
    %613 = vst [vmem:[%s612] sm:%s610] %v609
    %s614 = scalar_lea.vmem [#allocation0], 216
    %v615 = vld [vmem:[%s614] sm:%s427]
    %v616 = vpack.c.bf16 0.0, %v615
    %s617 = sshllo.u32 0, %s428
    %s618 = smul.addr 4, 27
    %s619 = scalar_lea.vmem %s1, %s618
    %620 = vst [vmem:[%s619] sm:%s617] %v616
    %s621 = scalar_lea.vmem [#allocation0], 224
    %v622 = vld [vmem:[%s621] sm:%s427]
    %v623 = vpack.c.bf16 0.0, %v622
    %s624 = sshllo.u32 0, %s428
    %s625 = smul.addr 4, 28
    %s626 = scalar_lea.vmem %s1, %s625
    %627 = vst [vmem:[%s626] sm:%s624] %v623
    %s628 = scalar_lea.vmem [#allocation0], 232
    %v629 = vld [vmem:[%s628] sm:%s427]
    %v630 = vpack.c.bf16 0.0, %v629
    %s631 = sshllo.u32 0, %s428
    %s632 = smul.addr 4, 29
    %s633 = scalar_lea.vmem %s1, %s632
    %634 = vst [vmem:[%s633] sm:%s631] %v630
    %s635 = scalar_lea.vmem [#allocation0], 240
    %v636 = vld [vmem:[%s635] sm:%s427]
    %v637 = vpack.c.bf16 0.0, %v636
    %s638 = sshllo.u32 0, %s428
    %s639 = smul.addr 4, 30
    %s640 = scalar_lea.vmem %s1, %s639
    %641 = vst [vmem:[%s640] sm:%s638] %v637
    %s642 = scalar_lea.vmem [#allocation0], 248
    %v643 = vld [vmem:[%s642] sm:%s427]
    %v644 = vpack.c.bf16 0.0, %v643
    %s645 = sshllo.u32 0, %s428
    %s646 = smul.addr 4, 31
    %s647 = scalar_lea.vmem %s1, %s646
    %648 = vst [vmem:[%s647] sm:%s645] %v644

// kernel: model_tanh.1
$region0: #{model_tanh.1}
  #allocation0 [shape = 'u32[]', space=smem, size = 0x4, offset = 0x4, fixed_abs, tag = 'smem constant byte address 0x4 - core index']
  #allocation1 [shape = 'u32[144,128]{1,0:T(1,128)}', space=vmem, size = 0x12000, scoped, tag = 'internal scratch']
  %s0 = inlined_call_operand.vmem [shape: bf16[16,145,512], index: 0, kind: input, shape index: {}]
  %s1 = inlined_call_operand.vmem [shape: bf16[256,145], index: 1, kind: input, shape index: {}]
  %s2 = inlined_call_operand.vmem [shape: f32[1,512], index: 2, kind: input, shape index: {}]
  %s3 = inlined_call_operand.vmem [shape: f32[1,512], index: 3, kind: input, shape index: {}]
  %s4 = inlined_call_operand.vmem [shape: f32[16,16,512], index: 4, kind: output, shape index: {}]
  %s5 = sld [smem:[#allocation0]]
  $region49: #{model_tanh.1} parent=0
    _
  %s7 = ssub.s32 1, %s5
  %s8 = scalar_select 0, %s7, %s5
  loop: start=0, step=1, limit=4
  $region2: #{model_tanh.1} parent=0 // loop_pre_header
    _
  $region3: #{model_tanh.1} parent=0 // loop_header
    %s10 = sphi 0, %s14
    %p11 = scmp.ge.s32.totalorder %s10, 4
    %s20 = sphi 0, %s22
    %s23 = sphi 0, %s20
    %s24 = sphi 0, %s23
    %s40 = sphi 0, %s24
    %s44 = sphi 0, %s44
    %s46 = sphi 0, %s44
    %s47 = sphi 0, %s46
    %s61 = sphi 0, %s47
    %s65 = sphi 0, %s65
    %s67 = sphi 0, %s65
    %s68 = sphi 0, %s67
    %s82 = sphi 0, %s68
    %s86 = sphi 0, %s86
    %s88 = sphi 0, %s86
    %s89 = sphi 0, %s88
    %s103 = sphi 0, %s89
    %s109 = sphi 0, %s111
    %s112 = sphi 0, %s109
    %s113 = sphi 0, %s112
    %s129 = sphi 0, %s113
  $region4: #{model_tanh.1} parent=0 // loop_header_branch
    %13 = sbr.rel (%p11) target = $region8
  $region5: #{model_tanh.1} parent=0 // loop_body
    %s15 = ssub.s32 %s10, 1
    %s16 = ssub.s32 %s10, 2
    %s17 = sadd.s32 %s10, 1
    %s18 = ssub.s32 %s10, %s17
    %p19 = scmp.eq.s32.totalorder %s18, 0
    %s21 = sadd.s32 %s20, 1
    %s22 = scalar_select %p19, %s20, %s21
    %p25 = pneg %p19
    %p26 = scmp.eq.s32.totalorder %s10, 1
    %p27 = por %p25, %p26
    %p28 = scmp.ne.s32.totalorder %s20, %s23
    %p29 = scmp.eq.s32.totalorder %s10, 0
    %p30 = por %p28, %p29
    %p31 = scmp.ne.s32.totalorder %s20, %s23
    %p32 = scmp.eq.s32.totalorder %s15, 1
    %p33 = por %p31, %p32
    %p34 = scmp.ne.s32.totalorder %s23, %s24
    %p35 = scmp.eq.s32.totalorder %s15, 0
    %p36 = por %p34, %p35
    %p37 = scmp.ne.s32.totalorder %s23, %s24
    %p38 = scmp.eq.s32.totalorder %s16, 1
    %p39 = por %p37, %p38
    %p41 = scmp.ne.s32.totalorder %s24, %s40
    %p42 = scmp.eq.s32.totalorder %s16, 0
    %p43 = por %p41, %p42
    %s45 = sadd.s32 %s44, 1
    %p48 = scmp.eq.s32.totalorder %s10, 1
    %p49 = scmp.ne.s32.totalorder %s44, %s46
    %p50 = scmp.eq.s32.totalorder %s10, 0
    %p51 = por %p49, %p50
    %p52 = scmp.ne.s32.totalorder %s44, %s46
    %p53 = scmp.eq.s32.totalorder %s15, 1
    %p54 = por %p52, %p53
    %p55 = scmp.ne.s32.totalorder %s46, %s47
    %p56 = scmp.eq.s32.totalorder %s15, 0
    %p57 = por %p55, %p56
    %p58 = scmp.ne.s32.totalorder %s46, %s47
    %p59 = scmp.eq.s32.totalorder %s16, 1
    %p60 = por %p58, %p59
    %p62 = scmp.ne.s32.totalorder %s47, %s61
    %p63 = scmp.eq.s32.totalorder %s16, 0
    %p64 = por %p62, %p63
    %s66 = sadd.s32 %s65, 1
    %p69 = scmp.eq.s32.totalorder %s10, 1
    %p70 = scmp.ne.s32.totalorder %s65, %s67
    %p71 = scmp.eq.s32.totalorder %s10, 0
    %p72 = por %p70, %p71
    %p73 = scmp.ne.s32.totalorder %s65, %s67
    %p74 = scmp.eq.s32.totalorder %s15, 1
    %p75 = por %p73, %p74
    %p76 = scmp.ne.s32.totalorder %s67, %s68
    %p77 = scmp.eq.s32.totalorder %s15, 0
    %p78 = por %p76, %p77
    %p79 = scmp.ne.s32.totalorder %s67, %s68
    %p80 = scmp.eq.s32.totalorder %s16, 1
    %p81 = por %p79, %p80
    %p83 = scmp.ne.s32.totalorder %s68, %s82
    %p84 = scmp.eq.s32.totalorder %s16, 0
    %p85 = por %p83, %p84
    %s87 = sadd.s32 %s86, 1
    %p90 = scmp.eq.s32.totalorder %s10, 1
    %p91 = scmp.ne.s32.totalorder %s86, %s88
    %p92 = scmp.eq.s32.totalorder %s10, 0
    %p93 = por %p91, %p92
    %p94 = scmp.ne.s32.totalorder %s86, %s88
    %p95 = scmp.eq.s32.totalorder %s15, 1
    %p96 = por %p94, %p95
    %p97 = scmp.ne.s32.totalorder %s88, %s89
    %p98 = scmp.eq.s32.totalorder %s15, 0
    %p99 = por %p97, %p98
    %p100 = scmp.ne.s32.totalorder %s88, %s89
    %p101 = scmp.eq.s32.totalorder %s16, 1
    %p102 = por %p100, %p101
    %p104 = scmp.ne.s32.totalorder %s89, %s103
    %p105 = scmp.eq.s32.totalorder %s16, 0
    %p106 = por %p104, %p105
    %s107 = ssub.s32 %s10, %s17
    %p108 = scmp.eq.s32.totalorder %s107, 0
    %s110 = sadd.s32 %s109, 1
    %s111 = scalar_select %p108, %s109, %s110
    %p114 = pneg %p108
    %p115 = scmp.eq.s32.totalorder %s10, 1
    %p116 = por %p114, %p115
    %p117 = scmp.ne.s32.totalorder %s109, %s112
    %p118 = scmp.eq.s32.totalorder %s10, 0
    %p119 = por %p117, %p118
    %p120 = scmp.ne.s32.totalorder %s109, %s112
    %p121 = scmp.eq.s32.totalorder %s15, 1
    %p122 = por %p120, %p121
    %p123 = scmp.ne.s32.totalorder %s112, %s113
    %p124 = scmp.eq.s32.totalorder %s15, 0
    %p125 = por %p123, %p124
    %p126 = scmp.ne.s32.totalorder %s112, %s113
    %p127 = scmp.eq.s32.totalorder %s16, 1
    %p128 = por %p126, %p127
    %p130 = scmp.ne.s32.totalorder %s113, %s129
    %p131 = scmp.eq.s32.totalorder %s16, 0
    %p132 = por %p130, %p131
    %p133 = scmp.le.s32.totalorder 1, %s10
    %p134 = scmp.lt.s32.totalorder %s10, 3
    %p135 = pnand %p133, %p134
    %p136 = pneg %p135
    // Predicated region
    $region9: #{model_tanh.1} parent=5 // pred_check
      _
    $region10: #{model_tanh.1} parent=5 // pred_check_branch
      %138 = sbr.rel (%p135) target = $region12
    $region11: #{model_tanh.1} parent=5 // pred_region
      %s139 = ssub.s32 %s10, 1
      // Predicated region
      $region13: #{model_tanh.1} parent=11 // pred_check
        %p140 = pneg %p57
      $region14: #{model_tanh.1} parent=11 // pred_check_branch
        %142 = sbr.rel (%p140) target = $region16
      $region15: #{model_tanh.1} parent=11 // pred_region
        _
      $region16: #{model_tanh.1} parent=11 // pred_fallthru
        _
      // Predicated region
      $region17: #{model_tanh.1} parent=11 // pred_check
        %p143 = pneg %p78
      $region18: #{model_tanh.1} parent=11 // pred_check_branch
        %145 = sbr.rel (%p143) target = $region20
      $region19: #{model_tanh.1} parent=11 // pred_region
        _
      $region20: #{model_tanh.1} parent=11 // pred_fallthru
        _
      // Predicated region
      $region21: #{model_tanh.1} parent=11 // pred_check
        %p146 = pneg %p99
      $region22: #{model_tanh.1} parent=11 // pred_check_branch
        %148 = sbr.rel (%p146) target = $region24
      $region23: #{model_tanh.1} parent=11 // pred_region
        _
      $region24: #{model_tanh.1} parent=11 // pred_fallthru
        _
    $region12: #{model_tanh.1} parent=5 // pred_fallthru
      _
    %p149 = scmp.lt.s32.totalorder %s10, 2
    // Predicated region
    $region25: #{model_tanh.1} parent=5 // pred_check
      %p150 = pneg %p149
    $region26: #{model_tanh.1} parent=5 // pred_check_branch
      %152 = sbr.rel (%p150) target = $region28
    $region27: #{model_tanh.1} parent=5 // pred_region
      // Predicated region
      $region29: #{model_tanh.1} parent=27 // pred_check
        %p153 = pneg %p30
      $region30: #{model_tanh.1} parent=27 // pred_check_branch
        %155 = sbr.rel (%p153) target = $region32
      $region31: #{model_tanh.1} parent=27 // pred_region
        %s156 = smul.u32 8, %s10
        %p157 = scmp.lt.s32.totalorder %s156, 15
        %s158 = scalar_select %p157, %s156, 15
        %s159 = smul.addr %s158, 76
        %s160 = smul.addr %s159, 4
        %s161 = scalar_lea.vmem %s0, %s160
        %s162 = smul.u32 8, %s10
      $region32: #{model_tanh.1} parent=27 // pred_fallthru
        _
    $region28: #{model_tanh.1} parent=5 // pred_fallthru
      _
    %p163 = scmp.le.s32.totalorder 1, %s10
    %p164 = scmp.lt.s32.totalorder %s10, 3
    %p165 = pnand %p163, %p164
    %p166 = pneg %p165
    // Predicated region
    $region33: #{model_tanh.1} parent=5 // pred_check
      _
    $region34: #{model_tanh.1} parent=5 // pred_check_branch
      %168 = sbr.rel (%p165) target = $region36
    $region35: #{model_tanh.1} parent=5 // pred_region
      %s169 = ssub.s32 %s10, 1
      %s170 = smul.u32 8, %s15
      %p171 = scmp.lt.s32.totalorder %s170, 15
      %s172 = scalar_select %p171, %s170, 15
      %s173 = smul.addr %s172, 76
      %s174 = smul.addr %s173, 4
      %s175 = scalar_lea.vmem %s0, %s174
      %p176 = pneg %p36
      %p177 = pneg %p33
      %p178 = pneg %p57
      %p179 = pneg %p54
      %p180 = pneg %p78
      %p181 = pneg %p75
      %p182 = pneg %p99
      %p183 = pneg %p96
      %p184 = pneg %p125
      %p185 = pneg %p122
      %s186 = smul.u32 8, %s15
      %p187 = scmp.lt.s32.totalorder %s186, 15
      %s188 = scalar_select %p187, %s186, 15
      %s189 = smul.addr %s188, 8
      %s190 = smul.addr %s189, 8
      %s191 = scalar_lea.vmem %s4, %s190
      %s192 = smul.u32 8, %s15
      %p193 = scmp.lt.s32.totalorder %s192, 15
      %s194 = scalar_select %p193, %s192, 15
      %s195 = smul.addr %s194, 76
      %s196 = smul.addr %s195, 4
      %s197 = scalar_lea.vmem %s0, %s196
      %s198 = smul.u32 8, %s15
      %s199 = smul.u32 8, %s15
      %p200 = scmp.lt.s32.totalorder %s199, 15
      %s201 = scalar_select %p200, %s199, 15
      %s202 = smul.addr %s201, 8
      %s203 = smul.addr %s202, 8
      %s204 = scalar_lea.vmem %s4, %s203
      %s205 = smul.u32 8, %s15
      %v207 = vld [vmem:[%s2] sm:$0xf]
      %v208 = vld [vmem:[%s3] sm:$0xf]
      %v209 = vld [vmem:[%s197] sm:$0xff]
      %v210 = vld [vmem:[%s197 + $0x8] sm:$0xff]
      %v211 = vld [vmem:[%s197 + $0x10] sm:$0xff]
      %v212 = vld [vmem:[%s197 + $0x18] sm:$0xff]
      %v213 = vld [vmem:[%s197 + $0x20] sm:$0xff]
      %v214 = vld [vmem:[%s197 + $0x28] sm:$0xff]
      %v215 = vld [vmem:[%s197 + $0x30] sm:$0xff]
      %v216 = vld [vmem:[%s197 + $0x38] sm:$0xff]
      %v217 = vld [vmem:[%s197 + $0x40] sm:$0xff]
      %v218 = vld [vmem:[%s197 + $0x48] sm:$0xff]
      %v219 = vld [vmem:[%s197 + $0x50] sm:$0xff]
      %v220 = vld [vmem:[%s197 + $0x58] sm:$0xff]
      %v221 = vld [vmem:[%s197 + $0x60] sm:$0xff]
      %v222 = vld [vmem:[%s197 + $0x68] sm:$0xff]
      %v223 = vld [vmem:[%s197 + $0x70] sm:$0xff]
      %v224 = vld [vmem:[%s197 + $0x78] sm:$0xff]
      %v225 = vld [vmem:[%s197 + $0x80] sm:$0xff]
      %v226 = vld [vmem:[%s197 + $0x88] sm:$0xff]
      %v227 = vld [vmem:[%s197 + $0x90] sm:$0xff]
      %v228 = vld [vmem:[%s197 + $0x98] sm:$0xff]
      %v229 = vld [vmem:[%s197 + $0xa0] sm:$0xff]
      %v230 = vld [vmem:[%s197 + $0xa8] sm:$0xff]
      %v231 = vld [vmem:[%s197 + $0xb0] sm:$0xff]
      %v232 = vld [vmem:[%s197 + $0xb8] sm:$0xff]
      %v233 = vld [vmem:[%s197 + $0xc0] sm:$0xff]
      %v234 = vld [vmem:[%s197 + $0xc8] sm:$0xff]
      %v235 = vld [vmem:[%s197 + $0xd0] sm:$0xff]
      %v236 = vld [vmem:[%s197 + $0xd8] sm:$0xff]
      %v237 = vld [vmem:[%s197 + $0xe0] sm:$0xff]
      %v238 = vld [vmem:[%s197 + $0xe8] sm:$0xff]
      %v239 = vld [vmem:[%s197 + $0xf0] sm:$0xff]
      %v240 = vld [vmem:[%s197 + $0xf8] sm:$0xff]
      %v241 = vld [vmem:[%s197 + $0x100] sm:$0xff]
      %v242 = vld [vmem:[%s197 + $0x108] sm:$0xff]
      %v243 = vld [vmem:[%s197 + $0x110] sm:$0xff]
      %v244 = vld [vmem:[%s197 + $0x118] sm:$0xff]
      %v245 = vld [vmem:[%s197 + $0x120] sm:$0x11]
      %v246 = vld [vmem:[%s197 + $0x128] sm:$0x11]
      %v247 = vld [vmem:[%s1] sm:$0xff]
      %v248 = vld [vmem:[%s1 + $0x8] sm:$0xff]
      %v249 = vld [vmem:[%s1 + $0x10] sm:$0xff]
      %v250 = vld [vmem:[%s1 + $0x18] sm:$0xff]
      %v251 = vld [vmem:[%s1 + $0x20] sm:$0xff]
      %v252 = vld [vmem:[%s1 + $0x28] sm:$0xff]
      %v253 = vld [vmem:[%s1 + $0x30] sm:$0xff]
      %v254 = vld [vmem:[%s1 + $0x38] sm:$0xff]
      %v263 = vunpack.c.l.b16 %v247
      %v264 = vunpack.c.h.b16 %v247
      %v265 = vunpack.c.l.b16 %v248
      %v266 = vunpack.c.h.b16 %v248
      %v267 = vunpack.c.l.b16 %v249
      %v268 = vunpack.c.h.b16 %v249
      %v269 = vunpack.c.l.b16 %v250
      %v270 = vunpack.c.h.b16 %v250
      %v271 = vunpack.c.l.b16 %v251
      %v272 = vunpack.c.h.b16 %v251
      %v273 = vunpack.c.l.b16 %v252
      %v274 = vunpack.c.h.b16 %v252
      %v275 = vunpack.c.l.b16 %v253
      %v276 = vunpack.c.h.b16 %v253
      %v277 = vunpack.c.l.b16 %v254
      %v278 = vunpack.c.h.b16 %v254
      %v279 = vpack.c.b16 %v265, %v263
      %v280 = vpack.c.b16 %v266, %v264
      %v281 = vpack.c.b16 %v269, %v267
      %v282 = vpack.c.b16 %v270, %v268
      %v283 = vpack.c.b16 %v273, %v271
      %v284 = vpack.c.b16 %v274, %v272
      %v285 = vpack.c.b16 %v277, %v275
      %v286 = vpack.c.b16 %v278, %v276
      %v329 = vunpack.c.l.b16 %v209
      %v330 = vunpack.c.h.b16 %v209
      %v331 = vunpack.c.l.b16 %v210
      %v332 = vunpack.c.h.b16 %v210
      %v333 = vunpack.c.l.b16 %v211
      %v334 = vunpack.c.h.b16 %v211
      %v335 = vunpack.c.l.b16 %v212
      %v336 = vunpack.c.h.b16 %v212
      %v337 = vunpack.c.l.b16 %v213
      %v338 = vunpack.c.h.b16 %v213
      %v339 = vunpack.c.l.b16 %v214
      %v340 = vunpack.c.h.b16 %v214
      %v341 = vunpack.c.l.b16 %v215
      %v342 = vunpack.c.h.b16 %v215
      %v343 = vunpack.c.l.b16 %v216
      %v344 = vunpack.c.h.b16 %v216
      %v345 = vunpack.c.l.b16 %v217
      %v346 = vunpack.c.h.b16 %v217
      %v347 = vunpack.c.l.b16 %v218
      %v348 = vunpack.c.h.b16 %v218
      %v349 = vunpack.c.l.b16 %v219
      %v350 = vunpack.c.h.b16 %v219
      %v351 = vunpack.c.l.b16 %v220
      %v352 = vunpack.c.h.b16 %v220
      %v353 = vunpack.c.l.b16 %v221
      %v354 = vunpack.c.h.b16 %v221
      %v355 = vunpack.c.l.b16 %v222
      %v356 = vunpack.c.h.b16 %v222
      %v357 = vunpack.c.l.b16 %v223
      %v358 = vunpack.c.h.b16 %v223
      %v359 = vunpack.c.l.b16 %v224
      %v360 = vunpack.c.h.b16 %v224
      %v361 = vunpack.c.l.b16 %v225
      %v362 = vunpack.c.h.b16 %v225
      %v363 = vunpack.c.l.b16 %v226
      %v364 = vunpack.c.h.b16 %v226
      %v365 = vunpack.c.l.b16 %v227
      %v366 = vunpack.c.h.b16 %v227
      %v367 = vunpack.c.l.b16 %v228
      %v368 = vunpack.c.h.b16 %v228
      %v369 = vunpack.c.l.b16 %v229
      %v370 = vunpack.c.h.b16 %v229
      %v371 = vunpack.c.l.b16 %v230
      %v372 = vunpack.c.h.b16 %v230
      %v373 = vunpack.c.l.b16 %v231
      %v374 = vunpack.c.h.b16 %v231
      %v375 = vunpack.c.l.b16 %v232
      %v376 = vunpack.c.h.b16 %v232
      %v377 = vunpack.c.l.b16 %v233
      %v378 = vunpack.c.h.b16 %v233
      %v379 = vunpack.c.l.b16 %v234
      %v380 = vunpack.c.h.b16 %v234
      %v381 = vunpack.c.l.b16 %v235
      %v382 = vunpack.c.h.b16 %v235
      %v383 = vunpack.c.l.b16 %v236
      %v384 = vunpack.c.h.b16 %v236
      %v385 = vunpack.c.l.b16 %v237
      %v386 = vunpack.c.h.b16 %v237
      %v387 = vunpack.c.l.b16 %v238
      %v388 = vunpack.c.h.b16 %v238
      %v389 = vunpack.c.l.b16 %v239
      %v390 = vunpack.c.h.b16 %v239
      %v391 = vunpack.c.l.b16 %v240
      %v392 = vunpack.c.h.b16 %v240
      %v393 = vunpack.c.l.b16 %v241
      %v394 = vunpack.c.h.b16 %v241
      %v395 = vunpack.c.l.b16 %v242
      %v396 = vunpack.c.h.b16 %v242
      %v397 = vunpack.c.l.b16 %v243
      %v398 = vunpack.c.h.b16 %v243
      %v399 = vunpack.c.l.b16 %v244
      %v400 = vunpack.c.h.b16 %v244
      %v401 = vunpack.c.l.b16 %v245
      %v402 = vunpack.c.h.b16 %v245
      %v403 = vunpack.c.l.b16 %v246
      %v404 = vunpack.c.h.b16 %v246
      %v405 = vpack.c.b16 %v333, %v329
      %v406 = vpack.c.b16 %v334, %v330
      %v407 = vpack.c.b16 %v335, %v331
      %v408 = vpack.c.b16 %v336, %v332
      %v409 = vpack.c.b16 %v341, %v337
      %v410 = vpack.c.b16 %v342, %v338
      %v411 = vpack.c.b16 %v343, %v339
      %v412 = vpack.c.b16 %v344, %v340
      %v413 = vpack.c.b16 %v349, %v345
      %v414 = vpack.c.b16 %v350, %v346
      %v415 = vpack.c.b16 %v351, %v347
      %v416 = vpack.c.b16 %v352, %v348
      %v417 = vpack.c.b16 %v357, %v353
      %v418 = vpack.c.b16 %v358, %v354
      %v419 = vpack.c.b16 %v359, %v355
      %v420 = vpack.c.b16 %v360, %v356
      %v421 = vpack.c.b16 %v365, %v361
      %v422 = vpack.c.b16 %v366, %v362
      %v423 = vpack.c.b16 %v367, %v363
      %v424 = vpack.c.b16 %v368, %v364
      %v425 = vpack.c.b16 %v373, %v369
      %v426 = vpack.c.b16 %v374, %v370
      %v427 = vpack.c.b16 %v375, %v371
      %v428 = vpack.c.b16 %v376, %v372
      %v429 = vpack.c.b16 %v381, %v377
      %v430 = vpack.c.b16 %v382, %v378
      %v431 = vpack.c.b16 %v383, %v379
      %v432 = vpack.c.b16 %v384, %v380
      %v433 = vpack.c.b16 %v389, %v385
      %v434 = vpack.c.b16 %v390, %v386
      %v435 = vpack.c.b16 %v391, %v387
      %v436 = vpack.c.b16 %v392, %v388
      %v437 = vpack.c.b16 %v397, %v393
      %v438 = vpack.c.b16 %v398, %v394
      %v439 = vpack.c.b16 %v399, %v395
      %v440 = vpack.c.b16 %v400, %v396
      %v441 = vpack.c.b16 %v401, %v401
      %v442 = vpack.c.b16 %v402, %v402
      %v443 = vpack.c.b16 %v403, %v403
      %v444 = vpack.c.b16 %v404, %v404
      %vm481 = vcmask 138240
      %v483 = vsel %vm481, %v280, 0
      %v486 = vsel %vm481, %v282, 0
      %v489 = vsel %vm481, %v284, 0
      %v492 = vsel %vm481, %v286, 0
      %vm494 = vcmask 1040384
      %v495 = vsel 0, 4294967295, 65535
      %v496 = vsel %vm494, %v495, 0
      %v498 = vand.u32 %v441, %v496
      %v501 = vand.u32 %v442, %v496
      %v504 = vand.u32 %v443, %v496
      %v507 = vand.u32 %v444, %v496
      %509 = vmatprep.subr.bf16.mxu0 %v406
      %510 = vmatpush1.bf16.msra.mxu0 %v405
      %511 = vmatprep.subr.bf16.mxu0 %v410
      %512 = vmatpush1.bf16.msra.mxu0 %v409
      %513 = vmatprep.subr.bf16.mxu0 %v414
      %514 = vmatpush1.bf16.msra.mxu0 %v413
      %515 = vmatprep.subr.bf16.mxu0 %v418
      %516 = vmatpush1.bf16.msra.mxu0 %v417
      %517 = vmatprep.subr.bf16.mxu0 %v422
      %518 = vmatpush1.bf16.msra.mxu0 %v421
      %519 = vmatprep.subr.bf16.mxu0 %v426
      %520 = vmatpush1.bf16.msra.mxu0 %v425
      %521 = vmatprep.subr.bf16.mxu0 %v430
      %522 = vmatpush1.bf16.msra.mxu0 %v429
      %523 = vmatprep.subr.bf16.mxu0 %v434
      %524 = vmatpush1.bf16.msra.mxu0 %v433
      %525 = vmatprep.subr.bf16.mxu0 %v438
      %526 = vmatpush1.bf16.msra.mxu0 %v437
      %527 = vmatprep.subr.bf16.mxu0 %v501
      %528 = vmatpush1.bf16.msra.mxu0 %v498
      %529 = vmatprep.subr.bf16.mxu0 0
      %530 = vmatpush1.bf16.msra.mxu0 0
      %531 = vmatprep.subr.bf16.mxu0 0
      %532 = vmatpush1.bf16.msra.mxu0 0
      %533 = vmatprep.subr.bf16.mxu0 0
      %534 = vmatpush1.bf16.msra.mxu0 0
      %535 = vmatprep.subr.bf16.mxu0 0
      %536 = vmatpush1.bf16.msra.mxu0 0
      %537 = vmatprep.subr.bf16.mxu0 0
      %538 = vmatpush1.bf16.msra.mxu0 0
      %539 = vmatprep.subr.bf16.mxu0 0
      %540 = vmatpush1.bf16.msra.mxu0 0
      %541 = vmatprep.mubr.bf16.mxu0 %v483
      %542 = vmatmul.mubr.bf16.gmra.mrb[0].mxu0 %v279
      %v543 = vpop.f32.mrb[0].mxu0
      %v544 = vadd.f32 0.0, %v543
      %v545 = vpop.f32.mrb[0].mxu0
      %v546 = vadd.f32 0.0, %v545
      %v547 = vpop.f32.mrb[0].mxu0
      %v548 = vadd.f32 0.0, %v547
      %v549 = vpop.f32.mrb[0].mxu0
      %v550 = vadd.f32 0.0, %v549
      %551 = vmatprep.mubr.bf16.mxu0 %v486
      %552 = vmatmul.mubr.bf16.gmra.mrb[0].mxu0 %v281
      %v553 = vpop.f32.mrb[0].mxu0
      %v554 = vadd.f32 0.0, %v553
      %v555 = vpop.f32.mrb[0].mxu0
      %v556 = vadd.f32 0.0, %v555
      %v557 = vpop.f32.mrb[0].mxu0
      %v558 = vadd.f32 0.0, %v557
      %v559 = vpop.f32.mrb[0].mxu0
      %v560 = vadd.f32 0.0, %v559
      %561 = vmatprep.mubr.bf16.mxu0 %v489
      %562 = vmatmul.mubr.bf16.gmra.mrb[0].mxu0 %v283
      %v563 = vpop.f32.mrb[0].mxu0
      %v564 = vadd.f32 0.0, %v563
      %v565 = vpop.f32.mrb[0].mxu0
      %v566 = vadd.f32 0.0, %v565
      %v567 = vpop.f32.mrb[0].mxu0
      %v568 = vadd.f32 0.0, %v567
      %v569 = vpop.f32.mrb[0].mxu0
      %v570 = vadd.f32 0.0, %v569
      %571 = vmatprep.mubr.bf16.mxu0 %v492
      %572 = vmatmul.mubr.bf16.gmra.mrb[0].mxu0 %v285
      %v573 = vpop.f32.mrb[0].mxu0
      %v574 = vadd.f32 0.0, %v573
      %v575 = vpop.f32.mrb[0].mxu0
      %v576 = vadd.f32 0.0, %v575
      %v577 = vpop.f32.mrb[0].mxu0
      %v578 = vadd.f32 0.0, %v577
      %v579 = vpop.f32.mrb[0].mxu0
      %v580 = vadd.f32 0.0, %v579
      %581 = vdwg.mxu0
      %582 = vmatprep.subr.bf16.mxu0 %v408
      %583 = vmatpush1.bf16.msra.mxu0 %v407
      %584 = vmatprep.subr.bf16.mxu0 %v412
      %585 = vmatpush1.bf16.msra.mxu0 %v411
      %586 = vmatprep.subr.bf16.mxu0 %v416
      %587 = vmatpush1.bf16.msra.mxu0 %v415
      %588 = vmatprep.subr.bf16.mxu0 %v420
      %589 = vmatpush1.bf16.msra.mxu0 %v419
      %590 = vmatprep.subr.bf16.mxu0 %v424
      %591 = vmatpush1.bf16.msra.mxu0 %v423
      %592 = vmatprep.subr.bf16.mxu0 %v428
      %593 = vmatpush1.bf16.msra.mxu0 %v427
      %594 = vmatprep.subr.bf16.mxu0 %v432
      %595 = vmatpush1.bf16.msra.mxu0 %v431
      %596 = vmatprep.subr.bf16.mxu0 %v436
      %597 = vmatpush1.bf16.msra.mxu0 %v435
      %598 = vmatprep.subr.bf16.mxu0 %v440
      %599 = vmatpush1.bf16.msra.mxu0 %v439
      %600 = vmatprep.subr.bf16.mxu0 %v507
      %601 = vmatpush1.bf16.msra.mxu0 %v504
      %602 = vmatprep.subr.bf16.mxu0 0
      %603 = vmatpush1.bf16.msra.mxu0 0
      %604 = vmatprep.subr.bf16.mxu0 0
      %605 = vmatpush1.bf16.msra.mxu0 0
      %606 = vmatprep.subr.bf16.mxu0 0
      %607 = vmatpush1.bf16.msra.mxu0 0
      %608 = vmatprep.subr.bf16.mxu0 0
      %609 = vmatpush1.bf16.msra.mxu0 0
      %610 = vmatprep.subr.bf16.mxu0 0
      %611 = vmatpush1.bf16.msra.mxu0 0
      %612 = vmatprep.subr.bf16.mxu0 0
      %613 = vmatpush1.bf16.msra.mxu0 0
      %614 = vmatprep.mubr.bf16.mxu0 %v483
      %615 = vmatmul.mubr.bf16.gmra.mrb[0].mxu0 %v279
      %v616 = vpop.f32.mrb[0].mxu0
      %v617 = vadd.f32 0.0, %v616
      %v618 = vpop.f32.mrb[0].mxu0
      %v619 = vadd.f32 0.0, %v618
      %v620 = vpop.f32.mrb[0].mxu0
      %v621 = vadd.f32 0.0, %v620
      %v622 = vpop.f32.mrb[0].mxu0
      %v623 = vadd.f32 0.0, %v622
      %624 = vmatprep.mubr.bf16.mxu0 %v486
      %625 = vmatmul.mubr.bf16.gmra.mrb[0].mxu0 %v281
      %v626 = vpop.f32.mrb[0].mxu0
      %v627 = vadd.f32 0.0, %v626
      %v628 = vpop.f32.mrb[0].mxu0
      %v629 = vadd.f32 0.0, %v628
      %v630 = vpop.f32.mrb[0].mxu0
      %v631 = vadd.f32 0.0, %v630
      %v632 = vpop.f32.mrb[0].mxu0
      %v633 = vadd.f32 0.0, %v632
      %634 = vmatprep.mubr.bf16.mxu0 %v489
      %635 = vmatmul.mubr.bf16.gmra.mrb[0].mxu0 %v283
      %v636 = vpop.f32.mrb[0].mxu0
      %v637 = vadd.f32 0.0, %v636
      %v638 = vpop.f32.mrb[0].mxu0
      %v639 = vadd.f32 0.0, %v638
      %v640 = vpop.f32.mrb[0].mxu0
      %v641 = vadd.f32 0.0, %v640
      %v642 = vpop.f32.mrb[0].mxu0
      %v643 = vadd.f32 0.0, %v642
      %644 = vmatprep.mubr.bf16.mxu0 %v492
      %645 = vmatmul.mubr.bf16.gmra.mrb[0].mxu0 %v285
      %v646 = vpop.f32.mrb[0].mxu0
      %v647 = vadd.f32 0.0, %v646
      %v648 = vpop.f32.mrb[0].mxu0
      %v649 = vadd.f32 0.0, %v648
      %v650 = vpop.f32.mrb[0].mxu0
      %v651 = vadd.f32 0.0, %v650
      %v652 = vpop.f32.mrb[0].mxu0
      %v653 = vadd.f32 0.0, %v652
      %654 = vdwg.mxu0
      %v655 = vmax.f32 %v544, %v564
      %v656 = vmax.f32 %v546, %v566
      %v657 = vmax.f32 %v617, %v637
      %v658 = vmax.f32 %v619, %v639
      %v659 = vmax.f32 %v548, %v568
      %v660 = vmax.f32 %v550, %v570
      %v661 = vmax.f32 %v621, %v641
      %v662 = vmax.f32 %v623, %v643
      %v663 = vmax.f32 %v554, %v574
      %v664 = vmax.f32 %v556, %v576
      %v665 = vmax.f32 %v627, %v647
      %v666 = vmax.f32 %v629, %v649
      %v667 = vmax.f32 %v558, %v578
      %v668 = vmax.f32 %v560, %v580
      %v669 = vmax.f32 %v631, %v651
      %v670 = vmax.f32 %v633, %v653
      %v671 = vmax.f32 %v655, %v663
      %v672 = vmax.f32 %v656, %v664
      %v673 = vmax.f32 %v657, %v665
      %v674 = vmax.f32 %v658, %v666
      %v675 = vmax.f32 %v659, %v667
      %v676 = vmax.f32 %v660, %v668
      %v677 = vmax.f32 %v661, %v669
      %v678 = vmax.f32 %v662, %v670
      %v679 = vld [vmem:[%s1 + $0x40] sm:$0xff]
      %v680 = vld [vmem:[%s1 + $0x48] sm:$0xff]
      %v681 = vld [vmem:[%s1 + $0x50] sm:$0xff]
      %v682 = vld [vmem:[%s1 + $0x58] sm:$0xff]
      %v683 = vld [vmem:[%s1 + $0x60] sm:$0xff]
      %v684 = vld [vmem:[%s1 + $0x68] sm:$0xff]
      %v685 = vld [vmem:[%s1 + $0x70] sm:$0xff]
      %v686 = vld [vmem:[%s1 + $0x78] sm:$0xff]
      %v695 = vunpack.c.l.b16 %v679
      %v696 = vunpack.c.h.b16 %v679
      %v697 = vunpack.c.l.b16 %v680
      %v698 = vunpack.c.h.b16 %v680
      %v699 = vunpack.c.l.b16 %v681
      %v700 = vunpack.c.h.b16 %v681
      %v701 = vunpack.c.l.b16 %v682
      %v702 = vunpack.c.h.b16 %v682
      %v703 = vunpack.c.l.b16 %v683
      %v704 = vunpack.c.h.b16 %v683
      %v705 = vunpack.c.l.b16 %v684
      %v706 = vunpack.c.h.b16 %v684
      %v707 = vunpack.c.l.b16 %v685
      %v708 = vunpack.c.h.b16 %v685
      %v709 = vunpack.c.l.b16 %v686
      %v710 = vunpack.c.h.b16 %v686
      %v711 = vpack.c.b16 %v697, %v695
      %v712 = vpack.c.b16 %v698, %v696
      %v713 = vpack.c.b16 %v701, %v699
      %v714 = vpack.c.b16 %v702, %v700
      %v715 = vpack.c.b16 %v705, %v703
      %v716 = vpack.c.b16 %v706, %v704
      %v717 = vpack.c.b16 %v709, %v707
      %v718 = vpack.c.b16 %v710, %v708
      %v724 = vsel %vm481, %v712, 0
      %v727 = vsel %vm481, %v714, 0
      %v730 = vsel %vm481, %v716, 0
      %v733 = vsel %vm481, %v718, 0
      %735 = vmatprep.subr.bf16.mxu0 %v406
      %736 = vmatpush1.bf16.msra.mxu0 %v405
      %737 = vmatprep.subr.bf16.mxu0 %v410
      %738 = vmatpush1.bf16.msra.mxu0 %v409
      %739 = vmatprep.subr.bf16.mxu0 %v414
      %740 = vmatpush1.bf16.msra.mxu0 %v413
      %741 = vmatprep.subr.bf16.mxu0 %v418
      %742 = vmatpush1.bf16.msra.mxu0 %v417
      %743 = vmatprep.subr.bf16.mxu0 %v422
      %744 = vmatpush1.bf16.msra.mxu0 %v421
      %745 = vmatprep.subr.bf16.mxu0 %v426
      %746 = vmatpush1.bf16.msra.mxu0 %v425
      %747 = vmatprep.subr.bf16.mxu0 %v430
      %748 = vmatpush1.bf16.msra.mxu0 %v429
      %749 = vmatprep.subr.bf16.mxu0 %v434
      %750 = vmatpush1.bf16.msra.mxu0 %v433
      %751 = vmatprep.subr.bf16.mxu0 %v438
      %752 = vmatpush1.bf16.msra.mxu0 %v437
      %753 = vmatprep.subr.bf16.mxu0 %v501
      %754 = vmatpush1.bf16.msra.mxu0 %v498
      %755 = vmatprep.subr.bf16.mxu0 0
      %756 = vmatpush1.bf16.msra.mxu0 0
      %757 = vmatprep.subr.bf16.mxu0 0
      %758 = vmatpush1.bf16.msra.mxu0 0
      %759 = vmatprep.subr.bf16.mxu0 0
      %760 = vmatpush1.bf16.msra.mxu0 0
      %761 = vmatprep.subr.bf16.mxu0 0
      %762 = vmatpush1.bf16.msra.mxu0 0
      %763 = vmatprep.subr.bf16.mxu0 0
      %764 = vmatpush1.bf16.msra.mxu0 0
      %765 = vmatprep.subr.bf16.mxu0 0
      %766 = vmatpush1.bf16.msra.mxu0 0
      %767 = vmatprep.mubr.bf16.mxu0 %v724
      %768 = vmatmul.mubr.bf16.gmra.mrb[0].mxu0 %v711
      %v769 = vpop.f32.mrb[0].mxu0
      %v770 = vadd.f32 0.0, %v769
      %v771 = vpop.f32.mrb[0].mxu0
      %v772 = vadd.f32 0.0, %v771
      %v773 = vpop.f32.mrb[0].mxu0
      %v774 = vadd.f32 0.0, %v773
      %v775 = vpop.f32.mrb[0].mxu0
      %v776 = vadd.f32 0.0, %v775
      %777 = vmatprep.mubr.bf16.mxu0 %v727
      %778 = vmatmul.mubr.bf16.gmra.mrb[0].mxu0 %v713
      %v779 = vpop.f32.mrb[0].mxu0
      %v780 = vadd.f32 0.0, %v779
      %v781 = vpop.f32.mrb[0].mxu0
      %v782 = vadd.f32 0.0, %v781
      %v783 = vpop.f32.mrb[0].mxu0
      %v784 = vadd.f32 0.0, %v783
      %v785 = vpop.f32.mrb[0].mxu0
      %v786 = vadd.f32 0.0, %v785
      %787 = vmatprep.mubr.bf16.mxu0 %v730
      %788 = vmatmul.mubr.bf16.gmra.mrb[0].mxu0 %v715
      %v789 = vpop.f32.mrb[0].mxu0
      %v790 = vadd.f32 0.0, %v789
      %v791 = vpop.f32.mrb[0].mxu0
      %v792 = vadd.f32 0.0, %v791
      %v793 = vpop.f32.mrb[0].mxu0
      %v794 = vadd.f32 0.0, %v793
      %v795 = vpop.f32.mrb[0].mxu0
      %v796 = vadd.f32 0.0, %v795
      %797 = vmatprep.mubr.bf16.mxu0 %v733
      %798 = vmatmul.mubr.bf16.gmra.mrb[0].mxu0 %v717
      %v799 = vpop.f32.mrb[0].mxu0
      %v800 = vadd.f32 0.0, %v799
      %v801 = vpop.f32.mrb[0].mxu0
      %v802 = vadd.f32 0.0, %v801
      %v803 = vpop.f32.mrb[0].mxu0
      %v804 = vadd.f32 0.0, %v803
      %v805 = vpop.f32.mrb[0].mxu0
      %v806 = vadd.f32 0.0, %v805
      %807 = vdwg.mxu0
      %808 = vmatprep.subr.bf16.mxu0 %v408
      %809 = vmatpush1.bf16.msra.mxu0 %v407
      %810 = vmatprep.subr.bf16.mxu0 %v412
      %811 = vmatpush1.bf16.msra.mxu0 %v411
      %812 = vmatprep.subr.bf16.mxu0 %v416
      %813 = vmatpush1.bf16.msra.mxu0 %v415
      %814 = vmatprep.subr.bf16.mxu0 %v420
      %815 = vmatpush1.bf16.msra.mxu0 %v419
      %816 = vmatprep.subr.bf16.mxu0 %v424
      %817 = vmatpush1.bf16.msra.mxu0 %v423
      %818 = vmatprep.subr.bf16.mxu0 %v428
      %819 = vmatpush1.bf16.msra.mxu0 %v427
      %820 = vmatprep.subr.bf16.mxu0 %v432
      %821 = vmatpush1.bf16.msra.mxu0 %v431
      %822 = vmatprep.subr.bf16.mxu0 %v436
      %823 = vmatpush1.bf16.msra.mxu0 %v435
      %824 = vmatprep.subr.bf16.mxu0 %v440
      %825 = vmatpush1.bf16.msra.mxu0 %v439
      %826 = vmatprep.subr.bf16.mxu0 %v507
      %827 = vmatpush1.bf16.msra.mxu0 %v504
      %828 = vmatprep.subr.bf16.mxu0 0
      %829 = vmatpush1.bf16.msra.mxu0 0
      %830 = vmatprep.subr.bf16.mxu0 0
      %831 = vmatpush1.bf16.msra.mxu0 0
      %832 = vmatprep.subr.bf16.mxu0 0
      %833 = vmatpush1.bf16.msra.mxu0 0
      %834 = vmatprep.subr.bf16.mxu0 0
      %835 = vmatpush1.bf16.msra.mxu0 0
      %836 = vmatprep.subr.bf16.mxu0 0
      %837 = vmatpush1.bf16.msra.mxu0 0
      %838 = vmatprep.subr.bf16.mxu0 0
      %839 = vmatpush1.bf16.msra.mxu0 0
      %840 = vmatprep.mubr.bf16.mxu0 %v724
      %841 = vmatmul.mubr.bf16.gmra.mrb[0].mxu0 %v711
      %v842 = vpop.f32.mrb[0].mxu0
      %v843 = vadd.f32 0.0, %v842
      %v844 = vpop.f32.mrb[0].mxu0
      %v845 = vadd.f32 0.0, %v844
      %v846 = vpop.f32.mrb[0].mxu0
      %v847 = vadd.f32 0.0, %v846
      %v848 = vpop.f32.mrb[0].mxu0
      %v849 = vadd.f32 0.0, %v848
      %850 = vmatprep.mubr.bf16.mxu0 %v727
      %851 = vmatmul.mubr.bf16.gmra.mrb[0].mxu0 %v713
      %v852 = vpop.f32.mrb[0].mxu0
      %v853 = vadd.f32 0.0, %v852
      %v854 = vpop.f32.mrb[0].mxu0
      %v855 = vadd.f32 0.0, %v854
      %v856 = vpop.f32.mrb[0].mxu0
      %v857 = vadd.f32 0.0, %v856
      %v858 = vpop.f32.mrb[0].mxu0
      %v859 = vadd.f32 0.0, %v858
      %860 = vmatprep.mubr.bf16.mxu0 %v730
      %861 = vmatmul.mubr.bf16.gmra.mrb[0].mxu0 %v715
      %v862 = vpop.f32.mrb[0].mxu0
      %v863 = vadd.f32 0.0, %v862
      %v864 = vpop.f32.mrb[0].mxu0
      %v865 = vadd.f32 0.0, %v864
      %v866 = vpop.f32.mrb[0].mxu0
      %v867 = vadd.f32 0.0, %v866
      %v868 = vpop.f32.mrb[0].mxu0
      %v869 = vadd.f32 0.0, %v868
      %870 = vmatprep.mubr.bf16.mxu0 %v733
      %871 = vmatmul.mubr.bf16.gmra.mrb[0].mxu0 %v717
      %v872 = vpop.f32.mrb[0].mxu0
      %v873 = vadd.f32 0.0, %v872
      %v874 = vpop.f32.mrb[0].mxu0
      %v875 = vadd.f32 0.0, %v874
      %v876 = vpop.f32.mrb[0].mxu0
      %v877 = vadd.f32 0.0, %v876
      %v878 = vpop.f32.mrb[0].mxu0
      %v879 = vadd.f32 0.0, %v878
      %880 = vdwg.mxu0
      %v881 = vmax.f32 %v770, %v790
      %v882 = vmax.f32 %v772, %v792
      %v883 = vmax.f32 %v843, %v863
      %v884 = vmax.f32 %v845, %v865
      %v885 = vmax.f32 %v774, %v794
      %v886 = vmax.f32 %v776, %v796
      %v887 = vmax.f32 %v847, %v867
      %v888 = vmax.f32 %v849, %v869
      %v889 = vmax.f32 %v780, %v800
      %v890 = vmax.f32 %v782, %v802
      %v891 = vmax.f32 %v853, %v873
      %v892 = vmax.f32 %v855, %v875
      %v893 = vmax.f32 %v784, %v804
      %v894 = vmax.f32 %v786, %v806
      %v895 = vmax.f32 %v857, %v877
      %v896 = vmax.f32 %v859, %v879
      %v897 = vmax.f32 %v881, %v889
      %v898 = vmax.f32 %v882, %v890
      %v899 = vmax.f32 %v883, %v891
      %v900 = vmax.f32 %v884, %v892
      %v901 = vmax.f32 %v885, %v893
      %v902 = vmax.f32 %v886, %v894
      %v903 = vmax.f32 %v887, %v895
      %v904 = vmax.f32 %v888, %v896
      %v905 = vmax.f32 %v671, %v897
      %v906 = vmax.f32 %v672, %v898
      %v907 = vmax.f32 %v673, %v899
      %v908 = vmax.f32 %v674, %v900
      %v909 = vmax.f32 %v675, %v901
      %v910 = vmax.f32 %v676, %v902
      %v911 = vmax.f32 %v677, %v903
      %v912 = vmax.f32 %v678, %v904
      %v913 = vld [vmem:[%s1 + $0x80] sm:$0xff]
      %v914 = vld [vmem:[%s1 + $0x88] sm:$0xff]
      %v915 = vld [vmem:[%s1 + $0x90] sm:$0xff]
      %v916 = vld [vmem:[%s1 + $0x98] sm:$0xff]
      %v917 = vld [vmem:[%s1 + $0xa0] sm:$0xff]
      %v918 = vld [vmem:[%s1 + $0xa8] sm:$0xff]
      %v919 = vld [vmem:[%s1 + $0xb0] sm:$0xff]
      %v920 = vld [vmem:[%s1 + $0xb8] sm:$0xff]
      %v929 = vunpack.c.l.b16 %v913
      %v930 = vunpack.c.h.b16 %v913
      %v931 = vunpack.c.l.b16 %v914
      %v932 = vunpack.c.h.b16 %v914
      %v933 = vunpack.c.l.b16 %v915
      %v934 = vunpack.c.h.b16 %v915
      %v935 = vunpack.c.l.b16 %v916
      %v936 = vunpack.c.h.b16 %v916
      %v937 = vunpack.c.l.b16 %v917
      %v938 = vunpack.c.h.b16 %v917
      %v939 = vunpack.c.l.b16 %v918
      %v940 = vunpack.c.h.b16 %v918
      %v941 = vunpack.c.l.b16 %v919
      %v942 = vunpack.c.h.b16 %v919
      %v943 = vunpack.c.l.b16 %v920
      %v944 = vunpack.c.h.b16 %v920
      %v945 = vpack.c.b16 %v931, %v929
      %v946 = vpack.c.b16 %v932, %v930
      %v947 = vpack.c.b16 %v935, %v933
      %v948 = vpack.c.b16 %v936, %v934
      %v949 = vpack.c.b16 %v939, %v937
      %v950 = vpack.c.b16 %v940, %v938
      %v951 = vpack.c.b16 %v943, %v941
      %v952 = vpack.c.b16 %v944, %v942
      %v958 = vsel %vm481, %v946, 0
      %v961 = vsel %vm481, %v948, 0
      %v964 = vsel %vm481, %v950, 0
      %v967 = vsel %vm481, %v952, 0
      %969 = vmatprep.subr.bf16.mxu0 %v406
      %970 = vmatpush1.bf16.msra.mxu0 %v405
      %971 = vmatprep.subr.bf16.mxu0 %v410
      %972 = vmatpush1.bf16.msra.mxu0 %v409
      %973 = vmatprep.subr.bf16.mxu0 %v414
      %974 = vmatpush1.bf16.msra.mxu0 %v413
      %975 = vmatprep.subr.bf16.mxu0 %v418
      %976 = vmatpush1.bf16.msra.mxu0 %v417
      %977 = vmatprep.subr.bf16.mxu0 %v422
      %978 = vmatpush1.bf16.msra.mxu0 %v421
      %979 = vmatprep.subr.bf16.mxu0 %v426
      %980 = vmatpush1.bf16.msra.mxu0 %v425
      %981 = vmatprep.subr.bf16.mxu0 %v430
      %982 = vmatpush1.bf16.msra.mxu0 %v429
      %983 = vmatprep.subr.bf16.mxu0 %v434
      %984 = vmatpush1.bf16.msra.mxu0 %v433
      %985 = vmatprep.subr.bf16.mxu0 %v438
      %986 = vmatpush1.bf16.msra.mxu0 %v437
      %987 = vmatprep.subr.bf16.mxu0 %v501
      %988 = vmatpush1.bf16.msra.mxu0 %v498
      %989 = vmatprep.subr.bf16.mxu0 0
      %990 = vmatpush1.bf16.msra.mxu0 0
      %991 = vmatprep.subr.bf16.mxu0 0
      %992 = vmatpush1.bf16.msra.mxu0 0
      %993 = vmatprep.subr.bf16.mxu0 0
      %994 = vmatpush1.bf16.msra.mxu0 0
      %995 = vmatprep.subr.bf16.mxu0 0
      %996 = vmatpush1.bf16.msra.mxu0 0
      %997 = vmatprep.subr.bf16.mxu0 0
      %998 = vmatpush1.bf16.msra.mxu0 0
      %999 = vmatprep.subr.bf16.mxu0 0
      %1000 = vmatpush1.bf16.msra.mxu0 0
      %1001 = vmatprep.mubr.bf16.mxu0 %v958
      %1002 = vmatmul.mubr.bf16.gmra.mrb[0].mxu0 %v945
      %v1003 = vpop.f32.mrb[0].mxu0
      %v1004 = vadd.f32 0.0, %v1003
      %v1005 = vpop.f32.mrb[0].mxu0
      %v1006 = vadd.f32 0.0, %v1005
      %v1007 = vpop.f32.mrb[0].mxu0
      %v1008 = vadd.f32 0.0, %v1007
      %v1009 = vpop.f32.mrb[0].mxu0
      %v1010 = vadd.f32 0.0, %v1009
      %1011 = vmatprep.mubr.bf16.mxu0 %v961
      %1012 = vmatmul.mubr.bf16.gmra.mrb[0].mxu0 %v947
      %v1013 = vpop.f32.mrb[0].mxu0
      %v1014 = vadd.f32 0.0, %v1013
      %v1015 = vpop.f32.mrb[0].mxu0
      %v1016 = vadd.f32 0.0, %v1015
      %v1017 = vpop.f32.mrb[0].mxu0
      %v1018 = vadd.f32 0.0, %v1017
      %v1019 = vpop.f32.mrb[0].mxu0
      %v1020 = vadd.f32 0.0, %v1019
      %1021 = vmatprep.mubr.bf16.mxu0 %v964
      %1022 = vmatmul.mubr.bf16.gmra.mrb[0].mxu0 %v949
      %v1023 = vpop.f32.mrb[0].mxu0
      %v1024 = vadd.f32 0.0, %v1023
      %v1025 = vpop.f32.mrb[0].mxu0
      %v1026 = vadd.f32 0.0, %v1025
      %v1027 = vpop.f32.mrb[0].mxu0
      %v1028 = vadd.f32 0.0, %v1027
      %v1029 = vpop.f32.mrb[0].mxu0
      %v1030 = vadd.f32 0.0, %v1029
      %1031 = vmatprep.mubr.bf16.mxu0 %v967
      %1032 = vmatmul.mubr.bf16.gmra.mrb[0].mxu0 %v951
      %v1033 = vpop.f32.mrb[0].mxu0
      %v1034 = vadd.f32 0.0, %v1033
      %v1035 = vpop.f32.mrb[0].mxu0
      %v1036 = vadd.f32 0.0, %v1035
      %v1037 = vpop.f32.mrb[0].mxu0
      %v1038 = vadd.f32 0.0, %v1037
      %v1039 = vpop.f32.mrb[0].mxu0
      %v1040 = vadd.f32 0.0, %v1039
      %1041 = vdwg.mxu0
      %1042 = vmatprep.subr.bf16.mxu0 %v408
      %1043 = vmatpush1.bf16.msra.mxu0 %v407
      %1044 = vmatprep.subr.bf16.mxu0 %v412
      %1045 = vmatpush1.bf16.msra.mxu0 %v411
      %1046 = vmatprep.subr.bf16.mxu0 %v416
      %1047 = vmatpush1.bf16.msra.mxu0 %v415
      %1048 = vmatprep.subr.bf16.mxu0 %v420
      %1049 = vmatpush1.bf16.msra.mxu0 %v419
      %1050 = vmatprep.subr.bf16.mxu0 %v424
      %1051 = vmatpush1.bf16.msra.mxu0 %v423
      %1052 = vmatprep.subr.bf16.mxu0 %v428
      %1053 = vmatpush1.bf16.msra.mxu0 %v427
      %1054 = vmatprep.subr.bf16.mxu0 %v432
      %1055 = vmatpush1.bf16.msra.mxu0 %v431
      %1056 = vmatprep.subr.bf16.mxu0 %v436
      %1057 = vmatpush1.bf16.msra.mxu0 %v435
      %1058 = vmatprep.subr.bf16.mxu0 %v440
      %1059 = vmatpush1.bf16.msra.mxu0 %v439
      %1060 = vmatprep.subr.bf16.mxu0 %v507
      %1061 = vmatpush1.bf16.msra.mxu0 %v504
      %1062 = vmatprep.subr.bf16.mxu0 0
      %1063 = vmatpush1.bf16.msra.mxu0 0
      %1064 = vmatprep.subr.bf16.mxu0 0
      %1065 = vmatpush1.bf16.msra.mxu0 0
      %1066 = vmatprep.subr.bf16.mxu0 0
      %1067 = vmatpush1.bf16.msra.mxu0 0
      %1068 = vmatprep.subr.bf16.mxu0 0
      %1069 = vmatpush1.bf16.msra.mxu0 0
      %1070 = vmatprep.subr.bf16.mxu0 0
      %1071 = vmatpush1.bf16.msra.mxu0 0
      %1072 = vmatprep.subr.bf16.mxu0 0
      %1073 = vmatpush1.bf16.msra.mxu0 0
      %1074 = vmatprep.mubr.bf16.mxu0 %v958
      %1075 = vmatmul.mubr.bf16.gmra.mrb[0].mxu0 %v945
      %v1076 = vpop.f32.mrb[0].mxu0
      %v1077 = vadd.f32 0.0, %v1076
      %v1078 = vpop.f32.mrb[0].mxu0
      %v1079 = vadd.f32 0.0, %v1078
      %v1080 = vpop.f32.mrb[0].mxu0
      %v1081 = vadd.f32 0.0, %v1080
      %v1082 = vpop.f32.mrb[0].mxu0
      %v1083 = vadd.f32 0.0, %v1082
      %1084 = vmatprep.mubr.bf16.mxu0 %v961
      %1085 = vmatmul.mubr.bf16.gmra.mrb[0].mxu0 %v947
      %v1086 = vpop.f32.mrb[0].mxu0
      %v1087 = vadd.f32 0.0, %v1086
      %v1088 = vpop.f32.mrb[0].mxu0
      %v1089 = vadd.f32 0.0, %v1088
      %v1090 = vpop.f32.mrb[0].mxu0
      %v1091 = vadd.f32 0.0, %v1090
      %v1092 = vpop.f32.mrb[0].mxu0
      %v1093 = vadd.f32 0.0, %v1092
      %1094 = vmatprep.mubr.bf16.mxu0 %v964
      %1095 = vmatmul.mubr.bf16.gmra.mrb[0].mxu0 %v949
      %v1096 = vpop.f32.mrb[0].mxu0
      %v1097 = vadd.f32 0.0, %v1096
      %v1098 = vpop.f32.mrb[0].mxu0
      %v1099 = vadd.f32 0.0, %v1098
      %v1100 = vpop.f32.mrb[0].mxu0
      %v1101 = vadd.f32 0.0, %v1100
      %v1102 = vpop.f32.mrb[0].mxu0
      %v1103 = vadd.f32 0.0, %v1102
      %1104 = vmatprep.mubr.bf16.mxu0 %v967
      %1105 = vmatmul.mubr.bf16.gmra.mrb[0].mxu0 %v951
      %v1106 = vpop.f32.mrb[0].mxu0
      %v1107 = vadd.f32 0.0, %v1106
      %v1108 = vpop.f32.mrb[0].mxu0
      %v1109 = vadd.f32 0.0, %v1108
      %v1110 = vpop.f32.mrb[0].mxu0
      %v1111 = vadd.f32 0.0, %v1110
      %v1112 = vpop.f32.mrb[0].mxu0
      %v1113 = vadd.f32 0.0, %v1112
      %1114 = vdwg.mxu0
      %v1115 = vmax.f32 %v1004, %v1024
      %v1116 = vmax.f32 %v1006, %v1026
      %v1117 = vmax.f32 %v1077, %v1097
      %v1118 = vmax.f32 %v1079, %v1099
      %v1119 = vmax.f32 %v1008, %v1028
      %v1120 = vmax.f32 %v1010, %v1030
      %v1121 = vmax.f32 %v1081, %v1101
      %v1122 = vmax.f32 %v1083, %v1103
      %v1123 = vmax.f32 %v1014, %v1034
      %v1124 = vmax.f32 %v1016, %v1036
      %v1125 = vmax.f32 %v1087, %v1107
      %v1126 = vmax.f32 %v1089, %v1109
      %v1127 = vmax.f32 %v1018, %v1038
      %v1128 = vmax.f32 %v1020, %v1040
      %v1129 = vmax.f32 %v1091, %v1111
      %v1130 = vmax.f32 %v1093, %v1113
      %v1131 = vmax.f32 %v1115, %v1123
      %v1132 = vmax.f32 %v1116, %v1124
      %v1133 = vmax.f32 %v1117, %v1125
      %v1134 = vmax.f32 %v1118, %v1126
      %v1135 = vmax.f32 %v1119, %v1127
      %v1136 = vmax.f32 %v1120, %v1128
      %v1137 = vmax.f32 %v1121, %v1129
      %v1138 = vmax.f32 %v1122, %v1130
      %v1139 = vmax.f32 %v905, %v1131
      %v1140 = vmax.f32 %v906, %v1132
      %v1141 = vmax.f32 %v907, %v1133
      %v1142 = vmax.f32 %v908, %v1134
      %v1143 = vmax.f32 %v909, %v1135
      %v1144 = vmax.f32 %v910, %v1136
      %v1145 = vmax.f32 %v911, %v1137
      %v1146 = vmax.f32 %v912, %v1138
      %v1147 = vld [vmem:[%s1 + $0xc0] sm:$0xff]
      %v1148 = vld [vmem:[%s1 + $0xc8] sm:$0xff]
      %v1149 = vld [vmem:[%s1 + $0xd0] sm:$0xff]
      %v1150 = vld [vmem:[%s1 + $0xd8] sm:$0xff]
      %v1151 = vld [vmem:[%s1 + $0xe0] sm:$0xff]
      %v1152 = vld [vmem:[%s1 + $0xe8] sm:$0xff]
      %v1153 = vld [vmem:[%s1 + $0xf0] sm:$0xff]
      %v1154 = vld [vmem:[%s1 + $0xf8] sm:$0xff]
      %v1163 = vunpack.c.l.b16 %v1147
      %v1164 = vunpack.c.h.b16 %v1147
      %v1165 = vunpack.c.l.b16 %v1148
      %v1166 = vunpack.c.h.b16 %v1148
      %v1167 = vunpack.c.l.b16 %v1149
      %v1168 = vunpack.c.h.b16 %v1149
      %v1169 = vunpack.c.l.b16 %v1150
      %v1170 = vunpack.c.h.b16 %v1150
      %v1171 = vunpack.c.l.b16 %v1151
      %v1172 = vunpack.c.h.b16 %v1151
      %v1173 = vunpack.c.l.b16 %v1152
      %v1174 = vunpack.c.h.b16 %v1152
      %v1175 = vunpack.c.l.b16 %v1153
      %v1176 = vunpack.c.h.b16 %v1153
      %v1177 = vunpack.c.l.b16 %v1154
      %v1178 = vunpack.c.h.b16 %v1154
      %v1179 = vpack.c.b16 %v1165, %v1163
      %v1180 = vpack.c.b16 %v1166, %v1164
      %v1181 = vpack.c.b16 %v1169, %v1167
      %v1182 = vpack.c.b16 %v1170, %v1168
      %v1183 = vpack.c.b16 %v1173, %v1171
      %v1184 = vpack.c.b16 %v1174, %v1172
      %v1185 = vpack.c.b16 %v1177, %v1175
      %v1186 = vpack.c.b16 %v1178, %v1176
      %v1192 = vsel %vm481, %v1180, 0
      %v1195 = vsel %vm481, %v1182, 0
      %v1198 = vsel %vm481, %v1184, 0
      %v1201 = vsel %vm481, %v1186, 0
      %1203 = vmatprep.subr.bf16.mxu0 %v406
      %1204 = vmatpush1.bf16.msra.mxu0 %v405
      %1205 = vmatprep.subr.bf16.mxu0 %v410
      %1206 = vmatpush1.bf16.msra.mxu0 %v409
      %1207 = vmatprep.subr.bf16.mxu0 %v414
      %1208 = vmatpush1.bf16.msra.mxu0 %v413
      %1209 = vmatprep.subr.bf16.mxu0 %v418
      %1210 = vmatpush1.bf16.msra.mxu0 %v417
      %1211 = vmatprep.subr.bf16.mxu0 %v422
      %1212 = vmatpush1.bf16.msra.mxu0 %v421
      %1213 = vmatprep.subr.bf16.mxu0 %v426
      %1214 = vmatpush1.bf16.msra.mxu0 %v425
      %1215 = vmatprep.subr.bf16.mxu0 %v430
      %1216 = vmatpush1.bf16.msra.mxu0 %v429
      %1217 = vmatprep.subr.bf16.mxu0 %v434
      %1218 = vmatpush1.bf16.msra.mxu0 %v433
      %1219 = vmatprep.subr.bf16.mxu0 %v438
      %1220 = vmatpush1.bf16.msra.mxu0 %v437
      %1221 = vmatprep.subr.bf16.mxu0 %v501
      %1222 = vmatpush1.bf16.msra.mxu0 %v498
      %1223 = vmatprep.subr.bf16.mxu0 0
      %1224 = vmatpush1.bf16.msra.mxu0 0
      %1225 = vmatprep.subr.bf16.mxu0 0
      %1226 = vmatpush1.bf16.msra.mxu0 0
      %1227 = vmatprep.subr.bf16.mxu0 0
      %1228 = vmatpush1.bf16.msra.mxu0 0
      %1229 = vmatprep.subr.bf16.mxu0 0
      %1230 = vmatpush1.bf16.msra.mxu0 0
      %1231 = vmatprep.subr.bf16.mxu0 0
      %1232 = vmatpush1.bf16.msra.mxu0 0
      %1233 = vmatprep.subr.bf16.mxu0 0
      %1234 = vmatpush1.bf16.msra.mxu0 0
      %1235 = vmatprep.mubr.bf16.mxu0 %v1192
      %1236 = vmatmul.mubr.bf16.gmra.mrb[0].mxu0 %v1179
      %v1237 = vpop.f32.mrb[0].mxu0
      %v1238 = vadd.f32 0.0, %v1237
      %v1239 = vpop.f32.mrb[0].mxu0
      %v1240 = vadd.f32 0.0, %v1239
      %v1241 = vpop.f32.mrb[0].mxu0
      %v1242 = vadd.f32 0.0, %v1241
      %v1243 = vpop.f32.mrb[0].mxu0
      %v1244 = vadd.f32 0.0, %v1243
      %1245 = vmatprep.mubr.bf16.mxu0 %v1195
      %1246 = vmatmul.mubr.bf16.gmra.mrb[0].mxu0 %v1181
      %v1247 = vpop.f32.mrb[0].mxu0
      %v1248 = vadd.f32 0.0, %v1247
      %v1249 = vpop.f32.mrb[0].mxu0
      %v1250 = vadd.f32 0.0, %v1249
      %v1251 = vpop.f32.mrb[0].mxu0
      %v1252 = vadd.f32 0.0, %v1251
      %v1253 = vpop.f32.mrb[0].mxu0
      %v1254 = vadd.f32 0.0, %v1253
      %1255 = vmatprep.mubr.bf16.mxu0 %v1198
      %1256 = vmatmul.mubr.bf16.gmra.mrb[0].mxu0 %v1183
      %v1257 = vpop.f32.mrb[0].mxu0
      %v1258 = vadd.f32 0.0, %v1257
      %v1259 = vpop.f32.mrb[0].mxu0
      %v1260 = vadd.f32 0.0, %v1259
      %v1261 = vpop.f32.mrb[0].mxu0
      %v1262 = vadd.f32 0.0, %v1261
      %v1263 = vpop.f32.mrb[0].mxu0
      %v1264 = vadd.f32 0.0, %v1263
      %1265 = vmatprep.mubr.bf16.mxu0 %v1201
      %1266 = vmatmul.mubr.bf16.gmra.mrb[0].mxu0 %v1185
      %v1267 = vpop.f32.mrb[0].mxu0
      %v1268 = vadd.f32 0.0, %v1267
      %v1269 = vpop.f32.mrb[0].mxu0
      %v1270 = vadd.f32 0.0, %v1269
      %v1271 = vpop.f32.mrb[0].mxu0
      %v1272 = vadd.f32 0.0, %v1271
      %v1273 = vpop.f32.mrb[0].mxu0
      %v1274 = vadd.f32 0.0, %v1273
      %1275 = vdwg.mxu0
      %1276 = vmatprep.subr.bf16.mxu0 %v408
      %1277 = vmatpush1.bf16.msra.mxu0 %v407
      %1278 = vmatprep.subr.bf16.mxu0 %v412
      %1279 = vmatpush1.bf16.msra.mxu0 %v411
      %1280 = vmatprep.subr.bf16.mxu0 %v416
      %1281 = vmatpush1.bf16.msra.mxu0 %v415
      %1282 = vmatprep.subr.bf16.mxu0 %v420
      %1283 = vmatpush1.bf16.msra.mxu0 %v419
      %1284 = vmatprep.subr.bf16.mxu0 %v424
      %1285 = vmatpush1.bf16.msra.mxu0 %v423
      %1286 = vmatprep.subr.bf16.mxu0 %v428
      %1287 = vmatpush1.bf16.msra.mxu0 %v427
      %1288 = vmatprep.subr.bf16.mxu0 %v432
      %1289 = vmatpush1.bf16.msra.mxu0 %v431
      %1290 = vmatprep.subr.bf16.mxu0 %v436
      %1291 = vmatpush1.bf16.msra.mxu0 %v435
      %1292 = vmatprep.subr.bf16.mxu0 %v440
      %1293 = vmatpush1.bf16.msra.mxu0 %v439
      %1294 = vmatprep.subr.bf16.mxu0 %v507
      %1295 = vmatpush1.bf16.msra.mxu0 %v504
      %1296 = vmatprep.subr.bf16.mxu0 0
      %1297 = vmatpush1.bf16.msra.mxu0 0
      %1298 = vmatprep.subr.bf16.mxu0 0
      %1299 = vmatpush1.bf16.msra.mxu0 0
      %1300 = vmatprep.subr.bf16.mxu0 0
      %1301 = vmatpush1.bf16.msra.mxu0 0
      %1302 = vmatprep.subr.bf16.mxu0 0
      %1303 = vmatpush1.bf16.msra.mxu0 0
      %1304 = vmatprep.subr.bf16.mxu0 0
      %1305 = vmatpush1.bf16.msra.mxu0 0
      %1306 = vmatprep.subr.bf16.mxu0 0
      %1307 = vmatpush1.bf16.msra.mxu0 0
      %1308 = vmatprep.mubr.bf16.mxu0 %v1192
      %1309 = vmatmul.mubr.bf16.gmra.mrb[0].mxu0 %v1179
      %v1310 = vpop.f32.mrb[0].mxu0
      %v1311 = vadd.f32 0.0, %v1310
      %v1312 = vpop.f32.mrb[0].mxu0
      %v1313 = vadd.f32 0.0, %v1312
      %v1314 = vpop.f32.mrb[0].mxu0
      %v1315 = vadd.f32 0.0, %v1314
      %v1316 = vpop.f32.mrb[0].mxu0
      %v1317 = vadd.f32 0.0, %v1316
      %1318 = vmatprep.mubr.bf16.mxu0 %v1195
      %1319 = vmatmul.mubr.bf16.gmra.mrb[0].mxu0 %v1181
      %v1320 = vpop.f32.mrb[0].mxu0
      %v1321 = vadd.f32 0.0, %v1320
      %v1322 = vpop.f32.mrb[0].mxu0
      %v1323 = vadd.f32 0.0, %v1322
      %v1324 = vpop.f32.mrb[0].mxu0
      %v1325 = vadd.f32 0.0, %v1324
      %v1326 = vpop.f32.mrb[0].mxu0
      %v1327 = vadd.f32 0.0, %v1326
      %1328 = vmatprep.mubr.bf16.mxu0 %v1198
      %1329 = vmatmul.mubr.bf16.gmra.mrb[0].mxu0 %v1183
      %v1330 = vpop.f32.mrb[0].mxu0
      %v1331 = vadd.f32 0.0, %v1330
      %v1332 = vpop.f32.mrb[0].mxu0
      %v1333 = vadd.f32 0.0, %v1332
      %v1334 = vpop.f32.mrb[0].mxu0
      %v1335 = vadd.f32 0.0, %v1334
      %v1336 = vpop.f32.mrb[0].mxu0
      %v1337 = vadd.f32 0.0, %v1336
      %1338 = vmatprep.mubr.bf16.mxu0 %v1201
      %1339 = vmatmul.mubr.bf16.gmra.mrb[0].mxu0 %v1185
      %v1340 = vpop.f32.mrb[0].mxu0
      %v1341 = vadd.f32 0.0, %v1340
      %v1342 = vpop.f32.mrb[0].mxu0
      %v1343 = vadd.f32 0.0, %v1342
      %v1344 = vpop.f32.mrb[0].mxu0
      %v1345 = vadd.f32 0.0, %v1344
      %v1346 = vpop.f32.mrb[0].mxu0
      %v1347 = vadd.f32 0.0, %v1346
      %1348 = vdwg.mxu0
      %v1349 = vmax.f32 %v1238, %v1258
      %v1350 = vmax.f32 %v1240, %v1260
      %v1351 = vmax.f32 %v1311, %v1331
      %v1352 = vmax.f32 %v1313, %v1333
      %v1353 = vmax.f32 %v1242, %v1262
      %v1354 = vmax.f32 %v1244, %v1264
      %v1355 = vmax.f32 %v1315, %v1335
      %v1356 = vmax.f32 %v1317, %v1337
      %v1357 = vmax.f32 %v1248, %v1268
      %v1358 = vmax.f32 %v1250, %v1270
      %v1359 = vmax.f32 %v1321, %v1341
      %v1360 = vmax.f32 %v1323, %v1343
      %v1361 = vmax.f32 %v1252, %v1272
      %v1362 = vmax.f32 %v1254, %v1274
      %v1363 = vmax.f32 %v1325, %v1345
      %v1364 = vmax.f32 %v1327, %v1347
      %v1365 = vmax.f32 %v1349, %v1357
      %v1366 = vmax.f32 %v1350, %v1358
      %v1367 = vmax.f32 %v1351, %v1359
      %v1368 = vmax.f32 %v1352, %v1360
      %v1369 = vmax.f32 %v1353, %v1361
      %v1370 = vmax.f32 %v1354, %v1362
      %v1371 = vmax.f32 %v1355, %v1363
      %v1372 = vmax.f32 %v1356, %v1364
      %v1373 = vmax.f32 %v1139, %v1365
      %v1374 = vmax.f32 %v1140, %v1366
      %v1375 = vmax.f32 %v1141, %v1367
      %v1376 = vmax.f32 %v1142, %v1368
      %v1377 = vmax.f32 %v1143, %v1369
      %v1378 = vmax.f32 %v1144, %v1370
      %v1379 = vmax.f32 %v1145, %v1371
      %v1380 = vmax.f32 %v1146, %v1372
      %v1381 = vmax.f32 %v1373, 0.0
      %v1382 = vmax.f32 %v1374, 0.0
      %v1383 = vmax.f32 %v1375, 0.0
      %v1384 = vmax.f32 %v1376, 0.0
      %v1385 = vmax.f32 %v1377, 0.0
      %v1386 = vmax.f32 %v1378, 0.0
      %v1387 = vmax.f32 %v1379, 0.0
      %v1388 = vmax.f32 %v1380, 0.0
      %v1389 = vmin.f32 %v1381, 6.0
      %v1390 = vmin.f32 %v1382, 6.0
      %v1391 = vmin.f32 %v1383, 6.0
      %v1392 = vmin.f32 %v1384, 6.0
      %v1393 = vmin.f32 %v1385, 6.0
      %v1394 = vmin.f32 %v1386, 6.0
      %v1395 = vmin.f32 %v1387, 6.0
      %v1396 = vmin.f32 %v1388, 6.0
      %v1397 = vadd.f32 %v1389, %v1390
      %v1398 = vadd.f32 %v1397, %v1391
      %v1399 = vadd.f32 %v1398, %v1392
      %1400 = vadd.xlane.f32.xlu0 %v1399
      %v1401 = vpop.xlane.xlu0 %1400
      %v1402 = vadd.f32 %v1393, %v1394
      %v1403 = vadd.f32 %v1402, %v1395
      %v1404 = vadd.f32 %v1403, %v1396
      %1405 = vadd.xlane.f32.xlu0 %v1404
      %v1406 = vpop.xlane.xlu0 %1405
      %v1407 = vrcp.pop 512.0
      %v1408 = vmul.f32 %v1401, %v1407
      %v1409 = vmul.f32 %v1406, %v1407
      %v1410 = vsub.f32 %v1389, %v1408
      %v1411 = vsub.f32 %v1390, %v1408
      %v1412 = vsub.f32 %v1391, %v1408
      %v1413 = vsub.f32 %v1392, %v1408
      %v1414 = vsub.f32 %v1393, %v1409
      %v1415 = vsub.f32 %v1394, %v1409
      %v1416 = vsub.f32 %v1395, %v1409
      %v1417 = vsub.f32 %v1396, %v1409
      %v1418 = vmul.f32 %v1410, %v1410
      %v1419 = vmul.f32 %v1411, %v1411
      %v1420 = vmul.f32 %v1412, %v1412
      %v1421 = vmul.f32 %v1413, %v1413
      %v1422 = vmul.f32 %v1414, %v1414
      %v1423 = vmul.f32 %v1415, %v1415
      %v1424 = vmul.f32 %v1416, %v1416
      %v1425 = vmul.f32 %v1417, %v1417
      %v1426 = vadd.f32 %v1418, %v1419
      %v1427 = vadd.f32 %v1426, %v1420
      %v1428 = vadd.f32 %v1427, %v1421
      %1429 = vadd.xlane.f32.xlu0 %v1428
      %v1430 = vpop.xlane.xlu0 %1429
      %v1431 = vadd.f32 %v1422, %v1423
      %v1432 = vadd.f32 %v1431, %v1424
      %v1433 = vadd.f32 %v1432, %v1425
      %1434 = vadd.xlane.f32.xlu0 %v1433
      %v1435 = vpop.xlane.xlu0 %1434
      %v1436 = vmul.f32 %v1430, %v1407
      %v1437 = vmul.f32 %v1435, %v1407
      %v1438 = vadd.f32 %v1436, 1e-05
      %v1439 = vadd.f32 %v1437, 1e-05
      %v1440 = vrsqrt.pop %v1438
      %v1441 = vrsqrt.pop %v1439
      %v1442 = vmul.f32 %v1410, %v1440
      %v1443 = vmul.f32 %v1411, %v1440
      %v1444 = vmul.f32 %v1412, %v1440
      %v1445 = vmul.f32 %v1413, %v1440
      %v1446 = vmul.f32 %v1414, %v1441
      %v1447 = vmul.f32 %v1415, %v1441
      %v1448 = vmul.f32 %v1416, %v1441
      %v1449 = vmul.f32 %v1417, %v1441
      %v1451 = vlaneseq
      %v1452 = vshrl.u32 %v1451, 7
      %v1453 = vsub.s32 0, %v1452
      %v1454 = vrot.slane %v207, %v1453
      %v1455 = vlaneseq
      %v1456 = vshrl.u32 %v1455, 7
      %v1457 = vsub.s32 1, %v1456
      %v1458 = vrot.slane %v207, %v1457
      %v1459 = vlaneseq
      %v1460 = vshrl.u32 %v1459, 7
      %v1461 = vsub.s32 2, %v1460
      %v1462 = vrot.slane %v207, %v1461
      %v1463 = vlaneseq
      %v1464 = vshrl.u32 %v1463, 7
      %v1465 = vsub.s32 3, %v1464
      %v1466 = vrot.slane %v207, %v1465
      %v1471 = vmul.f32 %v1442, %v1454
      %v1472 = vmul.f32 %v1443, %v1458
      %v1473 = vmul.f32 %v1444, %v1462
      %v1474 = vmul.f32 %v1445, %v1466
      %v1475 = vmul.f32 %v1446, %v1454
      %v1476 = vmul.f32 %v1447, %v1458
      %v1477 = vmul.f32 %v1448, %v1462
      %v1478 = vmul.f32 %v1449, %v1466
      %v1480 = vlaneseq
      %v1481 = vshrl.u32 %v1480, 7
      %v1482 = vsub.s32 0, %v1481
      %v1483 = vrot.slane %v208, %v1482
      %v1484 = vlaneseq
      %v1485 = vshrl.u32 %v1484, 7
      %v1486 = vsub.s32 1, %v1485
      %v1487 = vrot.slane %v208, %v1486
      %v1488 = vlaneseq
      %v1489 = vshrl.u32 %v1488, 7
      %v1490 = vsub.s32 2, %v1489
      %v1491 = vrot.slane %v208, %v1490
      %v1492 = vlaneseq
      %v1493 = vshrl.u32 %v1492, 7
      %v1494 = vsub.s32 3, %v1493
      %v1495 = vrot.slane %v208, %v1494
      %v1500 = vadd.f32 %v1471, %v1483
      %v1501 = vadd.f32 %v1472, %v1487
      %v1502 = vadd.f32 %v1473, %v1491
      %v1503 = vadd.f32 %v1474, %v1495
      %v1504 = vadd.f32 %v1475, %v1483
      %v1505 = vadd.f32 %v1476, %v1487
      %v1506 = vadd.f32 %v1477, %v1491
      %v1507 = vadd.f32 %v1478, %v1495
      %v1508 = vmul.f32 %v1500, 0.5
      %v1509 = vmul.f32 %v1501, 0.5
      %v1510 = vmul.f32 %v1502, 0.5
      %v1511 = vmul.f32 %v1503, 0.5
      %v1512 = vmul.f32 %v1504, 0.5
      %v1513 = vmul.f32 %v1505, 0.5
      %v1514 = vmul.f32 %v1506, 0.5
      %v1515 = vmul.f32 %v1507, 0.5
      %v1516 = vmul.f32 %v1500, 0.70710677
      %v1517 = vmul.f32 %v1501, 0.70710677
      %v1518 = vmul.f32 %v1502, 0.70710677
      %v1519 = vmul.f32 %v1503, 0.70710677
      %v1520 = vmul.f32 %v1504, 0.70710677
      %v1521 = vmul.f32 %v1505, 0.70710677
      %v1522 = vmul.f32 %v1506, 0.70710677
      %v1523 = vmul.f32 %v1507, 0.70710677
      %v1524 = verf.f32.pop %v1516
      %v1525 = verf.f32.pop %v1517
      %v1526 = verf.f32.pop %v1518
      %v1527 = verf.f32.pop %v1519
      %v1528 = verf.f32.pop %v1520
      %v1529 = verf.f32.pop %v1521
      %v1530 = verf.f32.pop %v1522
      %v1531 = verf.f32.pop %v1523
      %v1532 = vadd.f32 %v1524, 1.0
      %v1533 = vadd.f32 %v1525, 1.0
      %v1534 = vadd.f32 %v1526, 1.0
      %v1535 = vadd.f32 %v1527, 1.0
      %v1536 = vadd.f32 %v1528, 1.0
      %v1537 = vadd.f32 %v1529, 1.0
      %v1538 = vadd.f32 %v1530, 1.0
      %v1539 = vadd.f32 %v1531, 1.0
      %v1540 = vmul.f32 %v1508, %v1532
      %v1541 = vmul.f32 %v1509, %v1533
      %v1542 = vmul.f32 %v1510, %v1534
      %v1543 = vmul.f32 %v1511, %v1535
      %v1544 = vmul.f32 %v1512, %v1536
      %v1545 = vmul.f32 %v1513, %v1537
      %v1546 = vmul.f32 %v1514, %v1538
      %v1547 = vmul.f32 %v1515, %v1539
      %v1548 = vtanh.pop %v1540
      %v1549 = vtanh.pop %v1541
      %v1550 = vtanh.pop %v1542
      %v1551 = vtanh.pop %v1543
      %v1552 = vtanh.pop %v1544
      %v1553 = vtanh.pop %v1545
      %v1554 = vtanh.pop %v1546
      %v1555 = vtanh.pop %v1547
      %1556 = vst [vmem:[%s204] sm:$0xff] %v1548
      %1557 = vst [vmem:[%s204 + $0x8] sm:$0xff] %v1549
      %1558 = vst [vmem:[%s204 + $0x10] sm:$0xff] %v1550
      %1559 = vst [vmem:[%s204 + $0x18] sm:$0xff] %v1551
      %1560 = vst [vmem:[%s204 + $0x20] sm:$0xff] %v1552
      %1561 = vst [vmem:[%s204 + $0x28] sm:$0xff] %v1553
      %1562 = vst [vmem:[%s204 + $0x30] sm:$0xff] %v1554
      %1563 = vst [vmem:[%s204 + $0x38] sm:$0xff] %v1555
      %s1564 = scalar_lea.vmem %s197, 304
      %v1565 = vld [vmem:[%s1564] sm:$0xff]
      %v1566 = vld [vmem:[%s1564 + $0x8] sm:$0xff]
      %v1567 = vld [vmem:[%s1564 + $0x10] sm:$0xff]
      %v1568 = vld [vmem:[%s1564 + $0x18] sm:$0xff]
      %v1569 = vld [vmem:[%s1564 + $0x20] sm:$0xff]
      %v1570 = vld [vmem:[%s1564 + $0x28] sm:$0xff]
      %v1571 = vld [vmem:[%s1564 + $0x30] sm:$0xff]
      %v1572 = vld [vmem:[%s1564 + $0x38] sm:$0xff]
      %v1573 = vld [vmem:[%s1564 + $0x40] sm:$0xff]
      %v1574 = vld [vmem:[%s1564 + $0x48] sm:$0xff]
      %v1575 = vld [vmem:[%s1564 + $0x50] sm:$0xff]
      %v1576 = vld [vmem:[%s1564 + $0x58] sm:$0xff]
      %v1577 = vld [vmem:[%s1564 + $0x60] sm:$0xff]
      %v1578 = vld [vmem:[%s1564 + $0x68] sm:$0xff]
      %v1579 = vld [vmem:[%s1564 + $0x70] sm:$0xff]
      %v1580 = vld [vmem:[%s1564 + $0x78] sm:$0xff]
      %v1581 = vld [vmem:[%s1564 + $0x80] sm:$0xff]
      %v1582 = vld [vmem:[%s1564 + $0x88] sm:$0xff]
      %v1583 = vld [vmem:[%s1564 + $0x90] sm:$0xff]
      %v1584 = vld [vmem:[%s1564 + $0x98] sm:$0xff]
      %v1585 = vld [vmem:[%s1564 + $0xa0] sm:$0xff]
      %v1586 = vld [vmem:[%s1564 + $0xa8] sm:$0xff]
      %v1587 = vld [vmem:[%s1564 + $0xb0] sm:$0xff]
      %v1588 = vld [vmem:[%s1564 + $0xb8] sm:$0xff]
      %v1589 = vld [vmem:[%s1564 + $0xc0] sm:$0xff]
      %v1590 = vld [vmem:[%s1564 + $0xc8] sm:$0xff]
      %v1591 = vld [vmem:[%s1564 + $0xd0] sm:$0xff]
      %v1592 = vld [vmem:[%s1564 + $0xd8] sm:$0xff]
      %v1593 = vld [vmem:[%s1564 + $0xe0] sm:$0xff]
      %v1594 = vld [vmem:[%s1564 + $0xe8] sm:$0xff]
      %v1595 = vld [vmem:[%s1564 + $0xf0] sm:$0xff]
      %v1596 = vld [vmem:[%s1564 + $0xf8] sm:$0xff]
      %v1597 = vld [vmem:[%s1564 + $0x100] sm:$0xff]
      %v1598 = vld [vmem:[%s1564 + $0x108] sm:$0xff]
      %v1599 = vld [vmem:[%s1564 + $0x110] sm:$0xff]
      %v1600 = vld [vmem:[%s1564 + $0x118] sm:$0xff]
      %v1601 = vld [vmem:[%s1564 + $0x120] sm:$0x11]
      %v1602 = vld [vmem:[%s1564 + $0x128] sm:$0x11]
      %v1603 = vld [vmem:[%s1] sm:$0xff]
      %v1604 = vld [vmem:[%s1 + $0x8] sm:$0xff]
      %v1605 = vld [vmem:[%s1 + $0x10] sm:$0xff]
      %v1606 = vld [vmem:[%s1 + $0x18] sm:$0xff]
      %v1607 = vld [vmem:[%s1 + $0x20] sm:$0xff]
      %v1608 = vld [vmem:[%s1 + $0x28] sm:$0xff]
      %v1609 = vld [vmem:[%s1 + $0x30] sm:$0xff]
      %v1610 = vld [vmem:[%s1 + $0x38] sm:$0xff]
      %v1619 = vunpack.c.l.b16 %v1603
      %v1620 = vunpack.c.h.b16 %v1603
      %v1621 = vunpack.c.l.b16 %v1604
      %v1622 = vunpack.c.h.b16 %v1604
      %v1623 = vunpack.c.l.b16 %v1605
      %v1624 = vunpack.c.h.b16 %v1605
      %v1625 = vunpack.c.l.b16 %v1606
      %v1626 = vunpack.c.h.b16 %v1606
      %v1627 = vunpack.c.l.b16 %v1607
      %v1628 = vunpack.c.h.b16 %v1607
      %v1629 = vunpack.c.l.b16 %v1608
      %v1630 = vunpack.c.h.b16 %v1608
      %v1631 = vunpack.c.l.b16 %v1609
      %v1632 = vunpack.c.h.b16 %v1609
      %v1633 = vunpack.c.l.b16 %v1610
      %v1634 = vunpack.c.h.b16 %v1610
      %v1635 = vpack.c.b16 %v1621, %v1619
      %v1636 = vpack.c.b16 %v1622, %v1620
      %v1637 = vpack.c.b16 %v1625, %v1623
      %v1638 = vpack.c.b16 %v1626, %v1624
      %v1639 = vpack.c.b16 %v1629, %v1627
      %v1640 = vpack.c.b16 %v1630, %v1628
      %v1641 = vpack.c.b16 %v1633, %v1631
      %v1642 = vpack.c.b16 %v1634, %v1632
      %v1685 = vunpack.c.l.b16 %v1565
      %v1686 = vunpack.c.h.b16 %v1565
      %v1687 = vunpack.c.l.b16 %v1566
      %v1688 = vunpack.c.h.b16 %v1566
      %v1689 = vunpack.c.l.b16 %v1567
      %v1690 = vunpack.c.h.b16 %v1567
      %v1691 = vunpack.c.l.b16 %v1568
      %v1692 = vunpack.c.h.b16 %v1568
      %v1693 = vunpack.c.l.b16 %v1569
      %v1694 = vunpack.c.h.b16 %v1569
      %v1695 = vunpack.c.l.b16 %v1570
      %v1696 = vunpack.c.h.b16 %v1570
      %v1697 = vunpack.c.l.b16 %v1571
      %v1698 = vunpack.c.h.b16 %v1571
      %v1699 = vunpack.c.l.b16 %v1572
      %v1700 = vunpack.c.h.b16 %v1572
      %v1701 = vunpack.c.l.b16 %v1573
      %v1702 = vunpack.c.h.b16 %v1573
      %v1703 = vunpack.c.l.b16 %v1574
      %v1704 = vunpack.c.h.b16 %v1574
      %v1705 = vunpack.c.l.b16 %v1575
      %v1706 = vunpack.c.h.b16 %v1575
      %v1707 = vunpack.c.l.b16 %v1576
      %v1708 = vunpack.c.h.b16 %v1576
      %v1709 = vunpack.c.l.b16 %v1577
      %v1710 = vunpack.c.h.b16 %v1577
      %v1711 = vunpack.c.l.b16 %v1578
      %v1712 = vunpack.c.h.b16 %v1578
      %v1713 = vunpack.c.l.b16 %v1579
      %v1714 = vunpack.c.h.b16 %v1579
      %v1715 = vunpack.c.l.b16 %v1580
      %v1716 = vunpack.c.h.b16 %v1580
      %v1717 = vunpack.c.l.b16 %v1581
      %v1718 = vunpack.c.h.b16 %v1581
      %v1719 = vunpack.c.l.b16 %v1582
      %v1720 = vunpack.c.h.b16 %v1582
      %v1721 = vunpack.c.l.b16 %v1583
      %v1722 = vunpack.c.h.b16 %v1583
      %v1723 = vunpack.c.l.b16 %v1584
      %v1724 = vunpack.c.h.b16 %v1584
      %v1725 = vunpack.c.l.b16 %v1585
      %v1726 = vunpack.c.h.b16 %v1585
      %v1727 = vunpack.c.l.b16 %v1586
      %v1728 = vunpack.c.h.b16 %v1586
      %v1729 = vunpack.c.l.b16 %v1587
      %v1730 = vunpack.c.h.b16 %v1587
      %v1731 = vunpack.c.l.b16 %v1588
      %v1732 = vunpack.c.h.b16 %v1588
      %v1733 = vunpack.c.l.b16 %v1589
      %v1734 = vunpack.c.h.b16 %v1589
      %v1735 = vunpack.c.l.b16 %v1590
      %v1736 = vunpack.c.h.b16 %v1590
      %v1737 = vunpack.c.l.b16 %v1591
      %v1738 = vunpack.c.h.b16 %v1591
      %v1739 = vunpack.c.l.b16 %v1592
      %v1740 = vunpack.c.h.b16 %v1592
      %v1741 = vunpack.c.l.b16 %v1593
      %v1742 = vunpack.c.h.b16 %v1593
      %v1743 = vunpack.c.l.b16 %v1594
      %v1744 = vunpack.c.h.b16 %v1594
      %v1745 = vunpack.c.l.b16 %v1595
      %v1746 = vunpack.c.h.b16 %v1595
      %v1747 = vunpack.c.l.b16 %v1596
      %v1748 = vunpack.c.h.b16 %v1596
      %v1749 = vunpack.c.l.b16 %v1597
      %v1750 = vunpack.c.h.b16 %v1597
      %v1751 = vunpack.c.l.b16 %v1598
      %v1752 = vunpack.c.h.b16 %v1598
      %v1753 = vunpack.c.l.b16 %v1599
      %v1754 = vunpack.c.h.b16 %v1599
      %v1755 = vunpack.c.l.b16 %v1600
      %v1756 = vunpack.c.h.b16 %v1600
      %v1757 = vunpack.c.l.b16 %v1601
      %v1758 = vunpack.c.h.b16 %v1601
      %v1759 = vunpack.c.l.b16 %v1602
      %v1760 = vunpack.c.h.b16 %v1602
      %v1761 = vpack.c.b16 %v1689, %v1685
      %v1762 = vpack.c.b16 %v1690, %v1686
      %v1763 = vpack.c.b16 %v1691, %v1687
      %v1764 = vpack.c.b16 %v1692, %v1688
      %v1765 = vpack.c.b16 %v1697, %v1693
      %v1766 = vpack.c.b16 %v1698, %v1694
      %v1767 = vpack.c.b16 %v1699, %v1695
      %v1768 = vpack.c.b16 %v1700, %v1696
      %v1769 = vpack.c.b16 %v1705, %v1701
      %v1770 = vpack.c.b16 %v1706, %v1702
      %v1771 = vpack.c.b16 %v1707, %v1703
      %v1772 = vpack.c.b16 %v1708, %v1704
      %v1773 = vpack.c.b16 %v1713, %v1709
      %v1774 = vpack.c.b16 %v1714, %v1710
      %v1775 = vpack.c.b16 %v1715, %v1711
      %v1776 = vpack.c.b16 %v1716, %v1712
      %v1777 = vpack.c.b16 %v1721, %v1717
      %v1778 = vpack.c.b16 %v1722, %v1718
      %v1779 = vpack.c.b16 %v1723, %v1719
      %v1780 = vpack.c.b16 %v1724, %v1720
      %v1781 = vpack.c.b16 %v1729, %v1725
      %v1782 = vpack.c.b16 %v1730, %v1726
      %v1783 = vpack.c.b16 %v1731, %v1727
      %v1784 = vpack.c.b16 %v1732, %v1728
      %v1785 = vpack.c.b16 %v1737, %v1733
      %v1786 = vpack.c.b16 %v1738, %v1734
      %v1787 = vpack.c.b16 %v1739, %v1735
      %v1788 = vpack.c.b16 %v1740, %v1736
      %v1789 = vpack.c.b16 %v1745, %v1741
      %v1790 = vpack.c.b16 %v1746, %v1742
      %v1791 = vpack.c.b16 %v1747, %v1743
      %v1792 = vpack.c.b16 %v1748, %v1744
      %v1793 = vpack.c.b16 %v1753, %v1749
      %v1794 = vpack.c.b16 %v1754, %v1750
      %v1795 = vpack.c.b16 %v1755, %v1751
      %v1796 = vpack.c.b16 %v1756, %v1752
      %v1797 = vpack.c.b16 %v1757, %v1757
      %v1798 = vpack.c.b16 %v1758, %v1758
      %v1799 = vpack.c.b16 %v1759, %v1759
      %v1800 = vpack.c.b16 %v1760, %v1760
      %v1838 = vsel %vm481, %v1636, 0
      %v1841 = vsel %vm481, %v1638, 0
      %v1844 = vsel %vm481, %v1640, 0
      %v1847 = vsel %vm481, %v1642, 0
      %v1850 = vand.u32 %v1797, %v496
      %v1853 = vand.u32 %v1798, %v496
      %v1856 = vand.u32 %v1799, %v496
      %v1859 = vand.u32 %v1800, %v496
      %1861 = vmatprep.subr.bf16.mxu0 %v1762
      %1862 = vmatpush1.bf16.msra.mxu0 %v1761
      %1863 = vmatprep.subr.bf16.mxu0 %v1766
      %1864 = vmatpush1.bf16.msra.mxu0 %v1765
      %1865 = vmatprep.subr.bf16.mxu0 %v1770
      %1866 = vmatpush1.bf16.msra.mxu0 %v1769
      %1867 = vmatprep.subr.bf16.mxu0 %v1774
      %1868 = vmatpush1.bf16.msra.mxu0 %v1773
      %1869 = vmatprep.subr.bf16.mxu0 %v1778
      %1870 = vmatpush1.bf16.msra.mxu0 %v1777
      %1871 = vmatprep.subr.bf16.mxu0 %v1782
      %1872 = vmatpush1.bf16.msra.mxu0 %v1781
      %1873 = vmatprep.subr.bf16.mxu0 %v1786
      %1874 = vmatpush1.bf16.msra.mxu0 %v1785
      %1875 = vmatprep.subr.bf16.mxu0 %v1790
      %1876 = vmatpush1.bf16.msra.mxu0 %v1789
      %1877 = vmatprep.subr.bf16.mxu0 %v1794
      %1878 = vmatpush1.bf16.msra.mxu0 %v1793
      %1879 = vmatprep.subr.bf16.mxu0 %v1853
      %1880 = vmatpush1.bf16.msra.mxu0 %v1850
      %1881 = vmatprep.subr.bf16.mxu0 0
      %1882 = vmatpush1.bf16.msra.mxu0 0
      %1883 = vmatprep.subr.bf16.mxu0 0
      %1884 = vmatpush1.bf16.msra.mxu0 0
      %1885 = vmatprep.subr.bf16.mxu0 0
      %1886 = vmatpush1.bf16.msra.mxu0 0
      %1887 = vmatprep.subr.bf16.mxu0 0
      %1888 = vmatpush1.bf16.msra.mxu0 0
      %1889 = vmatprep.subr.bf16.mxu0 0
      %1890 = vmatpush1.bf16.msra.mxu0 0
      %1891 = vmatprep.subr.bf16.mxu0 0
      %1892 = vmatpush1.bf16.msra.mxu0 0
      %1893 = vmatprep.mubr.bf16.mxu0 %v1838
      %1894 = vmatmul.mubr.bf16.gmra.mrb[0].mxu0 %v1635
      %v1895 = vpop.f32.mrb[0].mxu0
      %v1896 = vadd.f32 0.0, %v1895
      %v1897 = vpop.f32.mrb[0].mxu0
      %v1898 = vadd.f32 0.0, %v1897
      %v1899 = vpop.f32.mrb[0].mxu0
      %v1900 = vadd.f32 0.0, %v1899
      %v1901 = vpop.f32.mrb[0].mxu0
      %v1902 = vadd.f32 0.0, %v1901
      %1903 = vmatprep.mubr.bf16.mxu0 %v1841
      %1904 = vmatmul.mubr.bf16.gmra.mrb[0].mxu0 %v1637
      %v1905 = vpop.f32.mrb[0].mxu0
      %v1906 = vadd.f32 0.0, %v1905
      %v1907 = vpop.f32.mrb[0].mxu0
      %v1908 = vadd.f32 0.0, %v1907
      %v1909 = vpop.f32.mrb[0].mxu0
      %v1910 = vadd.f32 0.0, %v1909
      %v1911 = vpop.f32.mrb[0].mxu0
      %v1912 = vadd.f32 0.0, %v1911
      %1913 = vmatprep.mubr.bf16.mxu0 %v1844
      %1914 = vmatmul.mubr.bf16.gmra.mrb[0].mxu0 %v1639
      %v1915 = vpop.f32.mrb[0].mxu0
      %v1916 = vadd.f32 0.0, %v1915
      %v1917 = vpop.f32.mrb[0].mxu0
      %v1918 = vadd.f32 0.0, %v1917
      %v1919 = vpop.f32.mrb[0].mxu0
      %v1920 = vadd.f32 0.0, %v1919
      %v1921 = vpop.f32.mrb[0].mxu0
      %v1922 = vadd.f32 0.0, %v1921
      %1923 = vmatprep.mubr.bf16.mxu0 %v1847
      %1924 = vmatmul.mubr.bf16.gmra.mrb[0].mxu0 %v1641
      %v1925 = vpop.f32.mrb[0].mxu0
      %v1926 = vadd.f32 0.0, %v1925
      %v1927 = vpop.f32.mrb[0].mxu0
      %v1928 = vadd.f32 0.0, %v1927
      %v1929 = vpop.f32.mrb[0].mxu0
      %v1930 = vadd.f32 0.0, %v1929
      %v1931 = vpop.f32.mrb[0].mxu0
      %v1932 = vadd.f32 0.0, %v1931
      %1933 = vdwg.mxu0
      %1934 = vmatprep.subr.bf16.mxu0 %v1764
      %1935 = vmatpush1.bf16.msra.mxu0 %v1763
      %1936 = vmatprep.subr.bf16.mxu0 %v1768
      %1937 = vmatpush1.bf16.msra.mxu0 %v1767
      %1938 = vmatprep.subr.bf16.mxu0 %v1772
      %1939 = vmatpush1.bf16.msra.mxu0 %v1771
      %1940 = vmatprep.subr.bf16.mxu0 %v1776
      %1941 = vmatpush1.bf16.msra.mxu0 %v1775
      %1942 = vmatprep.subr.bf16.mxu0 %v1780
      %1943 = vmatpush1.bf16.msra.mxu0 %v1779
      %1944 = vmatprep.subr.bf16.mxu0 %v1784
      %1945 = vmatpush1.bf16.msra.mxu0 %v1783
      %1946 = vmatprep.subr.bf16.mxu0 %v1788
      %1947 = vmatpush1.bf16.msra.mxu0 %v1787
      %1948 = vmatprep.subr.bf16.mxu0 %v1792
      %1949 = vmatpush1.bf16.msra.mxu0 %v1791
      %1950 = vmatprep.subr.bf16.mxu0 %v1796
      %1951 = vmatpush1.bf16.msra.mxu0 %v1795
      %1952 = vmatprep.subr.bf16.mxu0 %v1859
      %1953 = vmatpush1.bf16.msra.mxu0 %v1856
      %1954 = vmatprep.subr.bf16.mxu0 0
      %1955 = vmatpush1.bf16.msra.mxu0 0
      %1956 = vmatprep.subr.bf16.mxu0 0
      %1957 = vmatpush1.bf16.msra.mxu0 0
      %1958 = vmatprep.subr.bf16.mxu0 0
      %1959 = vmatpush1.bf16.msra.mxu0 0
      %1960 = vmatprep.subr.bf16.mxu0 0
      %1961 = vmatpush1.bf16.msra.mxu0 0
      %1962 = vmatprep.subr.bf16.mxu0 0
      %1963 = vmatpush1.bf16.msra.mxu0 0
      %1964 = vmatprep.subr.bf16.mxu0 0
      %1965 = vmatpush1.bf16.msra.mxu0 0
      %1966 = vmatprep.mubr.bf16.mxu0 %v1838
      %1967 = vmatmul.mubr.bf16.gmra.mrb[0].mxu0 %v1635
      %v1968 = vpop.f32.mrb[0].mxu0
      %v1969 = vadd.f32 0.0, %v1968
      %v1970 = vpop.f32.mrb[0].mxu0
      %v1971 = vadd.f32 0.0, %v1970
      %v1972 = vpop.f32.mrb[0].mxu0
      %v1973 = vadd.f32 0.0, %v1972
      %v1974 = vpop.f32.mrb[0].mxu0
      %v1975 = vadd.f32 0.0, %v1974
      %1976 = vmatprep.mubr.bf16.mxu0 %v1841
      %1977 = vmatmul.mubr.bf16.gmra.mrb[0].mxu0 %v1637
      %v1978 = vpop.f32.mrb[0].mxu0
      %v1979 = vadd.f32 0.0, %v1978
      %v1980 = vpop.f32.mrb[0].mxu0
      %v1981 = vadd.f32 0.0, %v1980
      %v1982 = vpop.f32.mrb[0].mxu0
      %v1983 = vadd.f32 0.0, %v1982
      %v1984 = vpop.f32.mrb[0].mxu0
      %v1985 = vadd.f32 0.0, %v1984
      %1986 = vmatprep.mubr.bf16.mxu0 %v1844
      %1987 = vmatmul.mubr.bf16.gmra.mrb[0].mxu0 %v1639
      %v1988 = vpop.f32.mrb[0].mxu0
      %v1989 = vadd.f32 0.0, %v1988
      %v1990 = vpop.f32.mrb[0].mxu0
      %v1991 = vadd.f32 0.0, %v1990
      %v1992 = vpop.f32.mrb[0].mxu0
      %v1993 = vadd.f32 0.0, %v1992
      %v1994 = vpop.f32.mrb[0].mxu0
      %v1995 = vadd.f32 0.0, %v1994
      %1996 = vmatprep.mubr.bf16.mxu0 %v1847
      %1997 = vmatmul.mubr.bf16.gmra.mrb[0].mxu0 %v1641
      %v1998 = vpop.f32.mrb[0].mxu0
      %v1999 = vadd.f32 0.0, %v1998
      %v2000 = vpop.f32.mrb[0].mxu0
      %v2001 = vadd.f32 0.0, %v2000
      %v2002 = vpop.f32.mrb[0].mxu0
      %v2003 = vadd.f32 0.0, %v2002
      %v2004 = vpop.f32.mrb[0].mxu0
      %v2005 = vadd.f32 0.0, %v2004
      %2006 = vdwg.mxu0
      %v2007 = vmax.f32 %v1896, %v1916
      %v2008 = vmax.f32 %v1898, %v1918
      %v2009 = vmax.f32 %v1969, %v1989
      %v2010 = vmax.f32 %v1971, %v1991
      %v2011 = vmax.f32 %v1900, %v1920
      %v2012 = vmax.f32 %v1902, %v1922
      %v2013 = vmax.f32 %v1973, %v1993
      %v2014 = vmax.f32 %v1975, %v1995
      %v2015 = vmax.f32 %v1906, %v1926
      %v2016 = vmax.f32 %v1908, %v1928
      %v2017 = vmax.f32 %v1979, %v1999
      %v2018 = vmax.f32 %v1981, %v2001
      %v2019 = vmax.f32 %v1910, %v1930
      %v2020 = vmax.f32 %v1912, %v1932
      %v2021 = vmax.f32 %v1983, %v2003
      %v2022 = vmax.f32 %v1985, %v2005
      %v2023 = vmax.f32 %v2007, %v2015
      %v2024 = vmax.f32 %v2008, %v2016
      %v2025 = vmax.f32 %v2009, %v2017
      %v2026 = vmax.f32 %v2010, %v2018
      %v2027 = vmax.f32 %v2011, %v2019
      %v2028 = vmax.f32 %v2012, %v2020
      %v2029 = vmax.f32 %v2013, %v2021
      %v2030 = vmax.f32 %v2014, %v2022
      %v2031 = vld [vmem:[%s1 + $0x40] sm:$0xff]
      %v2032 = vld [vmem:[%s1 + $0x48] sm:$0xff]
      %v2033 = vld [vmem:[%s1 + $0x50] sm:$0xff]
      %v2034 = vld [vmem:[%s1 + $0x58] sm:$0xff]
      %v2035 = vld [vmem:[%s1 + $0x60] sm:$0xff]
      %v2036 = vld [vmem:[%s1 + $0x68] sm:$0xff]
      %v2037 = vld [vmem:[%s1 + $0x70] sm:$0xff]
      %v2038 = vld [vmem:[%s1 + $0x78] sm:$0xff]
      %v2047 = vunpack.c.l.b16 %v2031
      %v2048 = vunpack.c.h.b16 %v2031
      %v2049 = vunpack.c.l.b16 %v2032
      %v2050 = vunpack.c.h.b16 %v2032
      %v2051 = vunpack.c.l.b16 %v2033
      %v2052 = vunpack.c.h.b16 %v2033
      %v2053 = vunpack.c.l.b16 %v2034
      %v2054 = vunpack.c.h.b16 %v2034
      %v2055 = vunpack.c.l.b16 %v2035
      %v2056 = vunpack.c.h.b16 %v2035
      %v2057 = vunpack.c.l.b16 %v2036
      %v2058 = vunpack.c.h.b16 %v2036
      %v2059 = vunpack.c.l.b16 %v2037
      %v2060 = vunpack.c.h.b16 %v2037
      %v2061 = vunpack.c.l.b16 %v2038
      %v2062 = vunpack.c.h.b16 %v2038
      %v2063 = vpack.c.b16 %v2049, %v2047
      %v2064 = vpack.c.b16 %v2050, %v2048
      %v2065 = vpack.c.b16 %v2053, %v2051
      %v2066 = vpack.c.b16 %v2054, %v2052
      %v2067 = vpack.c.b16 %v2057, %v2055
      %v2068 = vpack.c.b16 %v2058, %v2056
      %v2069 = vpack.c.b16 %v2061, %v2059
      %v2070 = vpack.c.b16 %v2062, %v2060
      %v2076 = vsel %vm481, %v2064, 0
      %v2079 = vsel %vm481, %v2066, 0
      %v2082 = vsel %vm481, %v2068, 0
      %v2085 = vsel %vm481, %v2070, 0
      %2087 = vmatprep.subr.bf16.mxu0 %v1762
      %2088 = vmatpush1.bf16.msra.mxu0 %v1761
      %2089 = vmatprep.subr.bf16.mxu0 %v1766
      %2090 = vmatpush1.bf16.msra.mxu0 %v1765
      %2091 = vmatprep.subr.bf16.mxu0 %v1770
      %2092 = vmatpush1.bf16.msra.mxu0 %v1769
      %2093 = vmatprep.subr.bf16.mxu0 %v1774
      %2094 = vmatpush1.bf16.msra.mxu0 %v1773
      %2095 = vmatprep.subr.bf16.mxu0 %v1778
      %2096 = vmatpush1.bf16.msra.mxu0 %v1777
      %2097 = vmatprep.subr.bf16.mxu0 %v1782
      %2098 = vmatpush1.bf16.msra.mxu0 %v1781
      %2099 = vmatprep.subr.bf16.mxu0 %v1786
      %2100 = vmatpush1.bf16.msra.mxu0 %v1785
      %2101 = vmatprep.subr.bf16.mxu0 %v1790
      %2102 = vmatpush1.bf16.msra.mxu0 %v1789
      %2103 = vmatprep.subr.bf16.mxu0 %v1794
      %2104 = vmatpush1.bf16.msra.mxu0 %v1793
      %2105 = vmatprep.subr.bf16.mxu0 %v1853
      %2106 = vmatpush1.bf16.msra.mxu0 %v1850
      %2107 = vmatprep.subr.bf16.mxu0 0
      %2108 = vmatpush1.bf16.msra.mxu0 0
      %2109 = vmatprep.subr.bf16.mxu0 0
      %2110 = vmatpush1.bf16.msra.mxu0 0
      %2111 = vmatprep.subr.bf16.mxu0 0
      %2112 = vmatpush1.bf16.msra.mxu0 0
      %2113 = vmatprep.subr.bf16.mxu0 0
      %2114 = vmatpush1.bf16.msra.mxu0 0
      %2115 = vmatprep.subr.bf16.mxu0 0
      %2116 = vmatpush1.bf16.msra.mxu0 0
      %2117 = vmatprep.subr.bf16.mxu0 0
      %2118 = vmatpush1.bf16.msra.mxu0 0
      %2119 = vmatprep.mubr.bf16.mxu0 %v2076
      %2120 = vmatmul.mubr.bf16.gmra.mrb[0].mxu0 %v2063
      %v2121 = vpop.f32.mrb[0].mxu0
      %v2122 = vadd.f32 0.0, %v2121
      %v2123 = vpop.f32.mrb[0].mxu0
      %v2124 = vadd.f32 0.0, %v2123
      %v2125 = vpop.f32.mrb[0].mxu0
      %v2126 = vadd.f32 0.0, %v2125
      %v2127 = vpop.f32.mrb[0].mxu0
      %v2128 = vadd.f32 0.0, %v2127
      %2129 = vmatprep.mubr.bf16.mxu0 %v2079
      %2130 = vmatmul.mubr.bf16.gmra.mrb[0].mxu0 %v2065
      %v2131 = vpop.f32.mrb[0].mxu0
      %v2132 = vadd.f32 0.0, %v2131
      %v2133 = vpop.f32.mrb[0].mxu0
      %v2134 = vadd.f32 0.0, %v2133
      %v2135 = vpop.f32.mrb[0].mxu0
      %v2136 = vadd.f32 0.0, %v2135
      %v2137 = vpop.f32.mrb[0].mxu0
      %v2138 = vadd.f32 0.0, %v2137
      %2139 = vmatprep.mubr.bf16.mxu0 %v2082
      %2140 = vmatmul.mubr.bf16.gmra.mrb[0].mxu0 %v2067
      %v2141 = vpop.f32.mrb[0].mxu0
      %v2142 = vadd.f32 0.0, %v2141
      %v2143 = vpop.f32.mrb[0].mxu0
      %v2144 = vadd.f32 0.0, %v2143
      %v2145 = vpop.f32.mrb[0].mxu0
      %v2146 = vadd.f32 0.0, %v2145
      %v2147 = vpop.f32.mrb[0].mxu0
      %v2148 = vadd.f32 0.0, %v2147
      %2149 = vmatprep.mubr.bf16.mxu0 %v2085
      %2150 = vmatmul.mubr.bf16.gmra.mrb[0].mxu0 %v2069
      %v2151 = vpop.f32.mrb[0].mxu0
      %v2152 = vadd.f32 0.0, %v2151
      %v2153 = vpop.f32.mrb[0].mxu0
      %v2154 = vadd.f32 0.0, %v2153
      %v2155 = vpop.f32.mrb[0].mxu0
      %v2156 = vadd.f32 0.0, %v2155
      %v2157 = vpop.f32.mrb[0].mxu0
      %v2158 = vadd.f32 0.0, %v2157
      %2159 = vdwg.mxu0
      %2160 = vmatprep.subr.bf16.mxu0 %v1764
      %2161 = vmatpush1.bf16.msra.mxu0 %v1763
      %2162 = vmatprep.subr.bf16.mxu0 %v1768
      %2163 = vmatpush1.bf16.msra.mxu0 %v1767
      %2164 = vmatprep.subr.bf16.mxu0 %v1772
      %2165 = vmatpush1.bf16.msra.mxu0 %v1771
      %2166 = vmatprep.subr.bf16.mxu0 %v1776
      %2167 = vmatpush1.bf16.msra.mxu0 %v1775
      %2168 = vmatprep.subr.bf16.mxu0 %v1780
      %2169 = vmatpush1.bf16.msra.mxu0 %v1779
      %2170 = vmatprep.subr.bf16.mxu0 %v1784
      %2171 = vmatpush1.bf16.msra.mxu0 %v1783
      %2172 = vmatprep.subr.bf16.mxu0 %v1788
      %2173 = vmatpush1.bf16.msra.mxu0 %v1787
      %2174 = vmatprep.subr.bf16.mxu0 %v1792
      %2175 = vmatpush1.bf16.msra.mxu0 %v1791
      %2176 = vmatprep.subr.bf16.mxu0 %v1796
      %2177 = vmatpush1.bf16.msra.mxu0 %v1795
      %2178 = vmatprep.subr.bf16.mxu0 %v1859
      %2179 = vmatpush1.bf16.msra.mxu0 %v1856
      %2180 = vmatprep.subr.bf16.mxu0 0
      %2181 = vmatpush1.bf16.msra.mxu0 0
      %2182 = vmatprep.subr.bf16.mxu0 0
      %2183 = vmatpush1.bf16.msra.mxu0 0
      %2184 = vmatprep.subr.bf16.mxu0 0
      %2185 = vmatpush1.bf16.msra.mxu0 0
      %2186 = vmatprep.subr.bf16.mxu0 0
      %2187 = vmatpush1.bf16.msra.mxu0 0
      %2188 = vmatprep.subr.bf16.mxu0 0
      %2189 = vmatpush1.bf16.msra.mxu0 0
      %2190 = vmatprep.subr.bf16.mxu0 0
      %2191 = vmatpush1.bf16.msra.mxu0 0
      %2192 = vmatprep.mubr.bf16.mxu0 %v2076
      %2193 = vmatmul.mubr.bf16.gmra.mrb[0].mxu0 %v2063
      %v2194 = vpop.f32.mrb[0].mxu0
      %v2195 = vadd.f32 0.0, %v2194
      %v2196 = vpop.f32.mrb[0].mxu0
      %v2197 = vadd.f32 0.0, %v2196
      %v2198 = vpop.f32.mrb[0].mxu0
      %v2199 = vadd.f32 0.0, %v2198
      %v2200 = vpop.f32.mrb[0].mxu0
      %v2201 = vadd.f32 0.0, %v2200
      %2202 = vmatprep.mubr.bf16.mxu0 %v2079
      %2203 = vmatmul.mubr.bf16.gmra.mrb[0].mxu0 %v2065
      %v2204 = vpop.f32.mrb[0].mxu0
      %v2205 = vadd.f32 0.0, %v2204
      %v2206 = vpop.f32.mrb[0].mxu0
      %v2207 = vadd.f32 0.0, %v2206
      %v2208 = vpop.f32.mrb[0].mxu0
      %v2209 = vadd.f32 0.0, %v2208
      %v2210 = vpop.f32.mrb[0].mxu0
      %v2211 = vadd.f32 0.0, %v2210
      %2212 = vmatprep.mubr.bf16.mxu0 %v2082
      %2213 = vmatmul.mubr.bf16.gmra.mrb[0].mxu0 %v2067
      %v2214 = vpop.f32.mrb[0].mxu0
      %v2215 = vadd.f32 0.0, %v2214
      %v2216 = vpop.f32.mrb[0].mxu0
      %v2217 = vadd.f32 0.0, %v2216
      %v2218 = vpop.f32.mrb[0].mxu0
      %v2219 = vadd.f32 0.0, %v2218
      %v2220 = vpop.f32.mrb[0].mxu0
      %v2221 = vadd.f32 0.0, %v2220
      %2222 = vmatprep.mubr.bf16.mxu0 %v2085
      %2223 = vmatmul.mubr.bf16.gmra.mrb[0].mxu0 %v2069
      %v2224 = vpop.f32.mrb[0].mxu0
      %v2225 = vadd.f32 0.0, %v2224
      %v2226 = vpop.f32.mrb[0].mxu0
      %v2227 = vadd.f32 0.0, %v2226
      %v2228 = vpop.f32.mrb[0].mxu0
      %v2229 = vadd.f32 0.0, %v2228
      %v2230 = vpop.f32.mrb[0].mxu0
      %v2231 = vadd.f32 0.0, %v2230
      %2232 = vdwg.mxu0
      %v2233 = vmax.f32 %v2122, %v2142
      %v2234 = vmax.f32 %v2124, %v2144
      %v2235 = vmax.f32 %v2195, %v2215
      %v2236 = vmax.f32 %v2197, %v2217
      %v2237 = vmax.f32 %v2126, %v2146
      %v2238 = vmax.f32 %v2128, %v2148
      %v2239 = vmax.f32 %v2199, %v2219
      %v2240 = vmax.f32 %v2201, %v2221
      %v2241 = vmax.f32 %v2132, %v2152
      %v2242 = vmax.f32 %v2134, %v2154
      %v2243 = vmax.f32 %v2205, %v2225
      %v2244 = vmax.f32 %v2207, %v2227
      %v2245 = vmax.f32 %v2136, %v2156
      %v2246 = vmax.f32 %v2138, %v2158
      %v2247 = vmax.f32 %v2209, %v2229
      %v2248 = vmax.f32 %v2211, %v2231
      %v2249 = vmax.f32 %v2233, %v2241
      %v2250 = vmax.f32 %v2234, %v2242
      %v2251 = vmax.f32 %v2235, %v2243
      %v2252 = vmax.f32 %v2236, %v2244
      %v2253 = vmax.f32 %v2237, %v2245
      %v2254 = vmax.f32 %v2238, %v2246
      %v2255 = vmax.f32 %v2239, %v2247
      %v2256 = vmax.f32 %v2240, %v2248
      %v2257 = vmax.f32 %v2023, %v2249
      %v2258 = vmax.f32 %v2024, %v2250
      %v2259 = vmax.f32 %v2025, %v2251
      %v2260 = vmax.f32 %v2026, %v2252
      %v2261 = vmax.f32 %v2027, %v2253
      %v2262 = vmax.f32 %v2028, %v2254
      %v2263 = vmax.f32 %v2029, %v2255
      %v2264 = vmax.f32 %v2030, %v2256
      %v2265 = vld [vmem:[%s1 + $0x80] sm:$0xff]
      %v2266 = vld [vmem:[%s1 + $0x88] sm:$0xff]
      %v2267 = vld [vmem:[%s1 + $0x90] sm:$0xff]
      %v2268 = vld [vmem:[%s1 + $0x98] sm:$0xff]
      %v2269 = vld [vmem:[%s1 + $0xa0] sm:$0xff]
      %v2270 = vld [vmem:[%s1 + $0xa8] sm:$0xff]
      %v2271 = vld [vmem:[%s1 + $0xb0] sm:$0xff]
      %v2272 = vld [vmem:[%s1 + $0xb8] sm:$0xff]
      %v2281 = vunpack.c.l.b16 %v2265
      %v2282 = vunpack.c.h.b16 %v2265
      %v2283 = vunpack.c.l.b16 %v2266
      %v2284 = vunpack.c.h.b16 %v2266
      %v2285 = vunpack.c.l.b16 %v2267
      %v2286 = vunpack.c.h.b16 %v2267
      %v2287 = vunpack.c.l.b16 %v2268
      %v2288 = vunpack.c.h.b16 %v2268
      %v2289 = vunpack.c.l.b16 %v2269
      %v2290 = vunpack.c.h.b16 %v2269
      %v2291 = vunpack.c.l.b16 %v2270
      %v2292 = vunpack.c.h.b16 %v2270
      %v2293 = vunpack.c.l.b16 %v2271
      %v2294 = vunpack.c.h.b16 %v2271
      %v2295 = vunpack.c.l.b16 %v2272
      %v2296 = vunpack.c.h.b16 %v2272
      %v2297 = vpack.c.b16 %v2283, %v2281
      %v2298 = vpack.c.b16 %v2284, %v2282
      %v2299 = vpack.c.b16 %v2287, %v2285
      %v2300 = vpack.c.b16 %v2288, %v2286
      %v2301 = vpack.c.b16 %v2291, %v2289
      %v2302 = vpack.c.b16 %v2292, %v2290
      %v2303 = vpack.c.b16 %v2295, %v2293
      %v2304 = vpack.c.b16 %v2296, %v2294
      %v2310 = vsel %vm481, %v2298, 0
      %v2313 = vsel %vm481, %v2300, 0
      %v2316 = vsel %vm481, %v2302, 0
      %v2319 = vsel %vm481, %v2304, 0
      %2321 = vmatprep.subr.bf16.mxu0 %v1762
      %2322 = vmatpush1.bf16.msra.mxu0 %v1761
      %2323 = vmatprep.subr.bf16.mxu0 %v1766
      %2324 = vmatpush1.bf16.msra.mxu0 %v1765
      %2325 = vmatprep.subr.bf16.mxu0 %v1770
      %2326 = vmatpush1.bf16.msra.mxu0 %v1769
      %2327 = vmatprep.subr.bf16.mxu0 %v1774
      %2328 = vmatpush1.bf16.msra.mxu0 %v1773
      %2329 = vmatprep.subr.bf16.mxu0 %v1778
      %2330 = vmatpush1.bf16.msra.mxu0 %v1777
      %2331 = vmatprep.subr.bf16.mxu0 %v1782
      %2332 = vmatpush1.bf16.msra.mxu0 %v1781
      %2333 = vmatprep.subr.bf16.mxu0 %v1786
      %2334 = vmatpush1.bf16.msra.mxu0 %v1785
      %2335 = vmatprep.subr.bf16.mxu0 %v1790
      %2336 = vmatpush1.bf16.msra.mxu0 %v1789
      %2337 = vmatprep.subr.bf16.mxu0 %v1794
      %2338 = vmatpush1.bf16.msra.mxu0 %v1793
      %2339 = vmatprep.subr.bf16.mxu0 %v1853
      %2340 = vmatpush1.bf16.msra.mxu0 %v1850
      %2341 = vmatprep.subr.bf16.mxu0 0
      %2342 = vmatpush1.bf16.msra.mxu0 0
      %2343 = vmatprep.subr.bf16.mxu0 0
      %2344 = vmatpush1.bf16.msra.mxu0 0
      %2345 = vmatprep.subr.bf16.mxu0 0
      %2346 = vmatpush1.bf16.msra.mxu0 0
      %2347 = vmatprep.subr.bf16.mxu0 0
      %2348 = vmatpush1.bf16.msra.mxu0 0
      %2349 = vmatprep.subr.bf16.mxu0 0
      %2350 = vmatpush1.bf16.msra.mxu0 0
      %2351 = vmatprep.subr.bf16.mxu0 0
      %2352 = vmatpush1.bf16.msra.mxu0 0
      %2353 = vmatprep.mubr.bf16.mxu0 %v2310
      %2354 = vmatmul.mubr.bf16.gmra.mrb[0].mxu0 %v2297
      %v2355 = vpop.f32.mrb[0].mxu0
      %v2356 = vadd.f32 0.0, %v2355
      %v2357 = vpop.f32.mrb[0].mxu0
      %v2358 = vadd.f32 0.0, %v2357
      %v2359 = vpop.f32.mrb[0].mxu0
      %v2360 = vadd.f32 0.0, %v2359
      %v2361 = vpop.f32.mrb[0].mxu0
      %v2362 = vadd.f32 0.0, %v2361
      %2363 = vmatprep.mubr.bf16.mxu0 %v2313
      %2364 = vmatmul.mubr.bf16.gmra.mrb[0].mxu0 %v2299
      %v2365 = vpop.f32.mrb[0].mxu0
      %v2366 = vadd.f32 0.0, %v2365
      %v2367 = vpop.f32.mrb[0].mxu0
      %v2368 = vadd.f32 0.0, %v2367
      %v2369 = vpop.f32.mrb[0].mxu0
      %v2370 = vadd.f32 0.0, %v2369
      %v2371 = vpop.f32.mrb[0].mxu0
      %v2372 = vadd.f32 0.0, %v2371
      %2373 = vmatprep.mubr.bf16.mxu0 %v2316
      %2374 = vmatmul.mubr.bf16.gmra.mrb[0].mxu0 %v2301
      %v2375 = vpop.f32.mrb[0].mxu0
      %v2376 = vadd.f32 0.0, %v2375
      %v2377 = vpop.f32.mrb[0].mxu0
      %v2378 = vadd.f32 0.0, %v2377
      %v2379 = vpop.f32.mrb[0].mxu0
      %v2380 = vadd.f32 0.0, %v2379
      %v2381 = vpop.f32.mrb[0].mxu0
      %v2382 = vadd.f32 0.0, %v2381
      %2383 = vmatprep.mubr.bf16.mxu0 %v2319
      %2384 = vmatmul.mubr.bf16.gmra.mrb[0].mxu0 %v2303
      %v2385 = vpop.f32.mrb[0].mxu0
      %v2386 = vadd.f32 0.0, %v2385
      %v2387 = vpop.f32.mrb[0].mxu0
      %v2388 = vadd.f32 0.0, %v2387
      %v2389 = vpop.f32.mrb[0].mxu0
      %v2390 = vadd.f32 0.0, %v2389
      %v2391 = vpop.f32.mrb[0].mxu0
      %v2392 = vadd.f32 0.0, %v2391
      %2393 = vdwg.mxu0
      %2394 = vmatprep.subr.bf16.mxu0 %v1764
      %2395 = vmatpush1.bf16.msra.mxu0 %v1763
      %2396 = vmatprep.subr.bf16.mxu0 %v1768
      %2397 = vmatpush1.bf16.msra.mxu0 %v1767
      %2398 = vmatprep.subr.bf16.mxu0 %v1772
      %2399 = vmatpush1.bf16.msra.mxu0 %v1771
      %2400 = vmatprep.subr.bf16.mxu0 %v1776
      %2401 = vmatpush1.bf16.msra.mxu0 %v1775
      %2402 = vmatprep.subr.bf16.mxu0 %v1780
      %2403 = vmatpush1.bf16.msra.mxu0 %v1779
      %2404 = vmatprep.subr.bf16.mxu0 %v1784
      %2405 = vmatpush1.bf16.msra.mxu0 %v1783
      %2406 = vmatprep.subr.bf16.mxu0 %v1788
      %2407 = vmatpush1.bf16.msra.mxu0 %v1787
      %2408 = vmatprep.subr.bf16.mxu0 %v1792
      %2409 = vmatpush1.bf16.msra.mxu0 %v1791
      %2410 = vmatprep.subr.bf16.mxu0 %v1796
      %2411 = vmatpush1.bf16.msra.mxu0 %v1795
      %2412 = vmatprep.subr.bf16.mxu0 %v1859
      %2413 = vmatpush1.bf16.msra.mxu0 %v1856
      %2414 = vmatprep.subr.bf16.mxu0 0
      %2415 = vmatpush1.bf16.msra.mxu0 0
      %2416 = vmatprep.subr.bf16.mxu0 0
      %2417 = vmatpush1.bf16.msra.mxu0 0
      %2418 = vmatprep.subr.bf16.mxu0 0
      %2419 = vmatpush1.bf16.msra.mxu0 0
      %2420 = vmatprep.subr.bf16.mxu0 0
      %2421 = vmatpush1.bf16.msra.mxu0 0
      %2422 = vmatprep.subr.bf16.mxu0 0
      %2423 = vmatpush1.bf16.msra.mxu0 0
      %2424 = vmatprep.subr.bf16.mxu0 0
      %2425 = vmatpush1.bf16.msra.mxu0 0
      %2426 = vmatprep.mubr.bf16.mxu0 %v2310
      %2427 = vmatmul.mubr.bf16.gmra.mrb[0].mxu0 %v2297
      %v2428 = vpop.f32.mrb[0].mxu0
      %v2429 = vadd.f32 0.0, %v2428
      %v2430 = vpop.f32.mrb[0].mxu0
      %v2431 = vadd.f32 0.0, %v2430
      %v2432 = vpop.f32.mrb[0].mxu0
      %v2433 = vadd.f32 0.0, %v2432
      %v2434 = vpop.f32.mrb[0].mxu0
      %v2435 = vadd.f32 0.0, %v2434
      %2436 = vmatprep.mubr.bf16.mxu0 %v2313
      %2437 = vmatmul.mubr.bf16.gmra.mrb[0].mxu0 %v2299
      %v2438 = vpop.f32.mrb[0].mxu0
      %v2439 = vadd.f32 0.0, %v2438
      %v2440 = vpop.f32.mrb[0].mxu0
      %v2441 = vadd.f32 0.0, %v2440
      %v2442 = vpop.f32.mrb[0].mxu0
      %v2443 = vadd.f32 0.0, %v2442
      %v2444 = vpop.f32.mrb[0].mxu0
      %v2445 = vadd.f32 0.0, %v2444
      %2446 = vmatprep.mubr.bf16.mxu0 %v2316
      %2447 = vmatmul.mubr.bf16.gmra.mrb[0].mxu0 %v2301
      %v2448 = vpop.f32.mrb[0].mxu0
      %v2449 = vadd.f32 0.0, %v2448
      %v2450 = vpop.f32.mrb[0].mxu0
      %v2451 = vadd.f32 0.0, %v2450
      %v2452 = vpop.f32.mrb[0].mxu0
      %v2453 = vadd.f32 0.0, %v2452
      %v2454 = vpop.f32.mrb[0].mxu0
      %v2455 = vadd.f32 0.0, %v2454
      %2456 = vmatprep.mubr.bf16.mxu0 %v2319
      %2457 = vmatmul.mubr.bf16.gmra.mrb[0].mxu0 %v2303
      %v2458 = vpop.f32.mrb[0].mxu0
      %v2459 = vadd.f32 0.0, %v2458
      %v2460 = vpop.f32.mrb[0].mxu0
      %v2461 = vadd.f32 0.0, %v2460
      %v2462 = vpop.f32.mrb[0].mxu0
      %v2463 = vadd.f32 0.0, %v2462
      %v2464 = vpop.f32.mrb[0].mxu0
      %v2465 = vadd.f32 0.0, %v2464
      %2466 = vdwg.mxu0
      %v2467 = vmax.f32 %v2356, %v2376
      %v2468 = vmax.f32 %v2358, %v2378
      %v2469 = vmax.f32 %v2429, %v2449
      %v2470 = vmax.f32 %v2431, %v2451
      %v2471 = vmax.f32 %v2360, %v2380
      %v2472 = vmax.f32 %v2362, %v2382
      %v2473 = vmax.f32 %v2433, %v2453
      %v2474 = vmax.f32 %v2435, %v2455
      %v2475 = vmax.f32 %v2366, %v2386
      %v2476 = vmax.f32 %v2368, %v2388
      %v2477 = vmax.f32 %v2439, %v2459
      %v2478 = vmax.f32 %v2441, %v2461
      %v2479 = vmax.f32 %v2370, %v2390
      %v2480 = vmax.f32 %v2372, %v2392
      %v2481 = vmax.f32 %v2443, %v2463
      %v2482 = vmax.f32 %v2445, %v2465
      %v2483 = vmax.f32 %v2467, %v2475
      %v2484 = vmax.f32 %v2468, %v2476
      %v2485 = vmax.f32 %v2469, %v2477
      %v2486 = vmax.f32 %v2470, %v2478
      %v2487 = vmax.f32 %v2471, %v2479
      %v2488 = vmax.f32 %v2472, %v2480
      %v2489 = vmax.f32 %v2473, %v2481
      %v2490 = vmax.f32 %v2474, %v2482
      %v2491 = vmax.f32 %v2257, %v2483
      %v2492 = vmax.f32 %v2258, %v2484
      %v2493 = vmax.f32 %v2259, %v2485
      %v2494 = vmax.f32 %v2260, %v2486
      %v2495 = vmax.f32 %v2261, %v2487
      %v2496 = vmax.f32 %v2262, %v2488
      %v2497 = vmax.f32 %v2263, %v2489
      %v2498 = vmax.f32 %v2264, %v2490
      %v2499 = vld [vmem:[%s1 + $0xc0] sm:$0xff]
      %v2500 = vld [vmem:[%s1 + $0xc8] sm:$0xff]
      %v2501 = vld [vmem:[%s1 + $0xd0] sm:$0xff]
      %v2502 = vld [vmem:[%s1 + $0xd8] sm:$0xff]
      %v2503 = vld [vmem:[%s1 + $0xe0] sm:$0xff]
      %v2504 = vld [vmem:[%s1 + $0xe8] sm:$0xff]
      %v2505 = vld [vmem:[%s1 + $0xf0] sm:$0xff]
      %v2506 = vld [vmem:[%s1 + $0xf8] sm:$0xff]
      %v2515 = vunpack.c.l.b16 %v2499
      %v2516 = vunpack.c.h.b16 %v2499
      %v2517 = vunpack.c.l.b16 %v2500
      %v2518 = vunpack.c.h.b16 %v2500
      %v2519 = vunpack.c.l.b16 %v2501
      %v2520 = vunpack.c.h.b16 %v2501
      %v2521 = vunpack.c.l.b16 %v2502
      %v2522 = vunpack.c.h.b16 %v2502
      %v2523 = vunpack.c.l.b16 %v2503
      %v2524 = vunpack.c.h.b16 %v2503
      %v2525 = vunpack.c.l.b16 %v2504
      %v2526 = vunpack.c.h.b16 %v2504
      %v2527 = vunpack.c.l.b16 %v2505
      %v2528 = vunpack.c.h.b16 %v2505
      %v2529 = vunpack.c.l.b16 %v2506
      %v2530 = vunpack.c.h.b16 %v2506
      %v2531 = vpack.c.b16 %v2517, %v2515
      %v2532 = vpack.c.b16 %v2518, %v2516
      %v2533 = vpack.c.b16 %v2521, %v2519
      %v2534 = vpack.c.b16 %v2522, %v2520
      %v2535 = vpack.c.b16 %v2525, %v2523
      %v2536 = vpack.c.b16 %v2526, %v2524
      %v2537 = vpack.c.b16 %v2529, %v2527
      %v2538 = vpack.c.b16 %v2530, %v2528
      %v2544 = vsel %vm481, %v2532, 0
      %v2547 = vsel %vm481, %v2534, 0
      %v2550 = vsel %vm481, %v2536, 0
      %v2553 = vsel %vm481, %v2538, 0
      %2555 = vmatprep.subr.bf16.mxu0 %v1762
      %2556 = vmatpush1.bf16.msra.mxu0 %v1761
      %2557 = vmatprep.subr.bf16.mxu0 %v1766
      %2558 = vmatpush1.bf16.msra.mxu0 %v1765
      %2559 = vmatprep.subr.bf16.mxu0 %v1770
      %2560 = vmatpush1.bf16.msra.mxu0 %v1769
      %2561 = vmatprep.subr.bf16.mxu0 %v1774
      %2562 = vmatpush1.bf16.msra.mxu0 %v1773
      %2563 = vmatprep.subr.bf16.mxu0 %v1778
      %2564 = vmatpush1.bf16.msra.mxu0 %v1777
      %2565 = vmatprep.subr.bf16.mxu0 %v1782
      %2566 = vmatpush1.bf16.msra.mxu0 %v1781
      %2567 = vmatprep.subr.bf16.mxu0 %v1786
      %2568 = vmatpush1.bf16.msra.mxu0 %v1785
      %2569 = vmatprep.subr.bf16.mxu0 %v1790
      %2570 = vmatpush1.bf16.msra.mxu0 %v1789
      %2571 = vmatprep.subr.bf16.mxu0 %v1794
      %2572 = vmatpush1.bf16.msra.mxu0 %v1793
      %2573 = vmatprep.subr.bf16.mxu0 %v1853
      %2574 = vmatpush1.bf16.msra.mxu0 %v1850
      %2575 = vmatprep.subr.bf16.mxu0 0
      %2576 = vmatpush1.bf16.msra.mxu0 0
      %2577 = vmatprep.subr.bf16.mxu0 0
      %2578 = vmatpush1.bf16.msra.mxu0 0
      %2579 = vmatprep.subr.bf16.mxu0 0
      %2580 = vmatpush1.bf16.msra.mxu0 0
      %2581 = vmatprep.subr.bf16.mxu0 0
      %2582 = vmatpush1.bf16.msra.mxu0 0
      %2583 = vmatprep.subr.bf16.mxu0 0
      %2584 = vmatpush1.bf16.msra.mxu0 0
      %2585 = vmatprep.subr.bf16.mxu0 0
      %2586 = vmatpush1.bf16.msra.mxu0 0
      %2587 = vmatprep.mubr.bf16.mxu0 %v2544
      %2588 = vmatmul.mubr.bf16.gmra.mrb[0].mxu0 %v2531
      %v2589 = vpop.f32.mrb[0].mxu0
      %v2590 = vadd.f32 0.0, %v2589
      %v2591 = vpop.f32.mrb[0].mxu0
      %v2592 = vadd.f32 0.0, %v2591
      %v2593 = vpop.f32.mrb[0].mxu0
      %v2594 = vadd.f32 0.0, %v2593
      %v2595 = vpop.f32.mrb[0].mxu0
      %v2596 = vadd.f32 0.0, %v2595
      %2597 = vmatprep.mubr.bf16.mxu0 %v2547
      %2598 = vmatmul.mubr.bf16.gmra.mrb[0].mxu0 %v2533
      %v2599 = vpop.f32.mrb[0].mxu0
      %v2600 = vadd.f32 0.0, %v2599
      %v2601 = vpop.f32.mrb[0].mxu0
      %v2602 = vadd.f32 0.0, %v2601
      %v2603 = vpop.f32.mrb[0].mxu0
      %v2604 = vadd.f32 0.0, %v2603
      %v2605 = vpop.f32.mrb[0].mxu0
      %v2606 = vadd.f32 0.0, %v2605
      %2607 = vmatprep.mubr.bf16.mxu0 %v2550
      %2608 = vmatmul.mubr.bf16.gmra.mrb[0].mxu0 %v2535
      %v2609 = vpop.f32.mrb[0].mxu0
      %v2610 = vadd.f32 0.0, %v2609
      %v2611 = vpop.f32.mrb[0].mxu0
      %v2612 = vadd.f32 0.0, %v2611
      %v2613 = vpop.f32.mrb[0].mxu0
      %v2614 = vadd.f32 0.0, %v2613
      %v2615 = vpop.f32.mrb[0].mxu0
      %v2616 = vadd.f32 0.0, %v2615
      %2617 = vmatprep.mubr.bf16.mxu0 %v2553
      %2618 = vmatmul.mubr.bf16.gmra.mrb[0].mxu0 %v2537
      %v2619 = vpop.f32.mrb[0].mxu0
      %v2620 = vadd.f32 0.0, %v2619
      %v2621 = vpop.f32.mrb[0].mxu0
      %v2622 = vadd.f32 0.0, %v2621
      %v2623 = vpop.f32.mrb[0].mxu0
      %v2624 = vadd.f32 0.0, %v2623
      %v2625 = vpop.f32.mrb[0].mxu0
      %v2626 = vadd.f32 0.0, %v2625
      %2627 = vdwg.mxu0
      %2628 = vmatprep.subr.bf16.mxu0 %v1764
      %2629 = vmatpush1.bf16.msra.mxu0 %v1763
      %2630 = vmatprep.subr.bf16.mxu0 %v1768
      %2631 = vmatpush1.bf16.msra.mxu0 %v1767
      %2632 = vmatprep.subr.bf16.mxu0 %v1772
      %2633 = vmatpush1.bf16.msra.mxu0 %v1771
      %2634 = vmatprep.subr.bf16.mxu0 %v1776
      %2635 = vmatpush1.bf16.msra.mxu0 %v1775
      %2636 = vmatprep.subr.bf16.mxu0 %v1780
      %2637 = vmatpush1.bf16.msra.mxu0 %v1779
      %2638 = vmatprep.subr.bf16.mxu0 %v1784
      %2639 = vmatpush1.bf16.msra.mxu0 %v1783
      %2640 = vmatprep.subr.bf16.mxu0 %v1788
      %2641 = vmatpush1.bf16.msra.mxu0 %v1787
      %2642 = vmatprep.subr.bf16.mxu0 %v1792
      %2643 = vmatpush1.bf16.msra.mxu0 %v1791
      %2644 = vmatprep.subr.bf16.mxu0 %v1796
      %2645 = vmatpush1.bf16.msra.mxu0 %v1795
      %2646 = vmatprep.subr.bf16.mxu0 %v1859
      %2647 = vmatpush1.bf16.msra.mxu0 %v1856
      %2648 = vmatprep.subr.bf16.mxu0 0
      %2649 = vmatpush1.bf16.msra.mxu0 0
      %2650 = vmatprep.subr.bf16.mxu0 0
      %2651 = vmatpush1.bf16.msra.mxu0 0
      %2652 = vmatprep.subr.bf16.mxu0 0
      %2653 = vmatpush1.bf16.msra.mxu0 0
      %2654 = vmatprep.subr.bf16.mxu0 0
      %2655 = vmatpush1.bf16.msra.mxu0 0
      %2656 = vmatprep.subr.bf16.mxu0 0
      %2657 = vmatpush1.bf16.msra.mxu0 0
      %2658 = vmatprep.subr.bf16.mxu0 0
      %2659 = vmatpush1.bf16.msra.mxu0 0
      %2660 = vmatprep.mubr.bf16.mxu0 %v2544
      %2661 = vmatmul.mubr.bf16.gmra.mrb[0].mxu0 %v2531
      %v2662 = vpop.f32.mrb[0].mxu0
      %v2663 = vadd.f32 0.0, %v2662
      %v2664 = vpop.f32.mrb[0].mxu0
      %v2665 = vadd.f32 0.0, %v2664
      %v2666 = vpop.f32.mrb[0].mxu0
      %v2667 = vadd.f32 0.0, %v2666
      %v2668 = vpop.f32.mrb[0].mxu0
      %v2669 = vadd.f32 0.0, %v2668
      %2670 = vmatprep.mubr.bf16.mxu0 %v2547
      %2671 = vmatmul.mubr.bf16.gmra.mrb[0].mxu0 %v2533
      %v2672 = vpop.f32.mrb[0].mxu0
      %v2673 = vadd.f32 0.0, %v2672
      %v2674 = vpop.f32.mrb[0].mxu0
      %v2675 = vadd.f32 0.0, %v2674
      %v2676 = vpop.f32.mrb[0].mxu0
      %v2677 = vadd.f32 0.0, %v2676
      %v2678 = vpop.f32.mrb[0].mxu0
      %v2679 = vadd.f32 0.0, %v2678
      %2680 = vmatprep.mubr.bf16.mxu0 %v2550
      %2681 = vmatmul.mubr.bf16.gmra.mrb[0].mxu0 %v2535
      %v2682 = vpop.f32.mrb[0].mxu0
      %v2683 = vadd.f32 0.0, %v2682
      %v2684 = vpop.f32.mrb[0].mxu0
      %v2685 = vadd.f32 0.0, %v2684
      %v2686 = vpop.f32.mrb[0].mxu0
      %v2687 = vadd.f32 0.0, %v2686
      %v2688 = vpop.f32.mrb[0].mxu0
      %v2689 = vadd.f32 0.0, %v2688
      %2690 = vmatprep.mubr.bf16.mxu0 %v2553
      %2691 = vmatmul.mubr.bf16.gmra.mrb[0].mxu0 %v2537
      %v2692 = vpop.f32.mrb[0].mxu0
      %v2693 = vadd.f32 0.0, %v2692
      %v2694 = vpop.f32.mrb[0].mxu0
      %v2695 = vadd.f32 0.0, %v2694
      %v2696 = vpop.f32.mrb[0].mxu0
      %v2697 = vadd.f32 0.0, %v2696
      %v2698 = vpop.f32.mrb[0].mxu0
      %v2699 = vadd.f32 0.0, %v2698
      %2700 = vdwg.mxu0
      %v2701 = vmax.f32 %v2590, %v2610
      %v2702 = vmax.f32 %v2592, %v2612
      %v2703 = vmax.f32 %v2663, %v2683
      %v2704 = vmax.f32 %v2665, %v2685
      %v2705 = vmax.f32 %v2594, %v2614
      %v2706 = vmax.f32 %v2596, %v2616
      %v2707 = vmax.f32 %v2667, %v2687
      %v2708 = vmax.f32 %v2669, %v2689
      %v2709 = vmax.f32 %v2600, %v2620
      %v2710 = vmax.f32 %v2602, %v2622
      %v2711 = vmax.f32 %v2673, %v2693
      %v2712 = vmax.f32 %v2675, %v2695
      %v2713 = vmax.f32 %v2604, %v2624
      %v2714 = vmax.f32 %v2606, %v2626
      %v2715 = vmax.f32 %v2677, %v2697
      %v2716 = vmax.f32 %v2679, %v2699
      %v2717 = vmax.f32 %v2701, %v2709
      %v2718 = vmax.f32 %v2702, %v2710
      %v2719 = vmax.f32 %v2703, %v2711
      %v2720 = vmax.f32 %v2704, %v2712
      %v2721 = vmax.f32 %v2705, %v2713
      %v2722 = vmax.f32 %v2706, %v2714
      %v2723 = vmax.f32 %v2707, %v2715
      %v2724 = vmax.f32 %v2708, %v2716
      %v2725 = vmax.f32 %v2491, %v2717
      %v2726 = vmax.f32 %v2492, %v2718
      %v2727 = vmax.f32 %v2493, %v2719
      %v2728 = vmax.f32 %v2494, %v2720
      %v2729 = vmax.f32 %v2495, %v2721
      %v2730 = vmax.f32 %v2496, %v2722
      %v2731 = vmax.f32 %v2497, %v2723
      %v2732 = vmax.f32 %v2498, %v2724
      %v2733 = vmax.f32 %v2725, 0.0
      %v2734 = vmax.f32 %v2726, 0.0
      %v2735 = vmax.f32 %v2727, 0.0
      %v2736 = vmax.f32 %v2728, 0.0
      %v2737 = vmax.f32 %v2729, 0.0
      %v2738 = vmax.f32 %v2730, 0.0
      %v2739 = vmax.f32 %v2731, 0.0
      %v2740 = vmax.f32 %v2732, 0.0
      %v2741 = vmin.f32 %v2733, 6.0
      %v2742 = vmin.f32 %v2734, 6.0
      %v2743 = vmin.f32 %v2735, 6.0
      %v2744 = vmin.f32 %v2736, 6.0
      %v2745 = vmin.f32 %v2737, 6.0
      %v2746 = vmin.f32 %v2738, 6.0
      %v2747 = vmin.f32 %v2739, 6.0
      %v2748 = vmin.f32 %v2740, 6.0
      %v2749 = vadd.f32 %v2741, %v2742
      %v2750 = vadd.f32 %v2749, %v2743
      %v2751 = vadd.f32 %v2750, %v2744
      %2752 = vadd.xlane.f32.xlu0 %v2751
      %v2753 = vpop.xlane.xlu0 %2752
      %v2754 = vadd.f32 %v2745, %v2746
      %v2755 = vadd.f32 %v2754, %v2747
      %v2756 = vadd.f32 %v2755, %v2748
      %2757 = vadd.xlane.f32.xlu0 %v2756
      %v2758 = vpop.xlane.xlu0 %2757
      %v2759 = vmul.f32 %v2753, %v1407
      %v2760 = vmul.f32 %v2758, %v1407
      %v2761 = vsub.f32 %v2741, %v2759
      %v2762 = vsub.f32 %v2742, %v2759
      %v2763 = vsub.f32 %v2743, %v2759
      %v2764 = vsub.f32 %v2744, %v2759
      %v2765 = vsub.f32 %v2745, %v2760
      %v2766 = vsub.f32 %v2746, %v2760
      %v2767 = vsub.f32 %v2747, %v2760
      %v2768 = vsub.f32 %v2748, %v2760
      %v2769 = vmul.f32 %v2761, %v2761
      %v2770 = vmul.f32 %v2762, %v2762
      %v2771 = vmul.f32 %v2763, %v2763
      %v2772 = vmul.f32 %v2764, %v2764
      %v2773 = vmul.f32 %v2765, %v2765
      %v2774 = vmul.f32 %v2766, %v2766
      %v2775 = vmul.f32 %v2767, %v2767
      %v2776 = vmul.f32 %v2768, %v2768
      %v2777 = vadd.f32 %v2769, %v2770
      %v2778 = vadd.f32 %v2777, %v2771
      %v2779 = vadd.f32 %v2778, %v2772
      %2780 = vadd.xlane.f32.xlu0 %v2779
      %v2781 = vpop.xlane.xlu0 %2780
      %v2782 = vadd.f32 %v2773, %v2774
      %v2783 = vadd.f32 %v2782, %v2775
      %v2784 = vadd.f32 %v2783, %v2776
      %2785 = vadd.xlane.f32.xlu0 %v2784
      %v2786 = vpop.xlane.xlu0 %2785
      %v2787 = vmul.f32 %v2781, %v1407
      %v2788 = vmul.f32 %v2786, %v1407
      %v2789 = vadd.f32 %v2787, 1e-05
      %v2790 = vadd.f32 %v2788, 1e-05
      %v2791 = vrsqrt.pop %v2789
      %v2792 = vrsqrt.pop %v2790
      %v2793 = vmul.f32 %v2761, %v2791
      %v2794 = vmul.f32 %v2762, %v2791
      %v2795 = vmul.f32 %v2763, %v2791
      %v2796 = vmul.f32 %v2764, %v2791
      %v2797 = vmul.f32 %v2765, %v2792
      %v2798 = vmul.f32 %v2766, %v2792
      %v2799 = vmul.f32 %v2767, %v2792
      %v2800 = vmul.f32 %v2768, %v2792
      %v2801 = vmul.f32 %v2793, %v1454
      %v2802 = vmul.f32 %v2794, %v1458
      %v2803 = vmul.f32 %v2795, %v1462
      %v2804 = vmul.f32 %v2796, %v1466
      %v2805 = vmul.f32 %v2797, %v1454
      %v2806 = vmul.f32 %v2798, %v1458
      %v2807 = vmul.f32 %v2799, %v1462
      %v2808 = vmul.f32 %v2800, %v1466
      %v2809 = vadd.f32 %v2801, %v1483
      %v2810 = vadd.f32 %v2802, %v1487
      %v2811 = vadd.f32 %v2803, %v1491
      %v2812 = vadd.f32 %v2804, %v1495
      %v2813 = vadd.f32 %v2805, %v1483
      %v2814 = vadd.f32 %v2806, %v1487
      %v2815 = vadd.f32 %v2807, %v1491
      %v2816 = vadd.f32 %v2808, %v1495
      %v2817 = vmul.f32 %v2809, 0.5
      %v2818 = vmul.f32 %v2810, 0.5
      %v2819 = vmul.f32 %v2811, 0.5
      %v2820 = vmul.f32 %v2812, 0.5
      %v2821 = vmul.f32 %v2813, 0.5
      %v2822 = vmul.f32 %v2814, 0.5
      %v2823 = vmul.f32 %v2815, 0.5
      %v2824 = vmul.f32 %v2816, 0.5
      %v2825 = vmul.f32 %v2809, 0.70710677
      %v2826 = vmul.f32 %v2810, 0.70710677
      %v2827 = vmul.f32 %v2811, 0.70710677
      %v2828 = vmul.f32 %v2812, 0.70710677
      %v2829 = vmul.f32 %v2813, 0.70710677
      %v2830 = vmul.f32 %v2814, 0.70710677
      %v2831 = vmul.f32 %v2815, 0.70710677
      %v2832 = vmul.f32 %v2816, 0.70710677
      %v2833 = verf.f32.pop %v2825
      %v2834 = verf.f32.pop %v2826
      %v2835 = verf.f32.pop %v2827
      %v2836 = verf.f32.pop %v2828
      %v2837 = verf.f32.pop %v2829
      %v2838 = verf.f32.pop %v2830
      %v2839 = verf.f32.pop %v2831
      %v2840 = verf.f32.pop %v2832
      %v2841 = vadd.f32 %v2833, 1.0
      %v2842 = vadd.f32 %v2834, 1.0
      %v2843 = vadd.f32 %v2835, 1.0
      %v2844 = vadd.f32 %v2836, 1.0
      %v2845 = vadd.f32 %v2837, 1.0
      %v2846 = vadd.f32 %v2838, 1.0
      %v2847 = vadd.f32 %v2839, 1.0
      %v2848 = vadd.f32 %v2840, 1.0
      %v2849 = vmul.f32 %v2817, %v2841
      %v2850 = vmul.f32 %v2818, %v2842
      %v2851 = vmul.f32 %v2819, %v2843
      %v2852 = vmul.f32 %v2820, %v2844
      %v2853 = vmul.f32 %v2821, %v2845
      %v2854 = vmul.f32 %v2822, %v2846
      %v2855 = vmul.f32 %v2823, %v2847
      %v2856 = vmul.f32 %v2824, %v2848
      %v2857 = vtanh.pop %v2849
      %v2858 = vtanh.pop %v2850
      %v2859 = vtanh.pop %v2851
      %v2860 = vtanh.pop %v2852
      %v2861 = vtanh.pop %v2853
      %v2862 = vtanh.pop %v2854
      %v2863 = vtanh.pop %v2855
      %v2864 = vtanh.pop %v2856
      %s2865 = scalar_lea.vmem %s204, 64
      %2866 = vst [vmem:[%s2865] sm:$0xff] %v2857
      %2867 = vst [vmem:[%s2865 + $0x8] sm:$0xff] %v2858
      %2868 = vst [vmem:[%s2865 + $0x10] sm:$0xff] %v2859
      %2869 = vst [vmem:[%s2865 + $0x18] sm:$0xff] %v2860
      %2870 = vst [vmem:[%s2865 + $0x20] sm:$0xff] %v2861
      %2871 = vst [vmem:[%s2865 + $0x28] sm:$0xff] %v2862
      %2872 = vst [vmem:[%s2865 + $0x30] sm:$0xff] %v2863
      %2873 = vst [vmem:[%s2865 + $0x38] sm:$0xff] %v2864
      %s2874 = scalar_lea.vmem %s197, 608
      %v2875 = vld [vmem:[%s2874] sm:$0xff]
      %v2876 = vld [vmem:[%s2874 + $0x8] sm:$0xff]
      %v2877 = vld [vmem:[%s2874 + $0x10] sm:$0xff]
      %v2878 = vld [vmem:[%s2874 + $0x18] sm:$0xff]
      %v2879 = vld [vmem:[%s2874 + $0x20] sm:$0xff]
      %v2880 = vld [vmem:[%s2874 + $0x28] sm:$0xff]
      %v2881 = vld [vmem:[%s2874 + $0x30] sm:$0xff]
      %v2882 = vld [vmem:[%s2874 + $0x38] sm:$0xff]
      %v2883 = vld [vmem:[%s2874 + $0x40] sm:$0xff]
      %v2884 = vld [vmem:[%s2874 + $0x48] sm:$0xff]
      %v2885 = vld [vmem:[%s2874 + $0x50] sm:$0xff]
      %v2886 = vld [vmem:[%s2874 + $0x58] sm:$0xff]
      %v2887 = vld [vmem:[%s2874 + $0x60] sm:$0xff]
      %v2888 = vld [vmem:[%s2874 + $0x68] sm:$0xff]
      %v2889 = vld [vmem:[%s2874 + $0x70] sm:$0xff]
      %v2890 = vld [vmem:[%s2874 + $0x78] sm:$0xff]
      %v2891 = vld [vmem:[%s2874 + $0x80] sm:$0xff]
      %v2892 = vld [vmem:[%s2874 + $0x88] sm:$0xff]
      %v2893 = vld [vmem:[%s2874 + $0x90] sm:$0xff]
      %v2894 = vld [vmem:[%s2874 + $0x98] sm:$0xff]
      %v2895 = vld [vmem:[%s2874 + $0xa0] sm:$0xff]
      %v2896 = vld [vmem:[%s2874 + $0xa8] sm:$0xff]
      %v2897 = vld [vmem:[%s2874 + $0xb0] sm:$0xff]
      %v2898 = vld [vmem:[%s2874 + $0xb8] sm:$0xff]
      %v2899 = vld [vmem:[%s2874 + $0xc0] sm:$0xff]
      %v2900 = vld [vmem:[%s2874 + $0xc8] sm:$0xff]
      %v2901 = vld [vmem:[%s2874 + $0xd0] sm:$0xff]
      %v2902 = vld [vmem:[%s2874 + $0xd8] sm:$0xff]
      %v2903 = vld [vmem:[%s2874 + $0xe0] sm:$0xff]
      %v2904 = vld [vmem:[%s2874 + $0xe8] sm:$0xff]
      %v2905 = vld [vmem:[%s2874 + $0xf0] sm:$0xff]
      %v2906 = vld [vmem:[%s2874 + $0xf8] sm:$0xff]
      %v2907 = vld [vmem:[%s2874 + $0x100] sm:$0xff]
      %v2908 = vld [vmem:[%s2874 + $0x108] sm:$0xff]
      %v2909 = vld [vmem:[%s2874 + $0x110] sm:$0xff]
      %v2910 = vld [vmem:[%s2874 + $0x118] sm:$0xff]
      %v2911 = vld [vmem:[%s2874 + $0x120] sm:$0x11]
      %v2912 = vld [vmem:[%s2874 + $0x128] sm:$0x11]
      %v2913 = vld [vmem:[%s1] sm:$0xff]
      %v2914 = vld [vmem:[%s1 + $0x8] sm:$0xff]
      %v2915 = vld [vmem:[%s1 + $0x10] sm:$0xff]
      %v2916 = vld [vmem:[%s1 + $0x18] sm:$0xff]
      %v2917 = vld [vmem:[%s1 + $0x20] sm:$0xff]
      %v2918 = vld [vmem:[%s1 + $0x28] sm:$0xff]
      %v2919 = vld [vmem:[%s1 + $0x30] sm:$0xff]
      %v2920 = vld [vmem:[%s1 + $0x38] sm:$0xff]
      %v2929 = vunpack.c.l.b16 %v2913
      %v2930 = vunpack.c.h.b16 %v2913
      %v2931 = vunpack.c.l.b16 %v2914
      %v2932 = vunpack.c.h.b16 %v2914
      %v2933 = vunpack.c.l.b16 %v2915
      %v2934 = vunpack.c.h.b16 %v2915
      %v2935 = vunpack.c.l.b16 %v2916
      %v2936 = vunpack.c.h.b16 %v2916
      %v2937 = vunpack.c.l.b16 %v2917
      %v2938 = vunpack.c.h.b16 %v2917
      %v2939 = vunpack.c.l.b16 %v2918
      %v2940 = vunpack.c.h.b16 %v2918
      %v2941 = vunpack.c.l.b16 %v2919
      %v2942 = vunpack.c.h.b16 %v2919
      %v2943 = vunpack.c.l.b16 %v2920
      %v2944 = vunpack.c.h.b16 %v2920
      %v2945 = vpack.c.b16 %v2931, %v2929
      %v2946 = vpack.c.b16 %v2932, %v2930
      %v2947 = vpack.c.b16 %v2935, %v2933
      %v2948 = vpack.c.b16 %v2936, %v2934
      %v2949 = vpack.c.b16 %v2939, %v2937
      %v2950 = vpack.c.b16 %v2940, %v2938
      %v2951 = vpack.c.b16 %v2943, %v2941
      %v2952 = vpack.c.b16 %v2944, %v2942
      %v2995 = vunpack.c.l.b16 %v2875
      %v2996 = vunpack.c.h.b16 %v2875
      %v2997 = vunpack.c.l.b16 %v2876
      %v2998 = vunpack.c.h.b16 %v2876
      %v2999 = vunpack.c.l.b16 %v2877
      %v3000 = vunpack.c.h.b16 %v2877
      %v3001 = vunpack.c.l.b16 %v2878
      %v3002 = vunpack.c.h.b16 %v2878
      %v3003 = vunpack.c.l.b16 %v2879
      %v3004 = vunpack.c.h.b16 %v2879
      %v3005 = vunpack.c.l.b16 %v2880
      %v3006 = vunpack.c.h.b16 %v2880
      %v3007 = vunpack.c.l.b16 %v2881
      %v3008 = vunpack.c.h.b16 %v2881
      %v3009 = vunpack.c.l.b16 %v2882
      %v3010 = vunpack.c.h.b16 %v2882
      %v3011 = vunpack.c.l.b16 %v2883
      %v3012 = vunpack.c.h.b16 %v2883
      %v3013 = vunpack.c.l.b16 %v2884
      %v3014 = vunpack.c.h.b16 %v2884
      %v3015 = vunpack.c.l.b16 %v2885
      %v3016 = vunpack.c.h.b16 %v2885
      %v3017 = vunpack.c.l.b16 %v2886
      %v3018 = vunpack.c.h.b16 %v2886
      %v3019 = vunpack.c.l.b16 %v2887
      %v3020 = vunpack.c.h.b16 %v2887
      %v3021 = vunpack.c.l.b16 %v2888
      %v3022 = vunpack.c.h.b16 %v2888
      %v3023 = vunpack.c.l.b16 %v2889
      %v3024 = vunpack.c.h.b16 %v2889
      %v3025 = vunpack.c.l.b16 %v2890
      %v3026 = vunpack.c.h.b16 %v2890
      %v3027 = vunpack.c.l.b16 %v2891
      %v3028 = vunpack.c.h.b16 %v2891
      %v3029 = vunpack.c.l.b16 %v2892
      %v3030 = vunpack.c.h.b16 %v2892
      %v3031 = vunpack.c.l.b16 %v2893
      %v3032 = vunpack.c.h.b16 %v2893
      %v3033 = vunpack.c.l.b16 %v2894
      %v3034 = vunpack.c.h.b16 %v2894
      %v3035 = vunpack.c.l.b16 %v2895
      %v3036 = vunpack.c.h.b16 %v2895
      %v3037 = vunpack.c.l.b16 %v2896
      %v3038 = vunpack.c.h.b16 %v2896
      %v3039 = vunpack.c.l.b16 %v2897
      %v3040 = vunpack.c.h.b16 %v2897
      %v3041 = vunpack.c.l.b16 %v2898
      %v3042 = vunpack.c.h.b16 %v2898
      %v3043 = vunpack.c.l.b16 %v2899
      %v3044 = vunpack.c.h.b16 %v2899
      %v3045 = vunpack.c.l.b16 %v2900
      %v3046 = vunpack.c.h.b16 %v2900
      %v3047 = vunpack.c.l.b16 %v2901
      %v3048 = vunpack.c.h.b16 %v2901
      %v3049 = vunpack.c.l.b16 %v2902
      %v3050 = vunpack.c.h.b16 %v2902
      %v3051 = vunpack.c.l.b16 %v2903
      %v3052 = vunpack.c.h.b16 %v2903
      %v3053 = vunpack.c.l.b16 %v2904
      %v3054 = vunpack.c.h.b16 %v2904
      %v3055 = vunpack.c.l.b16 %v2905
      %v3056 = vunpack.c.h.b16 %v2905
      %v3057 = vunpack.c.l.b16 %v2906
      %v3058 = vunpack.c.h.b16 %v2906
      %v3059 = vunpack.c.l.b16 %v2907
      %v3060 = vunpack.c.h.b16 %v2907
      %v3061 = vunpack.c.l.b16 %v2908
      %v3062 = vunpack.c.h.b16 %v2908
      %v3063 = vunpack.c.l.b16 %v2909
      %v3064 = vunpack.c.h.b16 %v2909
      %v3065 = vunpack.c.l.b16 %v2910
      %v3066 = vunpack.c.h.b16 %v2910
      %v3067 = vunpack.c.l.b16 %v2911
      %v3068 = vunpack.c.h.b16 %v2911
      %v3069 = vunpack.c.l.b16 %v2912
      %v3070 = vunpack.c.h.b16 %v2912
      %v3071 = vpack.c.b16 %v2999, %v2995
      %v3072 = vpack.c.b16 %v3000, %v2996
      %v3073 = vpack.c.b16 %v3001, %v2997
      %v3074 = vpack.c.b16 %v3002, %v2998
      %v3075 = vpack.c.b16 %v3007, %v3003
      %v3076 = vpack.c.b16 %v3008, %v3004
      %v3077 = vpack.c.b16 %v3009, %v3005
      %v3078 = vpack.c.b16 %v3010, %v3006
      %v3079 = vpack.c.b16 %v3015, %v3011
      %v3080 = vpack.c.b16 %v3016, %v3012
      %v3081 = vpack.c.b16 %v3017, %v3013
      %v3082 = vpack.c.b16 %v3018, %v3014
      %v3083 = vpack.c.b16 %v3023, %v3019
      %v3084 = vpack.c.b16 %v3024, %v3020
      %v3085 = vpack.c.b16 %v3025, %v3021
      %v3086 = vpack.c.b16 %v3026, %v3022
      %v3087 = vpack.c.b16 %v3031, %v3027
      %v3088 = vpack.c.b16 %v3032, %v3028
      %v3089 = vpack.c.b16 %v3033, %v3029
      %v3090 = vpack.c.b16 %v3034, %v3030
      %v3091 = vpack.c.b16 %v3039, %v3035
      %v3092 = vpack.c.b16 %v3040, %v3036
      %v3093 = vpack.c.b16 %v3041, %v3037
      %v3094 = vpack.c.b16 %v3042, %v3038
      %v3095 = vpack.c.b16 %v3047, %v3043
      %v3096 = vpack.c.b16 %v3048, %v3044
      %v3097 = vpack.c.b16 %v3049, %v3045
      %v3098 = vpack.c.b16 %v3050, %v3046
      %v3099 = vpack.c.b16 %v3055, %v3051
      %v3100 = vpack.c.b16 %v3056, %v3052
      %v3101 = vpack.c.b16 %v3057, %v3053
      %v3102 = vpack.c.b16 %v3058, %v3054
      %v3103 = vpack.c.b16 %v3063, %v3059
      %v3104 = vpack.c.b16 %v3064, %v3060
      %v3105 = vpack.c.b16 %v3065, %v3061
      %v3106 = vpack.c.b16 %v3066, %v3062
      %v3107 = vpack.c.b16 %v3067, %v3067
      %v3108 = vpack.c.b16 %v3068, %v3068
      %v3109 = vpack.c.b16 %v3069, %v3069
      %v3110 = vpack.c.b16 %v3070, %v3070
      %v3148 = vsel %vm481, %v2946, 0
      %v3151 = vsel %vm481, %v2948, 0
      %v3154 = vsel %vm481, %v2950, 0
      %v3157 = vsel %vm481, %v2952, 0
      %v3160 = vand.u32 %v3107, %v496
      %v3163 = vand.u32 %v3108, %v496
      %v3166 = vand.u32 %v3109, %v496
      %v3169 = vand.u32 %v3110, %v496
      %3171 = vmatprep.subr.bf16.mxu0 %v3072
      %3172 = vmatpush1.bf16.msra.mxu0 %v3071
      %3173 = vmatprep.subr.bf16.mxu0 %v3076
      %3174 = vmatpush1.bf16.msra.mxu0 %v3075
      %3175 = vmatprep.subr.bf16.mxu0 %v3080
      %3176 = vmatpush1.bf16.msra.mxu0 %v3079
      %3177 = vmatprep.subr.bf16.mxu0 %v3084
      %3178 = vmatpush1.bf16.msra.mxu0 %v3083
      %3179 = vmatprep.subr.bf16.mxu0 %v3088
      %3180 = vmatpush1.bf16.msra.mxu0 %v3087
      %3181 = vmatprep.subr.bf16.mxu0 %v3092
      %3182 = vmatpush1.bf16.msra.mxu0 %v3091
      %3183 = vmatprep.subr.bf16.mxu0 %v3096
      %3184 = vmatpush1.bf16.msra.mxu0 %v3095
      %3185 = vmatprep.subr.bf16.mxu0 %v3100
      %3186 = vmatpush1.bf16.msra.mxu0 %v3099
      %3187 = vmatprep.subr.bf16.mxu0 %v3104
      %3188 = vmatpush1.bf16.msra.mxu0 %v3103
      %3189 = vmatprep.subr.bf16.mxu0 %v3163
      %3190 = vmatpush1.bf16.msra.mxu0 %v3160
      %3191 = vmatprep.subr.bf16.mxu0 0
      %3192 = vmatpush1.bf16.msra.mxu0 0
      %3193 = vmatprep.subr.bf16.mxu0 0
      %3194 = vmatpush1.bf16.msra.mxu0 0
      %3195 = vmatprep.subr.bf16.mxu0 0
      %3196 = vmatpush1.bf16.msra.mxu0 0
      %3197 = vmatprep.subr.bf16.mxu0 0
      %3198 = vmatpush1.bf16.msra.mxu0 0
      %3199 = vmatprep.subr.bf16.mxu0 0
      %3200 = vmatpush1.bf16.msra.mxu0 0
      %3201 = vmatprep.subr.bf16.mxu0 0
      %3202 = vmatpush1.bf16.msra.mxu0 0
      %3203 = vmatprep.mubr.bf16.mxu0 %v3148
      %3204 = vmatmul.mubr.bf16.gmra.mrb[0].mxu0 %v2945
      %v3205 = vpop.f32.mrb[0].mxu0
      %v3206 = vadd.f32 0.0, %v3205
      %v3207 = vpop.f32.mrb[0].mxu0
      %v3208 = vadd.f32 0.0, %v3207
      %v3209 = vpop.f32.mrb[0].mxu0
      %v3210 = vadd.f32 0.0, %v3209
      %v3211 = vpop.f32.mrb[0].mxu0
      %v3212 = vadd.f32 0.0, %v3211
      %3213 = vmatprep.mubr.bf16.mxu0 %v3151
      %3214 = vmatmul.mubr.bf16.gmra.mrb[0].mxu0 %v2947
      %v3215 = vpop.f32.mrb[0].mxu0
      %v3216 = vadd.f32 0.0, %v3215
      %v3217 = vpop.f32.mrb[0].mxu0
      %v3218 = vadd.f32 0.0, %v3217
      %v3219 = vpop.f32.mrb[0].mxu0
      %v3220 = vadd.f32 0.0, %v3219
      %v3221 = vpop.f32.mrb[0].mxu0
      %v3222 = vadd.f32 0.0, %v3221
      %3223 = vmatprep.mubr.bf16.mxu0 %v3154
      %3224 = vmatmul.mubr.bf16.gmra.mrb[0].mxu0 %v2949
      %v3225 = vpop.f32.mrb[0].mxu0
      %v3226 = vadd.f32 0.0, %v3225
      %v3227 = vpop.f32.mrb[0].mxu0
      %v3228 = vadd.f32 0.0, %v3227
      %v3229 = vpop.f32.mrb[0].mxu0
      %v3230 = vadd.f32 0.0, %v3229
      %v3231 = vpop.f32.mrb[0].mxu0
      %v3232 = vadd.f32 0.0, %v3231
      %3233 = vmatprep.mubr.bf16.mxu0 %v3157
      %3234 = vmatmul.mubr.bf16.gmra.mrb[0].mxu0 %v2951
      %v3235 = vpop.f32.mrb[0].mxu0
      %v3236 = vadd.f32 0.0, %v3235
      %v3237 = vpop.f32.mrb[0].mxu0
      %v3238 = vadd.f32 0.0, %v3237
      %v3239 = vpop.f32.mrb[0].mxu0
      %v3240 = vadd.f32 0.0, %v3239
      %v3241 = vpop.f32.mrb[0].mxu0
      %v3242 = vadd.f32 0.0, %v3241
      %3243 = vdwg.mxu0
      %3244 = vmatprep.subr.bf16.mxu0 %v3074
      %3245 = vmatpush1.bf16.msra.mxu0 %v3073
      %3246 = vmatprep.subr.bf16.mxu0 %v3078
      %3247 = vmatpush1.bf16.msra.mxu0 %v3077
      %3248 = vmatprep.subr.bf16.mxu0 %v3082
      %3249 = vmatpush1.bf16.msra.mxu0 %v3081
      %3250 = vmatprep.subr.bf16.mxu0 %v3086
      %3251 = vmatpush1.bf16.msra.mxu0 %v3085
      %3252 = vmatprep.subr.bf16.mxu0 %v3090
      %3253 = vmatpush1.bf16.msra.mxu0 %v3089
      %3254 = vmatprep.subr.bf16.mxu0 %v3094
      %3255 = vmatpush1.bf16.msra.mxu0 %v3093
      %3256 = vmatprep.subr.bf16.mxu0 %v3098
      %3257 = vmatpush1.bf16.msra.mxu0 %v3097
      %3258 = vmatprep.subr.bf16.mxu0 %v3102
      %3259 = vmatpush1.bf16.msra.mxu0 %v3101
      %3260 = vmatprep.subr.bf16.mxu0 %v3106
      %3261 = vmatpush1.bf16.msra.mxu0 %v3105
      %3262 = vmatprep.subr.bf16.mxu0 %v3169
      %3263 = vmatpush1.bf16.msra.mxu0 %v3166
      %3264 = vmatprep.subr.bf16.mxu0 0
      %3265 = vmatpush1.bf16.msra.mxu0 0
      %3266 = vmatprep.subr.bf16.mxu0 0
      %3267 = vmatpush1.bf16.msra.mxu0 0
      %3268 = vmatprep.subr.bf16.mxu0 0
      %3269 = vmatpush1.bf16.msra.mxu0 0
      %3270 = vmatprep.subr.bf16.mxu0 0
      %3271 = vmatpush1.bf16.msra.mxu0 0
      %3272 = vmatprep.subr.bf16.mxu0 0
      %3273 = vmatpush1.bf16.msra.mxu0 0
      %3274 = vmatprep.subr.bf16.mxu0 0
      %3275 = vmatpush1.bf16.msra.mxu0 0
      %3276 = vmatprep.mubr.bf16.mxu0 %v3148
      %3277 = vmatmul.mubr.bf16.gmra.mrb[0].mxu0 %v2945
      %v3278 = vpop.f32.mrb[0].mxu0
      %v3279 = vadd.f32 0.0, %v3278
      %v3280 = vpop.f32.mrb[0].mxu0
      %v3281 = vadd.f32 0.0, %v3280
      %v3282 = vpop.f32.mrb[0].mxu0
      %v3283 = vadd.f32 0.0, %v3282
      %v3284 = vpop.f32.mrb[0].mxu0
      %v3285 = vadd.f32 0.0, %v3284
      %3286 = vmatprep.mubr.bf16.mxu0 %v3151
      %3287 = vmatmul.mubr.bf16.gmra.mrb[0].mxu0 %v2947
      %v3288 = vpop.f32.mrb[0].mxu0
      %v3289 = vadd.f32 0.0, %v3288
      %v3290 = vpop.f32.mrb[0].mxu0
      %v3291 = vadd.f32 0.0, %v3290
      %v3292 = vpop.f32.mrb[0].mxu0
      %v3293 = vadd.f32 0.0, %v3292
      %v3294 = vpop.f32.mrb[0].mxu0
      %v3295 = vadd.f32 0.0, %v3294
      %3296 = vmatprep.mubr.bf16.mxu0 %v3154
      %3297 = vmatmul.mubr.bf16.gmra.mrb[0].mxu0 %v2949
      %v3298 = vpop.f32.mrb[0].mxu0
      %v3299 = vadd.f32 0.0, %v3298
      %v3300 = vpop.f32.mrb[0].mxu0
      %v3301 = vadd.f32 0.0, %v3300
      %v3302 = vpop.f32.mrb[0].mxu0
      %v3303 = vadd.f32 0.0, %v3302
      %v3304 = vpop.f32.mrb[0].mxu0
      %v3305 = vadd.f32 0.0, %v3304
      %3306 = vmatprep.mubr.bf16.mxu0 %v3157
      %3307 = vmatmul.mubr.bf16.gmra.mrb[0].mxu0 %v2951
      %v3308 = vpop.f32.mrb[0].mxu0
      %v3309 = vadd.f32 0.0, %v3308
      %v3310 = vpop.f32.mrb[0].mxu0
      %v3311 = vadd.f32 0.0, %v3310
      %v3312 = vpop.f32.mrb[0].mxu0
      %v3313 = vadd.f32 0.0, %v3312
      %v3314 = vpop.f32.mrb[0].mxu0
      %v3315 = vadd.f32 0.0, %v3314
      %3316 = vdwg.mxu0
      %v3317 = vmax.f32 %v3206, %v3226
      %v3318 = vmax.f32 %v3208, %v3228
      %v3319 = vmax.f32 %v3279, %v3299
      %v3320 = vmax.f32 %v3281, %v3301
      %v3321 = vmax.f32 %v3210, %v3230
      %v3322 = vmax.f32 %v3212, %v3232
      %v3323 = vmax.f32 %v3283, %v3303
      %v3324 = vmax.f32 %v3285, %v3305
      %v3325 = vmax.f32 %v3216, %v3236
      %v3326 = vmax.f32 %v3218, %v3238
      %v3327 = vmax.f32 %v3289, %v3309
      %v3328 = vmax.f32 %v3291, %v3311
      %v3329 = vmax.f32 %v3220, %v3240
      %v3330 = vmax.f32 %v3222, %v3242
      %v3331 = vmax.f32 %v3293, %v3313
      %v3332 = vmax.f32 %v3295, %v3315
      %v3333 = vmax.f32 %v3317, %v3325
      %v3334 = vmax.f32 %v3318, %v3326
      %v3335 = vmax.f32 %v3319, %v3327
      %v3336 = vmax.f32 %v3320, %v3328
      %v3337 = vmax.f32 %v3321, %v3329
      %v3338 = vmax.f32 %v3322, %v3330
      %v3339 = vmax.f32 %v3323, %v3331
      %v3340 = vmax.f32 %v3324, %v3332
      %v3341 = vld [vmem:[%s1 + $0x40] sm:$0xff]
      %v3342 = vld [vmem:[%s1 + $0x48] sm:$0xff]
      %v3343 = vld [vmem:[%s1 + $0x50] sm:$0xff]
      %v3344 = vld [vmem:[%s1 + $0x58] sm:$0xff]
      %v3345 = vld [vmem:[%s1 + $0x60] sm:$0xff]
      %v3346 = vld [vmem:[%s1 + $0x68] sm:$0xff]
      %v3347 = vld [vmem:[%s1 + $0x70] sm:$0xff]
      %v3348 = vld [vmem:[%s1 + $0x78] sm:$0xff]
      %v3357 = vunpack.c.l.b16 %v3341
      %v3358 = vunpack.c.h.b16 %v3341
      %v3359 = vunpack.c.l.b16 %v3342
      %v3360 = vunpack.c.h.b16 %v3342
      %v3361 = vunpack.c.l.b16 %v3343
      %v3362 = vunpack.c.h.b16 %v3343
      %v3363 = vunpack.c.l.b16 %v3344
      %v3364 = vunpack.c.h.b16 %v3344
      %v3365 = vunpack.c.l.b16 %v3345
      %v3366 = vunpack.c.h.b16 %v3345
      %v3367 = vunpack.c.l.b16 %v3346
      %v3368 = vunpack.c.h.b16 %v3346
      %v3369 = vunpack.c.l.b16 %v3347
      %v3370 = vunpack.c.h.b16 %v3347
      %v3371 = vunpack.c.l.b16 %v3348
      %v3372 = vunpack.c.h.b16 %v3348
      %v3373 = vpack.c.b16 %v3359, %v3357
      %v3374 = vpack.c.b16 %v3360, %v3358
      %v3375 = vpack.c.b16 %v3363, %v3361
      %v3376 = vpack.c.b16 %v3364, %v3362
      %v3377 = vpack.c.b16 %v3367, %v3365
      %v3378 = vpack.c.b16 %v3368, %v3366
      %v3379 = vpack.c.b16 %v3371, %v3369
      %v3380 = vpack.c.b16 %v3372, %v3370
      %v3386 = vsel %vm481, %v3374, 0
      %v3389 = vsel %vm481, %v3376, 0
      %v3392 = vsel %vm481, %v3378, 0
      %v3395 = vsel %vm481, %v3380, 0
      %3397 = vmatprep.subr.bf16.mxu0 %v3072
      %3398 = vmatpush1.bf16.msra.mxu0 %v3071
      %3399 = vmatprep.subr.bf16.mxu0 %v3076
      %3400 = vmatpush1.bf16.msra.mxu0 %v3075
      %3401 = vmatprep.subr.bf16.mxu0 %v3080
      %3402 = vmatpush1.bf16.msra.mxu0 %v3079
      %3403 = vmatprep.subr.bf16.mxu0 %v3084
      %3404 = vmatpush1.bf16.msra.mxu0 %v3083
      %3405 = vmatprep.subr.bf16.mxu0 %v3088
      %3406 = vmatpush1.bf16.msra.mxu0 %v3087
      %3407 = vmatprep.subr.bf16.mxu0 %v3092
      %3408 = vmatpush1.bf16.msra.mxu0 %v3091
      %3409 = vmatprep.subr.bf16.mxu0 %v3096
      %3410 = vmatpush1.bf16.msra.mxu0 %v3095
      %3411 = vmatprep.subr.bf16.mxu0 %v3100
      %3412 = vmatpush1.bf16.msra.mxu0 %v3099
      %3413 = vmatprep.subr.bf16.mxu0 %v3104
      %3414 = vmatpush1.bf16.msra.mxu0 %v3103
      %3415 = vmatprep.subr.bf16.mxu0 %v3163
      %3416 = vmatpush1.bf16.msra.mxu0 %v3160
      %3417 = vmatprep.subr.bf16.mxu0 0
      %3418 = vmatpush1.bf16.msra.mxu0 0
      %3419 = vmatprep.subr.bf16.mxu0 0
      %3420 = vmatpush1.bf16.msra.mxu0 0
      %3421 = vmatprep.subr.bf16.mxu0 0
      %3422 = vmatpush1.bf16.msra.mxu0 0
      %3423 = vmatprep.subr.bf16.mxu0 0
      %3424 = vmatpush1.bf16.msra.mxu0 0
      %3425 = vmatprep.subr.bf16.mxu0 0
      %3426 = vmatpush1.bf16.msra.mxu0 0
      %3427 = vmatprep.subr.bf16.mxu0 0
      %3428 = vmatpush1.bf16.msra.mxu0 0
      %3429 = vmatprep.mubr.bf16.mxu0 %v3386
      %3430 = vmatmul.mubr.bf16.gmra.mrb[0].mxu0 %v3373
      %v3431 = vpop.f32.mrb[0].mxu0
      %v3432 = vadd.f32 0.0, %v3431
      %v3433 = vpop.f32.mrb[0].mxu0
      %v3434 = vadd.f32 0.0, %v3433
      %v3435 = vpop.f32.mrb[0].mxu0
      %v3436 = vadd.f32 0.0, %v3435
      %v3437 = vpop.f32.mrb[0].mxu0
      %v3438 = vadd.f32 0.0, %v3437
      %3439 = vmatprep.mubr.bf16.mxu0 %v3389
      %3440 = vmatmul.mubr.bf16.gmra.mrb[0].mxu0 %v3375
      %v3441 = vpop.f32.mrb[0].mxu0
      %v3442 = vadd.f32 0.0, %v3441
      %v3443 = vpop.f32.mrb[0].mxu0
      %v3444 = vadd.f32 0.0, %v3443
      %v3445 = vpop.f32.mrb[0].mxu0
      %v3446 = vadd.f32 0.0, %v3445
      %v3447 = vpop.f32.mrb[0].mxu0
      %v3448 = vadd.f32 0.0, %v3447
      %3449 = vmatprep.mubr.bf16.mxu0 %v3392
      %3450 = vmatmul.mubr.bf16.gmra.mrb[0].mxu0 %v3377
      %v3451 = vpop.f32.mrb[0].mxu0
      %v3452 = vadd.f32 0.0, %v3451
      %v3453 = vpop.f32.mrb[0].mxu0
      %v3454 = vadd.f32 0.0, %v3453
      %v3455 = vpop.f32.mrb[0].mxu0
      %v3456 = vadd.f32 0.0, %v3455
      %v3457 = vpop.f32.mrb[0].mxu0
      %v3458 = vadd.f32 0.0, %v3457
      %3459 = vmatprep.mubr.bf16.mxu0 %v3395
      %3460 = vmatmul.mubr.bf16.gmra.mrb[0].mxu0 %v3379
      %v3461 = vpop.f32.mrb[0].mxu0
      %v3462 = vadd.f32 0.0, %v3461
      %v3463 = vpop.f32.mrb[0].mxu0
      %v3464 = vadd.f32 0.0, %v3463
      %v3465 = vpop.f32.mrb[0].mxu0
      %v3466 = vadd.f32 0.0, %v3465
      %v3467 = vpop.f32.mrb[0].mxu0
      %v3468 = vadd.f32 0.0, %v3467
      %3469 = vdwg.mxu0
      %3470 = vmatprep.subr.bf16.mxu0 %v3074
      %3471 = vmatpush1.bf16.msra.mxu0 %v3073
      %3472 = vmatprep.subr.bf16.mxu0 %v3078
      %3473 = vmatpush1.bf16.msra.mxu0 %v3077
      %3474 = vmatprep.subr.bf16.mxu0 %v3082
      %3475 = vmatpush1.bf16.msra.mxu0 %v3081
      %3476 = vmatprep.subr.bf16.mxu0 %v3086
      %3477 = vmatpush1.bf16.msra.mxu0 %v3085
      %3478 = vmatprep.subr.bf16.mxu0 %v3090
      %3479 = vmatpush1.bf16.msra.mxu0 %v3089
      %3480 = vmatprep.subr.bf16.mxu0 %v3094
      %3481 = vmatpush1.bf16.msra.mxu0 %v3093
      %3482 = vmatprep.subr.bf16.mxu0 %v3098
      %3483 = vmatpush1.bf16.msra.mxu0 %v3097
      %3484 = vmatprep.subr.bf16.mxu0 %v3102
      %3485 = vmatpush1.bf16.msra.mxu0 %v3101
      %3486 = vmatprep.subr.bf16.mxu0 %v3106
      %3487 = vmatpush1.bf16.msra.mxu0 %v3105
      %3488 = vmatprep.subr.bf16.mxu0 %v3169
      %3489 = vmatpush1.bf16.msra.mxu0 %v3166
      %3490 = vmatprep.subr.bf16.mxu0 0
      %3491 = vmatpush1.bf16.msra.mxu0 0
      %3492 = vmatprep.subr.bf16.mxu0 0
      %3493 = vmatpush1.bf16.msra.mxu0 0
      %3494 = vmatprep.subr.bf16.mxu0 0
      %3495 = vmatpush1.bf16.msra.mxu0 0
      %3496 = vmatprep.subr.bf16.mxu0 0
      %3497 = vmatpush1.bf16.msra.mxu0 0
      %3498 = vmatprep.subr.bf16.mxu0 0
      %3499 = vmatpush1.bf16.msra.mxu0 0
      %3500 = vmatprep.subr.bf16.mxu0 0
      %3501 = vmatpush1.bf16.msra.mxu0 0
      %3502 = vmatprep.mubr.bf16.mxu0 %v3386
      %3503 = vmatmul.mubr.bf16.gmra.mrb[0].mxu0 %v3373
      %v3504 = vpop.f32.mrb[0].mxu0
      %v3505 = vadd.f32 0.0, %v3504
      %v3506 = vpop.f32.mrb[0].mxu0
      %v3507 = vadd.f32 0.0, %v3506
      %v3508 = vpop.f32.mrb[0].mxu0
      %v3509 = vadd.f32 0.0, %v3508
      %v3510 = vpop.f32.mrb[0].mxu0
      %v3511 = vadd.f32 0.0, %v3510
      %3512 = vmatprep.mubr.bf16.mxu0 %v3389
      %3513 = vmatmul.mubr.bf16.gmra.mrb[0].mxu0 %v3375
      %v3514 = vpop.f32.mrb[0].mxu0
      %v3515 = vadd.f32 0.0, %v3514
      %v3516 = vpop.f32.mrb[0].mxu0
      %v3517 = vadd.f32 0.0, %v3516
      %v3518 = vpop.f32.mrb[0].mxu0
      %v3519 = vadd.f32 0.0, %v3518
      %v3520 = vpop.f32.mrb[0].mxu0
      %v3521 = vadd.f32 0.0, %v3520
      %3522 = vmatprep.mubr.bf16.mxu0 %v3392
      %3523 = vmatmul.mubr.bf16.gmra.mrb[0].mxu0 %v3377
      %v3524 = vpop.f32.mrb[0].mxu0
      %v3525 = vadd.f32 0.0, %v3524
      %v3526 = vpop.f32.mrb[0].mxu0
      %v3527 = vadd.f32 0.0, %v3526
      %v3528 = vpop.f32.mrb[0].mxu0
      %v3529 = vadd.f32 0.0, %v3528
      %v3530 = vpop.f32.mrb[0].mxu0
      %v3531 = vadd.f32 0.0, %v3530
      %3532 = vmatprep.mubr.bf16.mxu0 %v3395
      %3533 = vmatmul.mubr.bf16.gmra.mrb[0].mxu0 %v3379
      %v3534 = vpop.f32.mrb[0].mxu0
      %v3535 = vadd.f32 0.0, %v3534
      %v3536 = vpop.f32.mrb[0].mxu0
      %v3537 = vadd.f32 0.0, %v3536
      %v3538 = vpop.f32.mrb[0].mxu0
      %v3539 = vadd.f32 0.0, %v3538
      %v3540 = vpop.f32.mrb[0].mxu0
      %v3541 = vadd.f32 0.0, %v3540
      %3542 = vdwg.mxu0
      %v3543 = vmax.f32 %v3432, %v3452
      %v3544 = vmax.f32 %v3434, %v3454
      %v3545 = vmax.f32 %v3505, %v3525
      %v3546 = vmax.f32 %v3507, %v3527
      %v3547 = vmax.f32 %v3436, %v3456
      %v3548 = vmax.f32 %v3438, %v3458
      %v3549 = vmax.f32 %v3509, %v3529
      %v3550 = vmax.f32 %v3511, %v3531
      %v3551 = vmax.f32 %v3442, %v3462
      %v3552 = vmax.f32 %v3444, %v3464
      %v3553 = vmax.f32 %v3515, %v3535
      %v3554 = vmax.f32 %v3517, %v3537
      %v3555 = vmax.f32 %v3446, %v3466
      %v3556 = vmax.f32 %v3448, %v3468
      %v3557 = vmax.f32 %v3519, %v3539
      %v3558 = vmax.f32 %v3521, %v3541
      %v3559 = vmax.f32 %v3543, %v3551
      %v3560 = vmax.f32 %v3544, %v3552
      %v3561 = vmax.f32 %v3545, %v3553
      %v3562 = vmax.f32 %v3546, %v3554
      %v3563 = vmax.f32 %v3547, %v3555
      %v3564 = vmax.f32 %v3548, %v3556
      %v3565 = vmax.f32 %v3549, %v3557
      %v3566 = vmax.f32 %v3550, %v3558
      %v3567 = vmax.f32 %v3333, %v3559
      %v3568 = vmax.f32 %v3334, %v3560
      %v3569 = vmax.f32 %v3335, %v3561
      %v3570 = vmax.f32 %v3336, %v3562
      %v3571 = vmax.f32 %v3337, %v3563
      %v3572 = vmax.f32 %v3338, %v3564
      %v3573 = vmax.f32 %v3339, %v3565
      %v3574 = vmax.f32 %v3340, %v3566
      %v3575 = vld [vmem:[%s1 + $0x80] sm:$0xff]
      %v3576 = vld [vmem:[%s1 + $0x88] sm:$0xff]
      %v3577 = vld [vmem:[%s1 + $0x90] sm:$0xff]
      %v3578 = vld [vmem:[%s1 + $0x98] sm:$0xff]
      %v3579 = vld [vmem:[%s1 + $0xa0] sm:$0xff]
      %v3580 = vld [vmem:[%s1 + $0xa8] sm:$0xff]
      %v3581 = vld [vmem:[%s1 + $0xb0] sm:$0xff]
      %v3582 = vld [vmem:[%s1 + $0xb8] sm:$0xff]
      %v3591 = vunpack.c.l.b16 %v3575
      %v3592 = vunpack.c.h.b16 %v3575
      %v3593 = vunpack.c.l.b16 %v3576
      %v3594 = vunpack.c.h.b16 %v3576
      %v3595 = vunpack.c.l.b16 %v3577
      %v3596 = vunpack.c.h.b16 %v3577
      %v3597 = vunpack.c.l.b16 %v3578
      %v3598 = vunpack.c.h.b16 %v3578
      %v3599 = vunpack.c.l.b16 %v3579
      %v3600 = vunpack.c.h.b16 %v3579
      %v3601 = vunpack.c.l.b16 %v3580
      %v3602 = vunpack.c.h.b16 %v3580
      %v3603 = vunpack.c.l.b16 %v3581
      %v3604 = vunpack.c.h.b16 %v3581
      %v3605 = vunpack.c.l.b16 %v3582
      %v3606 = vunpack.c.h.b16 %v3582
      %v3607 = vpack.c.b16 %v3593, %v3591
      %v3608 = vpack.c.b16 %v3594, %v3592
      %v3609 = vpack.c.b16 %v3597, %v3595
      %v3610 = vpack.c.b16 %v3598, %v3596
      %v3611 = vpack.c.b16 %v3601, %v3599
      %v3612 = vpack.c.b16 %v3602, %v3600
      %v3613 = vpack.c.b16 %v3605, %v3603
      %v3614 = vpack.c.b16 %v3606, %v3604
      %v3620 = vsel %vm481, %v3608, 0
      %v3623 = vsel %vm481, %v3610, 0
      %v3626 = vsel %vm481, %v3612, 0
      %v3629 = vsel %vm481, %v3614, 0
      %3631 = vmatprep.subr.bf16.mxu0 %v3072
      %3632 = vmatpush1.bf16.msra.mxu0 %v3071
      %3633 = vmatprep.subr.bf16.mxu0 %v3076
      %3634 = vmatpush1.bf16.msra.mxu0 %v3075
      %3635 = vmatprep.subr.bf16.mxu0 %v3080
      %3636 = vmatpush1.bf16.msra.mxu0 %v3079
      %3637 = vmatprep.subr.bf16.mxu0 %v3084
      %3638 = vmatpush1.bf16.msra.mxu0 %v3083
      %3639 = vmatprep.subr.bf16.mxu0 %v3088
      %3640 = vmatpush1.bf16.msra.mxu0 %v3087
      %3641 = vmatprep.subr.bf16.mxu0 %v3092
      %3642 = vmatpush1.bf16.msra.mxu0 %v3091
      %3643 = vmatprep.subr.bf16.mxu0 %v3096
      %3644 = vmatpush1.bf16.msra.mxu0 %v3095
      %3645 = vmatprep.subr.bf16.mxu0 %v3100
      %3646 = vmatpush1.bf16.msra.mxu0 %v3099
      %3647 = vmatprep.subr.bf16.mxu0 %v3104
      %3648 = vmatpush1.bf16.msra.mxu0 %v3103
      %3649 = vmatprep.subr.bf16.mxu0 %v3163
      %3650 = vmatpush1.bf16.msra.mxu0 %v3160
      %3651 = vmatprep.subr.bf16.mxu0 0
      %3652 = vmatpush1.bf16.msra.mxu0 0
      %3653 = vmatprep.subr.bf16.mxu0 0
      %3654 = vmatpush1.bf16.msra.mxu0 0
      %3655 = vmatprep.subr.bf16.mxu0 0
      %3656 = vmatpush1.bf16.msra.mxu0 0
      %3657 = vmatprep.subr.bf16.mxu0 0
      %3658 = vmatpush1.bf16.msra.mxu0 0
      %3659 = vmatprep.subr.bf16.mxu0 0
      %3660 = vmatpush1.bf16.msra.mxu0 0
      %3661 = vmatprep.subr.bf16.mxu0 0
      %3662 = vmatpush1.bf16.msra.mxu0 0
      %3663 = vmatprep.mubr.bf16.mxu0 %v3620
      %3664 = vmatmul.mubr.bf16.gmra.mrb[0].mxu0 %v3607
      %v3665 = vpop.f32.mrb[0].mxu0
      %v3666 = vadd.f32 0.0, %v3665
      %v3667 = vpop.f32.mrb[0].mxu0
      %v3668 = vadd.f32 0.0, %v3667
      %v3669 = vpop.f32.mrb[0].mxu0
      %v3670 = vadd.f32 0.0, %v3669
      %v3671 = vpop.f32.mrb[0].mxu0
      %v3672 = vadd.f32 0.0, %v3671
      %3673 = vmatprep.mubr.bf16.mxu0 %v3623
      %3674 = vmatmul.mubr.bf16.gmra.mrb[0].mxu0 %v3609
      %v3675 = vpop.f32.mrb[0].mxu0
      %v3676 = vadd.f32 0.0, %v3675
      %v3677 = vpop.f32.mrb[0].mxu0
      %v3678 = vadd.f32 0.0, %v3677
      %v3679 = vpop.f32.mrb[0].mxu0
      %v3680 = vadd.f32 0.0, %v3679
      %v3681 = vpop.f32.mrb[0].mxu0
      %v3682 = vadd.f32 0.0, %v3681
      %3683 = vmatprep.mubr.bf16.mxu0 %v3626
      %3684 = vmatmul.mubr.bf16.gmra.mrb[0].mxu0 %v3611
      %v3685 = vpop.f32.mrb[0].mxu0
      %v3686 = vadd.f32 0.0, %v3685
      %v3687 = vpop.f32.mrb[0].mxu0
      %v3688 = vadd.f32 0.0, %v3687
      %v3689 = vpop.f32.mrb[0].mxu0
      %v3690 = vadd.f32 0.0, %v3689
      %v3691 = vpop.f32.mrb[0].mxu0
      %v3692 = vadd.f32 0.0, %v3691
      %3693 = vmatprep.mubr.bf16.mxu0 %v3629
      %3694 = vmatmul.mubr.bf16.gmra.mrb[0].mxu0 %v3613
      %v3695 = vpop.f32.mrb[0].mxu0
      %v3696 = vadd.f32 0.0, %v3695
      %v3697 = vpop.f32.mrb[0].mxu0
      %v3698 = vadd.f32 0.0, %v3697
      %v3699 = vpop.f32.mrb[0].mxu0
      %v3700 = vadd.f32 0.0, %v3699
      %v3701 = vpop.f32.mrb[0].mxu0
      %v3702 = vadd.f32 0.0, %v3701
      %3703 = vdwg.mxu0
      %3704 = vmatprep.subr.bf16.mxu0 %v3074
      %3705 = vmatpush1.bf16.msra.mxu0 %v3073
      %3706 = vmatprep.subr.bf16.mxu0 %v3078
      %3707 = vmatpush1.bf16.msra.mxu0 %v3077
      %3708 = vmatprep.subr.bf16.mxu0 %v3082
      %3709 = vmatpush1.bf16.msra.mxu0 %v3081
      %3710 = vmatprep.subr.bf16.mxu0 %v3086
      %3711 = vmatpush1.bf16.msra.mxu0 %v3085
      %3712 = vmatprep.subr.bf16.mxu0 %v3090
      %3713 = vmatpush1.bf16.msra.mxu0 %v3089
      %3714 = vmatprep.subr.bf16.mxu0 %v3094
      %3715 = vmatpush1.bf16.msra.mxu0 %v3093
      %3716 = vmatprep.subr.bf16.mxu0 %v3098
      %3717 = vmatpush1.bf16.msra.mxu0 %v3097
      %3718 = vmatprep.subr.bf16.mxu0 %v3102
      %3719 = vmatpush1.bf16.msra.mxu0 %v3101
      %3720 = vmatprep.subr.bf16.mxu0 %v3106
      %3721 = vmatpush1.bf16.msra.mxu0 %v3105
      %3722 = vmatprep.subr.bf16.mxu0 %v3169
      %3723 = vmatpush1.bf16.msra.mxu0 %v3166
      %3724 = vmatprep.subr.bf16.mxu0 0
      %3725 = vmatpush1.bf16.msra.mxu0 0
      %3726 = vmatprep.subr.bf16.mxu0 0
      %3727 = vmatpush1.bf16.msra.mxu0 0
      %3728 = vmatprep.subr.bf16.mxu0 0
      %3729 = vmatpush1.bf16.msra.mxu0 0
      %3730 = vmatprep.subr.bf16.mxu0 0
      %3731 = vmatpush1.bf16.msra.mxu0 0
      %3732 = vmatprep.subr.bf16.mxu0 0
      %3733 = vmatpush1.bf16.msra.mxu0 0
      %3734 = vmatprep.subr.bf16.mxu0 0
      %3735 = vmatpush1.bf16.msra.mxu0 0
      %3736 = vmatprep.mubr.bf16.mxu0 %v3620
      %3737 = vmatmul.mubr.bf16.gmra.mrb[0].mxu0 %v3607
      %v3738 = vpop.f32.mrb[0].mxu0
      %v3739 = vadd.f32 0.0, %v3738
      %v3740 = vpop.f32.mrb[0].mxu0
      %v3741 = vadd.f32 0.0, %v3740
      %v3742 = vpop.f32.mrb[0].mxu0
      %v3743 = vadd.f32 0.0, %v3742
      %v3744 = vpop.f32.mrb[0].mxu0
      %v3745 = vadd.f32 0.0, %v3744
      %3746 = vmatprep.mubr.bf16.mxu0 %v3623
      %3747 = vmatmul.mubr.bf16.gmra.mrb[0].mxu0 %v3609
      %v3748 = vpop.f32.mrb[0].mxu0
      %v3749 = vadd.f32 0.0, %v3748
      %v3750 = vpop.f32.mrb[0].mxu0
      %v3751 = vadd.f32 0.0, %v3750
      %v3752 = vpop.f32.mrb[0].mxu0
      %v3753 = vadd.f32 0.0, %v3752
      %v3754 = vpop.f32.mrb[0].mxu0
      %v3755 = vadd.f32 0.0, %v3754
      %3756 = vmatprep.mubr.bf16.mxu0 %v3626
      %3757 = vmatmul.mubr.bf16.gmra.mrb[0].mxu0 %v3611
      %v3758 = vpop.f32.mrb[0].mxu0
      %v3759 = vadd.f32 0.0, %v3758
      %v3760 = vpop.f32.mrb[0].mxu0
      %v3761 = vadd.f32 0.0, %v3760
      %v3762 = vpop.f32.mrb[0].mxu0
      %v3763 = vadd.f32 0.0, %v3762
      %v3764 = vpop.f32.mrb[0].mxu0
      %v3765 = vadd.f32 0.0, %v3764
      %3766 = vmatprep.mubr.bf16.mxu0 %v3629
      %3767 = vmatmul.mubr.bf16.gmra.mrb[0].mxu0 %v3613
      %v3768 = vpop.f32.mrb[0].mxu0
      %v3769 = vadd.f32 0.0, %v3768
      %v3770 = vpop.f32.mrb[0].mxu0
      %v3771 = vadd.f32 0.0, %v3770
      %v3772 = vpop.f32.mrb[0].mxu0
      %v3773 = vadd.f32 0.0, %v3772
      %v3774 = vpop.f32.mrb[0].mxu0
      %v3775 = vadd.f32 0.0, %v3774
      %3776 = vdwg.mxu0
      %v3777 = vmax.f32 %v3666, %v3686
      %v3778 = vmax.f32 %v3668, %v3688
      %v3779 = vmax.f32 %v3739, %v3759
      %v3780 = vmax.f32 %v3741, %v3761
      %v3781 = vmax.f32 %v3670, %v3690
      %v3782 = vmax.f32 %v3672, %v3692
      %v3783 = vmax.f32 %v3743, %v3763
      %v3784 = vmax.f32 %v3745, %v3765
      %v3785 = vmax.f32 %v3676, %v3696
      %v3786 = vmax.f32 %v3678, %v3698
      %v3787 = vmax.f32 %v3749, %v3769
      %v3788 = vmax.f32 %v3751, %v3771
      %v3789 = vmax.f32 %v3680, %v3700
      %v3790 = vmax.f32 %v3682, %v3702
      %v3791 = vmax.f32 %v3753, %v3773
      %v3792 = vmax.f32 %v3755, %v3775
      %v3793 = vmax.f32 %v3777, %v3785
      %v3794 = vmax.f32 %v3778, %v3786
      %v3795 = vmax.f32 %v3779, %v3787
      %v3796 = vmax.f32 %v3780, %v3788
      %v3797 = vmax.f32 %v3781, %v3789
      %v3798 = vmax.f32 %v3782, %v3790
      %v3799 = vmax.f32 %v3783, %v3791
      %v3800 = vmax.f32 %v3784, %v3792
      %v3801 = vmax.f32 %v3567, %v3793
      %v3802 = vmax.f32 %v3568, %v3794
      %v3803 = vmax.f32 %v3569, %v3795
      %v3804 = vmax.f32 %v3570, %v3796
      %v3805 = vmax.f32 %v3571, %v3797
      %v3806 = vmax.f32 %v3572, %v3798
      %v3807 = vmax.f32 %v3573, %v3799
      %v3808 = vmax.f32 %v3574, %v3800
      %v3809 = vld [vmem:[%s1 + $0xc0] sm:$0xff]
      %v3810 = vld [vmem:[%s1 + $0xc8] sm:$0xff]
      %v3811 = vld [vmem:[%s1 + $0xd0] sm:$0xff]
      %v3812 = vld [vmem:[%s1 + $0xd8] sm:$0xff]
      %v3813 = vld [vmem:[%s1 + $0xe0] sm:$0xff]
      %v3814 = vld [vmem:[%s1 + $0xe8] sm:$0xff]
      %v3815 = vld [vmem:[%s1 + $0xf0] sm:$0xff]
      %v3816 = vld [vmem:[%s1 + $0xf8] sm:$0xff]
      %v3825 = vunpack.c.l.b16 %v3809
      %v3826 = vunpack.c.h.b16 %v3809
      %v3827 = vunpack.c.l.b16 %v3810
      %v3828 = vunpack.c.h.b16 %v3810
      %v3829 = vunpack.c.l.b16 %v3811
      %v3830 = vunpack.c.h.b16 %v3811
      %v3831 = vunpack.c.l.b16 %v3812
      %v3832 = vunpack.c.h.b16 %v3812
      %v3833 = vunpack.c.l.b16 %v3813
      %v3834 = vunpack.c.h.b16 %v3813
      %v3835 = vunpack.c.l.b16 %v3814
      %v3836 = vunpack.c.h.b16 %v3814
      %v3837 = vunpack.c.l.b16 %v3815
      %v3838 = vunpack.c.h.b16 %v3815
      %v3839 = vunpack.c.l.b16 %v3816
      %v3840 = vunpack.c.h.b16 %v3816
      %v3841 = vpack.c.b16 %v3827, %v3825
      %v3842 = vpack.c.b16 %v3828, %v3826
      %v3843 = vpack.c.b16 %v3831, %v3829
      %v3844 = vpack.c.b16 %v3832, %v3830
      %v3845 = vpack.c.b16 %v3835, %v3833
      %v3846 = vpack.c.b16 %v3836, %v3834
      %v3847 = vpack.c.b16 %v3839, %v3837
      %v3848 = vpack.c.b16 %v3840, %v3838
      %v3854 = vsel %vm481, %v3842, 0
      %v3857 = vsel %vm481, %v3844, 0
      %v3860 = vsel %vm481, %v3846, 0
      %v3863 = vsel %vm481, %v3848, 0
      %3865 = vmatprep.subr.bf16.mxu0 %v3072
      %3866 = vmatpush1.bf16.msra.mxu0 %v3071
      %3867 = vmatprep.subr.bf16.mxu0 %v3076
      %3868 = vmatpush1.bf16.msra.mxu0 %v3075
      %3869 = vmatprep.subr.bf16.mxu0 %v3080
      %3870 = vmatpush1.bf16.msra.mxu0 %v3079
      %3871 = vmatprep.subr.bf16.mxu0 %v3084
      %3872 = vmatpush1.bf16.msra.mxu0 %v3083
      %3873 = vmatprep.subr.bf16.mxu0 %v3088
      %3874 = vmatpush1.bf16.msra.mxu0 %v3087
      %3875 = vmatprep.subr.bf16.mxu0 %v3092
      %3876 = vmatpush1.bf16.msra.mxu0 %v3091
      %3877 = vmatprep.subr.bf16.mxu0 %v3096
      %3878 = vmatpush1.bf16.msra.mxu0 %v3095
      %3879 = vmatprep.subr.bf16.mxu0 %v3100
      %3880 = vmatpush1.bf16.msra.mxu0 %v3099
      %3881 = vmatprep.subr.bf16.mxu0 %v3104
      %3882 = vmatpush1.bf16.msra.mxu0 %v3103
      %3883 = vmatprep.subr.bf16.mxu0 %v3163
      %3884 = vmatpush1.bf16.msra.mxu0 %v3160
      %3885 = vmatprep.subr.bf16.mxu0 0
      %3886 = vmatpush1.bf16.msra.mxu0 0
      %3887 = vmatprep.subr.bf16.mxu0 0
      %3888 = vmatpush1.bf16.msra.mxu0 0
      %3889 = vmatprep.subr.bf16.mxu0 0
      %3890 = vmatpush1.bf16.msra.mxu0 0
      %3891 = vmatprep.subr.bf16.mxu0 0
      %3892 = vmatpush1.bf16.msra.mxu0 0
      %3893 = vmatprep.subr.bf16.mxu0 0
      %3894 = vmatpush1.bf16.msra.mxu0 0
      %3895 = vmatprep.subr.bf16.mxu0 0
      %3896 = vmatpush1.bf16.msra.mxu0 0
      %3897 = vmatprep.mubr.bf16.mxu0 %v3854
      %3898 = vmatmul.mubr.bf16.gmra.mrb[0].mxu0 %v3841
      %v3899 = vpop.f32.mrb[0].mxu0
      %v3900 = vadd.f32 0.0, %v3899
      %v3901 = vpop.f32.mrb[0].mxu0
      %v3902 = vadd.f32 0.0, %v3901
      %v3903 = vpop.f32.mrb[0].mxu0
      %v3904 = vadd.f32 0.0, %v3903
      %v3905 = vpop.f32.mrb[0].mxu0
      %v3906 = vadd.f32 0.0, %v3905
      %3907 = vmatprep.mubr.bf16.mxu0 %v3857
      %3908 = vmatmul.mubr.bf16.gmra.mrb[0].mxu0 %v3843
      %v3909 = vpop.f32.mrb[0].mxu0
      %v3910 = vadd.f32 0.0, %v3909
      %v3911 = vpop.f32.mrb[0].mxu0
      %v3912 = vadd.f32 0.0, %v3911
      %v3913 = vpop.f32.mrb[0].mxu0
      %v3914 = vadd.f32 0.0, %v3913
      %v3915 = vpop.f32.mrb[0].mxu0
      %v3916 = vadd.f32 0.0, %v3915
      %3917 = vmatprep.mubr.bf16.mxu0 %v3860
      %3918 = vmatmul.mubr.bf16.gmra.mrb[0].mxu0 %v3845
      %v3919 = vpop.f32.mrb[0].mxu0
      %v3920 = vadd.f32 0.0, %v3919
      %v3921 = vpop.f32.mrb[0].mxu0
      %v3922 = vadd.f32 0.0, %v3921
      %v3923 = vpop.f32.mrb[0].mxu0
      %v3924 = vadd.f32 0.0, %v3923
      %v3925 = vpop.f32.mrb[0].mxu0
      %v3926 = vadd.f32 0.0, %v3925
      %3927 = vmatprep.mubr.bf16.mxu0 %v3863
      %3928 = vmatmul.mubr.bf16.gmra.mrb[0].mxu0 %v3847
      %v3929 = vpop.f32.mrb[0].mxu0
      %v3930 = vadd.f32 0.0, %v3929
      %v3931 = vpop.f32.mrb[0].mxu0
      %v3932 = vadd.f32 0.0, %v3931
      %v3933 = vpop.f32.mrb[0].mxu0
      %v3934 = vadd.f32 0.0, %v3933
      %v3935 = vpop.f32.mrb[0].mxu0
      %v3936 = vadd.f32 0.0, %v3935
      %3937 = vdwg.mxu0
      %3938 = vmatprep.subr.bf16.mxu0 %v3074
      %3939 = vmatpush1.bf16.msra.mxu0 %v3073
      %3940 = vmatprep.subr.bf16.mxu0 %v3078
      %3941 = vmatpush1.bf16.msra.mxu0 %v3077
      %3942 = vmatprep.subr.bf16.mxu0 %v3082
      %3943 = vmatpush1.bf16.msra.mxu0 %v3081
      %3944 = vmatprep.subr.bf16.mxu0 %v3086
      %3945 = vmatpush1.bf16.msra.mxu0 %v3085
      %3946 = vmatprep.subr.bf16.mxu0 %v3090
      %3947 = vmatpush1.bf16.msra.mxu0 %v3089
      %3948 = vmatprep.subr.bf16.mxu0 %v3094
      %3949 = vmatpush1.bf16.msra.mxu0 %v3093
      %3950 = vmatprep.subr.bf16.mxu0 %v3098
      %3951 = vmatpush1.bf16.msra.mxu0 %v3097
      %3952 = vmatprep.subr.bf16.mxu0 %v3102
      %3953 = vmatpush1.bf16.msra.mxu0 %v3101
      %3954 = vmatprep.subr.bf16.mxu0 %v3106
      %3955 = vmatpush1.bf16.msra.mxu0 %v3105
      %3956 = vmatprep.subr.bf16.mxu0 %v3169
      %3957 = vmatpush1.bf16.msra.mxu0 %v3166
      %3958 = vmatprep.subr.bf16.mxu0 0
      %3959 = vmatpush1.bf16.msra.mxu0 0
      %3960 = vmatprep.subr.bf16.mxu0 0
      %3961 = vmatpush1.bf16.msra.mxu0 0
      %3962 = vmatprep.subr.bf16.mxu0 0
      %3963 = vmatpush1.bf16.msra.mxu0 0
      %3964 = vmatprep.subr.bf16.mxu0 0
      %3965 = vmatpush1.bf16.msra.mxu0 0
      %3966 = vmatprep.subr.bf16.mxu0 0
      %3967 = vmatpush1.bf16.msra.mxu0 0
      %3968 = vmatprep.subr.bf16.mxu0 0
      %3969 = vmatpush1.bf16.msra.mxu0 0
      %3970 = vmatprep.mubr.bf16.mxu0 %v3854
      %3971 = vmatmul.mubr.bf16.gmra.mrb[0].mxu0 %v3841
      %v3972 = vpop.f32.mrb[0].mxu0
      %v3973 = vadd.f32 0.0, %v3972
      %v3974 = vpop.f32.mrb[0].mxu0
      %v3975 = vadd.f32 0.0, %v3974
      %v3976 = vpop.f32.mrb[0].mxu0
      %v3977 = vadd.f32 0.0, %v3976
      %v3978 = vpop.f32.mrb[0].mxu0
      %v3979 = vadd.f32 0.0, %v3978
      %3980 = vmatprep.mubr.bf16.mxu0 %v3857
      %3981 = vmatmul.mubr.bf16.gmra.mrb[0].mxu0 %v3843
      %v3982 = vpop.f32.mrb[0].mxu0
      %v3983 = vadd.f32 0.0, %v3982
      %v3984 = vpop.f32.mrb[0].mxu0
      %v3985 = vadd.f32 0.0, %v3984
      %v3986 = vpop.f32.mrb[0].mxu0
      %v3987 = vadd.f32 0.0, %v3986
      %v3988 = vpop.f32.mrb[0].mxu0
      %v3989 = vadd.f32 0.0, %v3988
      %3990 = vmatprep.mubr.bf16.mxu0 %v3860
      %3991 = vmatmul.mubr.bf16.gmra.mrb[0].mxu0 %v3845
      %v3992 = vpop.f32.mrb[0].mxu0
      %v3993 = vadd.f32 0.0, %v3992
      %v3994 = vpop.f32.mrb[0].mxu0
      %v3995 = vadd.f32 0.0, %v3994
      %v3996 = vpop.f32.mrb[0].mxu0
      %v3997 = vadd.f32 0.0, %v3996
      %v3998 = vpop.f32.mrb[0].mxu0
      %v3999 = vadd.f32 0.0, %v3998
      %4000 = vmatprep.mubr.bf16.mxu0 %v3863
      %4001 = vmatmul.mubr.bf16.gmra.mrb[0].mxu0 %v3847
      %v4002 = vpop.f32.mrb[0].mxu0
      %v4003 = vadd.f32 0.0, %v4002
      %v4004 = vpop.f32.mrb[0].mxu0
      %v4005 = vadd.f32 0.0, %v4004
      %v4006 = vpop.f32.mrb[0].mxu0
      %v4007 = vadd.f32 0.0, %v4006
      %v4008 = vpop.f32.mrb[0].mxu0
      %v4009 = vadd.f32 0.0, %v4008
      %4010 = vdwg.mxu0
      %v4011 = vmax.f32 %v3900, %v3920
      %v4012 = vmax.f32 %v3902, %v3922
      %v4013 = vmax.f32 %v3973, %v3993
      %v4014 = vmax.f32 %v3975, %v3995
      %v4015 = vmax.f32 %v3904, %v3924
      %v4016 = vmax.f32 %v3906, %v3926
      %v4017 = vmax.f32 %v3977, %v3997
      %v4018 = vmax.f32 %v3979, %v3999
      %v4019 = vmax.f32 %v3910, %v3930
      %v4020 = vmax.f32 %v3912, %v3932
      %v4021 = vmax.f32 %v3983, %v4003
      %v4022 = vmax.f32 %v3985, %v4005
      %v4023 = vmax.f32 %v3914, %v3934
      %v4024 = vmax.f32 %v3916, %v3936
      %v4025 = vmax.f32 %v3987, %v4007
      %v4026 = vmax.f32 %v3989, %v4009
      %v4027 = vmax.f32 %v4011, %v4019
      %v4028 = vmax.f32 %v4012, %v4020
      %v4029 = vmax.f32 %v4013, %v4021
      %v4030 = vmax.f32 %v4014, %v4022
      %v4031 = vmax.f32 %v4015, %v4023
      %v4032 = vmax.f32 %v4016, %v4024
      %v4033 = vmax.f32 %v4017, %v4025
      %v4034 = vmax.f32 %v4018, %v4026
      %v4035 = vmax.f32 %v3801, %v4027
      %v4036 = vmax.f32 %v3802, %v4028
      %v4037 = vmax.f32 %v3803, %v4029
      %v4038 = vmax.f32 %v3804, %v4030
      %v4039 = vmax.f32 %v3805, %v4031
      %v4040 = vmax.f32 %v3806, %v4032
      %v4041 = vmax.f32 %v3807, %v4033
      %v4042 = vmax.f32 %v3808, %v4034
      %v4043 = vmax.f32 %v4035, 0.0
      %v4044 = vmax.f32 %v4036, 0.0
      %v4045 = vmax.f32 %v4037, 0.0
      %v4046 = vmax.f32 %v4038, 0.0
      %v4047 = vmax.f32 %v4039, 0.0
      %v4048 = vmax.f32 %v4040, 0.0
      %v4049 = vmax.f32 %v4041, 0.0
      %v4050 = vmax.f32 %v4042, 0.0
      %v4051 = vmin.f32 %v4043, 6.0
      %v4052 = vmin.f32 %v4044, 6.0
      %v4053 = vmin.f32 %v4045, 6.0
      %v4054 = vmin.f32 %v4046, 6.0
      %v4055 = vmin.f32 %v4047, 6.0
      %v4056 = vmin.f32 %v4048, 6.0
      %v4057 = vmin.f32 %v4049, 6.0
      %v4058 = vmin.f32 %v4050, 6.0
      %v4059 = vadd.f32 %v4051, %v4052
      %v4060 = vadd.f32 %v4059, %v4053
      %v4061 = vadd.f32 %v4060, %v4054
      %4062 = vadd.xlane.f32.xlu0 %v4061
      %v4063 = vpop.xlane.xlu0 %4062
      %v4064 = vadd.f32 %v4055, %v4056
      %v4065 = vadd.f32 %v4064, %v4057
      %v4066 = vadd.f32 %v4065, %v4058
      %4067 = vadd.xlane.f32.xlu0 %v4066
      %v4068 = vpop.xlane.xlu0 %4067
      %v4069 = vmul.f32 %v4063, %v1407
      %v4070 = vmul.f32 %v4068, %v1407
      %v4071 = vsub.f32 %v4051, %v4069
      %v4072 = vsub.f32 %v4052, %v4069
      %v4073 = vsub.f32 %v4053, %v4069
      %v4074 = vsub.f32 %v4054, %v4069
      %v4075 = vsub.f32 %v4055, %v4070
      %v4076 = vsub.f32 %v4056, %v4070
      %v4077 = vsub.f32 %v4057, %v4070
      %v4078 = vsub.f32 %v4058, %v4070
      %v4079 = vmul.f32 %v4071, %v4071
      %v4080 = vmul.f32 %v4072, %v4072
      %v4081 = vmul.f32 %v4073, %v4073
      %v4082 = vmul.f32 %v4074, %v4074
      %v4083 = vmul.f32 %v4075, %v4075
      %v4084 = vmul.f32 %v4076, %v4076
      %v4085 = vmul.f32 %v4077, %v4077
      %v4086 = vmul.f32 %v4078, %v4078
      %v4087 = vadd.f32 %v4079, %v4080
      %v4088 = vadd.f32 %v4087, %v4081
      %v4089 = vadd.f32 %v4088, %v4082
      %4090 = vadd.xlane.f32.xlu0 %v4089
      %v4091 = vpop.xlane.xlu0 %4090
      %v4092 = vadd.f32 %v4083, %v4084
      %v4093 = vadd.f32 %v4092, %v4085
      %v4094 = vadd.f32 %v4093, %v4086
      %4095 = vadd.xlane.f32.xlu0 %v4094
      %v4096 = vpop.xlane.xlu0 %4095
      %v4097 = vmul.f32 %v4091, %v1407
      %v4098 = vmul.f32 %v4096, %v1407
      %v4099 = vadd.f32 %v4097, 1e-05
      %v4100 = vadd.f32 %v4098, 1e-05
      %v4101 = vrsqrt.pop %v4099
      %v4102 = vrsqrt.pop %v4100
      %v4103 = vmul.f32 %v4071, %v4101
      %v4104 = vmul.f32 %v4072, %v4101
      %v4105 = vmul.f32 %v4073, %v4101
      %v4106 = vmul.f32 %v4074, %v4101
      %v4107 = vmul.f32 %v4075, %v4102
      %v4108 = vmul.f32 %v4076, %v4102
      %v4109 = vmul.f32 %v4077, %v4102
      %v4110 = vmul.f32 %v4078, %v4102
      %v4111 = vmul.f32 %v4103, %v1454
      %v4112 = vmul.f32 %v4104, %v1458
      %v4113 = vmul.f32 %v4105, %v1462
      %v4114 = vmul.f32 %v4106, %v1466
      %v4115 = vmul.f32 %v4107, %v1454
      %v4116 = vmul.f32 %v4108, %v1458
      %v4117 = vmul.f32 %v4109, %v1462
      %v4118 = vmul.f32 %v4110, %v1466
      %v4119 = vadd.f32 %v4111, %v1483
      %v4120 = vadd.f32 %v4112, %v1487
      %v4121 = vadd.f32 %v4113, %v1491
      %v4122 = vadd.f32 %v4114, %v1495
      %v4123 = vadd.f32 %v4115, %v1483
      %v4124 = vadd.f32 %v4116, %v1487
      %v4125 = vadd.f32 %v4117, %v1491
      %v4126 = vadd.f32 %v4118, %v1495
      %v4127 = vmul.f32 %v4119, 0.5
      %v4128 = vmul.f32 %v4120, 0.5
      %v4129 = vmul.f32 %v4121, 0.5
      %v4130 = vmul.f32 %v4122, 0.5
      %v4131 = vmul.f32 %v4123, 0.5
      %v4132 = vmul.f32 %v4124, 0.5
      %v4133 = vmul.f32 %v4125, 0.5
      %v4134 = vmul.f32 %v4126, 0.5
      %v4135 = vmul.f32 %v4119, 0.70710677
      %v4136 = vmul.f32 %v4120, 0.70710677
      %v4137 = vmul.f32 %v4121, 0.70710677
      %v4138 = vmul.f32 %v4122, 0.70710677
      %v4139 = vmul.f32 %v4123, 0.70710677
      %v4140 = vmul.f32 %v4124, 0.70710677
      %v4141 = vmul.f32 %v4125, 0.70710677
      %v4142 = vmul.f32 %v4126, 0.70710677
      %v4143 = verf.f32.pop %v4135
      %v4144 = verf.f32.pop %v4136
      %v4145 = verf.f32.pop %v4137
      %v4146 = verf.f32.pop %v4138
      %v4147 = verf.f32.pop %v4139
      %v4148 = verf.f32.pop %v4140
      %v4149 = verf.f32.pop %v4141
      %v4150 = verf.f32.pop %v4142
      %v4151 = vadd.f32 %v4143, 1.0
      %v4152 = vadd.f32 %v4144, 1.0
      %v4153 = vadd.f32 %v4145, 1.0
      %v4154 = vadd.f32 %v4146, 1.0
      %v4155 = vadd.f32 %v4147, 1.0
      %v4156 = vadd.f32 %v4148, 1.0
      %v4157 = vadd.f32 %v4149, 1.0
      %v4158 = vadd.f32 %v4150, 1.0
      %v4159 = vmul.f32 %v4127, %v4151
      %v4160 = vmul.f32 %v4128, %v4152
      %v4161 = vmul.f32 %v4129, %v4153
      %v4162 = vmul.f32 %v4130, %v4154
      %v4163 = vmul.f32 %v4131, %v4155
      %v4164 = vmul.f32 %v4132, %v4156
      %v4165 = vmul.f32 %v4133, %v4157
      %v4166 = vmul.f32 %v4134, %v4158
      %v4167 = vtanh.pop %v4159
      %v4168 = vtanh.pop %v4160
      %v4169 = vtanh.pop %v4161
      %v4170 = vtanh.pop %v4162
      %v4171 = vtanh.pop %v4163
      %v4172 = vtanh.pop %v4164
      %v4173 = vtanh.pop %v4165
      %v4174 = vtanh.pop %v4166
      %s4175 = scalar_lea.vmem %s204, 128
      %4176 = vst [vmem:[%s4175] sm:$0xff] %v4167
      %4177 = vst [vmem:[%s4175 + $0x8] sm:$0xff] %v4168
      %4178 = vst [vmem:[%s4175 + $0x10] sm:$0xff] %v4169
      %4179 = vst [vmem:[%s4175 + $0x18] sm:$0xff] %v4170
      %4180 = vst [vmem:[%s4175 + $0x20] sm:$0xff] %v4171
      %4181 = vst [vmem:[%s4175 + $0x28] sm:$0xff] %v4172
      %4182 = vst [vmem:[%s4175 + $0x30] sm:$0xff] %v4173
      %4183 = vst [vmem:[%s4175 + $0x38] sm:$0xff] %v4174
      %s4184 = scalar_lea.vmem %s197, 912
      %v4185 = vld [vmem:[%s4184] sm:$0xff]
      %v4186 = vld [vmem:[%s4184 + $0x8] sm:$0xff]
      %v4187 = vld [vmem:[%s4184 + $0x10] sm:$0xff]
      %v4188 = vld [vmem:[%s4184 + $0x18] sm:$0xff]
      %v4189 = vld [vmem:[%s4184 + $0x20] sm:$0xff]
      %v4190 = vld [vmem:[%s4184 + $0x28] sm:$0xff]
      %v4191 = vld [vmem:[%s4184 + $0x30] sm:$0xff]
      %v4192 = vld [vmem:[%s4184 + $0x38] sm:$0xff]
      %v4193 = vld [vmem:[%s4184 + $0x40] sm:$0xff]
      %v4194 = vld [vmem:[%s4184 + $0x48] sm:$0xff]
      %v4195 = vld [vmem:[%s4184 + $0x50] sm:$0xff]
      %v4196 = vld [vmem:[%s4184 + $0x58] sm:$0xff]
      %v4197 = vld [vmem:[%s4184 + $0x60] sm:$0xff]
      %v4198 = vld [vmem:[%s4184 + $0x68] sm:$0xff]
      %v4199 = vld [vmem:[%s4184 + $0x70] sm:$0xff]
      %v4200 = vld [vmem:[%s4184 + $0x78] sm:$0xff]
      %v4201 = vld [vmem:[%s4184 + $0x80] sm:$0xff]
      %v4202 = vld [vmem:[%s4184 + $0x88] sm:$0xff]
      %v4203 = vld [vmem:[%s4184 + $0x90] sm:$0xff]
      %v4204 = vld [vmem:[%s4184 + $0x98] sm:$0xff]
      %v4205 = vld [vmem:[%s4184 + $0xa0] sm:$0xff]
      %v4206 = vld [vmem:[%s4184 + $0xa8] sm:$0xff]
      %v4207 = vld [vmem:[%s4184 + $0xb0] sm:$0xff]
      %v4208 = vld [vmem:[%s4184 + $0xb8] sm:$0xff]
      %v4209 = vld [vmem:[%s4184 + $0xc0] sm:$0xff]
      %v4210 = vld [vmem:[%s4184 + $0xc8] sm:$0xff]
      %v4211 = vld [vmem:[%s4184 + $0xd0] sm:$0xff]
      %v4212 = vld [vmem:[%s4184 + $0xd8] sm:$0xff]
      %v4213 = vld [vmem:[%s4184 + $0xe0] sm:$0xff]
      %v4214 = vld [vmem:[%s4184 + $0xe8] sm:$0xff]
      %v4215 = vld [vmem:[%s4184 + $0xf0] sm:$0xff]
      %v4216 = vld [vmem:[%s4184 + $0xf8] sm:$0xff]
      %v4217 = vld [vmem:[%s4184 + $0x100] sm:$0xff]
      %v4218 = vld [vmem:[%s4184 + $0x108] sm:$0xff]
      %v4219 = vld [vmem:[%s4184 + $0x110] sm:$0xff]
      %v4220 = vld [vmem:[%s4184 + $0x118] sm:$0xff]
      %v4221 = vld [vmem:[%s4184 + $0x120] sm:$0x11]
      %v4222 = vld [vmem:[%s4184 + $0x128] sm:$0x11]
      %v4223 = vld [vmem:[%s1] sm:$0xff]
      %v4224 = vld [vmem:[%s1 + $0x8] sm:$0xff]
      %v4225 = vld [vmem:[%s1 + $0x10] sm:$0xff]
      %v4226 = vld [vmem:[%s1 + $0x18] sm:$0xff]
      %v4227 = vld [vmem:[%s1 + $0x20] sm:$0xff]
      %v4228 = vld [vmem:[%s1 + $0x28] sm:$0xff]
      %v4229 = vld [vmem:[%s1 + $0x30] sm:$0xff]
      %v4230 = vld [vmem:[%s1 + $0x38] sm:$0xff]
      %v4239 = vunpack.c.l.b16 %v4223
      %v4240 = vunpack.c.h.b16 %v4223
      %v4241 = vunpack.c.l.b16 %v4224
      %v4242 = vunpack.c.h.b16 %v4224
      %v4243 = vunpack.c.l.b16 %v4225
      %v4244 = vunpack.c.h.b16 %v4225
      %v4245 = vunpack.c.l.b16 %v4226
      %v4246 = vunpack.c.h.b16 %v4226
      %v4247 = vunpack.c.l.b16 %v4227
      %v4248 = vunpack.c.h.b16 %v4227
      %v4249 = vunpack.c.l.b16 %v4228
      %v4250 = vunpack.c.h.b16 %v4228
      %v4251 = vunpack.c.l.b16 %v4229
      %v4252 = vunpack.c.h.b16 %v4229
      %v4253 = vunpack.c.l.b16 %v4230
      %v4254 = vunpack.c.h.b16 %v4230
      %v4255 = vpack.c.b16 %v4241, %v4239
      %v4256 = vpack.c.b16 %v4242, %v4240
      %v4257 = vpack.c.b16 %v4245, %v4243
      %v4258 = vpack.c.b16 %v4246, %v4244
      %v4259 = vpack.c.b16 %v4249, %v4247
      %v4260 = vpack.c.b16 %v4250, %v4248
      %v4261 = vpack.c.b16 %v4253, %v4251
      %v4262 = vpack.c.b16 %v4254, %v4252
      %v4305 = vunpack.c.l.b16 %v4185
      %v4306 = vunpack.c.h.b16 %v4185
      %v4307 = vunpack.c.l.b16 %v4186
      %v4308 = vunpack.c.h.b16 %v4186
      %v4309 = vunpack.c.l.b16 %v4187
      %v4310 = vunpack.c.h.b16 %v4187
      %v4311 = vunpack.c.l.b16 %v4188
      %v4312 = vunpack.c.h.b16 %v4188
      %v4313 = vunpack.c.l.b16 %v4189
      %v4314 = vunpack.c.h.b16 %v4189
      %v4315 = vunpack.c.l.b16 %v4190
      %v4316 = vunpack.c.h.b16 %v4190
      %v4317 = vunpack.c.l.b16 %v4191
      %v4318 = vunpack.c.h.b16 %v4191
      %v4319 = vunpack.c.l.b16 %v4192
      %v4320 = vunpack.c.h.b16 %v4192
      %v4321 = vunpack.c.l.b16 %v4193
      %v4322 = vunpack.c.h.b16 %v4193
      %v4323 = vunpack.c.l.b16 %v4194
      %v4324 = vunpack.c.h.b16 %v4194
      %v4325 = vunpack.c.l.b16 %v4195
      %v4326 = vunpack.c.h.b16 %v4195
      %v4327 = vunpack.c.l.b16 %v4196
      %v4328 = vunpack.c.h.b16 %v4196
      %v4329 = vunpack.c.l.b16 %v4197
      %v4330 = vunpack.c.h.b16 %v4197
      %v4331 = vunpack.c.l.b16 %v4198
      %v4332 = vunpack.c.h.b16 %v4198
      %v4333 = vunpack.c.l.b16 %v4199
      %v4334 = vunpack.c.h.b16 %v4199
      %v4335 = vunpack.c.l.b16 %v4200
      %v4336 = vunpack.c.h.b16 %v4200
      %v4337 = vunpack.c.l.b16 %v4201
      %v4338 = vunpack.c.h.b16 %v4201
      %v4339 = vunpack.c.l.b16 %v4202
      %v4340 = vunpack.c.h.b16 %v4202
      %v4341 = vunpack.c.l.b16 %v4203
      %v4342 = vunpack.c.h.b16 %v4203
      %v4343 = vunpack.c.l.b16 %v4204
      %v4344 = vunpack.c.h.b16 %v4204
      %v4345 = vunpack.c.l.b16 %v4205
      %v4346 = vunpack.c.h.b16 %v4205
      %v4347 = vunpack.c.l.b16 %v4206
      %v4348 = vunpack.c.h.b16 %v4206
      %v4349 = vunpack.c.l.b16 %v4207
      %v4350 = vunpack.c.h.b16 %v4207
      %v4351 = vunpack.c.l.b16 %v4208
      %v4352 = vunpack.c.h.b16 %v4208
      %v4353 = vunpack.c.l.b16 %v4209
      %v4354 = vunpack.c.h.b16 %v4209
      %v4355 = vunpack.c.l.b16 %v4210
      %v4356 = vunpack.c.h.b16 %v4210
      %v4357 = vunpack.c.l.b16 %v4211
      %v4358 = vunpack.c.h.b16 %v4211
      %v4359 = vunpack.c.l.b16 %v4212
      %v4360 = vunpack.c.h.b16 %v4212
      %v4361 = vunpack.c.l.b16 %v4213
      %v4362 = vunpack.c.h.b16 %v4213
      %v4363 = vunpack.c.l.b16 %v4214
      %v4364 = vunpack.c.h.b16 %v4214
      %v4365 = vunpack.c.l.b16 %v4215
      %v4366 = vunpack.c.h.b16 %v4215
      %v4367 = vunpack.c.l.b16 %v4216
      %v4368 = vunpack.c.h.b16 %v4216
      %v4369 = vunpack.c.l.b16 %v4217
      %v4370 = vunpack.c.h.b16 %v4217
      %v4371 = vunpack.c.l.b16 %v4218
      %v4372 = vunpack.c.h.b16 %v4218
      %v4373 = vunpack.c.l.b16 %v4219
      %v4374 = vunpack.c.h.b16 %v4219
      %v4375 = vunpack.c.l.b16 %v4220
      %v4376 = vunpack.c.h.b16 %v4220
      %v4377 = vunpack.c.l.b16 %v4221
      %v4378 = vunpack.c.h.b16 %v4221
      %v4379 = vunpack.c.l.b16 %v4222
      %v4380 = vunpack.c.h.b16 %v4222
      %v4381 = vpack.c.b16 %v4309, %v4305
      %v4382 = vpack.c.b16 %v4310, %v4306
      %v4383 = vpack.c.b16 %v4311, %v4307
      %v4384 = vpack.c.b16 %v4312, %v4308
      %v4385 = vpack.c.b16 %v4317, %v4313
      %v4386 = vpack.c.b16 %v4318, %v4314
      %v4387 = vpack.c.b16 %v4319, %v4315
      %v4388 = vpack.c.b16 %v4320, %v4316
      %v4389 = vpack.c.b16 %v4325, %v4321
      %v4390 = vpack.c.b16 %v4326, %v4322
      %v4391 = vpack.c.b16 %v4327, %v4323
      %v4392 = vpack.c.b16 %v4328, %v4324
      %v4393 = vpack.c.b16 %v4333, %v4329
      %v4394 = vpack.c.b16 %v4334, %v4330
      %v4395 = vpack.c.b16 %v4335, %v4331
      %v4396 = vpack.c.b16 %v4336, %v4332
      %v4397 = vpack.c.b16 %v4341, %v4337
      %v4398 = vpack.c.b16 %v4342, %v4338
      %v4399 = vpack.c.b16 %v4343, %v4339
      %v4400 = vpack.c.b16 %v4344, %v4340
      %v4401 = vpack.c.b16 %v4349, %v4345
      %v4402 = vpack.c.b16 %v4350, %v4346
      %v4403 = vpack.c.b16 %v4351, %v4347
      %v4404 = vpack.c.b16 %v4352, %v4348
      %v4405 = vpack.c.b16 %v4357, %v4353
      %v4406 = vpack.c.b16 %v4358, %v4354
      %v4407 = vpack.c.b16 %v4359, %v4355
      %v4408 = vpack.c.b16 %v4360, %v4356
      %v4409 = vpack.c.b16 %v4365, %v4361
      %v4410 = vpack.c.b16 %v4366, %v4362
      %v4411 = vpack.c.b16 %v4367, %v4363
      %v4412 = vpack.c.b16 %v4368, %v4364
      %v4413 = vpack.c.b16 %v4373, %v4369
      %v4414 = vpack.c.b16 %v4374, %v4370
      %v4415 = vpack.c.b16 %v4375, %v4371
      %v4416 = vpack.c.b16 %v4376, %v4372
      %v4417 = vpack.c.b16 %v4377, %v4377
      %v4418 = vpack.c.b16 %v4378, %v4378
      %v4419 = vpack.c.b16 %v4379, %v4379
      %v4420 = vpack.c.b16 %v4380, %v4380
      %v4458 = vsel %vm481, %v4256, 0
      %v4461 = vsel %vm481, %v4258, 0
      %v4464 = vsel %vm481, %v4260, 0
      %v4467 = vsel %vm481, %v4262, 0
      %v4470 = vand.u32 %v4417, %v496
      %v4473 = vand.u32 %v4418, %v496
      %v4476 = vand.u32 %v4419, %v496
      %v4479 = vand.u32 %v4420, %v496
      %4481 = vmatprep.subr.bf16.mxu0 %v4382
      %4482 = vmatpush1.bf16.msra.mxu0 %v4381
      %4483 = vmatprep.subr.bf16.mxu0 %v4386
      %4484 = vmatpush1.bf16.msra.mxu0 %v4385
      %4485 = vmatprep.subr.bf16.mxu0 %v4390
      %4486 = vmatpush1.bf16.msra.mxu0 %v4389
      %4487 = vmatprep.subr.bf16.mxu0 %v4394
      %4488 = vmatpush1.bf16.msra.mxu0 %v4393
      %4489 = vmatprep.subr.bf16.mxu0 %v4398
      %4490 = vmatpush1.bf16.msra.mxu0 %v4397
      %4491 = vmatprep.subr.bf16.mxu0 %v4402
      %4492 = vmatpush1.bf16.msra.mxu0 %v4401
      %4493 = vmatprep.subr.bf16.mxu0 %v4406
      %4494 = vmatpush1.bf16.msra.mxu0 %v4405
      %4495 = vmatprep.subr.bf16.mxu0 %v4410
      %4496 = vmatpush1.bf16.msra.mxu0 %v4409
      %4497 = vmatprep.subr.bf16.mxu0 %v4414
      %4498 = vmatpush1.bf16.msra.mxu0 %v4413
      %4499 = vmatprep.subr.bf16.mxu0 %v4473
      %4500 = vmatpush1.bf16.msra.mxu0 %v4470
      %4501 = vmatprep.subr.bf16.mxu0 0
      %4502 = vmatpush1.bf16.msra.mxu0 0
      %4503 = vmatprep.subr.bf16.mxu0 0
      %4504 = vmatpush1.bf16.msra.mxu0 0
      %4505 = vmatprep.subr.bf16.mxu0 0
      %4506 = vmatpush1.bf16.msra.mxu0 0
      %4507 = vmatprep.subr.bf16.mxu0 0
      %4508 = vmatpush1.bf16.msra.mxu0 0
      %4509 = vmatprep.subr.bf16.mxu0 0
      %4510 = vmatpush1.bf16.msra.mxu0 0
      %4511 = vmatprep.subr.bf16.mxu0 0
      %4512 = vmatpush1.bf16.msra.mxu0 0
      %4513 = vmatprep.mubr.bf16.mxu0 %v4458
      %4514 = vmatmul.mubr.bf16.gmra.mrb[0].mxu0 %v4255
      %v4515 = vpop.f32.mrb[0].mxu0
      %v4516 = vadd.f32 0.0, %v4515
      %v4517 = vpop.f32.mrb[0].mxu0
      %v4518 = vadd.f32 0.0, %v4517
      %v4519 = vpop.f32.mrb[0].mxu0
      %v4520 = vadd.f32 0.0, %v4519
      %v4521 = vpop.f32.mrb[0].mxu0
      %v4522 = vadd.f32 0.0, %v4521
      %4523 = vmatprep.mubr.bf16.mxu0 %v4461
      %4524 = vmatmul.mubr.bf16.gmra.mrb[0].mxu0 %v4257
      %v4525 = vpop.f32.mrb[0].mxu0
      %v4526 = vadd.f32 0.0, %v4525
      %v4527 = vpop.f32.mrb[0].mxu0
      %v4528 = vadd.f32 0.0, %v4527
      %v4529 = vpop.f32.mrb[0].mxu0
      %v4530 = vadd.f32 0.0, %v4529
      %v4531 = vpop.f32.mrb[0].mxu0
      %v4532 = vadd.f32 0.0, %v4531
      %4533 = vmatprep.mubr.bf16.mxu0 %v4464
      %4534 = vmatmul.mubr.bf16.gmra.mrb[0].mxu0 %v4259
      %v4535 = vpop.f32.mrb[0].mxu0
      %v4536 = vadd.f32 0.0, %v4535
      %v4537 = vpop.f32.mrb[0].mxu0
      %v4538 = vadd.f32 0.0, %v4537
      %v4539 = vpop.f32.mrb[0].mxu0
      %v4540 = vadd.f32 0.0, %v4539
      %v4541 = vpop.f32.mrb[0].mxu0
      %v4542 = vadd.f32 0.0, %v4541
      %4543 = vmatprep.mubr.bf16.mxu0 %v4467
      %4544 = vmatmul.mubr.bf16.gmra.mrb[0].mxu0 %v4261
      %v4545 = vpop.f32.mrb[0].mxu0
      %v4546 = vadd.f32 0.0, %v4545
      %v4547 = vpop.f32.mrb[0].mxu0
      %v4548 = vadd.f32 0.0, %v4547
      %v4549 = vpop.f32.mrb[0].mxu0
      %v4550 = vadd.f32 0.0, %v4549
      %v4551 = vpop.f32.mrb[0].mxu0
      %v4552 = vadd.f32 0.0, %v4551
      %4553 = vdwg.mxu0
      %4554 = vmatprep.subr.bf16.mxu0 %v4384
      %4555 = vmatpush1.bf16.msra.mxu0 %v4383
      %4556 = vmatprep.subr.bf16.mxu0 %v4388
      %4557 = vmatpush1.bf16.msra.mxu0 %v4387
      %4558 = vmatprep.subr.bf16.mxu0 %v4392
      %4559 = vmatpush1.bf16.msra.mxu0 %v4391
      %4560 = vmatprep.subr.bf16.mxu0 %v4396
      %4561 = vmatpush1.bf16.msra.mxu0 %v4395
      %4562 = vmatprep.subr.bf16.mxu0 %v4400
      %4563 = vmatpush1.bf16.msra.mxu0 %v4399
      %4564 = vmatprep.subr.bf16.mxu0 %v4404
      %4565 = vmatpush1.bf16.msra.mxu0 %v4403
      %4566 = vmatprep.subr.bf16.mxu0 %v4408
      %4567 = vmatpush1.bf16.msra.mxu0 %v4407
      %4568 = vmatprep.subr.bf16.mxu0 %v4412
      %4569 = vmatpush1.bf16.msra.mxu0 %v4411
      %4570 = vmatprep.subr.bf16.mxu0 %v4416
      %4571 = vmatpush1.bf16.msra.mxu0 %v4415
      %4572 = vmatprep.subr.bf16.mxu0 %v4479
      %4573 = vmatpush1.bf16.msra.mxu0 %v4476
      %4574 = vmatprep.subr.bf16.mxu0 0
      %4575 = vmatpush1.bf16.msra.mxu0 0
      %4576 = vmatprep.subr.bf16.mxu0 0
      %4577 = vmatpush1.bf16.msra.mxu0 0
      %4578 = vmatprep.subr.bf16.mxu0 0
      %4579 = vmatpush1.bf16.msra.mxu0 0
      %4580 = vmatprep.subr.bf16.mxu0 0
      %4581 = vmatpush1.bf16.msra.mxu0 0
      %4582 = vmatprep.subr.bf16.mxu0 0
      %4583 = vmatpush1.bf16.msra.mxu0 0
      %4584 = vmatprep.subr.bf16.mxu0 0
      %4585 = vmatpush1.bf16.msra.mxu0 0
      %4586 = vmatprep.mubr.bf16.mxu0 %v4458
      %4587 = vmatmul.mubr.bf16.gmra.mrb[0].mxu0 %v4255
      %v4588 = vpop.f32.mrb[0].mxu0
      %v4589 = vadd.f32 0.0, %v4588
      %v4590 = vpop.f32.mrb[0].mxu0
      %v4591 = vadd.f32 0.0, %v4590
      %v4592 = vpop.f32.mrb[0].mxu0
      %v4593 = vadd.f32 0.0, %v4592
      %v4594 = vpop.f32.mrb[0].mxu0
      %v4595 = vadd.f32 0.0, %v4594
      %4596 = vmatprep.mubr.bf16.mxu0 %v4461
      %4597 = vmatmul.mubr.bf16.gmra.mrb[0].mxu0 %v4257
      %v4598 = vpop.f32.mrb[0].mxu0
      %v4599 = vadd.f32 0.0, %v4598
      %v4600 = vpop.f32.mrb[0].mxu0
      %v4601 = vadd.f32 0.0, %v4600
      %v4602 = vpop.f32.mrb[0].mxu0
      %v4603 = vadd.f32 0.0, %v4602
      %v4604 = vpop.f32.mrb[0].mxu0
      %v4605 = vadd.f32 0.0, %v4604
      %4606 = vmatprep.mubr.bf16.mxu0 %v4464
      %4607 = vmatmul.mubr.bf16.gmra.mrb[0].mxu0 %v4259
      %v4608 = vpop.f32.mrb[0].mxu0
      %v4609 = vadd.f32 0.0, %v4608
      %v4610 = vpop.f32.mrb[0].mxu0
      %v4611 = vadd.f32 0.0, %v4610
      %v4612 = vpop.f32.mrb[0].mxu0
      %v4613 = vadd.f32 0.0, %v4612
      %v4614 = vpop.f32.mrb[0].mxu0
      %v4615 = vadd.f32 0.0, %v4614
      %4616 = vmatprep.mubr.bf16.mxu0 %v4467
      %4617 = vmatmul.mubr.bf16.gmra.mrb[0].mxu0 %v4261
      %v4618 = vpop.f32.mrb[0].mxu0
      %v4619 = vadd.f32 0.0, %v4618
      %v4620 = vpop.f32.mrb[0].mxu0
      %v4621 = vadd.f32 0.0, %v4620
      %v4622 = vpop.f32.mrb[0].mxu0
      %v4623 = vadd.f32 0.0, %v4622
      %v4624 = vpop.f32.mrb[0].mxu0
      %v4625 = vadd.f32 0.0, %v4624
      %4626 = vdwg.mxu0
      %v4627 = vmax.f32 %v4516, %v4536
      %v4628 = vmax.f32 %v4518, %v4538
      %v4629 = vmax.f32 %v4589, %v4609
      %v4630 = vmax.f32 %v4591, %v4611
      %v4631 = vmax.f32 %v4520, %v4540
      %v4632 = vmax.f32 %v4522, %v4542
      %v4633 = vmax.f32 %v4593, %v4613
      %v4634 = vmax.f32 %v4595, %v4615
      %v4635 = vmax.f32 %v4526, %v4546
      %v4636 = vmax.f32 %v4528, %v4548
      %v4637 = vmax.f32 %v4599, %v4619
      %v4638 = vmax.f32 %v4601, %v4621
      %v4639 = vmax.f32 %v4530, %v4550
      %v4640 = vmax.f32 %v4532, %v4552
      %v4641 = vmax.f32 %v4603, %v4623
      %v4642 = vmax.f32 %v4605, %v4625
      %v4643 = vmax.f32 %v4627, %v4635
      %v4644 = vmax.f32 %v4628, %v4636
      %v4645 = vmax.f32 %v4629, %v4637
      %v4646 = vmax.f32 %v4630, %v4638
      %v4647 = vmax.f32 %v4631, %v4639
      %v4648 = vmax.f32 %v4632, %v4640
      %v4649 = vmax.f32 %v4633, %v4641
      %v4650 = vmax.f32 %v4634, %v4642
      %v4651 = vld [vmem:[%s1 + $0x40] sm:$0xff]
      %v4652 = vld [vmem:[%s1 + $0x48] sm:$0xff]
      %v4653 = vld [vmem:[%s1 + $0x50] sm:$0xff]
      %v4654 = vld [vmem:[%s1 + $0x58] sm:$0xff]
      %v4655 = vld [vmem:[%s1 + $0x60] sm:$0xff]
      %v4656 = vld [vmem:[%s1 + $0x68] sm:$0xff]
      %v4657 = vld [vmem:[%s1 + $0x70] sm:$0xff]
      %v4658 = vld [vmem:[%s1 + $0x78] sm:$0xff]
      %v4667 = vunpack.c.l.b16 %v4651
      %v4668 = vunpack.c.h.b16 %v4651
      %v4669 = vunpack.c.l.b16 %v4652
      %v4670 = vunpack.c.h.b16 %v4652
      %v4671 = vunpack.c.l.b16 %v4653
      %v4672 = vunpack.c.h.b16 %v4653
      %v4673 = vunpack.c.l.b16 %v4654
      %v4674 = vunpack.c.h.b16 %v4654
      %v4675 = vunpack.c.l.b16 %v4655
      %v4676 = vunpack.c.h.b16 %v4655
      %v4677 = vunpack.c.l.b16 %v4656
      %v4678 = vunpack.c.h.b16 %v4656
      %v4679 = vunpack.c.l.b16 %v4657
      %v4680 = vunpack.c.h.b16 %v4657
      %v4681 = vunpack.c.l.b16 %v4658
      %v4682 = vunpack.c.h.b16 %v4658
      %v4683 = vpack.c.b16 %v4669, %v4667
      %v4684 = vpack.c.b16 %v4670, %v4668
      %v4685 = vpack.c.b16 %v4673, %v4671
      %v4686 = vpack.c.b16 %v4674, %v4672
      %v4687 = vpack.c.b16 %v4677, %v4675
      %v4688 = vpack.c.b16 %v4678, %v4676
      %v4689 = vpack.c.b16 %v4681, %v4679
      %v4690 = vpack.c.b16 %v4682, %v4680
      %v4696 = vsel %vm481, %v4684, 0
      %v4699 = vsel %vm481, %v4686, 0
      %v4702 = vsel %vm481, %v4688, 0
      %v4705 = vsel %vm481, %v4690, 0
      %4707 = vmatprep.subr.bf16.mxu0 %v4382
      %4708 = vmatpush1.bf16.msra.mxu0 %v4381
      %4709 = vmatprep.subr.bf16.mxu0 %v4386
      %4710 = vmatpush1.bf16.msra.mxu0 %v4385
      %4711 = vmatprep.subr.bf16.mxu0 %v4390
      %4712 = vmatpush1.bf16.msra.mxu0 %v4389
      %4713 = vmatprep.subr.bf16.mxu0 %v4394
      %4714 = vmatpush1.bf16.msra.mxu0 %v4393
      %4715 = vmatprep.subr.bf16.mxu0 %v4398
      %4716 = vmatpush1.bf16.msra.mxu0 %v4397
      %4717 = vmatprep.subr.bf16.mxu0 %v4402
      %4718 = vmatpush1.bf16.msra.mxu0 %v4401
      %4719 = vmatprep.subr.bf16.mxu0 %v4406
      %4720 = vmatpush1.bf16.msra.mxu0 %v4405
      %4721 = vmatprep.subr.bf16.mxu0 %v4410
      %4722 = vmatpush1.bf16.msra.mxu0 %v4409
      %4723 = vmatprep.subr.bf16.mxu0 %v4414
      %4724 = vmatpush1.bf16.msra.mxu0 %v4413
      %4725 = vmatprep.subr.bf16.mxu0 %v4473
      %4726 = vmatpush1.bf16.msra.mxu0 %v4470
      %4727 = vmatprep.subr.bf16.mxu0 0
      %4728 = vmatpush1.bf16.msra.mxu0 0
      %4729 = vmatprep.subr.bf16.mxu0 0
      %4730 = vmatpush1.bf16.msra.mxu0 0
      %4731 = vmatprep.subr.bf16.mxu0 0
      %4732 = vmatpush1.bf16.msra.mxu0 0
      %4733 = vmatprep.subr.bf16.mxu0 0
      %4734 = vmatpush1.bf16.msra.mxu0 0
      %4735 = vmatprep.subr.bf16.mxu0 0
      %4736 = vmatpush1.bf16.msra.mxu0 0
      %4737 = vmatprep.subr.bf16.mxu0 0
      %4738 = vmatpush1.bf16.msra.mxu0 0
      %4739 = vmatprep.mubr.bf16.mxu0 %v4696
      %4740 = vmatmul.mubr.bf16.gmra.mrb[0].mxu0 %v4683
      %v4741 = vpop.f32.mrb[0].mxu0
      %v4742 = vadd.f32 0.0, %v4741
      %v4743 = vpop.f32.mrb[0].mxu0
      %v4744 = vadd.f32 0.0, %v4743
      %v4745 = vpop.f32.mrb[0].mxu0
      %v4746 = vadd.f32 0.0, %v4745
      %v4747 = vpop.f32.mrb[0].mxu0
      %v4748 = vadd.f32 0.0, %v4747
      %4749 = vmatprep.mubr.bf16.mxu0 %v4699
      %4750 = vmatmul.mubr.bf16.gmra.mrb[0].mxu0 %v4685
      %v4751 = vpop.f32.mrb[0].mxu0
      %v4752 = vadd.f32 0.0, %v4751
      %v4753 = vpop.f32.mrb[0].mxu0
      %v4754 = vadd.f32 0.0, %v4753
      %v4755 = vpop.f32.mrb[0].mxu0
      %v4756 = vadd.f32 0.0, %v4755
      %v4757 = vpop.f32.mrb[0].mxu0
      %v4758 = vadd.f32 0.0, %v4757
      %4759 = vmatprep.mubr.bf16.mxu0 %v4702
      %4760 = vmatmul.mubr.bf16.gmra.mrb[0].mxu0 %v4687
      %v4761 = vpop.f32.mrb[0].mxu0
      %v4762 = vadd.f32 0.0, %v4761
      %v4763 = vpop.f32.mrb[0].mxu0
      %v4764 = vadd.f32 0.0, %v4763
      %v4765 = vpop.f32.mrb[0].mxu0
      %v4766 = vadd.f32 0.0, %v4765
      %v4767 = vpop.f32.mrb[0].mxu0
      %v4768 = vadd.f32 0.0, %v4767
      %4769 = vmatprep.mubr.bf16.mxu0 %v4705
      %4770 = vmatmul.mubr.bf16.gmra.mrb[0].mxu0 %v4689
      %v4771 = vpop.f32.mrb[0].mxu0
      %v4772 = vadd.f32 0.0, %v4771
      %v4773 = vpop.f32.mrb[0].mxu0
      %v4774 = vadd.f32 0.0, %v4773
      %v4775 = vpop.f32.mrb[0].mxu0
      %v4776 = vadd.f32 0.0, %v4775
      %v4777 = vpop.f32.mrb[0].mxu0
      %v4778 = vadd.f32 0.0, %v4777
      %4779 = vdwg.mxu0
      %4780 = vmatprep.subr.bf16.mxu0 %v4384
      %4781 = vmatpush1.bf16.msra.mxu0 %v4383
      %4782 = vmatprep.subr.bf16.mxu0 %v4388
      %4783 = vmatpush1.bf16.msra.mxu0 %v4387
      %4784 = vmatprep.subr.bf16.mxu0 %v4392
      %4785 = vmatpush1.bf16.msra.mxu0 %v4391
      %4786 = vmatprep.subr.bf16.mxu0 %v4396
      %4787 = vmatpush1.bf16.msra.mxu0 %v4395
      %4788 = vmatprep.subr.bf16.mxu0 %v4400
      %4789 = vmatpush1.bf16.msra.mxu0 %v4399
      %4790 = vmatprep.subr.bf16.mxu0 %v4404
      %4791 = vmatpush1.bf16.msra.mxu0 %v4403
      %4792 = vmatprep.subr.bf16.mxu0 %v4408
      %4793 = vmatpush1.bf16.msra.mxu0 %v4407
      %4794 = vmatprep.subr.bf16.mxu0 %v4412
      %4795 = vmatpush1.bf16.msra.mxu0 %v4411
      %4796 = vmatprep.subr.bf16.mxu0 %v4416
      %4797 = vmatpush1.bf16.msra.mxu0 %v4415
      %4798 = vmatprep.subr.bf16.mxu0 %v4479
      %4799 = vmatpush1.bf16.msra.mxu0 %v4476
      %4800 = vmatprep.subr.bf16.mxu0 0
      %4801 = vmatpush1.bf16.msra.mxu0 0
      %4802 = vmatprep.subr.bf16.mxu0 0
      %4803 = vmatpush1.bf16.msra.mxu0 0
      %4804 = vmatprep.subr.bf16.mxu0 0
      %4805 = vmatpush1.bf16.msra.mxu0 0
      %4806 = vmatprep.subr.bf16.mxu0 0
      %4807 = vmatpush1.bf16.msra.mxu0 0
      %4808 = vmatprep.subr.bf16.mxu0 0
      %4809 = vmatpush1.bf16.msra.mxu0 0
      %4810 = vmatprep.subr.bf16.mxu0 0
      %4811 = vmatpush1.bf16.msra.mxu0 0
      %4812 = vmatprep.mubr.bf16.mxu0 %v4696
      %4813 = vmatmul.mubr.bf16.gmra.mrb[0].mxu0 %v4683
      %v4814 = vpop.f32.mrb[0].mxu0
      %v4815 = vadd.f32 0.0, %v4814
      %v4816 = vpop.f32.mrb[0].mxu0
      %v4817 = vadd.f32 0.0, %v4816
      %v4818 = vpop.f32.mrb[0].mxu0
      %v4819 = vadd.f32 0.0, %v4818
      %v4820 = vpop.f32.mrb[0].mxu0
      %v4821 = vadd.f32 0.0, %v4820
      %4822 = vmatprep.mubr.bf16.mxu0 %v4699
      %4823 = vmatmul.mubr.bf16.gmra.mrb[0].mxu0 %v4685
      %v4824 = vpop.f32.mrb[0].mxu0
      %v4825 = vadd.f32 0.0, %v4824
      %v4826 = vpop.f32.mrb[0].mxu0
      %v4827 = vadd.f32 0.0, %v4826
      %v4828 = vpop.f32.mrb[0].mxu0
      %v4829 = vadd.f32 0.0, %v4828
      %v4830 = vpop.f32.mrb[0].mxu0
      %v4831 = vadd.f32 0.0, %v4830
      %4832 = vmatprep.mubr.bf16.mxu0 %v4702
      %4833 = vmatmul.mubr.bf16.gmra.mrb[0].mxu0 %v4687
      %v4834 = vpop.f32.mrb[0].mxu0
      %v4835 = vadd.f32 0.0, %v4834
      %v4836 = vpop.f32.mrb[0].mxu0
      %v4837 = vadd.f32 0.0, %v4836
      %v4838 = vpop.f32.mrb[0].mxu0
      %v4839 = vadd.f32 0.0, %v4838
      %v4840 = vpop.f32.mrb[0].mxu0
      %v4841 = vadd.f32 0.0, %v4840
      %4842 = vmatprep.mubr.bf16.mxu0 %v4705
      %4843 = vmatmul.mubr.bf16.gmra.mrb[0].mxu0 %v4689
      %v4844 = vpop.f32.mrb[0].mxu0
      %v4845 = vadd.f32 0.0, %v4844
      %v4846 = vpop.f32.mrb[0].mxu0
      %v4847 = vadd.f32 0.0, %v4846
      %v4848 = vpop.f32.mrb[0].mxu0
      %v4849 = vadd.f32 0.0, %v4848
      %v4850 = vpop.f32.mrb[0].mxu0
      %v4851 = vadd.f32 0.0, %v4850
      %4852 = vdwg.mxu0
      %v4853 = vmax.f32 %v4742, %v4762
      %v4854 = vmax.f32 %v4744, %v4764
      %v4855 = vmax.f32 %v4815, %v4835
      %v4856 = vmax.f32 %v4817, %v4837
      %v4857 = vmax.f32 %v4746, %v4766
      %v4858 = vmax.f32 %v4748, %v4768
      %v4859 = vmax.f32 %v4819, %v4839
      %v4860 = vmax.f32 %v4821, %v4841
      %v4861 = vmax.f32 %v4752, %v4772
      %v4862 = vmax.f32 %v4754, %v4774
      %v4863 = vmax.f32 %v4825, %v4845
      %v4864 = vmax.f32 %v4827, %v4847
      %v4865 = vmax.f32 %v4756, %v4776
      %v4866 = vmax.f32 %v4758, %v4778
      %v4867 = vmax.f32 %v4829, %v4849
      %v4868 = vmax.f32 %v4831, %v4851
      %v4869 = vmax.f32 %v4853, %v4861
      %v4870 = vmax.f32 %v4854, %v4862
      %v4871 = vmax.f32 %v4855, %v4863
      %v4872 = vmax.f32 %v4856, %v4864
      %v4873 = vmax.f32 %v4857, %v4865
      %v4874 = vmax.f32 %v4858, %v4866
      %v4875 = vmax.f32 %v4859, %v4867
      %v4876 = vmax.f32 %v4860, %v4868
      %v4877 = vmax.f32 %v4643, %v4869
      %v4878 = vmax.f32 %v4644, %v4870
      %v4879 = vmax.f32 %v4645, %v4871
      %v4880 = vmax.f32 %v4646, %v4872
      %v4881 = vmax.f32 %v4647, %v4873
      %v4882 = vmax.f32 %v4648, %v4874
      %v4883 = vmax.f32 %v4649, %v4875
      %v4884 = vmax.f32 %v4650, %v4876
      %v4885 = vld [vmem:[%s1 + $0x80] sm:$0xff]
      %v4886 = vld [vmem:[%s1 + $0x88] sm:$0xff]
      %v4887 = vld [vmem:[%s1 + $0x90] sm:$0xff]
      %v4888 = vld [vmem:[%s1 + $0x98] sm:$0xff]
      %v4889 = vld [vmem:[%s1 + $0xa0] sm:$0xff]
      %v4890 = vld [vmem:[%s1 + $0xa8] sm:$0xff]
      %v4891 = vld [vmem:[%s1 + $0xb0] sm:$0xff]
      %v4892 = vld [vmem:[%s1 + $0xb8] sm:$0xff]
      %v4901 = vunpack.c.l.b16 %v4885
      %v4902 = vunpack.c.h.b16 %v4885
      %v4903 = vunpack.c.l.b16 %v4886
      %v4904 = vunpack.c.h.b16 %v4886
      %v4905 = vunpack.c.l.b16 %v4887
      %v4906 = vunpack.c.h.b16 %v4887
      %v4907 = vunpack.c.l.b16 %v4888
      %v4908 = vunpack.c.h.b16 %v4888
      %v4909 = vunpack.c.l.b16 %v4889
      %v4910 = vunpack.c.h.b16 %v4889
      %v4911 = vunpack.c.l.b16 %v4890
      %v4912 = vunpack.c.h.b16 %v4890
      %v4913 = vunpack.c.l.b16 %v4891
      %v4914 = vunpack.c.h.b16 %v4891
      %v4915 = vunpack.c.l.b16 %v4892
      %v4916 = vunpack.c.h.b16 %v4892
      %v4917 = vpack.c.b16 %v4903, %v4901
      %v4918 = vpack.c.b16 %v4904, %v4902
      %v4919 = vpack.c.b16 %v4907, %v4905
      %v4920 = vpack.c.b16 %v4908, %v4906
      %v4921 = vpack.c.b16 %v4911, %v4909
      %v4922 = vpack.c.b16 %v4912, %v4910
      %v4923 = vpack.c.b16 %v4915, %v4913
      %v4924 = vpack.c.b16 %v4916, %v4914
      %v4930 = vsel %vm481, %v4918, 0
      %v4933 = vsel %vm481, %v4920, 0
      %v4936 = vsel %vm481, %v4922, 0
      %v4939 = vsel %vm481, %v4924, 0
      %4941 = vmatprep.subr.bf16.mxu0 %v4382
      %4942 = vmatpush1.bf16.msra.mxu0 %v4381
      %4943 = vmatprep.subr.bf16.mxu0 %v4386
      %4944 = vmatpush1.bf16.msra.mxu0 %v4385
      %4945 = vmatprep.subr.bf16.mxu0 %v4390
      %4946 = vmatpush1.bf16.msra.mxu0 %v4389
      %4947 = vmatprep.subr.bf16.mxu0 %v4394
      %4948 = vmatpush1.bf16.msra.mxu0 %v4393
      %4949 = vmatprep.subr.bf16.mxu0 %v4398
      %4950 = vmatpush1.bf16.msra.mxu0 %v4397
      %4951 = vmatprep.subr.bf16.mxu0 %v4402
      %4952 = vmatpush1.bf16.msra.mxu0 %v4401
      %4953 = vmatprep.subr.bf16.mxu0 %v4406
      %4954 = vmatpush1.bf16.msra.mxu0 %v4405
      %4955 = vmatprep.subr.bf16.mxu0 %v4410
      %4956 = vmatpush1.bf16.msra.mxu0 %v4409
      %4957 = vmatprep.subr.bf16.mxu0 %v4414
      %4958 = vmatpush1.bf16.msra.mxu0 %v4413
      %4959 = vmatprep.subr.bf16.mxu0 %v4473
      %4960 = vmatpush1.bf16.msra.mxu0 %v4470
      %4961 = vmatprep.subr.bf16.mxu0 0
      %4962 = vmatpush1.bf16.msra.mxu0 0
      %4963 = vmatprep.subr.bf16.mxu0 0
      %4964 = vmatpush1.bf16.msra.mxu0 0
      %4965 = vmatprep.subr.bf16.mxu0 0
      %4966 = vmatpush1.bf16.msra.mxu0 0
      %4967 = vmatprep.subr.bf16.mxu0 0
      %4968 = vmatpush1.bf16.msra.mxu0 0
      %4969 = vmatprep.subr.bf16.mxu0 0
      %4970 = vmatpush1.bf16.msra.mxu0 0
      %4971 = vmatprep.subr.bf16.mxu0 0
      %4972 = vmatpush1.bf16.msra.mxu0 0
      %4973 = vmatprep.mubr.bf16.mxu0 %v4930
      %4974 = vmatmul.mubr.bf16.gmra.mrb[0].mxu0 %v4917
      %v4975 = vpop.f32.mrb[0].mxu0
      %v4976 = vadd.f32 0.0, %v4975
      %v4977 = vpop.f32.mrb[0].mxu0
      %v4978 = vadd.f32 0.0, %v4977
      %v4979 = vpop.f32.mrb[0].mxu0
      %v4980 = vadd.f32 0.0, %v4979
      %v4981 = vpop.f32.mrb[0].mxu0
      %v4982 = vadd.f32 0.0, %v4981
      %4983 = vmatprep.mubr.bf16.mxu0 %v4933
      %4984 = vmatmul.mubr.bf16.gmra.mrb[0].mxu0 %v4919
      %v4985 = vpop.f32.mrb[0].mxu0
      %v4986 = vadd.f32 0.0, %v4985
      %v4987 = vpop.f32.mrb[0].mxu0
      %v4988 = vadd.f32 0.0, %v4987
      %v4989 = vpop.f32.mrb[0].mxu0
      %v4990 = vadd.f32 0.0, %v4989
      %v4991 = vpop.f32.mrb[0].mxu0
      %v4992 = vadd.f32 0.0, %v4991
      %4993 = vmatprep.mubr.bf16.mxu0 %v4936
      %4994 = vmatmul.mubr.bf16.gmra.mrb[0].mxu0 %v4921
      %v4995 = vpop.f32.mrb[0].mxu0
      %v4996 = vadd.f32 0.0, %v4995
      %v4997 = vpop.f32.mrb[0].mxu0
      %v4998 = vadd.f32 0.0, %v4997
      %v4999 = vpop.f32.mrb[0].mxu0
      %v5000 = vadd.f32 0.0, %v4999
      %v5001 = vpop.f32.mrb[0].mxu0
      %v5002 = vadd.f32 0.0, %v5001
      %5003 = vmatprep.mubr.bf16.mxu0 %v4939
      %5004 = vmatmul.mubr.bf16.gmra.mrb[0].mxu0 %v4923
      %v5005 = vpop.f32.mrb[0].mxu0
      %v5006 = vadd.f32 0.0, %v5005
      %v5007 = vpop.f32.mrb[0].mxu0
      %v5008 = vadd.f32 0.0, %v5007
      %v5009 = vpop.f32.mrb[0].mxu0
      %v5010 = vadd.f32 0.0, %v5009
      %v5011 = vpop.f32.mrb[0].mxu0
      %v5012 = vadd.f32 0.0, %v5011
      %5013 = vdwg.mxu0
      %5014 = vmatprep.subr.bf16.mxu0 %v4384
      %5015 = vmatpush1.bf16.msra.mxu0 %v4383
      %5016 = vmatprep.subr.bf16.mxu0 %v4388
      %5017 = vmatpush1.bf16.msra.mxu0 %v4387
      %5018 = vmatprep.subr.bf16.mxu0 %v4392
      %5019 = vmatpush1.bf16.msra.mxu0 %v4391
      %5020 = vmatprep.subr.bf16.mxu0 %v4396
      %5021 = vmatpush1.bf16.msra.mxu0 %v4395
      %5022 = vmatprep.subr.bf16.mxu0 %v4400
      %5023 = vmatpush1.bf16.msra.mxu0 %v4399
      %5024 = vmatprep.subr.bf16.mxu0 %v4404
      %5025 = vmatpush1.bf16.msra.mxu0 %v4403
      %5026 = vmatprep.subr.bf16.mxu0 %v4408
      %5027 = vmatpush1.bf16.msra.mxu0 %v4407
      %5028 = vmatprep.subr.bf16.mxu0 %v4412
      %5029 = vmatpush1.bf16.msra.mxu0 %v4411
      %5030 = vmatprep.subr.bf16.mxu0 %v4416
      %5031 = vmatpush1.bf16.msra.mxu0 %v4415
      %5032 = vmatprep.subr.bf16.mxu0 %v4479
      %5033 = vmatpush1.bf16.msra.mxu0 %v4476
      %5034 = vmatprep.subr.bf16.mxu0 0
      %5035 = vmatpush1.bf16.msra.mxu0 0
      %5036 = vmatprep.subr.bf16.mxu0 0
      %5037 = vmatpush1.bf16.msra.mxu0 0
      %5038 = vmatprep.subr.bf16.mxu0 0
      %5039 = vmatpush1.bf16.msra.mxu0 0
      %5040 = vmatprep.subr.bf16.mxu0 0
      %5041 = vmatpush1.bf16.msra.mxu0 0
      %5042 = vmatprep.subr.bf16.mxu0 0
      %5043 = vmatpush1.bf16.msra.mxu0 0
      %5044 = vmatprep.subr.bf16.mxu0 0
      %5045 = vmatpush1.bf16.msra.mxu0 0
      %5046 = vmatprep.mubr.bf16.mxu0 %v4930
      %5047 = vmatmul.mubr.bf16.gmra.mrb[0].mxu0 %v4917
      %v5048 = vpop.f32.mrb[0].mxu0
      %v5049 = vadd.f32 0.0, %v5048
      %v5050 = vpop.f32.mrb[0].mxu0
      %v5051 = vadd.f32 0.0, %v5050
      %v5052 = vpop.f32.mrb[0].mxu0
      %v5053 = vadd.f32 0.0, %v5052
      %v5054 = vpop.f32.mrb[0].mxu0
      %v5055 = vadd.f32 0.0, %v5054
      %5056 = vmatprep.mubr.bf16.mxu0 %v4933
      %5057 = vmatmul.mubr.bf16.gmra.mrb[0].mxu0 %v4919
      %v5058 = vpop.f32.mrb[0].mxu0
      %v5059 = vadd.f32 0.0, %v5058
      %v5060 = vpop.f32.mrb[0].mxu0
      %v5061 = vadd.f32 0.0, %v5060
      %v5062 = vpop.f32.mrb[0].mxu0
      %v5063 = vadd.f32 0.0, %v5062
      %v5064 = vpop.f32.mrb[0].mxu0
      %v5065 = vadd.f32 0.0, %v5064
      %5066 = vmatprep.mubr.bf16.mxu0 %v4936
      %5067 = vmatmul.mubr.bf16.gmra.mrb[0].mxu0 %v4921
      %v5068 = vpop.f32.mrb[0].mxu0
      %v5069 = vadd.f32 0.0, %v5068
      %v5070 = vpop.f32.mrb[0].mxu0
      %v5071 = vadd.f32 0.0, %v5070
      %v5072 = vpop.f32.mrb[0].mxu0
      %v5073 = vadd.f32 0.0, %v5072
      %v5074 = vpop.f32.mrb[0].mxu0
      %v5075 = vadd.f32 0.0, %v5074
      %5076 = vmatprep.mubr.bf16.mxu0 %v4939
      %5077 = vmatmul.mubr.bf16.gmra.mrb[0].mxu0 %v4923
      %v5078 = vpop.f32.mrb[0].mxu0
      %v5079 = vadd.f32 0.0, %v5078
      %v5080 = vpop.f32.mrb[0].mxu0
      %v5081 = vadd.f32 0.0, %v5080
      %v5082 = vpop.f32.mrb[0].mxu0
      %v5083 = vadd.f32 0.0, %v5082
      %v5084 = vpop.f32.mrb[0].mxu0
      %v5085 = vadd.f32 0.0, %v5084
      %5086 = vdwg.mxu0
      %v5087 = vmax.f32 %v4976, %v4996
      %v5088 = vmax.f32 %v4978, %v4998
      %v5089 = vmax.f32 %v5049, %v5069
      %v5090 = vmax.f32 %v5051, %v5071
      %v5091 = vmax.f32 %v4980, %v5000
      %v5092 = vmax.f32 %v4982, %v5002
      %v5093 = vmax.f32 %v5053, %v5073
      %v5094 = vmax.f32 %v5055, %v5075
      %v5095 = vmax.f32 %v4986, %v5006
      %v5096 = vmax.f32 %v4988, %v5008
      %v5097 = vmax.f32 %v5059, %v5079
      %v5098 = vmax.f32 %v5061, %v5081
      %v5099 = vmax.f32 %v4990, %v5010
      %v5100 = vmax.f32 %v4992, %v5012
      %v5101 = vmax.f32 %v5063, %v5083
      %v5102 = vmax.f32 %v5065, %v5085
      %v5103 = vmax.f32 %v5087, %v5095
      %v5104 = vmax.f32 %v5088, %v5096
      %v5105 = vmax.f32 %v5089, %v5097
      %v5106 = vmax.f32 %v5090, %v5098
      %v5107 = vmax.f32 %v5091, %v5099
      %v5108 = vmax.f32 %v5092, %v5100
      %v5109 = vmax.f32 %v5093, %v5101
      %v5110 = vmax.f32 %v5094, %v5102
      %v5111 = vmax.f32 %v4877, %v5103
      %v5112 = vmax.f32 %v4878, %v5104
      %v5113 = vmax.f32 %v4879, %v5105
      %v5114 = vmax.f32 %v4880, %v5106
      %v5115 = vmax.f32 %v4881, %v5107
      %v5116 = vmax.f32 %v4882, %v5108
      %v5117 = vmax.f32 %v4883, %v5109
      %v5118 = vmax.f32 %v4884, %v5110
      %v5119 = vld [vmem:[%s1 + $0xc0] sm:$0xff]
      %v5120 = vld [vmem:[%s1 + $0xc8] sm:$0xff]
      %v5121 = vld [vmem:[%s1 + $0xd0] sm:$0xff]
      %v5122 = vld [vmem:[%s1 + $0xd8] sm:$0xff]
      %v5123 = vld [vmem:[%s1 + $0xe0] sm:$0xff]
      %v5124 = vld [vmem:[%s1 + $0xe8] sm:$0xff]
      %v5125 = vld [vmem:[%s1 + $0xf0] sm:$0xff]
      %v5126 = vld [vmem:[%s1 + $0xf8] sm:$0xff]
      %v5135 = vunpack.c.l.b16 %v5119
      %v5136 = vunpack.c.h.b16 %v5119
      %v5137 = vunpack.c.l.b16 %v5120
      %v5138 = vunpack.c.h.b16 %v5120
      %v5139 = vunpack.c.l.b16 %v5121
      %v5140 = vunpack.c.h.b16 %v5121
      %v5141 = vunpack.c.l.b16 %v5122
      %v5142 = vunpack.c.h.b16 %v5122
      %v5143 = vunpack.c.l.b16 %v5123
      %v5144 = vunpack.c.h.b16 %v5123
      %v5145 = vunpack.c.l.b16 %v5124
      %v5146 = vunpack.c.h.b16 %v5124
      %v5147 = vunpack.c.l.b16 %v5125
      %v5148 = vunpack.c.h.b16 %v5125
      %v5149 = vunpack.c.l.b16 %v5126
      %v5150 = vunpack.c.h.b16 %v5126
      %v5151 = vpack.c.b16 %v5137, %v5135
      %v5152 = vpack.c.b16 %v5138, %v5136
      %v5153 = vpack.c.b16 %v5141, %v5139
      %v5154 = vpack.c.b16 %v5142, %v5140
      %v5155 = vpack.c.b16 %v5145, %v5143
      %v5156 = vpack.c.b16 %v5146, %v5144
      %v5157 = vpack.c.b16 %v5149, %v5147
      %v5158 = vpack.c.b16 %v5150, %v5148
      %v5164 = vsel %vm481, %v5152, 0
      %v5167 = vsel %vm481, %v5154, 0
      %v5170 = vsel %vm481, %v5156, 0
      %v5173 = vsel %vm481, %v5158, 0
      %5175 = vmatprep.subr.bf16.mxu0 %v4382
      %5176 = vmatpush1.bf16.msra.mxu0 %v4381
      %5177 = vmatprep.subr.bf16.mxu0 %v4386
      %5178 = vmatpush1.bf16.msra.mxu0 %v4385
      %5179 = vmatprep.subr.bf16.mxu0 %v4390
      %5180 = vmatpush1.bf16.msra.mxu0 %v4389
      %5181 = vmatprep.subr.bf16.mxu0 %v4394
      %5182 = vmatpush1.bf16.msra.mxu0 %v4393
      %5183 = vmatprep.subr.bf16.mxu0 %v4398
      %5184 = vmatpush1.bf16.msra.mxu0 %v4397
      %5185 = vmatprep.subr.bf16.mxu0 %v4402
      %5186 = vmatpush1.bf16.msra.mxu0 %v4401
      %5187 = vmatprep.subr.bf16.mxu0 %v4406
      %5188 = vmatpush1.bf16.msra.mxu0 %v4405
      %5189 = vmatprep.subr.bf16.mxu0 %v4410
      %5190 = vmatpush1.bf16.msra.mxu0 %v4409
      %5191 = vmatprep.subr.bf16.mxu0 %v4414
      %5192 = vmatpush1.bf16.msra.mxu0 %v4413
      %5193 = vmatprep.subr.bf16.mxu0 %v4473
      %5194 = vmatpush1.bf16.msra.mxu0 %v4470
      %5195 = vmatprep.subr.bf16.mxu0 0
      %5196 = vmatpush1.bf16.msra.mxu0 0
      %5197 = vmatprep.subr.bf16.mxu0 0
      %5198 = vmatpush1.bf16.msra.mxu0 0
      %5199 = vmatprep.subr.bf16.mxu0 0
      %5200 = vmatpush1.bf16.msra.mxu0 0
      %5201 = vmatprep.subr.bf16.mxu0 0
      %5202 = vmatpush1.bf16.msra.mxu0 0
      %5203 = vmatprep.subr.bf16.mxu0 0
      %5204 = vmatpush1.bf16.msra.mxu0 0
      %5205 = vmatprep.subr.bf16.mxu0 0
      %5206 = vmatpush1.bf16.msra.mxu0 0
      %5207 = vmatprep.mubr.bf16.mxu0 %v5164
      %5208 = vmatmul.mubr.bf16.gmra.mrb[0].mxu0 %v5151
      %v5209 = vpop.f32.mrb[0].mxu0
      %v5210 = vadd.f32 0.0, %v5209
      %v5211 = vpop.f32.mrb[0].mxu0
      %v5212 = vadd.f32 0.0, %v5211
      %v5213 = vpop.f32.mrb[0].mxu0
      %v5214 = vadd.f32 0.0, %v5213
      %v5215 = vpop.f32.mrb[0].mxu0
      %v5216 = vadd.f32 0.0, %v5215
      %5217 = vmatprep.mubr.bf16.mxu0 %v5167
      %5218 = vmatmul.mubr.bf16.gmra.mrb[0].mxu0 %v5153
      %v5219 = vpop.f32.mrb[0].mxu0
      %v5220 = vadd.f32 0.0, %v5219
      %v5221 = vpop.f32.mrb[0].mxu0
      %v5222 = vadd.f32 0.0, %v5221
      %v5223 = vpop.f32.mrb[0].mxu0
      %v5224 = vadd.f32 0.0, %v5223
      %v5225 = vpop.f32.mrb[0].mxu0
      %v5226 = vadd.f32 0.0, %v5225
      %5227 = vmatprep.mubr.bf16.mxu0 %v5170
      %5228 = vmatmul.mubr.bf16.gmra.mrb[0].mxu0 %v5155
      %v5229 = vpop.f32.mrb[0].mxu0
      %v5230 = vadd.f32 0.0, %v5229
      %v5231 = vpop.f32.mrb[0].mxu0
      %v5232 = vadd.f32 0.0, %v5231
      %v5233 = vpop.f32.mrb[0].mxu0
      %v5234 = vadd.f32 0.0, %v5233
      %v5235 = vpop.f32.mrb[0].mxu0
      %v5236 = vadd.f32 0.0, %v5235
      %5237 = vmatprep.mubr.bf16.mxu0 %v5173
      %5238 = vmatmul.mubr.bf16.gmra.mrb[0].mxu0 %v5157
      %v5239 = vpop.f32.mrb[0].mxu0
      %v5240 = vadd.f32 0.0, %v5239
      %v5241 = vpop.f32.mrb[0].mxu0
      %v5242 = vadd.f32 0.0, %v5241
      %v5243 = vpop.f32.mrb[0].mxu0
      %v5244 = vadd.f32 0.0, %v5243
      %v5245 = vpop.f32.mrb[0].mxu0
      %v5246 = vadd.f32 0.0, %v5245
      %5247 = vdwg.mxu0
      %5248 = vmatprep.subr.bf16.mxu0 %v4384
      %5249 = vmatpush1.bf16.msra.mxu0 %v4383
      %5250 = vmatprep.subr.bf16.mxu0 %v4388
      %5251 = vmatpush1.bf16.msra.mxu0 %v4387
      %5252 = vmatprep.subr.bf16.mxu0 %v4392
      %5253 = vmatpush1.bf16.msra.mxu0 %v4391
      %5254 = vmatprep.subr.bf16.mxu0 %v4396
      %5255 = vmatpush1.bf16.msra.mxu0 %v4395
      %5256 = vmatprep.subr.bf16.mxu0 %v4400
      %5257 = vmatpush1.bf16.msra.mxu0 %v4399
      %5258 = vmatprep.subr.bf16.mxu0 %v4404
      %5259 = vmatpush1.bf16.msra.mxu0 %v4403
      %5260 = vmatprep.subr.bf16.mxu0 %v4408
      %5261 = vmatpush1.bf16.msra.mxu0 %v4407
      %5262 = vmatprep.subr.bf16.mxu0 %v4412
      %5263 = vmatpush1.bf16.msra.mxu0 %v4411
      %5264 = vmatprep.subr.bf16.mxu0 %v4416
      %5265 = vmatpush1.bf16.msra.mxu0 %v4415
      %5266 = vmatprep.subr.bf16.mxu0 %v4479
      %5267 = vmatpush1.bf16.msra.mxu0 %v4476
      %5268 = vmatprep.subr.bf16.mxu0 0
      %5269 = vmatpush1.bf16.msra.mxu0 0
      %5270 = vmatprep.subr.bf16.mxu0 0
      %5271 = vmatpush1.bf16.msra.mxu0 0
      %5272 = vmatprep.subr.bf16.mxu0 0
      %5273 = vmatpush1.bf16.msra.mxu0 0
      %5274 = vmatprep.subr.bf16.mxu0 0
      %5275 = vmatpush1.bf16.msra.mxu0 0
      %5276 = vmatprep.subr.bf16.mxu0 0
      %5277 = vmatpush1.bf16.msra.mxu0 0
      %5278 = vmatprep.subr.bf16.mxu0 0
      %5279 = vmatpush1.bf16.msra.mxu0 0
      %5280 = vmatprep.mubr.bf16.mxu0 %v5164
      %5281 = vmatmul.mubr.bf16.gmra.mrb[0].mxu0 %v5151
      %v5282 = vpop.f32.mrb[0].mxu0
      %v5283 = vadd.f32 0.0, %v5282
      %v5284 = vpop.f32.mrb[0].mxu0
      %v5285 = vadd.f32 0.0, %v5284
      %v5286 = vpop.f32.mrb[0].mxu0
      %v5287 = vadd.f32 0.0, %v5286
      %v5288 = vpop.f32.mrb[0].mxu0
      %v5289 = vadd.f32 0.0, %v5288
      %5290 = vmatprep.mubr.bf16.mxu0 %v5167
      %5291 = vmatmul.mubr.bf16.gmra.mrb[0].mxu0 %v5153
      %v5292 = vpop.f32.mrb[0].mxu0
      %v5293 = vadd.f32 0.0, %v5292
      %v5294 = vpop.f32.mrb[0].mxu0
      %v5295 = vadd.f32 0.0, %v5294
      %v5296 = vpop.f32.mrb[0].mxu0
      %v5297 = vadd.f32 0.0, %v5296
      %v5298 = vpop.f32.mrb[0].mxu0
      %v5299 = vadd.f32 0.0, %v5298
      %5300 = vmatprep.mubr.bf16.mxu0 %v5170
      %5301 = vmatmul.mubr.bf16.gmra.mrb[0].mxu0 %v5155
      %v5302 = vpop.f32.mrb[0].mxu0
      %v5303 = vadd.f32 0.0, %v5302
      %v5304 = vpop.f32.mrb[0].mxu0
      %v5305 = vadd.f32 0.0, %v5304
      %v5306 = vpop.f32.mrb[0].mxu0
      %v5307 = vadd.f32 0.0, %v5306
      %v5308 = vpop.f32.mrb[0].mxu0
      %v5309 = vadd.f32 0.0, %v5308
      %5310 = vmatprep.mubr.bf16.mxu0 %v5173
      %5311 = vmatmul.mubr.bf16.gmra.mrb[0].mxu0 %v5157
      %v5312 = vpop.f32.mrb[0].mxu0
      %v5313 = vadd.f32 0.0, %v5312
      %v5314 = vpop.f32.mrb[0].mxu0
      %v5315 = vadd.f32 0.0, %v5314
      %v5316 = vpop.f32.mrb[0].mxu0
      %v5317 = vadd.f32 0.0, %v5316
      %v5318 = vpop.f32.mrb[0].mxu0
      %v5319 = vadd.f32 0.0, %v5318
      %5320 = vdwg.mxu0
      %v5321 = vmax.f32 %v5210, %v5230
      %v5322 = vmax.f32 %v5212, %v5232
      %v5323 = vmax.f32 %v5283, %v5303
      %v5324 = vmax.f32 %v5285, %v5305
      %v5325 = vmax.f32 %v5214, %v5234
      %v5326 = vmax.f32 %v5216, %v5236
      %v5327 = vmax.f32 %v5287, %v5307
      %v5328 = vmax.f32 %v5289, %v5309
      %v5329 = vmax.f32 %v5220, %v5240
      %v5330 = vmax.f32 %v5222, %v5242
      %v5331 = vmax.f32 %v5293, %v5313
      %v5332 = vmax.f32 %v5295, %v5315
      %v5333 = vmax.f32 %v5224, %v5244
      %v5334 = vmax.f32 %v5226, %v5246
      %v5335 = vmax.f32 %v5297, %v5317
      %v5336 = vmax.f32 %v5299, %v5319
      %v5337 = vmax.f32 %v5321, %v5329
      %v5338 = vmax.f32 %v5322, %v5330
      %v5339 = vmax.f32 %v5323, %v5331
      %v5340 = vmax.f32 %v5324, %v5332
      %v5341 = vmax.f32 %v5325, %v5333
      %v5342 = vmax.f32 %v5326, %v5334
      %v5343 = vmax.f32 %v5327, %v5335
      %v5344 = vmax.f32 %v5328, %v5336
      %v5345 = vmax.f32 %v5111, %v5337
      %v5346 = vmax.f32 %v5112, %v5338
      %v5347 = vmax.f32 %v5113, %v5339
      %v5348 = vmax.f32 %v5114, %v5340
      %v5349 = vmax.f32 %v5115, %v5341
      %v5350 = vmax.f32 %v5116, %v5342
      %v5351 = vmax.f32 %v5117, %v5343
      %v5352 = vmax.f32 %v5118, %v5344
      %v5353 = vmax.f32 %v5345, 0.0
      %v5354 = vmax.f32 %v5346, 0.0
      %v5355 = vmax.f32 %v5347, 0.0
      %v5356 = vmax.f32 %v5348, 0.0
      %v5357 = vmax.f32 %v5349, 0.0
      %v5358 = vmax.f32 %v5350, 0.0
      %v5359 = vmax.f32 %v5351, 0.0
      %v5360 = vmax.f32 %v5352, 0.0
      %v5361 = vmin.f32 %v5353, 6.0
      %v5362 = vmin.f32 %v5354, 6.0
      %v5363 = vmin.f32 %v5355, 6.0
      %v5364 = vmin.f32 %v5356, 6.0
      %v5365 = vmin.f32 %v5357, 6.0
      %v5366 = vmin.f32 %v5358, 6.0
      %v5367 = vmin.f32 %v5359, 6.0
      %v5368 = vmin.f32 %v5360, 6.0
      %v5369 = vadd.f32 %v5361, %v5362
      %v5370 = vadd.f32 %v5369, %v5363
      %v5371 = vadd.f32 %v5370, %v5364
      %5372 = vadd.xlane.f32.xlu0 %v5371
      %v5373 = vpop.xlane.xlu0 %5372
      %v5374 = vadd.f32 %v5365, %v5366
      %v5375 = vadd.f32 %v5374, %v5367
      %v5376 = vadd.f32 %v5375, %v5368
      %5377 = vadd.xlane.f32.xlu0 %v5376
      %v5378 = vpop.xlane.xlu0 %5377
      %v5379 = vmul.f32 %v5373, %v1407
      %v5380 = vmul.f32 %v5378, %v1407
      %v5381 = vsub.f32 %v5361, %v5379
      %v5382 = vsub.f32 %v5362, %v5379
      %v5383 = vsub.f32 %v5363, %v5379
      %v5384 = vsub.f32 %v5364, %v5379
      %v5385 = vsub.f32 %v5365, %v5380
      %v5386 = vsub.f32 %v5366, %v5380
      %v5387 = vsub.f32 %v5367, %v5380
      %v5388 = vsub.f32 %v5368, %v5380
      %v5389 = vmul.f32 %v5381, %v5381
      %v5390 = vmul.f32 %v5382, %v5382
      %v5391 = vmul.f32 %v5383, %v5383
      %v5392 = vmul.f32 %v5384, %v5384
      %v5393 = vmul.f32 %v5385, %v5385
      %v5394 = vmul.f32 %v5386, %v5386
      %v5395 = vmul.f32 %v5387, %v5387
      %v5396 = vmul.f32 %v5388, %v5388
      %v5397 = vadd.f32 %v5389, %v5390
      %v5398 = vadd.f32 %v5397, %v5391
      %v5399 = vadd.f32 %v5398, %v5392
      %5400 = vadd.xlane.f32.xlu0 %v5399
      %v5401 = vpop.xlane.xlu0 %5400
      %v5402 = vadd.f32 %v5393, %v5394
      %v5403 = vadd.f32 %v5402, %v5395
      %v5404 = vadd.f32 %v5403, %v5396
      %5405 = vadd.xlane.f32.xlu0 %v5404
      %v5406 = vpop.xlane.xlu0 %5405
      %v5407 = vmul.f32 %v5401, %v1407
      %v5408 = vmul.f32 %v5406, %v1407
      %v5409 = vadd.f32 %v5407, 1e-05
      %v5410 = vadd.f32 %v5408, 1e-05
      %v5411 = vrsqrt.pop %v5409
      %v5412 = vrsqrt.pop %v5410
      %v5413 = vmul.f32 %v5381, %v5411
      %v5414 = vmul.f32 %v5382, %v5411
      %v5415 = vmul.f32 %v5383, %v5411
      %v5416 = vmul.f32 %v5384, %v5411
      %v5417 = vmul.f32 %v5385, %v5412
      %v5418 = vmul.f32 %v5386, %v5412
      %v5419 = vmul.f32 %v5387, %v5412
      %v5420 = vmul.f32 %v5388, %v5412
      %v5421 = vmul.f32 %v5413, %v1454
      %v5422 = vmul.f32 %v5414, %v1458
      %v5423 = vmul.f32 %v5415, %v1462
      %v5424 = vmul.f32 %v5416, %v1466
      %v5425 = vmul.f32 %v5417, %v1454
      %v5426 = vmul.f32 %v5418, %v1458
      %v5427 = vmul.f32 %v5419, %v1462
      %v5428 = vmul.f32 %v5420, %v1466
      %v5429 = vadd.f32 %v5421, %v1483
      %v5430 = vadd.f32 %v5422, %v1487
      %v5431 = vadd.f32 %v5423, %v1491
      %v5432 = vadd.f32 %v5424, %v1495
      %v5433 = vadd.f32 %v5425, %v1483
      %v5434 = vadd.f32 %v5426, %v1487
      %v5435 = vadd.f32 %v5427, %v1491
      %v5436 = vadd.f32 %v5428, %v1495
      %v5437 = vmul.f32 %v5429, 0.5
      %v5438 = vmul.f32 %v5430, 0.5
      %v5439 = vmul.f32 %v5431, 0.5
      %v5440 = vmul.f32 %v5432, 0.5
      %v5441 = vmul.f32 %v5433, 0.5
      %v5442 = vmul.f32 %v5434, 0.5
      %v5443 = vmul.f32 %v5435, 0.5
      %v5444 = vmul.f32 %v5436, 0.5
      %v5445 = vmul.f32 %v5429, 0.70710677
      %v5446 = vmul.f32 %v5430, 0.70710677
      %v5447 = vmul.f32 %v5431, 0.70710677
      %v5448 = vmul.f32 %v5432, 0.70710677
      %v5449 = vmul.f32 %v5433, 0.70710677
      %v5450 = vmul.f32 %v5434, 0.70710677
      %v5451 = vmul.f32 %v5435, 0.70710677
      %v5452 = vmul.f32 %v5436, 0.70710677
      %v5453 = verf.f32.pop %v5445
      %v5454 = verf.f32.pop %v5446
      %v5455 = verf.f32.pop %v5447
      %v5456 = verf.f32.pop %v5448
      %v5457 = verf.f32.pop %v5449
      %v5458 = verf.f32.pop %v5450
      %v5459 = verf.f32.pop %v5451
      %v5460 = verf.f32.pop %v5452
      %v5461 = vadd.f32 %v5453, 1.0
      %v5462 = vadd.f32 %v5454, 1.0
      %v5463 = vadd.f32 %v5455, 1.0
      %v5464 = vadd.f32 %v5456, 1.0
      %v5465 = vadd.f32 %v5457, 1.0
      %v5466 = vadd.f32 %v5458, 1.0
      %v5467 = vadd.f32 %v5459, 1.0
      %v5468 = vadd.f32 %v5460, 1.0
      %v5469 = vmul.f32 %v5437, %v5461
      %v5470 = vmul.f32 %v5438, %v5462
      %v5471 = vmul.f32 %v5439, %v5463
      %v5472 = vmul.f32 %v5440, %v5464
      %v5473 = vmul.f32 %v5441, %v5465
      %v5474 = vmul.f32 %v5442, %v5466
      %v5475 = vmul.f32 %v5443, %v5467
      %v5476 = vmul.f32 %v5444, %v5468
      %v5477 = vtanh.pop %v5469
      %v5478 = vtanh.pop %v5470
      %v5479 = vtanh.pop %v5471
      %v5480 = vtanh.pop %v5472
      %v5481 = vtanh.pop %v5473
      %v5482 = vtanh.pop %v5474
      %v5483 = vtanh.pop %v5475
      %v5484 = vtanh.pop %v5476
      %s5485 = scalar_lea.vmem %s204, 192
      %5486 = vst [vmem:[%s5485] sm:$0xff] %v5477
      %5487 = vst [vmem:[%s5485 + $0x8] sm:$0xff] %v5478
      %5488 = vst [vmem:[%s5485 + $0x10] sm:$0xff] %v5479
      %5489 = vst [vmem:[%s5485 + $0x18] sm:$0xff] %v5480
      %5490 = vst [vmem:[%s5485 + $0x20] sm:$0xff] %v5481
      %5491 = vst [vmem:[%s5485 + $0x28] sm:$0xff] %v5482
      %5492 = vst [vmem:[%s5485 + $0x30] sm:$0xff] %v5483
      %5493 = vst [vmem:[%s5485 + $0x38] sm:$0xff] %v5484
      %s5494 = scalar_lea.vmem %s197, 1216
      %v5495 = vld [vmem:[%s5494] sm:$0xff]
      %v5496 = vld [vmem:[%s5494 + $0x8] sm:$0xff]
      %v5497 = vld [vmem:[%s5494 + $0x10] sm:$0xff]
      %v5498 = vld [vmem:[%s5494 + $0x18] sm:$0xff]
      %v5499 = vld [vmem:[%s5494 + $0x20] sm:$0xff]
      %v5500 = vld [vmem:[%s5494 + $0x28] sm:$0xff]
      %v5501 = vld [vmem:[%s5494 + $0x30] sm:$0xff]
      %v5502 = vld [vmem:[%s5494 + $0x38] sm:$0xff]
      %v5503 = vld [vmem:[%s5494 + $0x40] sm:$0xff]
      %v5504 = vld [vmem:[%s5494 + $0x48] sm:$0xff]
      %v5505 = vld [vmem:[%s5494 + $0x50] sm:$0xff]
      %v5506 = vld [vmem:[%s5494 + $0x58] sm:$0xff]
      %v5507 = vld [vmem:[%s5494 + $0x60] sm:$0xff]
      %v5508 = vld [vmem:[%s5494 + $0x68] sm:$0xff]
      %v5509 = vld [vmem:[%s5494 + $0x70] sm:$0xff]
      %v5510 = vld [vmem:[%s5494 + $0x78] sm:$0xff]
      %v5511 = vld [vmem:[%s5494 + $0x80] sm:$0xff]
      %v5512 = vld [vmem:[%s5494 + $0x88] sm:$0xff]
      %v5513 = vld [vmem:[%s5494 + $0x90] sm:$0xff]
      %v5514 = vld [vmem:[%s5494 + $0x98] sm:$0xff]
      %v5515 = vld [vmem:[%s5494 + $0xa0] sm:$0xff]
      %v5516 = vld [vmem:[%s5494 + $0xa8] sm:$0xff]
      %v5517 = vld [vmem:[%s5494 + $0xb0] sm:$0xff]
      %v5518 = vld [vmem:[%s5494 + $0xb8] sm:$0xff]
      %v5519 = vld [vmem:[%s5494 + $0xc0] sm:$0xff]
      %v5520 = vld [vmem:[%s5494 + $0xc8] sm:$0xff]
      %v5521 = vld [vmem:[%s5494 + $0xd0] sm:$0xff]
      %v5522 = vld [vmem:[%s5494 + $0xd8] sm:$0xff]
      %v5523 = vld [vmem:[%s5494 + $0xe0] sm:$0xff]
      %v5524 = vld [vmem:[%s5494 + $0xe8] sm:$0xff]
      %v5525 = vld [vmem:[%s5494 + $0xf0] sm:$0xff]
      %v5526 = vld [vmem:[%s5494 + $0xf8] sm:$0xff]
      %v5527 = vld [vmem:[%s5494 + $0x100] sm:$0xff]
      %v5528 = vld [vmem:[%s5494 + $0x108] sm:$0xff]
      %v5529 = vld [vmem:[%s5494 + $0x110] sm:$0xff]
      %v5530 = vld [vmem:[%s5494 + $0x118] sm:$0xff]
      %v5531 = vld [vmem:[%s5494 + $0x120] sm:$0x11]
      %v5532 = vld [vmem:[%s5494 + $0x128] sm:$0x11]
      %v5533 = vld [vmem:[%s1] sm:$0xff]
      %v5534 = vld [vmem:[%s1 + $0x8] sm:$0xff]
      %v5535 = vld [vmem:[%s1 + $0x10] sm:$0xff]
      %v5536 = vld [vmem:[%s1 + $0x18] sm:$0xff]
      %v5537 = vld [vmem:[%s1 + $0x20] sm:$0xff]
      %v5538 = vld [vmem:[%s1 + $0x28] sm:$0xff]
      %v5539 = vld [vmem:[%s1 + $0x30] sm:$0xff]
      %v5540 = vld [vmem:[%s1 + $0x38] sm:$0xff]
      %v5549 = vunpack.c.l.b16 %v5533
      %v5550 = vunpack.c.h.b16 %v5533
      %v5551 = vunpack.c.l.b16 %v5534
      %v5552 = vunpack.c.h.b16 %v5534
      %v5553 = vunpack.c.l.b16 %v5535
      %v5554 = vunpack.c.h.b16 %v5535
      %v5555 = vunpack.c.l.b16 %v5536
      %v5556 = vunpack.c.h.b16 %v5536
      %v5557 = vunpack.c.l.b16 %v5537
      %v5558 = vunpack.c.h.b16 %v5537
      %v5559 = vunpack.c.l.b16 %v5538
      %v5560 = vunpack.c.h.b16 %v5538
      %v5561 = vunpack.c.l.b16 %v5539
      %v5562 = vunpack.c.h.b16 %v5539
      %v5563 = vunpack.c.l.b16 %v5540
      %v5564 = vunpack.c.h.b16 %v5540
      %v5565 = vpack.c.b16 %v5551, %v5549
      %v5566 = vpack.c.b16 %v5552, %v5550
      %v5567 = vpack.c.b16 %v5555, %v5553
      %v5568 = vpack.c.b16 %v5556, %v5554
      %v5569 = vpack.c.b16 %v5559, %v5557
      %v5570 = vpack.c.b16 %v5560, %v5558
      %v5571 = vpack.c.b16 %v5563, %v5561
      %v5572 = vpack.c.b16 %v5564, %v5562
      %v5615 = vunpack.c.l.b16 %v5495
      %v5616 = vunpack.c.h.b16 %v5495
      %v5617 = vunpack.c.l.b16 %v5496
      %v5618 = vunpack.c.h.b16 %v5496
      %v5619 = vunpack.c.l.b16 %v5497
      %v5620 = vunpack.c.h.b16 %v5497
      %v5621 = vunpack.c.l.b16 %v5498
      %v5622 = vunpack.c.h.b16 %v5498
      %v5623 = vunpack.c.l.b16 %v5499
      %v5624 = vunpack.c.h.b16 %v5499
      %v5625 = vunpack.c.l.b16 %v5500
      %v5626 = vunpack.c.h.b16 %v5500
      %v5627 = vunpack.c.l.b16 %v5501
      %v5628 = vunpack.c.h.b16 %v5501
      %v5629 = vunpack.c.l.b16 %v5502
      %v5630 = vunpack.c.h.b16 %v5502
      %v5631 = vunpack.c.l.b16 %v5503
      %v5632 = vunpack.c.h.b16 %v5503
      %v5633 = vunpack.c.l.b16 %v5504
      %v5634 = vunpack.c.h.b16 %v5504
      %v5635 = vunpack.c.l.b16 %v5505
      %v5636 = vunpack.c.h.b16 %v5505
      %v5637 = vunpack.c.l.b16 %v5506
      %v5638 = vunpack.c.h.b16 %v5506
      %v5639 = vunpack.c.l.b16 %v5507
      %v5640 = vunpack.c.h.b16 %v5507
      %v5641 = vunpack.c.l.b16 %v5508
      %v5642 = vunpack.c.h.b16 %v5508
      %v5643 = vunpack.c.l.b16 %v5509
      %v5644 = vunpack.c.h.b16 %v5509
      %v5645 = vunpack.c.l.b16 %v5510
      %v5646 = vunpack.c.h.b16 %v5510
      %v5647 = vunpack.c.l.b16 %v5511
      %v5648 = vunpack.c.h.b16 %v5511
      %v5649 = vunpack.c.l.b16 %v5512
      %v5650 = vunpack.c.h.b16 %v5512
      %v5651 = vunpack.c.l.b16 %v5513
      %v5652 = vunpack.c.h.b16 %v5513
      %v5653 = vunpack.c.l.b16 %v5514
      %v5654 = vunpack.c.h.b16 %v5514
      %v5655 = vunpack.c.l.b16 %v5515
      %v5656 = vunpack.c.h.b16 %v5515
      %v5657 = vunpack.c.l.b16 %v5516
      %v5658 = vunpack.c.h.b16 %v5516
      %v5659 = vunpack.c.l.b16 %v5517
      %v5660 = vunpack.c.h.b16 %v5517
      %v5661 = vunpack.c.l.b16 %v5518
      %v5662 = vunpack.c.h.b16 %v5518
      %v5663 = vunpack.c.l.b16 %v5519
      %v5664 = vunpack.c.h.b16 %v5519
      %v5665 = vunpack.c.l.b16 %v5520
      %v5666 = vunpack.c.h.b16 %v5520
      %v5667 = vunpack.c.l.b16 %v5521
      %v5668 = vunpack.c.h.b16 %v5521
      %v5669 = vunpack.c.l.b16 %v5522
      %v5670 = vunpack.c.h.b16 %v5522
      %v5671 = vunpack.c.l.b16 %v5523
      %v5672 = vunpack.c.h.b16 %v5523
      %v5673 = vunpack.c.l.b16 %v5524
      %v5674 = vunpack.c.h.b16 %v5524
      %v5675 = vunpack.c.l.b16 %v5525
      %v5676 = vunpack.c.h.b16 %v5525
      %v5677 = vunpack.c.l.b16 %v5526
      %v5678 = vunpack.c.h.b16 %v5526
      %v5679 = vunpack.c.l.b16 %v5527
      %v5680 = vunpack.c.h.b16 %v5527
      %v5681 = vunpack.c.l.b16 %v5528
      %v5682 = vunpack.c.h.b16 %v5528
      %v5683 = vunpack.c.l.b16 %v5529
      %v5684 = vunpack.c.h.b16 %v5529
      %v5685 = vunpack.c.l.b16 %v5530
      %v5686 = vunpack.c.h.b16 %v5530
      %v5687 = vunpack.c.l.b16 %v5531
      %v5688 = vunpack.c.h.b16 %v5531
      %v5689 = vunpack.c.l.b16 %v5532
      %v5690 = vunpack.c.h.b16 %v5532
      %v5691 = vpack.c.b16 %v5619, %v5615
      %v5692 = vpack.c.b16 %v5620, %v5616
      %v5693 = vpack.c.b16 %v5621, %v5617
      %v5694 = vpack.c.b16 %v5622, %v5618
      %v5695 = vpack.c.b16 %v5627, %v5623
      %v5696 = vpack.c.b16 %v5628, %v5624
      %v5697 = vpack.c.b16 %v5629, %v5625
      %v5698 = vpack.c.b16 %v5630, %v5626
      %v5699 = vpack.c.b16 %v5635, %v5631
      %v5700 = vpack.c.b16 %v5636, %v5632
      %v5701 = vpack.c.b16 %v5637, %v5633
      %v5702 = vpack.c.b16 %v5638, %v5634
      %v5703 = vpack.c.b16 %v5643, %v5639
      %v5704 = vpack.c.b16 %v5644, %v5640
      %v5705 = vpack.c.b16 %v5645, %v5641
      %v5706 = vpack.c.b16 %v5646, %v5642
      %v5707 = vpack.c.b16 %v5651, %v5647
      %v5708 = vpack.c.b16 %v5652, %v5648
      %v5709 = vpack.c.b16 %v5653, %v5649
      %v5710 = vpack.c.b16 %v5654, %v5650
      %v5711 = vpack.c.b16 %v5659, %v5655
      %v5712 = vpack.c.b16 %v5660, %v5656
      %v5713 = vpack.c.b16 %v5661, %v5657
      %v5714 = vpack.c.b16 %v5662, %v5658
      %v5715 = vpack.c.b16 %v5667, %v5663
      %v5716 = vpack.c.b16 %v5668, %v5664
      %v5717 = vpack.c.b16 %v5669, %v5665
      %v5718 = vpack.c.b16 %v5670, %v5666
      %v5719 = vpack.c.b16 %v5675, %v5671
      %v5720 = vpack.c.b16 %v5676, %v5672
      %v5721 = vpack.c.b16 %v5677, %v5673
      %v5722 = vpack.c.b16 %v5678, %v5674
      %v5723 = vpack.c.b16 %v5683, %v5679
      %v5724 = vpack.c.b16 %v5684, %v5680
      %v5725 = vpack.c.b16 %v5685, %v5681
      %v5726 = vpack.c.b16 %v5686, %v5682
      %v5727 = vpack.c.b16 %v5687, %v5687
      %v5728 = vpack.c.b16 %v5688, %v5688
      %v5729 = vpack.c.b16 %v5689, %v5689
      %v5730 = vpack.c.b16 %v5690, %v5690
      %v5768 = vsel %vm481, %v5566, 0
      %v5771 = vsel %vm481, %v5568, 0
      %v5774 = vsel %vm481, %v5570, 0
      %v5777 = vsel %vm481, %v5572, 0
      %v5780 = vand.u32 %v5727, %v496
      %v5783 = vand.u32 %v5728, %v496
      %v5786 = vand.u32 %v5729, %v496
      %v5789 = vand.u32 %v5730, %v496
      %5791 = vmatprep.subr.bf16.mxu0 %v5692
      %5792 = vmatpush1.bf16.msra.mxu0 %v5691
      %5793 = vmatprep.subr.bf16.mxu0 %v5696
      %5794 = vmatpush1.bf16.msra.mxu0 %v5695
      %5795 = vmatprep.subr.bf16.mxu0 %v5700
      %5796 = vmatpush1.bf16.msra.mxu0 %v5699
      %5797 = vmatprep.subr.bf16.mxu0 %v5704
      %5798 = vmatpush1.bf16.msra.mxu0 %v5703
      %5799 = vmatprep.subr.bf16.mxu0 %v5708
      %5800 = vmatpush1.bf16.msra.mxu0 %v5707
      %5801 = vmatprep.subr.bf16.mxu0 %v5712
      %5802 = vmatpush1.bf16.msra.mxu0 %v5711
      %5803 = vmatprep.subr.bf16.mxu0 %v5716
      %5804 = vmatpush1.bf16.msra.mxu0 %v5715
      %5805 = vmatprep.subr.bf16.mxu0 %v5720
      %5806 = vmatpush1.bf16.msra.mxu0 %v5719
      %5807 = vmatprep.subr.bf16.mxu0 %v5724
      %5808 = vmatpush1.bf16.msra.mxu0 %v5723
      %5809 = vmatprep.subr.bf16.mxu0 %v5783
      %5810 = vmatpush1.bf16.msra.mxu0 %v5780
      %5811 = vmatprep.subr.bf16.mxu0 0
      %5812 = vmatpush1.bf16.msra.mxu0 0
      %5813 = vmatprep.subr.bf16.mxu0 0
      %5814 = vmatpush1.bf16.msra.mxu0 0
      %5815 = vmatprep.subr.bf16.mxu0 0
      %5816 = vmatpush1.bf16.msra.mxu0 0
      %5817 = vmatprep.subr.bf16.mxu0 0
      %5818 = vmatpush1.bf16.msra.mxu0 0
      %5819 = vmatprep.subr.bf16.mxu0 0
      %5820 = vmatpush1.bf16.msra.mxu0 0
      %5821 = vmatprep.subr.bf16.mxu0 0
      %5822 = vmatpush1.bf16.msra.mxu0 0
      %5823 = vmatprep.mubr.bf16.mxu0 %v5768
      %5824 = vmatmul.mubr.bf16.gmra.mrb[0].mxu0 %v5565
      %v5825 = vpop.f32.mrb[0].mxu0
      %v5826 = vadd.f32 0.0, %v5825
      %v5827 = vpop.f32.mrb[0].mxu0
      %v5828 = vadd.f32 0.0, %v5827
      %v5829 = vpop.f32.mrb[0].mxu0
      %v5830 = vadd.f32 0.0, %v5829
      %v5831 = vpop.f32.mrb[0].mxu0
      %v5832 = vadd.f32 0.0, %v5831
      %5833 = vmatprep.mubr.bf16.mxu0 %v5771
      %5834 = vmatmul.mubr.bf16.gmra.mrb[0].mxu0 %v5567
      %v5835 = vpop.f32.mrb[0].mxu0
      %v5836 = vadd.f32 0.0, %v5835
      %v5837 = vpop.f32.mrb[0].mxu0
      %v5838 = vadd.f32 0.0, %v5837
      %v5839 = vpop.f32.mrb[0].mxu0
      %v5840 = vadd.f32 0.0, %v5839
      %v5841 = vpop.f32.mrb[0].mxu0
      %v5842 = vadd.f32 0.0, %v5841
      %5843 = vmatprep.mubr.bf16.mxu0 %v5774
      %5844 = vmatmul.mubr.bf16.gmra.mrb[0].mxu0 %v5569
      %v5845 = vpop.f32.mrb[0].mxu0
      %v5846 = vadd.f32 0.0, %v5845
      %v5847 = vpop.f32.mrb[0].mxu0
      %v5848 = vadd.f32 0.0, %v5847
      %v5849 = vpop.f32.mrb[0].mxu0
      %v5850 = vadd.f32 0.0, %v5849
      %v5851 = vpop.f32.mrb[0].mxu0
      %v5852 = vadd.f32 0.0, %v5851
      %5853 = vmatprep.mubr.bf16.mxu0 %v5777
      %5854 = vmatmul.mubr.bf16.gmra.mrb[0].mxu0 %v5571
      %v5855 = vpop.f32.mrb[0].mxu0
      %v5856 = vadd.f32 0.0, %v5855
      %v5857 = vpop.f32.mrb[0].mxu0
      %v5858 = vadd.f32 0.0, %v5857
      %v5859 = vpop.f32.mrb[0].mxu0
      %v5860 = vadd.f32 0.0, %v5859
      %v5861 = vpop.f32.mrb[0].mxu0
      %v5862 = vadd.f32 0.0, %v5861
      %5863 = vdwg.mxu0
      %5864 = vmatprep.subr.bf16.mxu0 %v5694
      %5865 = vmatpush1.bf16.msra.mxu0 %v5693
      %5866 = vmatprep.subr.bf16.mxu0 %v5698
      %5867 = vmatpush1.bf16.msra.mxu0 %v5697
      %5868 = vmatprep.subr.bf16.mxu0 %v5702
      %5869 = vmatpush1.bf16.msra.mxu0 %v5701
      %5870 = vmatprep.subr.bf16.mxu0 %v5706
      %5871 = vmatpush1.bf16.msra.mxu0 %v5705
      %5872 = vmatprep.subr.bf16.mxu0 %v5710
      %5873 = vmatpush1.bf16.msra.mxu0 %v5709
      %5874 = vmatprep.subr.bf16.mxu0 %v5714
      %5875 = vmatpush1.bf16.msra.mxu0 %v5713
      %5876 = vmatprep.subr.bf16.mxu0 %v5718
      %5877 = vmatpush1.bf16.msra.mxu0 %v5717
      %5878 = vmatprep.subr.bf16.mxu0 %v5722
      %5879 = vmatpush1.bf16.msra.mxu0 %v5721
      %5880 = vmatprep.subr.bf16.mxu0 %v5726
      %5881 = vmatpush1.bf16.msra.mxu0 %v5725
      %5882 = vmatprep.subr.bf16.mxu0 %v5789
      %5883 = vmatpush1.bf16.msra.mxu0 %v5786
      %5884 = vmatprep.subr.bf16.mxu0 0
      %5885 = vmatpush1.bf16.msra.mxu0 0
      %5886 = vmatprep.subr.bf16.mxu0 0
      %5887 = vmatpush1.bf16.msra.mxu0 0
      %5888 = vmatprep.subr.bf16.mxu0 0
      %5889 = vmatpush1.bf16.msra.mxu0 0
      %5890 = vmatprep.subr.bf16.mxu0 0
      %5891 = vmatpush1.bf16.msra.mxu0 0
      %5892 = vmatprep.subr.bf16.mxu0 0
      %5893 = vmatpush1.bf16.msra.mxu0 0
      %5894 = vmatprep.subr.bf16.mxu0 0
      %5895 = vmatpush1.bf16.msra.mxu0 0
      %5896 = vmatprep.mubr.bf16.mxu0 %v5768
      %5897 = vmatmul.mubr.bf16.gmra.mrb[0].mxu0 %v5565
      %v5898 = vpop.f32.mrb[0].mxu0
      %v5899 = vadd.f32 0.0, %v5898
      %v5900 = vpop.f32.mrb[0].mxu0
      %v5901 = vadd.f32 0.0, %v5900
      %v5902 = vpop.f32.mrb[0].mxu0
      %v5903 = vadd.f32 0.0, %v5902
      %v5904 = vpop.f32.mrb[0].mxu0
      %v5905 = vadd.f32 0.0, %v5904
      %5906 = vmatprep.mubr.bf16.mxu0 %v5771
      %5907 = vmatmul.mubr.bf16.gmra.mrb[0].mxu0 %v5567
      %v5908 = vpop.f32.mrb[0].mxu0
      %v5909 = vadd.f32 0.0, %v5908
      %v5910 = vpop.f32.mrb[0].mxu0
      %v5911 = vadd.f32 0.0, %v5910
      %v5912 = vpop.f32.mrb[0].mxu0
      %v5913 = vadd.f32 0.0, %v5912
      %v5914 = vpop.f32.mrb[0].mxu0
      %v5915 = vadd.f32 0.0, %v5914
      %5916 = vmatprep.mubr.bf16.mxu0 %v5774
      %5917 = vmatmul.mubr.bf16.gmra.mrb[0].mxu0 %v5569
      %v5918 = vpop.f32.mrb[0].mxu0
      %v5919 = vadd.f32 0.0, %v5918
      %v5920 = vpop.f32.mrb[0].mxu0
      %v5921 = vadd.f32 0.0, %v5920
      %v5922 = vpop.f32.mrb[0].mxu0
      %v5923 = vadd.f32 0.0, %v5922
      %v5924 = vpop.f32.mrb[0].mxu0
      %v5925 = vadd.f32 0.0, %v5924
      %5926 = vmatprep.mubr.bf16.mxu0 %v5777
      %5927 = vmatmul.mubr.bf16.gmra.mrb[0].mxu0 %v5571
      %v5928 = vpop.f32.mrb[0].mxu0
      %v5929 = vadd.f32 0.0, %v5928
      %v5930 = vpop.f32.mrb[0].mxu0
      %v5931 = vadd.f32 0.0, %v5930
      %v5932 = vpop.f32.mrb[0].mxu0
      %v5933 = vadd.f32 0.0, %v5932
      %v5934 = vpop.f32.mrb[0].mxu0
      %v5935 = vadd.f32 0.0, %v5934
      %5936 = vdwg.mxu0
      %v5937 = vmax.f32 %v5826, %v5846
      %v5938 = vmax.f32 %v5828, %v5848
      %v5939 = vmax.f32 %v5899, %v5919
      %v5940 = vmax.f32 %v5901, %v5921
      %v5941 = vmax.f32 %v5830, %v5850
      %v5942 = vmax.f32 %v5832, %v5852
      %v5943 = vmax.f32 %v5903, %v5923
      %v5944 = vmax.f32 %v5905, %v5925
      %v5945 = vmax.f32 %v5836, %v5856
      %v5946 = vmax.f32 %v5838, %v5858
      %v5947 = vmax.f32 %v5909, %v5929
      %v5948 = vmax.f32 %v5911, %v5931
      %v5949 = vmax.f32 %v5840, %v5860
      %v5950 = vmax.f32 %v5842, %v5862
      %v5951 = vmax.f32 %v5913, %v5933
      %v5952 = vmax.f32 %v5915, %v5935
      %v5953 = vmax.f32 %v5937, %v5945
      %v5954 = vmax.f32 %v5938, %v5946
      %v5955 = vmax.f32 %v5939, %v5947
      %v5956 = vmax.f32 %v5940, %v5948
      %v5957 = vmax.f32 %v5941, %v5949
      %v5958 = vmax.f32 %v5942, %v5950
      %v5959 = vmax.f32 %v5943, %v5951
      %v5960 = vmax.f32 %v5944, %v5952
      %v5961 = vld [vmem:[%s1 + $0x40] sm:$0xff]
      %v5962 = vld [vmem:[%s1 + $0x48] sm:$0xff]
      %v5963 = vld [vmem:[%s1 + $0x50] sm:$0xff]
      %v5964 = vld [vmem:[%s1 + $0x58] sm:$0xff]
      %v5965 = vld [vmem:[%s1 + $0x60] sm:$0xff]
      %v5966 = vld [vmem:[%s1 + $0x68] sm:$0xff]
      %v5967 = vld [vmem:[%s1 + $0x70] sm:$0xff]
      %v5968 = vld [vmem:[%s1 + $0x78] sm:$0xff]
      %v5977 = vunpack.c.l.b16 %v5961
      %v5978 = vunpack.c.h.b16 %v5961
      %v5979 = vunpack.c.l.b16 %v5962
      %v5980 = vunpack.c.h.b16 %v5962
      %v5981 = vunpack.c.l.b16 %v5963
      %v5982 = vunpack.c.h.b16 %v5963
      %v5983 = vunpack.c.l.b16 %v5964
      %v5984 = vunpack.c.h.b16 %v5964
      %v5985 = vunpack.c.l.b16 %v5965
      %v5986 = vunpack.c.h.b16 %v5965
      %v5987 = vunpack.c.l.b16 %v5966
      %v5988 = vunpack.c.h.b16 %v5966
      %v5989 = vunpack.c.l.b16 %v5967
      %v5990 = vunpack.c.h.b16 %v5967
      %v5991 = vunpack.c.l.b16 %v5968
      %v5992 = vunpack.c.h.b16 %v5968
      %v5993 = vpack.c.b16 %v5979, %v5977
      %v5994 = vpack.c.b16 %v5980, %v5978
      %v5995 = vpack.c.b16 %v5983, %v5981
      %v5996 = vpack.c.b16 %v5984, %v5982
      %v5997 = vpack.c.b16 %v5987, %v5985
      %v5998 = vpack.c.b16 %v5988, %v5986
      %v5999 = vpack.c.b16 %v5991, %v5989
      %v6000 = vpack.c.b16 %v5992, %v5990
      %v6006 = vsel %vm481, %v5994, 0
      %v6009 = vsel %vm481, %v5996, 0
      %v6012 = vsel %vm481, %v5998, 0
      %v6015 = vsel %vm481, %v6000, 0
      %6017 = vmatprep.subr.bf16.mxu0 %v5692
      %6018 = vmatpush1.bf16.msra.mxu0 %v5691
      %6019 = vmatprep.subr.bf16.mxu0 %v5696
      %6020 = vmatpush1.bf16.msra.mxu0 %v5695
      %6021 = vmatprep.subr.bf16.mxu0 %v5700
      %6022 = vmatpush1.bf16.msra.mxu0 %v5699
      %6023 = vmatprep.subr.bf16.mxu0 %v5704
      %6024 = vmatpush1.bf16.msra.mxu0 %v5703
      %6025 = vmatprep.subr.bf16.mxu0 %v5708
      %6026 = vmatpush1.bf16.msra.mxu0 %v5707
      %6027 = vmatprep.subr.bf16.mxu0 %v5712
      %6028 = vmatpush1.bf16.msra.mxu0 %v5711
      %6029 = vmatprep.subr.bf16.mxu0 %v5716
      %6030 = vmatpush1.bf16.msra.mxu0 %v5715
      %6031 = vmatprep.subr.bf16.mxu0 %v5720
      %6032 = vmatpush1.bf16.msra.mxu0 %v5719
      %6033 = vmatprep.subr.bf16.mxu0 %v5724
      %6034 = vmatpush1.bf16.msra.mxu0 %v5723
      %6035 = vmatprep.subr.bf16.mxu0 %v5783
      %6036 = vmatpush1.bf16.msra.mxu0 %v5780
      %6037 = vmatprep.subr.bf16.mxu0 0
      %6038 = vmatpush1.bf16.msra.mxu0 0
      %6039 = vmatprep.subr.bf16.mxu0 0
      %6040 = vmatpush1.bf16.msra.mxu0 0
      %6041 = vmatprep.subr.bf16.mxu0 0
      %6042 = vmatpush1.bf16.msra.mxu0 0
      %6043 = vmatprep.subr.bf16.mxu0 0
      %6044 = vmatpush1.bf16.msra.mxu0 0
      %6045 = vmatprep.subr.bf16.mxu0 0
      %6046 = vmatpush1.bf16.msra.mxu0 0
      %6047 = vmatprep.subr.bf16.mxu0 0
      %6048 = vmatpush1.bf16.msra.mxu0 0
      %6049 = vmatprep.mubr.bf16.mxu0 %v6006
      %6050 = vmatmul.mubr.bf16.gmra.mrb[0].mxu0 %v5993
      %v6051 = vpop.f32.mrb[0].mxu0
      %v6052 = vadd.f32 0.0, %v6051
      %v6053 = vpop.f32.mrb[0].mxu0
      %v6054 = vadd.f32 0.0, %v6053
      %v6055 = vpop.f32.mrb[0].mxu0
      %v6056 = vadd.f32 0.0, %v6055
      %v6057 = vpop.f32.mrb[0].mxu0
      %v6058 = vadd.f32 0.0, %v6057
      %6059 = vmatprep.mubr.bf16.mxu0 %v6009
      %6060 = vmatmul.mubr.bf16.gmra.mrb[0].mxu0 %v5995
      %v6061 = vpop.f32.mrb[0].mxu0
      %v6062 = vadd.f32 0.0, %v6061
      %v6063 = vpop.f32.mrb[0].mxu0
      %v6064 = vadd.f32 0.0, %v6063
      %v6065 = vpop.f32.mrb[0].mxu0
      %v6066 = vadd.f32 0.0, %v6065
      %v6067 = vpop.f32.mrb[0].mxu0
      %v6068 = vadd.f32 0.0, %v6067
      %6069 = vmatprep.mubr.bf16.mxu0 %v6012
      %6070 = vmatmul.mubr.bf16.gmra.mrb[0].mxu0 %v5997
      %v6071 = vpop.f32.mrb[0].mxu0
      %v6072 = vadd.f32 0.0, %v6071
      %v6073 = vpop.f32.mrb[0].mxu0
      %v6074 = vadd.f32 0.0, %v6073
      %v6075 = vpop.f32.mrb[0].mxu0
      %v6076 = vadd.f32 0.0, %v6075
      %v6077 = vpop.f32.mrb[0].mxu0
      %v6078 = vadd.f32 0.0, %v6077
      %6079 = vmatprep.mubr.bf16.mxu0 %v6015
      %6080 = vmatmul.mubr.bf16.gmra.mrb[0].mxu0 %v5999
      %v6081 = vpop.f32.mrb[0].mxu0
      %v6082 = vadd.f32 0.0, %v6081
      %v6083 = vpop.f32.mrb[0].mxu0
      %v6084 = vadd.f32 0.0, %v6083
      %v6085 = vpop.f32.mrb[0].mxu0
      %v6086 = vadd.f32 0.0, %v6085
      %v6087 = vpop.f32.mrb[0].mxu0
      %v6088 = vadd.f32 0.0, %v6087
      %6089 = vdwg.mxu0
      %6090 = vmatprep.subr.bf16.mxu0 %v5694
      %6091 = vmatpush1.bf16.msra.mxu0 %v5693
      %6092 = vmatprep.subr.bf16.mxu0 %v5698
      %6093 = vmatpush1.bf16.msra.mxu0 %v5697
      %6094 = vmatprep.subr.bf16.mxu0 %v5702
      %6095 = vmatpush1.bf16.msra.mxu0 %v5701
      %6096 = vmatprep.subr.bf16.mxu0 %v5706
      %6097 = vmatpush1.bf16.msra.mxu0 %v5705
      %6098 = vmatprep.subr.bf16.mxu0 %v5710
      %6099 = vmatpush1.bf16.msra.mxu0 %v5709
      %6100 = vmatprep.subr.bf16.mxu0 %v5714
      %6101 = vmatpush1.bf16.msra.mxu0 %v5713
      %6102 = vmatprep.subr.bf16.mxu0 %v5718
      %6103 = vmatpush1.bf16.msra.mxu0 %v5717
      %6104 = vmatprep.subr.bf16.mxu0 %v5722
      %6105 = vmatpush1.bf16.msra.mxu0 %v5721
      %6106 = vmatprep.subr.bf16.mxu0 %v5726
      %6107 = vmatpush1.bf16.msra.mxu0 %v5725
      %6108 = vmatprep.subr.bf16.mxu0 %v5789
      %6109 = vmatpush1.bf16.msra.mxu0 %v5786
      %6110 = vmatprep.subr.bf16.mxu0 0
      %6111 = vmatpush1.bf16.msra.mxu0 0
      %6112 = vmatprep.subr.bf16.mxu0 0
      %6113 = vmatpush1.bf16.msra.mxu0 0
      %6114 = vmatprep.subr.bf16.mxu0 0
      %6115 = vmatpush1.bf16.msra.mxu0 0
      %6116 = vmatprep.subr.bf16.mxu0 0
      %6117 = vmatpush1.bf16.msra.mxu0 0
      %6118 = vmatprep.subr.bf16.mxu0 0
      %6119 = vmatpush1.bf16.msra.mxu0 0
      %6120 = vmatprep.subr.bf16.mxu0 0
      %6121 = vmatpush1.bf16.msra.mxu0 0
      %6122 = vmatprep.mubr.bf16.mxu0 %v6006
      %6123 = vmatmul.mubr.bf16.gmra.mrb[0].mxu0 %v5993
      %v6124 = vpop.f32.mrb[0].mxu0
      %v6125 = vadd.f32 0.0, %v6124
      %v6126 = vpop.f32.mrb[0].mxu0
      %v6127 = vadd.f32 0.0, %v6126
      %v6128 = vpop.f32.mrb[0].mxu0
      %v6129 = vadd.f32 0.0, %v6128
      %v6130 = vpop.f32.mrb[0].mxu0
      %v6131 = vadd.f32 0.0, %v6130
      %6132 = vmatprep.mubr.bf16.mxu0 %v6009
      %6133 = vmatmul.mubr.bf16.gmra.mrb[0].mxu0 %v5995
      %v6134 = vpop.f32.mrb[0].mxu0
      %v6135 = vadd.f32 0.0, %v6134
      %v6136 = vpop.f32.mrb[0].mxu0
      %v6137 = vadd.f32 0.0, %v6136
      %v6138 = vpop.f32.mrb[0].mxu0
      %v6139 = vadd.f32 0.0, %v6138
      %v6140 = vpop.f32.mrb[0].mxu0
      %v6141 = vadd.f32 0.0, %v6140
      %6142 = vmatprep.mubr.bf16.mxu0 %v6012
      %6143 = vmatmul.mubr.bf16.gmra.mrb[0].mxu0 %v5997
      %v6144 = vpop.f32.mrb[0].mxu0
      %v6145 = vadd.f32 0.0, %v6144
      %v6146 = vpop.f32.mrb[0].mxu0
      %v6147 = vadd.f32 0.0, %v6146
      %v6148 = vpop.f32.mrb[0].mxu0
      %v6149 = vadd.f32 0.0, %v6148
      %v6150 = vpop.f32.mrb[0].mxu0
      %v6151 = vadd.f32 0.0, %v6150
      %6152 = vmatprep.mubr.bf16.mxu0 %v6015
      %6153 = vmatmul.mubr.bf16.gmra.mrb[0].mxu0 %v5999
      %v6154 = vpop.f32.mrb[0].mxu0
      %v6155 = vadd.f32 0.0, %v6154
      %v6156 = vpop.f32.mrb[0].mxu0
      %v6157 = vadd.f32 0.0, %v6156
      %v6158 = vpop.f32.mrb[0].mxu0
      %v6159 = vadd.f32 0.0, %v6158
      %v6160 = vpop.f32.mrb[0].mxu0
      %v6161 = vadd.f32 0.0, %v6160
      %6162 = vdwg.mxu0
      %v6163 = vmax.f32 %v6052, %v6072
      %v6164 = vmax.f32 %v6054, %v6074
      %v6165 = vmax.f32 %v6125, %v6145
      %v6166 = vmax.f32 %v6127, %v6147
      %v6167 = vmax.f32 %v6056, %v6076
      %v6168 = vmax.f32 %v6058, %v6078
      %v6169 = vmax.f32 %v6129, %v6149
      %v6170 = vmax.f32 %v6131, %v6151
      %v6171 = vmax.f32 %v6062, %v6082
      %v6172 = vmax.f32 %v6064, %v6084
      %v6173 = vmax.f32 %v6135, %v6155
      %v6174 = vmax.f32 %v6137, %v6157
      %v6175 = vmax.f32 %v6066, %v6086
      %v6176 = vmax.f32 %v6068, %v6088
      %v6177 = vmax.f32 %v6139, %v6159
      %v6178 = vmax.f32 %v6141, %v6161
      %v6179 = vmax.f32 %v6163, %v6171
      %v6180 = vmax.f32 %v6164, %v6172
      %v6181 = vmax.f32 %v6165, %v6173
      %v6182 = vmax.f32 %v6166, %v6174
      %v6183 = vmax.f32 %v6167, %v6175
      %v6184 = vmax.f32 %v6168, %v6176
      %v6185 = vmax.f32 %v6169, %v6177
      %v6186 = vmax.f32 %v6170, %v6178
      %v6187 = vmax.f32 %v5953, %v6179
      %v6188 = vmax.f32 %v5954, %v6180
      %v6189 = vmax.f32 %v5955, %v6181
      %v6190 = vmax.f32 %v5956, %v6182
      %v6191 = vmax.f32 %v5957, %v6183
      %v6192 = vmax.f32 %v5958, %v6184
      %v6193 = vmax.f32 %v5959, %v6185
      %v6194 = vmax.f32 %v5960, %v6186
      %v6195 = vld [vmem:[%s1 + $0x80] sm:$0xff]
      %v6196 = vld [vmem:[%s1 + $0x88] sm:$0xff]
      %v6197 = vld [vmem:[%s1 + $0x90] sm:$0xff]
      %v6198 = vld [vmem:[%s1 + $0x98] sm:$0xff]
      %v6199 = vld [vmem:[%s1 + $0xa0] sm:$0xff]
      %v6200 = vld [vmem:[%s1 + $0xa8] sm:$0xff]
      %v6201 = vld [vmem:[%s1 + $0xb0] sm:$0xff]
      %v6202 = vld [vmem:[%s1 + $0xb8] sm:$0xff]
      %v6211 = vunpack.c.l.b16 %v6195
      %v6212 = vunpack.c.h.b16 %v6195
      %v6213 = vunpack.c.l.b16 %v6196
      %v6214 = vunpack.c.h.b16 %v6196
      %v6215 = vunpack.c.l.b16 %v6197
      %v6216 = vunpack.c.h.b16 %v6197
      %v6217 = vunpack.c.l.b16 %v6198
      %v6218 = vunpack.c.h.b16 %v6198
      %v6219 = vunpack.c.l.b16 %v6199
      %v6220 = vunpack.c.h.b16 %v6199
      %v6221 = vunpack.c.l.b16 %v6200
      %v6222 = vunpack.c.h.b16 %v6200
      %v6223 = vunpack.c.l.b16 %v6201
      %v6224 = vunpack.c.h.b16 %v6201
      %v6225 = vunpack.c.l.b16 %v6202
      %v6226 = vunpack.c.h.b16 %v6202
      %v6227 = vpack.c.b16 %v6213, %v6211
      %v6228 = vpack.c.b16 %v6214, %v6212
      %v6229 = vpack.c.b16 %v6217, %v6215
      %v6230 = vpack.c.b16 %v6218, %v6216
      %v6231 = vpack.c.b16 %v6221, %v6219
      %v6232 = vpack.c.b16 %v6222, %v6220
      %v6233 = vpack.c.b16 %v6225, %v6223
      %v6234 = vpack.c.b16 %v6226, %v6224
      %v6240 = vsel %vm481, %v6228, 0
      %v6243 = vsel %vm481, %v6230, 0
      %v6246 = vsel %vm481, %v6232, 0
      %v6249 = vsel %vm481, %v6234, 0
      %6251 = vmatprep.subr.bf16.mxu0 %v5692
      %6252 = vmatpush1.bf16.msra.mxu0 %v5691
      %6253 = vmatprep.subr.bf16.mxu0 %v5696
      %6254 = vmatpush1.bf16.msra.mxu0 %v5695
      %6255 = vmatprep.subr.bf16.mxu0 %v5700
      %6256 = vmatpush1.bf16.msra.mxu0 %v5699
      %6257 = vmatprep.subr.bf16.mxu0 %v5704
      %6258 = vmatpush1.bf16.msra.mxu0 %v5703
      %6259 = vmatprep.subr.bf16.mxu0 %v5708
      %6260 = vmatpush1.bf16.msra.mxu0 %v5707
      %6261 = vmatprep.subr.bf16.mxu0 %v5712
      %6262 = vmatpush1.bf16.msra.mxu0 %v5711
      %6263 = vmatprep.subr.bf16.mxu0 %v5716
      %6264 = vmatpush1.bf16.msra.mxu0 %v5715
      %6265 = vmatprep.subr.bf16.mxu0 %v5720
      %6266 = vmatpush1.bf16.msra.mxu0 %v5719
      %6267 = vmatprep.subr.bf16.mxu0 %v5724
      %6268 = vmatpush1.bf16.msra.mxu0 %v5723
      %6269 = vmatprep.subr.bf16.mxu0 %v5783
      %6270 = vmatpush1.bf16.msra.mxu0 %v5780
      %6271 = vmatprep.subr.bf16.mxu0 0
      %6272 = vmatpush1.bf16.msra.mxu0 0
      %6273 = vmatprep.subr.bf16.mxu0 0
      %6274 = vmatpush1.bf16.msra.mxu0 0
      %6275 = vmatprep.subr.bf16.mxu0 0
      %6276 = vmatpush1.bf16.msra.mxu0 0
      %6277 = vmatprep.subr.bf16.mxu0 0
      %6278 = vmatpush1.bf16.msra.mxu0 0
      %6279 = vmatprep.subr.bf16.mxu0 0
      %6280 = vmatpush1.bf16.msra.mxu0 0
      %6281 = vmatprep.subr.bf16.mxu0 0
      %6282 = vmatpush1.bf16.msra.mxu0 0
      %6283 = vmatprep.mubr.bf16.mxu0 %v6240
      %6284 = vmatmul.mubr.bf16.gmra.mrb[0].mxu0 %v6227
      %v6285 = vpop.f32.mrb[0].mxu0
      %v6286 = vadd.f32 0.0, %v6285
      %v6287 = vpop.f32.mrb[0].mxu0
      %v6288 = vadd.f32 0.0, %v6287
      %v6289 = vpop.f32.mrb[0].mxu0
      %v6290 = vadd.f32 0.0, %v6289
      %v6291 = vpop.f32.mrb[0].mxu0
      %v6292 = vadd.f32 0.0, %v6291
      %6293 = vmatprep.mubr.bf16.mxu0 %v6243
      %6294 = vmatmul.mubr.bf16.gmra.mrb[0].mxu0 %v6229
      %v6295 = vpop.f32.mrb[0].mxu0
      %v6296 = vadd.f32 0.0, %v6295
      %v6297 = vpop.f32.mrb[0].mxu0
      %v6298 = vadd.f32 0.0, %v6297
      %v6299 = vpop.f32.mrb[0].mxu0
      %v6300 = vadd.f32 0.0, %v6299
      %v6301 = vpop.f32.mrb[0].mxu0
      %v6302 = vadd.f32 0.0, %v6301
      %6303 = vmatprep.mubr.bf16.mxu0 %v6246
      %6304 = vmatmul.mubr.bf16.gmra.mrb[0].mxu0 %v6231
      %v6305 = vpop.f32.mrb[0].mxu0
      %v6306 = vadd.f32 0.0, %v6305
      %v6307 = vpop.f32.mrb[0].mxu0
      %v6308 = vadd.f32 0.0, %v6307
      %v6309 = vpop.f32.mrb[0].mxu0
      %v6310 = vadd.f32 0.0, %v6309
      %v6311 = vpop.f32.mrb[0].mxu0
      %v6312 = vadd.f32 0.0, %v6311
      %6313 = vmatprep.mubr.bf16.mxu0 %v6249
      %6314 = vmatmul.mubr.bf16.gmra.mrb[0].mxu0 %v6233
      %v6315 = vpop.f32.mrb[0].mxu0
      %v6316 = vadd.f32 0.0, %v6315
      %v6317 = vpop.f32.mrb[0].mxu0
      %v6318 = vadd.f32 0.0, %v6317
      %v6319 = vpop.f32.mrb[0].mxu0
      %v6320 = vadd.f32 0.0, %v6319
      %v6321 = vpop.f32.mrb[0].mxu0
      %v6322 = vadd.f32 0.0, %v6321
      %6323 = vdwg.mxu0
      %6324 = vmatprep.subr.bf16.mxu0 %v5694
      %6325 = vmatpush1.bf16.msra.mxu0 %v5693
      %6326 = vmatprep.subr.bf16.mxu0 %v5698
      %6327 = vmatpush1.bf16.msra.mxu0 %v5697
      %6328 = vmatprep.subr.bf16.mxu0 %v5702
      %6329 = vmatpush1.bf16.msra.mxu0 %v5701
      %6330 = vmatprep.subr.bf16.mxu0 %v5706
      %6331 = vmatpush1.bf16.msra.mxu0 %v5705
      %6332 = vmatprep.subr.bf16.mxu0 %v5710
      %6333 = vmatpush1.bf16.msra.mxu0 %v5709
      %6334 = vmatprep.subr.bf16.mxu0 %v5714
      %6335 = vmatpush1.bf16.msra.mxu0 %v5713
      %6336 = vmatprep.subr.bf16.mxu0 %v5718
      %6337 = vmatpush1.bf16.msra.mxu0 %v5717
      %6338 = vmatprep.subr.bf16.mxu0 %v5722
      %6339 = vmatpush1.bf16.msra.mxu0 %v5721
      %6340 = vmatprep.subr.bf16.mxu0 %v5726
      %6341 = vmatpush1.bf16.msra.mxu0 %v5725
      %6342 = vmatprep.subr.bf16.mxu0 %v5789
      %6343 = vmatpush1.bf16.msra.mxu0 %v5786
      %6344 = vmatprep.subr.bf16.mxu0 0
      %6345 = vmatpush1.bf16.msra.mxu0 0
      %6346 = vmatprep.subr.bf16.mxu0 0
      %6347 = vmatpush1.bf16.msra.mxu0 0
      %6348 = vmatprep.subr.bf16.mxu0 0
      %6349 = vmatpush1.bf16.msra.mxu0 0
      %6350 = vmatprep.subr.bf16.mxu0 0
      %6351 = vmatpush1.bf16.msra.mxu0 0
      %6352 = vmatprep.subr.bf16.mxu0 0
      %6353 = vmatpush1.bf16.msra.mxu0 0
      %6354 = vmatprep.subr.bf16.mxu0 0
      %6355 = vmatpush1.bf16.msra.mxu0 0
      %6356 = vmatprep.mubr.bf16.mxu0 %v6240
      %6357 = vmatmul.mubr.bf16.gmra.mrb[0].mxu0 %v6227
      %v6358 = vpop.f32.mrb[0].mxu0
      %v6359 = vadd.f32 0.0, %v6358
      %v6360 = vpop.f32.mrb[0].mxu0
      %v6361 = vadd.f32 0.0, %v6360
      %v6362 = vpop.f32.mrb[0].mxu0
      %v6363 = vadd.f32 0.0, %v6362
      %v6364 = vpop.f32.mrb[0].mxu0
      %v6365 = vadd.f32 0.0, %v6364
      %6366 = vmatprep.mubr.bf16.mxu0 %v6243
      %6367 = vmatmul.mubr.bf16.gmra.mrb[0].mxu0 %v6229
      %v6368 = vpop.f32.mrb[0].mxu0
      %v6369 = vadd.f32 0.0, %v6368
      %v6370 = vpop.f32.mrb[0].mxu0
      %v6371 = vadd.f32 0.0, %v6370
      %v6372 = vpop.f32.mrb[0].mxu0
      %v6373 = vadd.f32 0.0, %v6372
      %v6374 = vpop.f32.mrb[0].mxu0
      %v6375 = vadd.f32 0.0, %v6374
      %6376 = vmatprep.mubr.bf16.mxu0 %v6246
      %6377 = vmatmul.mubr.bf16.gmra.mrb[0].mxu0 %v6231
      %v6378 = vpop.f32.mrb[0].mxu0
      %v6379 = vadd.f32 0.0, %v6378
      %v6380 = vpop.f32.mrb[0].mxu0
      %v6381 = vadd.f32 0.0, %v6380
      %v6382 = vpop.f32.mrb[0].mxu0
      %v6383 = vadd.f32 0.0, %v6382
      %v6384 = vpop.f32.mrb[0].mxu0
      %v6385 = vadd.f32 0.0, %v6384
      %6386 = vmatprep.mubr.bf16.mxu0 %v6249
      %6387 = vmatmul.mubr.bf16.gmra.mrb[0].mxu0 %v6233
      %v6388 = vpop.f32.mrb[0].mxu0
      %v6389 = vadd.f32 0.0, %v6388
      %v6390 = vpop.f32.mrb[0].mxu0
      %v6391 = vadd.f32 0.0, %v6390
      %v6392 = vpop.f32.mrb[0].mxu0
      %v6393 = vadd.f32 0.0, %v6392
      %v6394 = vpop.f32.mrb[0].mxu0
      %v6395 = vadd.f32 0.0, %v6394
      %6396 = vdwg.mxu0
      %v6397 = vmax.f32 %v6286, %v6306
      %v6398 = vmax.f32 %v6288, %v6308
      %v6399 = vmax.f32 %v6359, %v6379
      %v6400 = vmax.f32 %v6361, %v6381
      %v6401 = vmax.f32 %v6290, %v6310
      %v6402 = vmax.f32 %v6292, %v6312
      %v6403 = vmax.f32 %v6363, %v6383
      %v6404 = vmax.f32 %v6365, %v6385
      %v6405 = vmax.f32 %v6296, %v6316
      %v6406 = vmax.f32 %v6298, %v6318
      %v6407 = vmax.f32 %v6369, %v6389
      %v6408 = vmax.f32 %v6371, %v6391
      %v6409 = vmax.f32 %v6300, %v6320
      %v6410 = vmax.f32 %v6302, %v6322
      %v6411 = vmax.f32 %v6373, %v6393
      %v6412 = vmax.f32 %v6375, %v6395
      %v6413 = vmax.f32 %v6397, %v6405
      %v6414 = vmax.f32 %v6398, %v6406
      %v6415 = vmax.f32 %v6399, %v6407
      %v6416 = vmax.f32 %v6400, %v6408
      %v6417 = vmax.f32 %v6401, %v6409
      %v6418 = vmax.f32 %v6402, %v6410
      %v6419 = vmax.f32 %v6403, %v6411
      %v6420 = vmax.f32 %v6404, %v6412
      %v6421 = vmax.f32 %v6187, %v6413
      %v6422 = vmax.f32 %v6188, %v6414
      %v6423 = vmax.f32 %v6189, %v6415
      %v6424 = vmax.f32 %v6190, %v6416
      %v6425 = vmax.f32 %v6191, %v6417
      %v6426 = vmax.f32 %v6192, %v6418
      %v6427 = vmax.f32 %v6193, %v6419
      %v6428 = vmax.f32 %v6194, %v6420
      %v6429 = vld [vmem:[%s1 + $0xc0] sm:$0xff]
      %v6430 = vld [vmem:[%s1 + $0xc8] sm:$0xff]
      %v6431 = vld [vmem:[%s1 + $0xd0] sm:$0xff]
      %v6432 = vld [vmem:[%s1 + $0xd8] sm:$0xff]
      %v6433 = vld [vmem:[%s1 + $0xe0] sm:$0xff]
      %v6434 = vld [vmem:[%s1 + $0xe8] sm:$0xff]
      %v6435 = vld [vmem:[%s1 + $0xf0] sm:$0xff]
      %v6436 = vld [vmem:[%s1 + $0xf8] sm:$0xff]
      %v6445 = vunpack.c.l.b16 %v6429
      %v6446 = vunpack.c.h.b16 %v6429
      %v6447 = vunpack.c.l.b16 %v6430
      %v6448 = vunpack.c.h.b16 %v6430
      %v6449 = vunpack.c.l.b16 %v6431
      %v6450 = vunpack.c.h.b16 %v6431
      %v6451 = vunpack.c.l.b16 %v6432
      %v6452 = vunpack.c.h.b16 %v6432
      %v6453 = vunpack.c.l.b16 %v6433
      %v6454 = vunpack.c.h.b16 %v6433
      %v6455 = vunpack.c.l.b16 %v6434
      %v6456 = vunpack.c.h.b16 %v6434
      %v6457 = vunpack.c.l.b16 %v6435
      %v6458 = vunpack.c.h.b16 %v6435
      %v6459 = vunpack.c.l.b16 %v6436
      %v6460 = vunpack.c.h.b16 %v6436
      %v6461 = vpack.c.b16 %v6447, %v6445
      %v6462 = vpack.c.b16 %v6448, %v6446
      %v6463 = vpack.c.b16 %v6451, %v6449
      %v6464 = vpack.c.b16 %v6452, %v6450
      %v6465 = vpack.c.b16 %v6455, %v6453
      %v6466 = vpack.c.b16 %v6456, %v6454
      %v6467 = vpack.c.b16 %v6459, %v6457
      %v6468 = vpack.c.b16 %v6460, %v6458
      %v6474 = vsel %vm481, %v6462, 0
      %v6477 = vsel %vm481, %v6464, 0
      %v6480 = vsel %vm481, %v6466, 0
      %v6483 = vsel %vm481, %v6468, 0
      %6485 = vmatprep.subr.bf16.mxu0 %v5692
      %6486 = vmatpush1.bf16.msra.mxu0 %v5691
      %6487 = vmatprep.subr.bf16.mxu0 %v5696
      %6488 = vmatpush1.bf16.msra.mxu0 %v5695
      %6489 = vmatprep.subr.bf16.mxu0 %v5700
      %6490 = vmatpush1.bf16.msra.mxu0 %v5699
      %6491 = vmatprep.subr.bf16.mxu0 %v5704
      %6492 = vmatpush1.bf16.msra.mxu0 %v5703
      %6493 = vmatprep.subr.bf16.mxu0 %v5708
      %6494 = vmatpush1.bf16.msra.mxu0 %v5707
      %6495 = vmatprep.subr.bf16.mxu0 %v5712
      %6496 = vmatpush1.bf16.msra.mxu0 %v5711
      %6497 = vmatprep.subr.bf16.mxu0 %v5716
      %6498 = vmatpush1.bf16.msra.mxu0 %v5715
      %6499 = vmatprep.subr.bf16.mxu0 %v5720
      %6500 = vmatpush1.bf16.msra.mxu0 %v5719
      %6501 = vmatprep.subr.bf16.mxu0 %v5724
      %6502 = vmatpush1.bf16.msra.mxu0 %v5723
      %6503 = vmatprep.subr.bf16.mxu0 %v5783
      %6504 = vmatpush1.bf16.msra.mxu0 %v5780
      %6505 = vmatprep.subr.bf16.mxu0 0
      %6506 = vmatpush1.bf16.msra.mxu0 0
      %6507 = vmatprep.subr.bf16.mxu0 0
      %6508 = vmatpush1.bf16.msra.mxu0 0
      %6509 = vmatprep.subr.bf16.mxu0 0
      %6510 = vmatpush1.bf16.msra.mxu0 0
      %6511 = vmatprep.subr.bf16.mxu0 0
      %6512 = vmatpush1.bf16.msra.mxu0 0
      %6513 = vmatprep.subr.bf16.mxu0 0
      %6514 = vmatpush1.bf16.msra.mxu0 0
      %6515 = vmatprep.subr.bf16.mxu0 0
      %6516 = vmatpush1.bf16.msra.mxu0 0
      %6517 = vmatprep.mubr.bf16.mxu0 %v6474
      %6518 = vmatmul.mubr.bf16.gmra.mrb[0].mxu0 %v6461
      %v6519 = vpop.f32.mrb[0].mxu0
      %v6520 = vadd.f32 0.0, %v6519
      %v6521 = vpop.f32.mrb[0].mxu0
      %v6522 = vadd.f32 0.0, %v6521
      %v6523 = vpop.f32.mrb[0].mxu0
      %v6524 = vadd.f32 0.0, %v6523
      %v6525 = vpop.f32.mrb[0].mxu0
      %v6526 = vadd.f32 0.0, %v6525
      %6527 = vmatprep.mubr.bf16.mxu0 %v6477
      %6528 = vmatmul.mubr.bf16.gmra.mrb[0].mxu0 %v6463
      %v6529 = vpop.f32.mrb[0].mxu0
      %v6530 = vadd.f32 0.0, %v6529
      %v6531 = vpop.f32.mrb[0].mxu0
      %v6532 = vadd.f32 0.0, %v6531
      %v6533 = vpop.f32.mrb[0].mxu0
      %v6534 = vadd.f32 0.0, %v6533
      %v6535 = vpop.f32.mrb[0].mxu0
      %v6536 = vadd.f32 0.0, %v6535
      %6537 = vmatprep.mubr.bf16.mxu0 %v6480
      %6538 = vmatmul.mubr.bf16.gmra.mrb[0].mxu0 %v6465
      %v6539 = vpop.f32.mrb[0].mxu0
      %v6540 = vadd.f32 0.0, %v6539
      %v6541 = vpop.f32.mrb[0].mxu0
      %v6542 = vadd.f32 0.0, %v6541
      %v6543 = vpop.f32.mrb[0].mxu0
      %v6544 = vadd.f32 0.0, %v6543
      %v6545 = vpop.f32.mrb[0].mxu0
      %v6546 = vadd.f32 0.0, %v6545
      %6547 = vmatprep.mubr.bf16.mxu0 %v6483
      %6548 = vmatmul.mubr.bf16.gmra.mrb[0].mxu0 %v6467
      %v6549 = vpop.f32.mrb[0].mxu0
      %v6550 = vadd.f32 0.0, %v6549
      %v6551 = vpop.f32.mrb[0].mxu0
      %v6552 = vadd.f32 0.0, %v6551
      %v6553 = vpop.f32.mrb[0].mxu0
      %v6554 = vadd.f32 0.0, %v6553
      %v6555 = vpop.f32.mrb[0].mxu0
      %v6556 = vadd.f32 0.0, %v6555
      %6557 = vdwg.mxu0
      %6558 = vmatprep.subr.bf16.mxu0 %v5694
      %6559 = vmatpush1.bf16.msra.mxu0 %v5693
      %6560 = vmatprep.subr.bf16.mxu0 %v5698
      %6561 = vmatpush1.bf16.msra.mxu0 %v5697
      %6562 = vmatprep.subr.bf16.mxu0 %v5702
      %6563 = vmatpush1.bf16.msra.mxu0 %v5701
      %6564 = vmatprep.subr.bf16.mxu0 %v5706
      %6565 = vmatpush1.bf16.msra.mxu0 %v5705
      %6566 = vmatprep.subr.bf16.mxu0 %v5710
      %6567 = vmatpush1.bf16.msra.mxu0 %v5709
      %6568 = vmatprep.subr.bf16.mxu0 %v5714
      %6569 = vmatpush1.bf16.msra.mxu0 %v5713
      %6570 = vmatprep.subr.bf16.mxu0 %v5718
      %6571 = vmatpush1.bf16.msra.mxu0 %v5717
      %6572 = vmatprep.subr.bf16.mxu0 %v5722
      %6573 = vmatpush1.bf16.msra.mxu0 %v5721
      %6574 = vmatprep.subr.bf16.mxu0 %v5726
      %6575 = vmatpush1.bf16.msra.mxu0 %v5725
      %6576 = vmatprep.subr.bf16.mxu0 %v5789
      %6577 = vmatpush1.bf16.msra.mxu0 %v5786
      %6578 = vmatprep.subr.bf16.mxu0 0
      %6579 = vmatpush1.bf16.msra.mxu0 0
      %6580 = vmatprep.subr.bf16.mxu0 0
      %6581 = vmatpush1.bf16.msra.mxu0 0
      %6582 = vmatprep.subr.bf16.mxu0 0
      %6583 = vmatpush1.bf16.msra.mxu0 0
      %6584 = vmatprep.subr.bf16.mxu0 0
      %6585 = vmatpush1.bf16.msra.mxu0 0
      %6586 = vmatprep.subr.bf16.mxu0 0
      %6587 = vmatpush1.bf16.msra.mxu0 0
      %6588 = vmatprep.subr.bf16.mxu0 0
      %6589 = vmatpush1.bf16.msra.mxu0 0
      %6590 = vmatprep.mubr.bf16.mxu0 %v6474
      %6591 = vmatmul.mubr.bf16.gmra.mrb[0].mxu0 %v6461
      %v6592 = vpop.f32.mrb[0].mxu0
      %v6593 = vadd.f32 0.0, %v6592
      %v6594 = vpop.f32.mrb[0].mxu0
      %v6595 = vadd.f32 0.0, %v6594
      %v6596 = vpop.f32.mrb[0].mxu0
      %v6597 = vadd.f32 0.0, %v6596
      %v6598 = vpop.f32.mrb[0].mxu0
      %v6599 = vadd.f32 0.0, %v6598
      %6600 = vmatprep.mubr.bf16.mxu0 %v6477
      %6601 = vmatmul.mubr.bf16.gmra.mrb[0].mxu0 %v6463
      %v6602 = vpop.f32.mrb[0].mxu0
      %v6603 = vadd.f32 0.0, %v6602
      %v6604 = vpop.f32.mrb[0].mxu0
      %v6605 = vadd.f32 0.0, %v6604
      %v6606 = vpop.f32.mrb[0].mxu0
      %v6607 = vadd.f32 0.0, %v6606
      %v6608 = vpop.f32.mrb[0].mxu0
      %v6609 = vadd.f32 0.0, %v6608
      %6610 = vmatprep.mubr.bf16.mxu0 %v6480
      %6611 = vmatmul.mubr.bf16.gmra.mrb[0].mxu0 %v6465
      %v6612 = vpop.f32.mrb[0].mxu0
      %v6613 = vadd.f32 0.0, %v6612
      %v6614 = vpop.f32.mrb[0].mxu0
      %v6615 = vadd.f32 0.0, %v6614
      %v6616 = vpop.f32.mrb[0].mxu0
      %v6617 = vadd.f32 0.0, %v6616
      %v6618 = vpop.f32.mrb[0].mxu0
      %v6619 = vadd.f32 0.0, %v6618
      %6620 = vmatprep.mubr.bf16.mxu0 %v6483
      %6621 = vmatmul.mubr.bf16.gmra.mrb[0].mxu0 %v6467
      %v6622 = vpop.f32.mrb[0].mxu0
      %v6623 = vadd.f32 0.0, %v6622
      %v6624 = vpop.f32.mrb[0].mxu0
      %v6625 = vadd.f32 0.0, %v6624
      %v6626 = vpop.f32.mrb[0].mxu0
      %v6627 = vadd.f32 0.0, %v6626
      %v6628 = vpop.f32.mrb[0].mxu0
      %v6629 = vadd.f32 0.0, %v6628
      %6630 = vdwg.mxu0
      %v6631 = vmax.f32 %v6520, %v6540
      %v6632 = vmax.f32 %v6522, %v6542
      %v6633 = vmax.f32 %v6593, %v6613
      %v6634 = vmax.f32 %v6595, %v6615
      %v6635 = vmax.f32 %v6524, %v6544
      %v6636 = vmax.f32 %v6526, %v6546
      %v6637 = vmax.f32 %v6597, %v6617
      %v6638 = vmax.f32 %v6599, %v6619
      %v6639 = vmax.f32 %v6530, %v6550
      %v6640 = vmax.f32 %v6532, %v6552
      %v6641 = vmax.f32 %v6603, %v6623
      %v6642 = vmax.f32 %v6605, %v6625
      %v6643 = vmax.f32 %v6534, %v6554
      %v6644 = vmax.f32 %v6536, %v6556
      %v6645 = vmax.f32 %v6607, %v6627
      %v6646 = vmax.f32 %v6609, %v6629
      %v6647 = vmax.f32 %v6631, %v6639
      %v6648 = vmax.f32 %v6632, %v6640
      %v6649 = vmax.f32 %v6633, %v6641
      %v6650 = vmax.f32 %v6634, %v6642
      %v6651 = vmax.f32 %v6635, %v6643
      %v6652 = vmax.f32 %v6636, %v6644
      %v6653 = vmax.f32 %v6637, %v6645
      %v6654 = vmax.f32 %v6638, %v6646
      %v6655 = vmax.f32 %v6421, %v6647
      %v6656 = vmax.f32 %v6422, %v6648
      %v6657 = vmax.f32 %v6423, %v6649
      %v6658 = vmax.f32 %v6424, %v6650
      %v6659 = vmax.f32 %v6425, %v6651
      %v6660 = vmax.f32 %v6426, %v6652
      %v6661 = vmax.f32 %v6427, %v6653
      %v6662 = vmax.f32 %v6428, %v6654
      %v6663 = vmax.f32 %v6655, 0.0
      %v6664 = vmax.f32 %v6656, 0.0
      %v6665 = vmax.f32 %v6657, 0.0
      %v6666 = vmax.f32 %v6658, 0.0
      %v6667 = vmax.f32 %v6659, 0.0
      %v6668 = vmax.f32 %v6660, 0.0
      %v6669 = vmax.f32 %v6661, 0.0
      %v6670 = vmax.f32 %v6662, 0.0
      %v6671 = vmin.f32 %v6663, 6.0
      %v6672 = vmin.f32 %v6664, 6.0
      %v6673 = vmin.f32 %v6665, 6.0
      %v6674 = vmin.f32 %v6666, 6.0
      %v6675 = vmin.f32 %v6667, 6.0
      %v6676 = vmin.f32 %v6668, 6.0
      %v6677 = vmin.f32 %v6669, 6.0
      %v6678 = vmin.f32 %v6670, 6.0
      %v6679 = vadd.f32 %v6671, %v6672
      %v6680 = vadd.f32 %v6679, %v6673
      %v6681 = vadd.f32 %v6680, %v6674
      %6682 = vadd.xlane.f32.xlu0 %v6681
      %v6683 = vpop.xlane.xlu0 %6682
      %v6684 = vadd.f32 %v6675, %v6676
      %v6685 = vadd.f32 %v6684, %v6677
      %v6686 = vadd.f32 %v6685, %v6678
      %6687 = vadd.xlane.f32.xlu0 %v6686
      %v6688 = vpop.xlane.xlu0 %6687
      %v6689 = vmul.f32 %v6683, %v1407
      %v6690 = vmul.f32 %v6688, %v1407
      %v6691 = vsub.f32 %v6671, %v6689
      %v6692 = vsub.f32 %v6672, %v6689
      %v6693 = vsub.f32 %v6673, %v6689
      %v6694 = vsub.f32 %v6674, %v6689
      %v6695 = vsub.f32 %v6675, %v6690
      %v6696 = vsub.f32 %v6676, %v6690
      %v6697 = vsub.f32 %v6677, %v6690
      %v6698 = vsub.f32 %v6678, %v6690
      %v6699 = vmul.f32 %v6691, %v6691
      %v6700 = vmul.f32 %v6692, %v6692
      %v6701 = vmul.f32 %v6693, %v6693
      %v6702 = vmul.f32 %v6694, %v6694
      %v6703 = vmul.f32 %v6695, %v6695
      %v6704 = vmul.f32 %v6696, %v6696
      %v6705 = vmul.f32 %v6697, %v6697
      %v6706 = vmul.f32 %v6698, %v6698
      %v6707 = vadd.f32 %v6699, %v6700
      %v6708 = vadd.f32 %v6707, %v6701
      %v6709 = vadd.f32 %v6708, %v6702
      %6710 = vadd.xlane.f32.xlu0 %v6709
      %v6711 = vpop.xlane.xlu0 %6710
      %v6712 = vadd.f32 %v6703, %v6704
      %v6713 = vadd.f32 %v6712, %v6705
      %v6714 = vadd.f32 %v6713, %v6706
      %6715 = vadd.xlane.f32.xlu0 %v6714
      %v6716 = vpop.xlane.xlu0 %6715
      %v6717 = vmul.f32 %v6711, %v1407
      %v6718 = vmul.f32 %v6716, %v1407
      %v6719 = vadd.f32 %v6717, 1e-05
      %v6720 = vadd.f32 %v6718, 1e-05
      %v6721 = vrsqrt.pop %v6719
      %v6722 = vrsqrt.pop %v6720
      %v6723 = vmul.f32 %v6691, %v6721
      %v6724 = vmul.f32 %v6692, %v6721
      %v6725 = vmul.f32 %v6693, %v6721
      %v6726 = vmul.f32 %v6694, %v6721
      %v6727 = vmul.f32 %v6695, %v6722
      %v6728 = vmul.f32 %v6696, %v6722
      %v6729 = vmul.f32 %v6697, %v6722
      %v6730 = vmul.f32 %v6698, %v6722
      %v6731 = vmul.f32 %v6723, %v1454
      %v6732 = vmul.f32 %v6724, %v1458
      %v6733 = vmul.f32 %v6725, %v1462
      %v6734 = vmul.f32 %v6726, %v1466
      %v6735 = vmul.f32 %v6727, %v1454
      %v6736 = vmul.f32 %v6728, %v1458
      %v6737 = vmul.f32 %v6729, %v1462
      %v6738 = vmul.f32 %v6730, %v1466
      %v6739 = vadd.f32 %v6731, %v1483
      %v6740 = vadd.f32 %v6732, %v1487
      %v6741 = vadd.f32 %v6733, %v1491
      %v6742 = vadd.f32 %v6734, %v1495
      %v6743 = vadd.f32 %v6735, %v1483
      %v6744 = vadd.f32 %v6736, %v1487
      %v6745 = vadd.f32 %v6737, %v1491
      %v6746 = vadd.f32 %v6738, %v1495
      %v6747 = vmul.f32 %v6739, 0.5
      %v6748 = vmul.f32 %v6740, 0.5
      %v6749 = vmul.f32 %v6741, 0.5
      %v6750 = vmul.f32 %v6742, 0.5
      %v6751 = vmul.f32 %v6743, 0.5
      %v6752 = vmul.f32 %v6744, 0.5
      %v6753 = vmul.f32 %v6745, 0.5
      %v6754 = vmul.f32 %v6746, 0.5
      %v6755 = vmul.f32 %v6739, 0.70710677
      %v6756 = vmul.f32 %v6740, 0.70710677
      %v6757 = vmul.f32 %v6741, 0.70710677
      %v6758 = vmul.f32 %v6742, 0.70710677
      %v6759 = vmul.f32 %v6743, 0.70710677
      %v6760 = vmul.f32 %v6744, 0.70710677
      %v6761 = vmul.f32 %v6745, 0.70710677
      %v6762 = vmul.f32 %v6746, 0.70710677
      %v6763 = verf.f32.pop %v6755
      %v6764 = verf.f32.pop %v6756
      %v6765 = verf.f32.pop %v6757
      %v6766 = verf.f32.pop %v6758
      %v6767 = verf.f32.pop %v6759
      %v6768 = verf.f32.pop %v6760
      %v6769 = verf.f32.pop %v6761
      %v6770 = verf.f32.pop %v6762
      %v6771 = vadd.f32 %v6763, 1.0
      %v6772 = vadd.f32 %v6764, 1.0
      %v6773 = vadd.f32 %v6765, 1.0
      %v6774 = vadd.f32 %v6766, 1.0
      %v6775 = vadd.f32 %v6767, 1.0
      %v6776 = vadd.f32 %v6768, 1.0
      %v6777 = vadd.f32 %v6769, 1.0
      %v6778 = vadd.f32 %v6770, 1.0
      %v6779 = vmul.f32 %v6747, %v6771
      %v6780 = vmul.f32 %v6748, %v6772
      %v6781 = vmul.f32 %v6749, %v6773
      %v6782 = vmul.f32 %v6750, %v6774
      %v6783 = vmul.f32 %v6751, %v6775
      %v6784 = vmul.f32 %v6752, %v6776
      %v6785 = vmul.f32 %v6753, %v6777
      %v6786 = vmul.f32 %v6754, %v6778
      %v6787 = vtanh.pop %v6779
      %v6788 = vtanh.pop %v6780
      %v6789 = vtanh.pop %v6781
      %v6790 = vtanh.pop %v6782
      %v6791 = vtanh.pop %v6783
      %v6792 = vtanh.pop %v6784
      %v6793 = vtanh.pop %v6785
      %v6794 = vtanh.pop %v6786
      %s6795 = scalar_lea.vmem %s204, 256
      %6796 = vst [vmem:[%s6795] sm:$0xff] %v6787
      %6797 = vst [vmem:[%s6795 + $0x8] sm:$0xff] %v6788
      %6798 = vst [vmem:[%s6795 + $0x10] sm:$0xff] %v6789
      %6799 = vst [vmem:[%s6795 + $0x18] sm:$0xff] %v6790
      %6800 = vst [vmem:[%s6795 + $0x20] sm:$0xff] %v6791
      %6801 = vst [vmem:[%s6795 + $0x28] sm:$0xff] %v6792
      %6802 = vst [vmem:[%s6795 + $0x30] sm:$0xff] %v6793
      %6803 = vst [vmem:[%s6795 + $0x38] sm:$0xff] %v6794
      %s6804 = scalar_lea.vmem %s197, 1520
      %v6805 = vld [vmem:[%s6804] sm:$0xff]
      %v6806 = vld [vmem:[%s6804 + $0x8] sm:$0xff]
      %v6807 = vld [vmem:[%s6804 + $0x10] sm:$0xff]
      %v6808 = vld [vmem:[%s6804 + $0x18] sm:$0xff]
      %v6809 = vld [vmem:[%s6804 + $0x20] sm:$0xff]
      %v6810 = vld [vmem:[%s6804 + $0x28] sm:$0xff]
      %v6811 = vld [vmem:[%s6804 + $0x30] sm:$0xff]
      %v6812 = vld [vmem:[%s6804 + $0x38] sm:$0xff]
      %v6813 = vld [vmem:[%s6804 + $0x40] sm:$0xff]
      %v6814 = vld [vmem:[%s6804 + $0x48] sm:$0xff]
      %v6815 = vld [vmem:[%s6804 + $0x50] sm:$0xff]
      %v6816 = vld [vmem:[%s6804 + $0x58] sm:$0xff]
      %v6817 = vld [vmem:[%s6804 + $0x60] sm:$0xff]
      %v6818 = vld [vmem:[%s6804 + $0x68] sm:$0xff]
      %v6819 = vld [vmem:[%s6804 + $0x70] sm:$0xff]
      %v6820 = vld [vmem:[%s6804 + $0x78] sm:$0xff]
      %v6821 = vld [vmem:[%s6804 + $0x80] sm:$0xff]
      %v6822 = vld [vmem:[%s6804 + $0x88] sm:$0xff]
      %v6823 = vld [vmem:[%s6804 + $0x90] sm:$0xff]
      %v6824 = vld [vmem:[%s6804 + $0x98] sm:$0xff]
      %v6825 = vld [vmem:[%s6804 + $0xa0] sm:$0xff]
      %v6826 = vld [vmem:[%s6804 + $0xa8] sm:$0xff]
      %v6827 = vld [vmem:[%s6804 + $0xb0] sm:$0xff]
      %v6828 = vld [vmem:[%s6804 + $0xb8] sm:$0xff]
      %v6829 = vld [vmem:[%s6804 + $0xc0] sm:$0xff]
      %v6830 = vld [vmem:[%s6804 + $0xc8] sm:$0xff]
      %v6831 = vld [vmem:[%s6804 + $0xd0] sm:$0xff]
      %v6832 = vld [vmem:[%s6804 + $0xd8] sm:$0xff]
      %v6833 = vld [vmem:[%s6804 + $0xe0] sm:$0xff]
      %v6834 = vld [vmem:[%s6804 + $0xe8] sm:$0xff]
      %v6835 = vld [vmem:[%s6804 + $0xf0] sm:$0xff]
      %v6836 = vld [vmem:[%s6804 + $0xf8] sm:$0xff]
      %v6837 = vld [vmem:[%s6804 + $0x100] sm:$0xff]
      %v6838 = vld [vmem:[%s6804 + $0x108] sm:$0xff]
      %v6839 = vld [vmem:[%s6804 + $0x110] sm:$0xff]
      %v6840 = vld [vmem:[%s6804 + $0x118] sm:$0xff]
      %v6841 = vld [vmem:[%s6804 + $0x120] sm:$0x11]
      %v6842 = vld [vmem:[%s6804 + $0x128] sm:$0x11]
      %v6843 = vld [vmem:[%s1] sm:$0xff]
      %v6844 = vld [vmem:[%s1 + $0x8] sm:$0xff]
      %v6845 = vld [vmem:[%s1 + $0x10] sm:$0xff]
      %v6846 = vld [vmem:[%s1 + $0x18] sm:$0xff]
      %v6847 = vld [vmem:[%s1 + $0x20] sm:$0xff]
      %v6848 = vld [vmem:[%s1 + $0x28] sm:$0xff]
      %v6849 = vld [vmem:[%s1 + $0x30] sm:$0xff]
      %v6850 = vld [vmem:[%s1 + $0x38] sm:$0xff]
      %v6859 = vunpack.c.l.b16 %v6843
      %v6860 = vunpack.c.h.b16 %v6843
      %v6861 = vunpack.c.l.b16 %v6844
      %v6862 = vunpack.c.h.b16 %v6844
      %v6863 = vunpack.c.l.b16 %v6845
      %v6864 = vunpack.c.h.b16 %v6845
      %v6865 = vunpack.c.l.b16 %v6846
      %v6866 = vunpack.c.h.b16 %v6846
      %v6867 = vunpack.c.l.b16 %v6847
      %v6868 = vunpack.c.h.b16 %v6847
      %v6869 = vunpack.c.l.b16 %v6848
      %v6870 = vunpack.c.h.b16 %v6848
      %v6871 = vunpack.c.l.b16 %v6849
      %v6872 = vunpack.c.h.b16 %v6849
      %v6873 = vunpack.c.l.b16 %v6850
      %v6874 = vunpack.c.h.b16 %v6850
      %v6875 = vpack.c.b16 %v6861, %v6859
      %v6876 = vpack.c.b16 %v6862, %v6860
      %v6877 = vpack.c.b16 %v6865, %v6863
      %v6878 = vpack.c.b16 %v6866, %v6864
      %v6879 = vpack.c.b16 %v6869, %v6867
      %v6880 = vpack.c.b16 %v6870, %v6868
      %v6881 = vpack.c.b16 %v6873, %v6871
      %v6882 = vpack.c.b16 %v6874, %v6872
      %v6925 = vunpack.c.l.b16 %v6805
      %v6926 = vunpack.c.h.b16 %v6805
      %v6927 = vunpack.c.l.b16 %v6806
      %v6928 = vunpack.c.h.b16 %v6806
      %v6929 = vunpack.c.l.b16 %v6807
      %v6930 = vunpack.c.h.b16 %v6807
      %v6931 = vunpack.c.l.b16 %v6808
      %v6932 = vunpack.c.h.b16 %v6808
      %v6933 = vunpack.c.l.b16 %v6809
      %v6934 = vunpack.c.h.b16 %v6809
      %v6935 = vunpack.c.l.b16 %v6810
      %v6936 = vunpack.c.h.b16 %v6810
      %v6937 = vunpack.c.l.b16 %v6811
      %v6938 = vunpack.c.h.b16 %v6811
      %v6939 = vunpack.c.l.b16 %v6812
      %v6940 = vunpack.c.h.b16 %v6812
      %v6941 = vunpack.c.l.b16 %v6813
      %v6942 = vunpack.c.h.b16 %v6813
      %v6943 = vunpack.c.l.b16 %v6814
      %v6944 = vunpack.c.h.b16 %v6814
      %v6945 = vunpack.c.l.b16 %v6815
      %v6946 = vunpack.c.h.b16 %v6815
      %v6947 = vunpack.c.l.b16 %v6816
      %v6948 = vunpack.c.h.b16 %v6816
      %v6949 = vunpack.c.l.b16 %v6817
      %v6950 = vunpack.c.h.b16 %v6817
      %v6951 = vunpack.c.l.b16 %v6818
      %v6952 = vunpack.c.h.b16 %v6818
      %v6953 = vunpack.c.l.b16 %v6819
      %v6954 = vunpack.c.h.b16 %v6819
      %v6955 = vunpack.c.l.b16 %v6820
      %v6956 = vunpack.c.h.b16 %v6820
      %v6957 = vunpack.c.l.b16 %v6821
      %v6958 = vunpack.c.h.b16 %v6821
      %v6959 = vunpack.c.l.b16 %v6822
      %v6960 = vunpack.c.h.b16 %v6822
      %v6961 = vunpack.c.l.b16 %v6823
      %v6962 = vunpack.c.h.b16 %v6823
      %v6963 = vunpack.c.l.b16 %v6824
      %v6964 = vunpack.c.h.b16 %v6824
      %v6965 = vunpack.c.l.b16 %v6825
      %v6966 = vunpack.c.h.b16 %v6825
      %v6967 = vunpack.c.l.b16 %v6826
      %v6968 = vunpack.c.h.b16 %v6826
      %v6969 = vunpack.c.l.b16 %v6827
      %v6970 = vunpack.c.h.b16 %v6827
      %v6971 = vunpack.c.l.b16 %v6828
      %v6972 = vunpack.c.h.b16 %v6828
      %v6973 = vunpack.c.l.b16 %v6829
      %v6974 = vunpack.c.h.b16 %v6829
      %v6975 = vunpack.c.l.b16 %v6830
      %v6976 = vunpack.c.h.b16 %v6830
      %v6977 = vunpack.c.l.b16 %v6831
      %v6978 = vunpack.c.h.b16 %v6831
      %v6979 = vunpack.c.l.b16 %v6832
      %v6980 = vunpack.c.h.b16 %v6832
      %v6981 = vunpack.c.l.b16 %v6833
      %v6982 = vunpack.c.h.b16 %v6833
      %v6983 = vunpack.c.l.b16 %v6834
      %v6984 = vunpack.c.h.b16 %v6834
      %v6985 = vunpack.c.l.b16 %v6835
      %v6986 = vunpack.c.h.b16 %v6835
      %v6987 = vunpack.c.l.b16 %v6836
      %v6988 = vunpack.c.h.b16 %v6836
      %v6989 = vunpack.c.l.b16 %v6837
      %v6990 = vunpack.c.h.b16 %v6837
      %v6991 = vunpack.c.l.b16 %v6838
      %v6992 = vunpack.c.h.b16 %v6838
      %v6993 = vunpack.c.l.b16 %v6839
      %v6994 = vunpack.c.h.b16 %v6839
      %v6995 = vunpack.c.l.b16 %v6840
      %v6996 = vunpack.c.h.b16 %v6840
      %v6997 = vunpack.c.l.b16 %v6841
      %v6998 = vunpack.c.h.b16 %v6841
      %v6999 = vunpack.c.l.b16 %v6842
      %v7000 = vunpack.c.h.b16 %v6842
      %v7001 = vpack.c.b16 %v6929, %v6925
      %v7002 = vpack.c.b16 %v6930, %v6926
      %v7003 = vpack.c.b16 %v6931, %v6927
      %v7004 = vpack.c.b16 %v6932, %v6928
      %v7005 = vpack.c.b16 %v6937, %v6933
      %v7006 = vpack.c.b16 %v6938, %v6934
      %v7007 = vpack.c.b16 %v6939, %v6935
      %v7008 = vpack.c.b16 %v6940, %v6936
      %v7009 = vpack.c.b16 %v6945, %v6941
      %v7010 = vpack.c.b16 %v6946, %v6942
      %v7011 = vpack.c.b16 %v6947, %v6943
      %v7012 = vpack.c.b16 %v6948, %v6944
      %v7013 = vpack.c.b16 %v6953, %v6949
      %v7014 = vpack.c.b16 %v6954, %v6950
      %v7015 = vpack.c.b16 %v6955, %v6951
      %v7016 = vpack.c.b16 %v6956, %v6952
      %v7017 = vpack.c.b16 %v6961, %v6957
      %v7018 = vpack.c.b16 %v6962, %v6958
      %v7019 = vpack.c.b16 %v6963, %v6959
      %v7020 = vpack.c.b16 %v6964, %v6960
      %v7021 = vpack.c.b16 %v6969, %v6965
      %v7022 = vpack.c.b16 %v6970, %v6966
      %v7023 = vpack.c.b16 %v6971, %v6967
      %v7024 = vpack.c.b16 %v6972, %v6968
      %v7025 = vpack.c.b16 %v6977, %v6973
      %v7026 = vpack.c.b16 %v6978, %v6974
      %v7027 = vpack.c.b16 %v6979, %v6975
      %v7028 = vpack.c.b16 %v6980, %v6976
      %v7029 = vpack.c.b16 %v6985, %v6981
      %v7030 = vpack.c.b16 %v6986, %v6982
      %v7031 = vpack.c.b16 %v6987, %v6983
      %v7032 = vpack.c.b16 %v6988, %v6984
      %v7033 = vpack.c.b16 %v6993, %v6989
      %v7034 = vpack.c.b16 %v6994, %v6990
      %v7035 = vpack.c.b16 %v6995, %v6991
      %v7036 = vpack.c.b16 %v6996, %v6992
      %v7037 = vpack.c.b16 %v6997, %v6997
      %v7038 = vpack.c.b16 %v6998, %v6998
      %v7039 = vpack.c.b16 %v6999, %v6999
      %v7040 = vpack.c.b16 %v7000, %v7000
      %v7078 = vsel %vm481, %v6876, 0
      %v7081 = vsel %vm481, %v6878, 0
      %v7084 = vsel %vm481, %v6880, 0
      %v7087 = vsel %vm481, %v6882, 0
      %v7090 = vand.u32 %v7037, %v496
      %v7093 = vand.u32 %v7038, %v496
      %v7096 = vand.u32 %v7039, %v496
      %v7099 = vand.u32 %v7040, %v496
      %7101 = vmatprep.subr.bf16.mxu0 %v7002
      %7102 = vmatpush1.bf16.msra.mxu0 %v7001
      %7103 = vmatprep.subr.bf16.mxu0 %v7006
      %7104 = vmatpush1.bf16.msra.mxu0 %v7005
      %7105 = vmatprep.subr.bf16.mxu0 %v7010
      %7106 = vmatpush1.bf16.msra.mxu0 %v7009
      %7107 = vmatprep.subr.bf16.mxu0 %v7014
      %7108 = vmatpush1.bf16.msra.mxu0 %v7013
      %7109 = vmatprep.subr.bf16.mxu0 %v7018
      %7110 = vmatpush1.bf16.msra.mxu0 %v7017
      %7111 = vmatprep.subr.bf16.mxu0 %v7022
      %7112 = vmatpush1.bf16.msra.mxu0 %v7021
      %7113 = vmatprep.subr.bf16.mxu0 %v7026
      %7114 = vmatpush1.bf16.msra.mxu0 %v7025
      %7115 = vmatprep.subr.bf16.mxu0 %v7030
      %7116 = vmatpush1.bf16.msra.mxu0 %v7029
      %7117 = vmatprep.subr.bf16.mxu0 %v7034
      %7118 = vmatpush1.bf16.msra.mxu0 %v7033
      %7119 = vmatprep.subr.bf16.mxu0 %v7093
      %7120 = vmatpush1.bf16.msra.mxu0 %v7090
      %7121 = vmatprep.subr.bf16.mxu0 0
      %7122 = vmatpush1.bf16.msra.mxu0 0
      %7123 = vmatprep.subr.bf16.mxu0 0
      %7124 = vmatpush1.bf16.msra.mxu0 0
      %7125 = vmatprep.subr.bf16.mxu0 0
      %7126 = vmatpush1.bf16.msra.mxu0 0
      %7127 = vmatprep.subr.bf16.mxu0 0
      %7128 = vmatpush1.bf16.msra.mxu0 0
      %7129 = vmatprep.subr.bf16.mxu0 0
      %7130 = vmatpush1.bf16.msra.mxu0 0
      %7131 = vmatprep.subr.bf16.mxu0 0
      %7132 = vmatpush1.bf16.msra.mxu0 0
      %7133 = vmatprep.mubr.bf16.mxu0 %v7078
      %7134 = vmatmul.mubr.bf16.gmra.mrb[0].mxu0 %v6875
      %v7135 = vpop.f32.mrb[0].mxu0
      %v7136 = vadd.f32 0.0, %v7135
      %v7137 = vpop.f32.mrb[0].mxu0
      %v7138 = vadd.f32 0.0, %v7137
      %v7139 = vpop.f32.mrb[0].mxu0
      %v7140 = vadd.f32 0.0, %v7139
      %v7141 = vpop.f32.mrb[0].mxu0
      %v7142 = vadd.f32 0.0, %v7141
      %7143 = vmatprep.mubr.bf16.mxu0 %v7081
      %7144 = vmatmul.mubr.bf16.gmra.mrb[0].mxu0 %v6877
      %v7145 = vpop.f32.mrb[0].mxu0
      %v7146 = vadd.f32 0.0, %v7145
      %v7147 = vpop.f32.mrb[0].mxu0
      %v7148 = vadd.f32 0.0, %v7147
      %v7149 = vpop.f32.mrb[0].mxu0
      %v7150 = vadd.f32 0.0, %v7149
      %v7151 = vpop.f32.mrb[0].mxu0
      %v7152 = vadd.f32 0.0, %v7151
      %7153 = vmatprep.mubr.bf16.mxu0 %v7084
      %7154 = vmatmul.mubr.bf16.gmra.mrb[0].mxu0 %v6879
      %v7155 = vpop.f32.mrb[0].mxu0
      %v7156 = vadd.f32 0.0, %v7155
      %v7157 = vpop.f32.mrb[0].mxu0
      %v7158 = vadd.f32 0.0, %v7157
      %v7159 = vpop.f32.mrb[0].mxu0
      %v7160 = vadd.f32 0.0, %v7159
      %v7161 = vpop.f32.mrb[0].mxu0
      %v7162 = vadd.f32 0.0, %v7161
      %7163 = vmatprep.mubr.bf16.mxu0 %v7087
      %7164 = vmatmul.mubr.bf16.gmra.mrb[0].mxu0 %v6881
      %v7165 = vpop.f32.mrb[0].mxu0
      %v7166 = vadd.f32 0.0, %v7165
      %v7167 = vpop.f32.mrb[0].mxu0
      %v7168 = vadd.f32 0.0, %v7167
      %v7169 = vpop.f32.mrb[0].mxu0
      %v7170 = vadd.f32 0.0, %v7169
      %v7171 = vpop.f32.mrb[0].mxu0
      %v7172 = vadd.f32 0.0, %v7171
      %7173 = vdwg.mxu0
      %7174 = vmatprep.subr.bf16.mxu0 %v7004
      %7175 = vmatpush1.bf16.msra.mxu0 %v7003
      %7176 = vmatprep.subr.bf16.mxu0 %v7008
      %7177 = vmatpush1.bf16.msra.mxu0 %v7007
      %7178 = vmatprep.subr.bf16.mxu0 %v7012
      %7179 = vmatpush1.bf16.msra.mxu0 %v7011
      %7180 = vmatprep.subr.bf16.mxu0 %v7016
      %7181 = vmatpush1.bf16.msra.mxu0 %v7015
      %7182 = vmatprep.subr.bf16.mxu0 %v7020
      %7183 = vmatpush1.bf16.msra.mxu0 %v7019
      %7184 = vmatprep.subr.bf16.mxu0 %v7024
      %7185 = vmatpush1.bf16.msra.mxu0 %v7023
      %7186 = vmatprep.subr.bf16.mxu0 %v7028
      %7187 = vmatpush1.bf16.msra.mxu0 %v7027
      %7188 = vmatprep.subr.bf16.mxu0 %v7032
      %7189 = vmatpush1.bf16.msra.mxu0 %v7031
      %7190 = vmatprep.subr.bf16.mxu0 %v7036
      %7191 = vmatpush1.bf16.msra.mxu0 %v7035
      %7192 = vmatprep.subr.bf16.mxu0 %v7099
      %7193 = vmatpush1.bf16.msra.mxu0 %v7096
      %7194 = vmatprep.subr.bf16.mxu0 0
      %7195 = vmatpush1.bf16.msra.mxu0 0
      %7196 = vmatprep.subr.bf16.mxu0 0
      %7197 = vmatpush1.bf16.msra.mxu0 0
      %7198 = vmatprep.subr.bf16.mxu0 0
      %7199 = vmatpush1.bf16.msra.mxu0 0
      %7200 = vmatprep.subr.bf16.mxu0 0
      %7201 = vmatpush1.bf16.msra.mxu0 0
      %7202 = vmatprep.subr.bf16.mxu0 0
      %7203 = vmatpush1.bf16.msra.mxu0 0
      %7204 = vmatprep.subr.bf16.mxu0 0
      %7205 = vmatpush1.bf16.msra.mxu0 0
      %7206 = vmatprep.mubr.bf16.mxu0 %v7078
      %7207 = vmatmul.mubr.bf16.gmra.mrb[0].mxu0 %v6875
      %v7208 = vpop.f32.mrb[0].mxu0
      %v7209 = vadd.f32 0.0, %v7208
      %v7210 = vpop.f32.mrb[0].mxu0
      %v7211 = vadd.f32 0.0, %v7210
      %v7212 = vpop.f32.mrb[0].mxu0
      %v7213 = vadd.f32 0.0, %v7212
      %v7214 = vpop.f32.mrb[0].mxu0
      %v7215 = vadd.f32 0.0, %v7214
      %7216 = vmatprep.mubr.bf16.mxu0 %v7081
      %7217 = vmatmul.mubr.bf16.gmra.mrb[0].mxu0 %v6877
      %v7218 = vpop.f32.mrb[0].mxu0
      %v7219 = vadd.f32 0.0, %v7218
      %v7220 = vpop.f32.mrb[0].mxu0
      %v7221 = vadd.f32 0.0, %v7220
      %v7222 = vpop.f32.mrb[0].mxu0
      %v7223 = vadd.f32 0.0, %v7222
      %v7224 = vpop.f32.mrb[0].mxu0
      %v7225 = vadd.f32 0.0, %v7224
      %7226 = vmatprep.mubr.bf16.mxu0 %v7084
      %7227 = vmatmul.mubr.bf16.gmra.mrb[0].mxu0 %v6879
      %v7228 = vpop.f32.mrb[0].mxu0
      %v7229 = vadd.f32 0.0, %v7228
      %v7230 = vpop.f32.mrb[0].mxu0
      %v7231 = vadd.f32 0.0, %v7230
      %v7232 = vpop.f32.mrb[0].mxu0
      %v7233 = vadd.f32 0.0, %v7232
      %v7234 = vpop.f32.mrb[0].mxu0
      %v7235 = vadd.f32 0.0, %v7234
      %7236 = vmatprep.mubr.bf16.mxu0 %v7087
      %7237 = vmatmul.mubr.bf16.gmra.mrb[0].mxu0 %v6881
      %v7238 = vpop.f32.mrb[0].mxu0
      %v7239 = vadd.f32 0.0, %v7238
      %v7240 = vpop.f32.mrb[0].mxu0
      %v7241 = vadd.f32 0.0, %v7240
      %v7242 = vpop.f32.mrb[0].mxu0
      %v7243 = vadd.f32 0.0, %v7242
      %v7244 = vpop.f32.mrb[0].mxu0
      %v7245 = vadd.f32 0.0, %v7244
      %7246 = vdwg.mxu0
      %v7247 = vmax.f32 %v7136, %v7156
      %v7248 = vmax.f32 %v7138, %v7158
      %v7249 = vmax.f32 %v7209, %v7229
      %v7250 = vmax.f32 %v7211, %v7231
      %v7251 = vmax.f32 %v7140, %v7160
      %v7252 = vmax.f32 %v7142, %v7162
      %v7253 = vmax.f32 %v7213, %v7233
      %v7254 = vmax.f32 %v7215, %v7235
      %v7255 = vmax.f32 %v7146, %v7166
      %v7256 = vmax.f32 %v7148, %v7168
      %v7257 = vmax.f32 %v7219, %v7239
      %v7258 = vmax.f32 %v7221, %v7241
      %v7259 = vmax.f32 %v7150, %v7170
      %v7260 = vmax.f32 %v7152, %v7172
      %v7261 = vmax.f32 %v7223, %v7243
      %v7262 = vmax.f32 %v7225, %v7245
      %v7263 = vmax.f32 %v7247, %v7255
      %v7264 = vmax.f32 %v7248, %v7256
      %v7265 = vmax.f32 %v7249, %v7257
      %v7266 = vmax.f32 %v7250, %v7258
      %v7267 = vmax.f32 %v7251, %v7259
      %v7268 = vmax.f32 %v7252, %v7260
      %v7269 = vmax.f32 %v7253, %v7261
      %v7270 = vmax.f32 %v7254, %v7262
      %v7271 = vld [vmem:[%s1 + $0x40] sm:$0xff]
      %v7272 = vld [vmem:[%s1 + $0x48] sm:$0xff]
      %v7273 = vld [vmem:[%s1 + $0x50] sm:$0xff]
      %v7274 = vld [vmem:[%s1 + $0x58] sm:$0xff]
      %v7275 = vld [vmem:[%s1 + $0x60] sm:$0xff]
      %v7276 = vld [vmem:[%s1 + $0x68] sm:$0xff]
      %v7277 = vld [vmem:[%s1 + $0x70] sm:$0xff]
      %v7278 = vld [vmem:[%s1 + $0x78] sm:$0xff]
      %v7287 = vunpack.c.l.b16 %v7271
      %v7288 = vunpack.c.h.b16 %v7271
      %v7289 = vunpack.c.l.b16 %v7272
      %v7290 = vunpack.c.h.b16 %v7272
      %v7291 = vunpack.c.l.b16 %v7273
      %v7292 = vunpack.c.h.b16 %v7273
      %v7293 = vunpack.c.l.b16 %v7274
      %v7294 = vunpack.c.h.b16 %v7274
      %v7295 = vunpack.c.l.b16 %v7275
      %v7296 = vunpack.c.h.b16 %v7275
      %v7297 = vunpack.c.l.b16 %v7276
      %v7298 = vunpack.c.h.b16 %v7276
      %v7299 = vunpack.c.l.b16 %v7277
      %v7300 = vunpack.c.h.b16 %v7277
      %v7301 = vunpack.c.l.b16 %v7278
      %v7302 = vunpack.c.h.b16 %v7278
      %v7303 = vpack.c.b16 %v7289, %v7287
      %v7304 = vpack.c.b16 %v7290, %v7288
      %v7305 = vpack.c.b16 %v7293, %v7291
      %v7306 = vpack.c.b16 %v7294, %v7292
      %v7307 = vpack.c.b16 %v7297, %v7295
      %v7308 = vpack.c.b16 %v7298, %v7296
      %v7309 = vpack.c.b16 %v7301, %v7299
      %v7310 = vpack.c.b16 %v7302, %v7300
      %v7316 = vsel %vm481, %v7304, 0
      %v7319 = vsel %vm481, %v7306, 0
      %v7322 = vsel %vm481, %v7308, 0
      %v7325 = vsel %vm481, %v7310, 0
      %7327 = vmatprep.subr.bf16.mxu0 %v7002
      %7328 = vmatpush1.bf16.msra.mxu0 %v7001
      %7329 = vmatprep.subr.bf16.mxu0 %v7006
      %7330 = vmatpush1.bf16.msra.mxu0 %v7005
      %7331 = vmatprep.subr.bf16.mxu0 %v7010
      %7332 = vmatpush1.bf16.msra.mxu0 %v7009
      %7333 = vmatprep.subr.bf16.mxu0 %v7014
      %7334 = vmatpush1.bf16.msra.mxu0 %v7013
      %7335 = vmatprep.subr.bf16.mxu0 %v7018
      %7336 = vmatpush1.bf16.msra.mxu0 %v7017
      %7337 = vmatprep.subr.bf16.mxu0 %v7022
      %7338 = vmatpush1.bf16.msra.mxu0 %v7021
      %7339 = vmatprep.subr.bf16.mxu0 %v7026
      %7340 = vmatpush1.bf16.msra.mxu0 %v7025
      %7341 = vmatprep.subr.bf16.mxu0 %v7030
      %7342 = vmatpush1.bf16.msra.mxu0 %v7029
      %7343 = vmatprep.subr.bf16.mxu0 %v7034
      %7344 = vmatpush1.bf16.msra.mxu0 %v7033
      %7345 = vmatprep.subr.bf16.mxu0 %v7093
      %7346 = vmatpush1.bf16.msra.mxu0 %v7090
      %7347 = vmatprep.subr.bf16.mxu0 0
      %7348 = vmatpush1.bf16.msra.mxu0 0
      %7349 = vmatprep.subr.bf16.mxu0 0
      %7350 = vmatpush1.bf16.msra.mxu0 0
      %7351 = vmatprep.subr.bf16.mxu0 0
      %7352 = vmatpush1.bf16.msra.mxu0 0
      %7353 = vmatprep.subr.bf16.mxu0 0
      %7354 = vmatpush1.bf16.msra.mxu0 0
      %7355 = vmatprep.subr.bf16.mxu0 0
      %7356 = vmatpush1.bf16.msra.mxu0 0
      %7357 = vmatprep.subr.bf16.mxu0 0
      %7358 = vmatpush1.bf16.msra.mxu0 0
      %7359 = vmatprep.mubr.bf16.mxu0 %v7316
      %7360 = vmatmul.mubr.bf16.gmra.mrb[0].mxu0 %v7303
      %v7361 = vpop.f32.mrb[0].mxu0
      %v7362 = vadd.f32 0.0, %v7361
      %v7363 = vpop.f32.mrb[0].mxu0
      %v7364 = vadd.f32 0.0, %v7363
      %v7365 = vpop.f32.mrb[0].mxu0
      %v7366 = vadd.f32 0.0, %v7365
      %v7367 = vpop.f32.mrb[0].mxu0
      %v7368 = vadd.f32 0.0, %v7367
      %7369 = vmatprep.mubr.bf16.mxu0 %v7319
      %7370 = vmatmul.mubr.bf16.gmra.mrb[0].mxu0 %v7305
      %v7371 = vpop.f32.mrb[0].mxu0
      %v7372 = vadd.f32 0.0, %v7371
      %v7373 = vpop.f32.mrb[0].mxu0
      %v7374 = vadd.f32 0.0, %v7373
      %v7375 = vpop.f32.mrb[0].mxu0
      %v7376 = vadd.f32 0.0, %v7375
      %v7377 = vpop.f32.mrb[0].mxu0
      %v7378 = vadd.f32 0.0, %v7377
      %7379 = vmatprep.mubr.bf16.mxu0 %v7322
      %7380 = vmatmul.mubr.bf16.gmra.mrb[0].mxu0 %v7307
      %v7381 = vpop.f32.mrb[0].mxu0
      %v7382 = vadd.f32 0.0, %v7381
      %v7383 = vpop.f32.mrb[0].mxu0
      %v7384 = vadd.f32 0.0, %v7383
      %v7385 = vpop.f32.mrb[0].mxu0
      %v7386 = vadd.f32 0.0, %v7385
      %v7387 = vpop.f32.mrb[0].mxu0
      %v7388 = vadd.f32 0.0, %v7387
      %7389 = vmatprep.mubr.bf16.mxu0 %v7325
      %7390 = vmatmul.mubr.bf16.gmra.mrb[0].mxu0 %v7309
      %v7391 = vpop.f32.mrb[0].mxu0
      %v7392 = vadd.f32 0.0, %v7391
      %v7393 = vpop.f32.mrb[0].mxu0
      %v7394 = vadd.f32 0.0, %v7393
      %v7395 = vpop.f32.mrb[0].mxu0
      %v7396 = vadd.f32 0.0, %v7395
      %v7397 = vpop.f32.mrb[0].mxu0
      %v7398 = vadd.f32 0.0, %v7397
      %7399 = vdwg.mxu0
      %7400 = vmatprep.subr.bf16.mxu0 %v7004
      %7401 = vmatpush1.bf16.msra.mxu0 %v7003
      %7402 = vmatprep.subr.bf16.mxu0 %v7008
      %7403 = vmatpush1.bf16.msra.mxu0 %v7007
      %7404 = vmatprep.subr.bf16.mxu0 %v7012
      %7405 = vmatpush1.bf16.msra.mxu0 %v7011
      %7406 = vmatprep.subr.bf16.mxu0 %v7016
      %7407 = vmatpush1.bf16.msra.mxu0 %v7015
      %7408 = vmatprep.subr.bf16.mxu0 %v7020
      %7409 = vmatpush1.bf16.msra.mxu0 %v7019
      %7410 = vmatprep.subr.bf16.mxu0 %v7024
      %7411 = vmatpush1.bf16.msra.mxu0 %v7023
      %7412 = vmatprep.subr.bf16.mxu0 %v7028
      %7413 = vmatpush1.bf16.msra.mxu0 %v7027
      %7414 = vmatprep.subr.bf16.mxu0 %v7032
      %7415 = vmatpush1.bf16.msra.mxu0 %v7031
      %7416 = vmatprep.subr.bf16.mxu0 %v7036
      %7417 = vmatpush1.bf16.msra.mxu0 %v7035
      %7418 = vmatprep.subr.bf16.mxu0 %v7099
      %7419 = vmatpush1.bf16.msra.mxu0 %v7096
      %7420 = vmatprep.subr.bf16.mxu0 0
      %7421 = vmatpush1.bf16.msra.mxu0 0
      %7422 = vmatprep.subr.bf16.mxu0 0
      %7423 = vmatpush1.bf16.msra.mxu0 0
      %7424 = vmatprep.subr.bf16.mxu0 0
      %7425 = vmatpush1.bf16.msra.mxu0 0
      %7426 = vmatprep.subr.bf16.mxu0 0
      %7427 = vmatpush1.bf16.msra.mxu0 0
      %7428 = vmatprep.subr.bf16.mxu0 0
      %7429 = vmatpush1.bf16.msra.mxu0 0
      %7430 = vmatprep.subr.bf16.mxu0 0
      %7431 = vmatpush1.bf16.msra.mxu0 0
      %7432 = vmatprep.mubr.bf16.mxu0 %v7316
      %7433 = vmatmul.mubr.bf16.gmra.mrb[0].mxu0 %v7303
      %v7434 = vpop.f32.mrb[0].mxu0
      %v7435 = vadd.f32 0.0, %v7434
      %v7436 = vpop.f32.mrb[0].mxu0
      %v7437 = vadd.f32 0.0, %v7436
      %v7438 = vpop.f32.mrb[0].mxu0
      %v7439 = vadd.f32 0.0, %v7438
      %v7440 = vpop.f32.mrb[0].mxu0
      %v7441 = vadd.f32 0.0, %v7440
      %7442 = vmatprep.mubr.bf16.mxu0 %v7319
      %7443 = vmatmul.mubr.bf16.gmra.mrb[0].mxu0 %v7305
      %v7444 = vpop.f32.mrb[0].mxu0
      %v7445 = vadd.f32 0.0, %v7444
      %v7446 = vpop.f32.mrb[0].mxu0
      %v7447 = vadd.f32 0.0, %v7446
      %v7448 = vpop.f32.mrb[0].mxu0
      %v7449 = vadd.f32 0.0, %v7448
      %v7450 = vpop.f32.mrb[0].mxu0
      %v7451 = vadd.f32 0.0, %v7450
      %7452 = vmatprep.mubr.bf16.mxu0 %v7322
      %7453 = vmatmul.mubr.bf16.gmra.mrb[0].mxu0 %v7307
      %v7454 = vpop.f32.mrb[0].mxu0
      %v7455 = vadd.f32 0.0, %v7454
      %v7456 = vpop.f32.mrb[0].mxu0
      %v7457 = vadd.f32 0.0, %v7456
      %v7458 = vpop.f32.mrb[0].mxu0
      %v7459 = vadd.f32 0.0, %v7458
      %v7460 = vpop.f32.mrb[0].mxu0
      %v7461 = vadd.f32 0.0, %v7460
      %7462 = vmatprep.mubr.bf16.mxu0 %v7325
      %7463 = vmatmul.mubr.bf16.gmra.mrb[0].mxu0 %v7309
      %v7464 = vpop.f32.mrb[0].mxu0
      %v7465 = vadd.f32 0.0, %v7464
      %v7466 = vpop.f32.mrb[0].mxu0
      %v7467 = vadd.f32 0.0, %v7466
      %v7468 = vpop.f32.mrb[0].mxu0
      %v7469 = vadd.f32 0.0, %v7468
      %v7470 = vpop.f32.mrb[0].mxu0
      %v7471 = vadd.f32 0.0, %v7470
      %7472 = vdwg.mxu0
      %v7473 = vmax.f32 %v7362, %v7382
      %v7474 = vmax.f32 %v7364, %v7384
      %v7475 = vmax.f32 %v7435, %v7455
      %v7476 = vmax.f32 %v7437, %v7457
      %v7477 = vmax.f32 %v7366, %v7386
      %v7478 = vmax.f32 %v7368, %v7388
      %v7479 = vmax.f32 %v7439, %v7459
      %v7480 = vmax.f32 %v7441, %v7461
      %v7481 = vmax.f32 %v7372, %v7392
      %v7482 = vmax.f32 %v7374, %v7394
      %v7483 = vmax.f32 %v7445, %v7465
      %v7484 = vmax.f32 %v7447, %v7467
      %v7485 = vmax.f32 %v7376, %v7396
      %v7486 = vmax.f32 %v7378, %v7398
      %v7487 = vmax.f32 %v7449, %v7469
      %v7488 = vmax.f32 %v7451, %v7471
      %v7489 = vmax.f32 %v7473, %v7481
      %v7490 = vmax.f32 %v7474, %v7482
      %v7491 = vmax.f32 %v7475, %v7483
      %v7492 = vmax.f32 %v7476, %v7484
      %v7493 = vmax.f32 %v7477, %v7485
      %v7494 = vmax.f32 %v7478, %v7486
      %v7495 = vmax.f32 %v7479, %v7487
      %v7496 = vmax.f32 %v7480, %v7488
      %v7497 = vmax.f32 %v7263, %v7489
      %v7498 = vmax.f32 %v7264, %v7490
      %v7499 = vmax.f32 %v7265, %v7491
      %v7500 = vmax.f32 %v7266, %v7492
      %v7501 = vmax.f32 %v7267, %v7493
      %v7502 = vmax.f32 %v7268, %v7494
      %v7503 = vmax.f32 %v7269, %v7495
      %v7504 = vmax.f32 %v7270, %v7496
      %v7505 = vld [vmem:[%s1 + $0x80] sm:$0xff]
      %v7506 = vld [vmem:[%s1 + $0x88] sm:$0xff]
      %v7507 = vld [vmem:[%s1 + $0x90] sm:$0xff]
      %v7508 = vld [vmem:[%s1 + $0x98] sm:$0xff]
      %v7509 = vld [vmem:[%s1 + $0xa0] sm:$0xff]
      %v7510 = vld [vmem:[%s1 + $0xa8] sm:$0xff]
      %v7511 = vld [vmem:[%s1 + $0xb0] sm:$0xff]
      %v7512 = vld [vmem:[%s1 + $0xb8] sm:$0xff]
      %v7521 = vunpack.c.l.b16 %v7505
      %v7522 = vunpack.c.h.b16 %v7505
      %v7523 = vunpack.c.l.b16 %v7506
      %v7524 = vunpack.c.h.b16 %v7506
      %v7525 = vunpack.c.l.b16 %v7507
      %v7526 = vunpack.c.h.b16 %v7507
      %v7527 = vunpack.c.l.b16 %v7508
      %v7528 = vunpack.c.h.b16 %v7508
      %v7529 = vunpack.c.l.b16 %v7509
      %v7530 = vunpack.c.h.b16 %v7509
      %v7531 = vunpack.c.l.b16 %v7510
      %v7532 = vunpack.c.h.b16 %v7510
      %v7533 = vunpack.c.l.b16 %v7511
      %v7534 = vunpack.c.h.b16 %v7511
      %v7535 = vunpack.c.l.b16 %v7512
      %v7536 = vunpack.c.h.b16 %v7512
      %v7537 = vpack.c.b16 %v7523, %v7521
      %v7538 = vpack.c.b16 %v7524, %v7522
      %v7539 = vpack.c.b16 %v7527, %v7525
      %v7540 = vpack.c.b16 %v7528, %v7526
      %v7541 = vpack.c.b16 %v7531, %v7529
      %v7542 = vpack.c.b16 %v7532, %v7530
      %v7543 = vpack.c.b16 %v7535, %v7533
      %v7544 = vpack.c.b16 %v7536, %v7534
      %v7550 = vsel %vm481, %v7538, 0
      %v7553 = vsel %vm481, %v7540, 0
      %v7556 = vsel %vm481, %v7542, 0
      %v7559 = vsel %vm481, %v7544, 0
      %7561 = vmatprep.subr.bf16.mxu0 %v7002
      %7562 = vmatpush1.bf16.msra.mxu0 %v7001
      %7563 = vmatprep.subr.bf16.mxu0 %v7006
      %7564 = vmatpush1.bf16.msra.mxu0 %v7005
      %7565 = vmatprep.subr.bf16.mxu0 %v7010
      %7566 = vmatpush1.bf16.msra.mxu0 %v7009
      %7567 = vmatprep.subr.bf16.mxu0 %v7014
      %7568 = vmatpush1.bf16.msra.mxu0 %v7013
      %7569 = vmatprep.subr.bf16.mxu0 %v7018
      %7570 = vmatpush1.bf16.msra.mxu0 %v7017
      %7571 = vmatprep.subr.bf16.mxu0 %v7022
      %7572 = vmatpush1.bf16.msra.mxu0 %v7021
      %7573 = vmatprep.subr.bf16.mxu0 %v7026
      %7574 = vmatpush1.bf16.msra.mxu0 %v7025
      %7575 = vmatprep.subr.bf16.mxu0 %v7030
      %7576 = vmatpush1.bf16.msra.mxu0 %v7029
      %7577 = vmatprep.subr.bf16.mxu0 %v7034
      %7578 = vmatpush1.bf16.msra.mxu0 %v7033
      %7579 = vmatprep.subr.bf16.mxu0 %v7093
      %7580 = vmatpush1.bf16.msra.mxu0 %v7090
      %7581 = vmatprep.subr.bf16.mxu0 0
      %7582 = vmatpush1.bf16.msra.mxu0 0
      %7583 = vmatprep.subr.bf16.mxu0 0
      %7584 = vmatpush1.bf16.msra.mxu0 0
      %7585 = vmatprep.subr.bf16.mxu0 0
      %7586 = vmatpush1.bf16.msra.mxu0 0
      %7587 = vmatprep.subr.bf16.mxu0 0
      %7588 = vmatpush1.bf16.msra.mxu0 0
      %7589 = vmatprep.subr.bf16.mxu0 0
      %7590 = vmatpush1.bf16.msra.mxu0 0
      %7591 = vmatprep.subr.bf16.mxu0 0
      %7592 = vmatpush1.bf16.msra.mxu0 0
      %7593 = vmatprep.mubr.bf16.mxu0 %v7550
      %7594 = vmatmul.mubr.bf16.gmra.mrb[0].mxu0 %v7537
      %v7595 = vpop.f32.mrb[0].mxu0
      %v7596 = vadd.f32 0.0, %v7595
      %v7597 = vpop.f32.mrb[0].mxu0
      %v7598 = vadd.f32 0.0, %v7597
      %v7599 = vpop.f32.mrb[0].mxu0
      %v7600 = vadd.f32 0.0, %v7599
      %v7601 = vpop.f32.mrb[0].mxu0
      %v7602 = vadd.f32 0.0, %v7601
      %7603 = vmatprep.mubr.bf16.mxu0 %v7553
      %7604 = vmatmul.mubr.bf16.gmra.mrb[0].mxu0 %v7539
      %v7605 = vpop.f32.mrb[0].mxu0
      %v7606 = vadd.f32 0.0, %v7605
      %v7607 = vpop.f32.mrb[0].mxu0
      %v7608 = vadd.f32 0.0, %v7607
      %v7609 = vpop.f32.mrb[0].mxu0
      %v7610 = vadd.f32 0.0, %v7609
      %v7611 = vpop.f32.mrb[0].mxu0
      %v7612 = vadd.f32 0.0, %v7611
      %7613 = vmatprep.mubr.bf16.mxu0 %v7556
      %7614 = vmatmul.mubr.bf16.gmra.mrb[0].mxu0 %v7541
      %v7615 = vpop.f32.mrb[0].mxu0
      %v7616 = vadd.f32 0.0, %v7615
      %v7617 = vpop.f32.mrb[0].mxu0
      %v7618 = vadd.f32 0.0, %v7617
      %v7619 = vpop.f32.mrb[0].mxu0
      %v7620 = vadd.f32 0.0, %v7619
      %v7621 = vpop.f32.mrb[0].mxu0
      %v7622 = vadd.f32 0.0, %v7621
      %7623 = vmatprep.mubr.bf16.mxu0 %v7559
      %7624 = vmatmul.mubr.bf16.gmra.mrb[0].mxu0 %v7543
      %v7625 = vpop.f32.mrb[0].mxu0
      %v7626 = vadd.f32 0.0, %v7625
      %v7627 = vpop.f32.mrb[0].mxu0
      %v7628 = vadd.f32 0.0, %v7627
      %v7629 = vpop.f32.mrb[0].mxu0
      %v7630 = vadd.f32 0.0, %v7629
      %v7631 = vpop.f32.mrb[0].mxu0
      %v7632 = vadd.f32 0.0, %v7631
      %7633 = vdwg.mxu0
      %7634 = vmatprep.subr.bf16.mxu0 %v7004
      %7635 = vmatpush1.bf16.msra.mxu0 %v7003
      %7636 = vmatprep.subr.bf16.mxu0 %v7008
      %7637 = vmatpush1.bf16.msra.mxu0 %v7007
      %7638 = vmatprep.subr.bf16.mxu0 %v7012
      %7639 = vmatpush1.bf16.msra.mxu0 %v7011
      %7640 = vmatprep.subr.bf16.mxu0 %v7016
      %7641 = vmatpush1.bf16.msra.mxu0 %v7015
      %7642 = vmatprep.subr.bf16.mxu0 %v7020
      %7643 = vmatpush1.bf16.msra.mxu0 %v7019
      %7644 = vmatprep.subr.bf16.mxu0 %v7024
      %7645 = vmatpush1.bf16.msra.mxu0 %v7023
      %7646 = vmatprep.subr.bf16.mxu0 %v7028
      %7647 = vmatpush1.bf16.msra.mxu0 %v7027
      %7648 = vmatprep.subr.bf16.mxu0 %v7032
      %7649 = vmatpush1.bf16.msra.mxu0 %v7031
      %7650 = vmatprep.subr.bf16.mxu0 %v7036
      %7651 = vmatpush1.bf16.msra.mxu0 %v7035
      %7652 = vmatprep.subr.bf16.mxu0 %v7099
      %7653 = vmatpush1.bf16.msra.mxu0 %v7096
      %7654 = vmatprep.subr.bf16.mxu0 0
      %7655 = vmatpush1.bf16.msra.mxu0 0
      %7656 = vmatprep.subr.bf16.mxu0 0
      %7657 = vmatpush1.bf16.msra.mxu0 0
      %7658 = vmatprep.subr.bf16.mxu0 0
      %7659 = vmatpush1.bf16.msra.mxu0 0
      %7660 = vmatprep.subr.bf16.mxu0 0
      %7661 = vmatpush1.bf16.msra.mxu0 0
      %7662 = vmatprep.subr.bf16.mxu0 0
      %7663 = vmatpush1.bf16.msra.mxu0 0
      %7664 = vmatprep.subr.bf16.mxu0 0
      %7665 = vmatpush1.bf16.msra.mxu0 0
      %7666 = vmatprep.mubr.bf16.mxu0 %v7550
      %7667 = vmatmul.mubr.bf16.gmra.mrb[0].mxu0 %v7537
      %v7668 = vpop.f32.mrb[0].mxu0
      %v7669 = vadd.f32 0.0, %v7668
      %v7670 = vpop.f32.mrb[0].mxu0
      %v7671 = vadd.f32 0.0, %v7670
      %v7672 = vpop.f32.mrb[0].mxu0
      %v7673 = vadd.f32 0.0, %v7672
      %v7674 = vpop.f32.mrb[0].mxu0
      %v7675 = vadd.f32 0.0, %v7674
      %7676 = vmatprep.mubr.bf16.mxu0 %v7553
      %7677 = vmatmul.mubr.bf16.gmra.mrb[0].mxu0 %v7539
      %v7678 = vpop.f32.mrb[0].mxu0
      %v7679 = vadd.f32 0.0, %v7678
      %v7680 = vpop.f32.mrb[0].mxu0
      %v7681 = vadd.f32 0.0, %v7680
      %v7682 = vpop.f32.mrb[0].mxu0
      %v7683 = vadd.f32 0.0, %v7682
      %v7684 = vpop.f32.mrb[0].mxu0
      %v7685 = vadd.f32 0.0, %v7684
      %7686 = vmatprep.mubr.bf16.mxu0 %v7556
      %7687 = vmatmul.mubr.bf16.gmra.mrb[0].mxu0 %v7541
      %v7688 = vpop.f32.mrb[0].mxu0
      %v7689 = vadd.f32 0.0, %v7688
      %v7690 = vpop.f32.mrb[0].mxu0
      %v7691 = vadd.f32 0.0, %v7690
      %v7692 = vpop.f32.mrb[0].mxu0
      %v7693 = vadd.f32 0.0, %v7692
      %v7694 = vpop.f32.mrb[0].mxu0
      %v7695 = vadd.f32 0.0, %v7694
      %7696 = vmatprep.mubr.bf16.mxu0 %v7559
      %7697 = vmatmul.mubr.bf16.gmra.mrb[0].mxu0 %v7543
      %v7698 = vpop.f32.mrb[0].mxu0
      %v7699 = vadd.f32 0.0, %v7698
      %v7700 = vpop.f32.mrb[0].mxu0
      %v7701 = vadd.f32 0.0, %v7700
      %v7702 = vpop.f32.mrb[0].mxu0
      %v7703 = vadd.f32 0.0, %v7702
      %v7704 = vpop.f32.mrb[0].mxu0
      %v7705 = vadd.f32 0.0, %v7704
      %7706 = vdwg.mxu0
      %v7707 = vmax.f32 %v7596, %v7616
      %v7708 = vmax.f32 %v7598, %v7618
      %v7709 = vmax.f32 %v7669, %v7689
      %v7710 = vmax.f32 %v7671, %v7691
      %v7711 = vmax.f32 %v7600, %v7620
      %v7712 = vmax.f32 %v7602, %v7622
      %v7713 = vmax.f32 %v7673, %v7693
      %v7714 = vmax.f32 %v7675, %v7695
      %v7715 = vmax.f32 %v7606, %v7626
      %v7716 = vmax.f32 %v7608, %v7628
      %v7717 = vmax.f32 %v7679, %v7699
      %v7718 = vmax.f32 %v7681, %v7701
      %v7719 = vmax.f32 %v7610, %v7630
      %v7720 = vmax.f32 %v7612, %v7632
      %v7721 = vmax.f32 %v7683, %v7703
      %v7722 = vmax.f32 %v7685, %v7705
      %v7723 = vmax.f32 %v7707, %v7715
      %v7724 = vmax.f32 %v7708, %v7716
      %v7725 = vmax.f32 %v7709, %v7717
      %v7726 = vmax.f32 %v7710, %v7718
      %v7727 = vmax.f32 %v7711, %v7719
      %v7728 = vmax.f32 %v7712, %v7720
      %v7729 = vmax.f32 %v7713, %v7721
      %v7730 = vmax.f32 %v7714, %v7722
      %v7731 = vmax.f32 %v7497, %v7723
      %v7732 = vmax.f32 %v7498, %v7724
      %v7733 = vmax.f32 %v7499, %v7725
      %v7734 = vmax.f32 %v7500, %v7726
      %v7735 = vmax.f32 %v7501, %v7727
      %v7736 = vmax.f32 %v7502, %v7728
      %v7737 = vmax.f32 %v7503, %v7729
      %v7738 = vmax.f32 %v7504, %v7730
      %v7739 = vld [vmem:[%s1 + $0xc0] sm:$0xff]
      %v7740 = vld [vmem:[%s1 + $0xc8] sm:$0xff]
      %v7741 = vld [vmem:[%s1 + $0xd0] sm:$0xff]
      %v7742 = vld [vmem:[%s1 + $0xd8] sm:$0xff]
      %v7743 = vld [vmem:[%s1 + $0xe0] sm:$0xff]
      %v7744 = vld [vmem:[%s1 + $0xe8] sm:$0xff]
      %v7745 = vld [vmem:[%s1 + $0xf0] sm:$0xff]
      %v7746 = vld [vmem:[%s1 + $0xf8] sm:$0xff]
      %v7755 = vunpack.c.l.b16 %v7739
      %v7756 = vunpack.c.h.b16 %v7739
      %v7757 = vunpack.c.l.b16 %v7740
      %v7758 = vunpack.c.h.b16 %v7740
      %v7759 = vunpack.c.l.b16 %v7741
      %v7760 = vunpack.c.h.b16 %v7741
      %v7761 = vunpack.c.l.b16 %v7742
      %v7762 = vunpack.c.h.b16 %v7742
      %v7763 = vunpack.c.l.b16 %v7743
      %v7764 = vunpack.c.h.b16 %v7743
      %v7765 = vunpack.c.l.b16 %v7744
      %v7766 = vunpack.c.h.b16 %v7744
      %v7767 = vunpack.c.l.b16 %v7745
      %v7768 = vunpack.c.h.b16 %v7745
      %v7769 = vunpack.c.l.b16 %v7746
      %v7770 = vunpack.c.h.b16 %v7746
      %v7771 = vpack.c.b16 %v7757, %v7755
      %v7772 = vpack.c.b16 %v7758, %v7756
      %v7773 = vpack.c.b16 %v7761, %v7759
      %v7774 = vpack.c.b16 %v7762, %v7760
      %v7775 = vpack.c.b16 %v7765, %v7763
      %v7776 = vpack.c.b16 %v7766, %v7764
      %v7777 = vpack.c.b16 %v7769, %v7767
      %v7778 = vpack.c.b16 %v7770, %v7768
      %v7784 = vsel %vm481, %v7772, 0
      %v7787 = vsel %vm481, %v7774, 0
      %v7790 = vsel %vm481, %v7776, 0
      %v7793 = vsel %vm481, %v7778, 0
      %7795 = vmatprep.subr.bf16.mxu0 %v7002
      %7796 = vmatpush1.bf16.msra.mxu0 %v7001
      %7797 = vmatprep.subr.bf16.mxu0 %v7006
      %7798 = vmatpush1.bf16.msra.mxu0 %v7005
      %7799 = vmatprep.subr.bf16.mxu0 %v7010
      %7800 = vmatpush1.bf16.msra.mxu0 %v7009
      %7801 = vmatprep.subr.bf16.mxu0 %v7014
      %7802 = vmatpush1.bf16.msra.mxu0 %v7013
      %7803 = vmatprep.subr.bf16.mxu0 %v7018
      %7804 = vmatpush1.bf16.msra.mxu0 %v7017
      %7805 = vmatprep.subr.bf16.mxu0 %v7022
      %7806 = vmatpush1.bf16.msra.mxu0 %v7021
      %7807 = vmatprep.subr.bf16.mxu0 %v7026
      %7808 = vmatpush1.bf16.msra.mxu0 %v7025
      %7809 = vmatprep.subr.bf16.mxu0 %v7030
      %7810 = vmatpush1.bf16.msra.mxu0 %v7029
      %7811 = vmatprep.subr.bf16.mxu0 %v7034
      %7812 = vmatpush1.bf16.msra.mxu0 %v7033
      %7813 = vmatprep.subr.bf16.mxu0 %v7093
      %7814 = vmatpush1.bf16.msra.mxu0 %v7090
      %7815 = vmatprep.subr.bf16.mxu0 0
      %7816 = vmatpush1.bf16.msra.mxu0 0
      %7817 = vmatprep.subr.bf16.mxu0 0
      %7818 = vmatpush1.bf16.msra.mxu0 0
      %7819 = vmatprep.subr.bf16.mxu0 0
      %7820 = vmatpush1.bf16.msra.mxu0 0
      %7821 = vmatprep.subr.bf16.mxu0 0
      %7822 = vmatpush1.bf16.msra.mxu0 0
      %7823 = vmatprep.subr.bf16.mxu0 0
      %7824 = vmatpush1.bf16.msra.mxu0 0
      %7825 = vmatprep.subr.bf16.mxu0 0
      %7826 = vmatpush1.bf16.msra.mxu0 0
      %7827 = vmatprep.mubr.bf16.mxu0 %v7784
      %7828 = vmatmul.mubr.bf16.gmra.mrb[0].mxu0 %v7771
      %v7829 = vpop.f32.mrb[0].mxu0
      %v7830 = vadd.f32 0.0, %v7829
      %v7831 = vpop.f32.mrb[0].mxu0
      %v7832 = vadd.f32 0.0, %v7831
      %v7833 = vpop.f32.mrb[0].mxu0
      %v7834 = vadd.f32 0.0, %v7833
      %v7835 = vpop.f32.mrb[0].mxu0
      %v7836 = vadd.f32 0.0, %v7835
      %7837 = vmatprep.mubr.bf16.mxu0 %v7787
      %7838 = vmatmul.mubr.bf16.gmra.mrb[0].mxu0 %v7773
      %v7839 = vpop.f32.mrb[0].mxu0
      %v7840 = vadd.f32 0.0, %v7839
      %v7841 = vpop.f32.mrb[0].mxu0
      %v7842 = vadd.f32 0.0, %v7841
      %v7843 = vpop.f32.mrb[0].mxu0
      %v7844 = vadd.f32 0.0, %v7843
      %v7845 = vpop.f32.mrb[0].mxu0
      %v7846 = vadd.f32 0.0, %v7845
      %7847 = vmatprep.mubr.bf16.mxu0 %v7790
      %7848 = vmatmul.mubr.bf16.gmra.mrb[0].mxu0 %v7775
      %v7849 = vpop.f32.mrb[0].mxu0
      %v7850 = vadd.f32 0.0, %v7849
      %v7851 = vpop.f32.mrb[0].mxu0
      %v7852 = vadd.f32 0.0, %v7851
      %v7853 = vpop.f32.mrb[0].mxu0
      %v7854 = vadd.f32 0.0, %v7853
      %v7855 = vpop.f32.mrb[0].mxu0
      %v7856 = vadd.f32 0.0, %v7855
      %7857 = vmatprep.mubr.bf16.mxu0 %v7793
      %7858 = vmatmul.mubr.bf16.gmra.mrb[0].mxu0 %v7777
      %v7859 = vpop.f32.mrb[0].mxu0
      %v7860 = vadd.f32 0.0, %v7859
      %v7861 = vpop.f32.mrb[0].mxu0
      %v7862 = vadd.f32 0.0, %v7861
      %v7863 = vpop.f32.mrb[0].mxu0
      %v7864 = vadd.f32 0.0, %v7863
      %v7865 = vpop.f32.mrb[0].mxu0
      %v7866 = vadd.f32 0.0, %v7865
      %7867 = vdwg.mxu0
      %7868 = vmatprep.subr.bf16.mxu0 %v7004
      %7869 = vmatpush1.bf16.msra.mxu0 %v7003
      %7870 = vmatprep.subr.bf16.mxu0 %v7008
      %7871 = vmatpush1.bf16.msra.mxu0 %v7007
      %7872 = vmatprep.subr.bf16.mxu0 %v7012
      %7873 = vmatpush1.bf16.msra.mxu0 %v7011
      %7874 = vmatprep.subr.bf16.mxu0 %v7016
      %7875 = vmatpush1.bf16.msra.mxu0 %v7015
      %7876 = vmatprep.subr.bf16.mxu0 %v7020
      %7877 = vmatpush1.bf16.msra.mxu0 %v7019
      %7878 = vmatprep.subr.bf16.mxu0 %v7024
      %7879 = vmatpush1.bf16.msra.mxu0 %v7023
      %7880 = vmatprep.subr.bf16.mxu0 %v7028
      %7881 = vmatpush1.bf16.msra.mxu0 %v7027
      %7882 = vmatprep.subr.bf16.mxu0 %v7032
      %7883 = vmatpush1.bf16.msra.mxu0 %v7031
      %7884 = vmatprep.subr.bf16.mxu0 %v7036
      %7885 = vmatpush1.bf16.msra.mxu0 %v7035
      %7886 = vmatprep.subr.bf16.mxu0 %v7099
      %7887 = vmatpush1.bf16.msra.mxu0 %v7096
      %7888 = vmatprep.subr.bf16.mxu0 0
      %7889 = vmatpush1.bf16.msra.mxu0 0
      %7890 = vmatprep.subr.bf16.mxu0 0
      %7891 = vmatpush1.bf16.msra.mxu0 0
      %7892 = vmatprep.subr.bf16.mxu0 0
      %7893 = vmatpush1.bf16.msra.mxu0 0
      %7894 = vmatprep.subr.bf16.mxu0 0
      %7895 = vmatpush1.bf16.msra.mxu0 0
      %7896 = vmatprep.subr.bf16.mxu0 0
      %7897 = vmatpush1.bf16.msra.mxu0 0
      %7898 = vmatprep.subr.bf16.mxu0 0
      %7899 = vmatpush1.bf16.msra.mxu0 0
      %7900 = vmatprep.mubr.bf16.mxu0 %v7784
      %7901 = vmatmul.mubr.bf16.gmra.mrb[0].mxu0 %v7771
      %v7902 = vpop.f32.mrb[0].mxu0
      %v7903 = vadd.f32 0.0, %v7902
      %v7904 = vpop.f32.mrb[0].mxu0
      %v7905 = vadd.f32 0.0, %v7904
      %v7906 = vpop.f32.mrb[0].mxu0
      %v7907 = vadd.f32 0.0, %v7906
      %v7908 = vpop.f32.mrb[0].mxu0
      %v7909 = vadd.f32 0.0, %v7908
      %7910 = vmatprep.mubr.bf16.mxu0 %v7787
      %7911 = vmatmul.mubr.bf16.gmra.mrb[0].mxu0 %v7773
      %v7912 = vpop.f32.mrb[0].mxu0
      %v7913 = vadd.f32 0.0, %v7912
      %v7914 = vpop.f32.mrb[0].mxu0
      %v7915 = vadd.f32 0.0, %v7914
      %v7916 = vpop.f32.mrb[0].mxu0
      %v7917 = vadd.f32 0.0, %v7916
      %v7918 = vpop.f32.mrb[0].mxu0
      %v7919 = vadd.f32 0.0, %v7918
      %7920 = vmatprep.mubr.bf16.mxu0 %v7790
      %7921 = vmatmul.mubr.bf16.gmra.mrb[0].mxu0 %v7775
      %v7922 = vpop.f32.mrb[0].mxu0
      %v7923 = vadd.f32 0.0, %v7922
      %v7924 = vpop.f32.mrb[0].mxu0
      %v7925 = vadd.f32 0.0, %v7924
      %v7926 = vpop.f32.mrb[0].mxu0
      %v7927 = vadd.f32 0.0, %v7926
      %v7928 = vpop.f32.mrb[0].mxu0
      %v7929 = vadd.f32 0.0, %v7928
      %7930 = vmatprep.mubr.bf16.mxu0 %v7793
      %7931 = vmatmul.mubr.bf16.gmra.mrb[0].mxu0 %v7777
      %v7932 = vpop.f32.mrb[0].mxu0
      %v7933 = vadd.f32 0.0, %v7932
      %v7934 = vpop.f32.mrb[0].mxu0
      %v7935 = vadd.f32 0.0, %v7934
      %v7936 = vpop.f32.mrb[0].mxu0
      %v7937 = vadd.f32 0.0, %v7936
      %v7938 = vpop.f32.mrb[0].mxu0
      %v7939 = vadd.f32 0.0, %v7938
      %7940 = vdwg.mxu0
      %v7941 = vmax.f32 %v7830, %v7850
      %v7942 = vmax.f32 %v7832, %v7852
      %v7943 = vmax.f32 %v7903, %v7923
      %v7944 = vmax.f32 %v7905, %v7925
      %v7945 = vmax.f32 %v7834, %v7854
      %v7946 = vmax.f32 %v7836, %v7856
      %v7947 = vmax.f32 %v7907, %v7927
      %v7948 = vmax.f32 %v7909, %v7929
      %v7949 = vmax.f32 %v7840, %v7860
      %v7950 = vmax.f32 %v7842, %v7862
      %v7951 = vmax.f32 %v7913, %v7933
      %v7952 = vmax.f32 %v7915, %v7935
      %v7953 = vmax.f32 %v7844, %v7864
      %v7954 = vmax.f32 %v7846, %v7866
      %v7955 = vmax.f32 %v7917, %v7937
      %v7956 = vmax.f32 %v7919, %v7939
      %v7957 = vmax.f32 %v7941, %v7949
      %v7958 = vmax.f32 %v7942, %v7950
      %v7959 = vmax.f32 %v7943, %v7951
      %v7960 = vmax.f32 %v7944, %v7952
      %v7961 = vmax.f32 %v7945, %v7953
      %v7962 = vmax.f32 %v7946, %v7954
      %v7963 = vmax.f32 %v7947, %v7955
      %v7964 = vmax.f32 %v7948, %v7956
      %v7965 = vmax.f32 %v7731, %v7957
      %v7966 = vmax.f32 %v7732, %v7958
      %v7967 = vmax.f32 %v7733, %v7959
      %v7968 = vmax.f32 %v7734, %v7960
      %v7969 = vmax.f32 %v7735, %v7961
      %v7970 = vmax.f32 %v7736, %v7962
      %v7971 = vmax.f32 %v7737, %v7963
      %v7972 = vmax.f32 %v7738, %v7964
      %v7973 = vmax.f32 %v7965, 0.0
      %v7974 = vmax.f32 %v7966, 0.0
      %v7975 = vmax.f32 %v7967, 0.0
      %v7976 = vmax.f32 %v7968, 0.0
      %v7977 = vmax.f32 %v7969, 0.0
      %v7978 = vmax.f32 %v7970, 0.0
      %v7979 = vmax.f32 %v7971, 0.0
      %v7980 = vmax.f32 %v7972, 0.0
      %v7981 = vmin.f32 %v7973, 6.0
      %v7982 = vmin.f32 %v7974, 6.0
      %v7983 = vmin.f32 %v7975, 6.0
      %v7984 = vmin.f32 %v7976, 6.0
      %v7985 = vmin.f32 %v7977, 6.0
      %v7986 = vmin.f32 %v7978, 6.0
      %v7987 = vmin.f32 %v7979, 6.0
      %v7988 = vmin.f32 %v7980, 6.0
      %v7989 = vadd.f32 %v7981, %v7982
      %v7990 = vadd.f32 %v7989, %v7983
      %v7991 = vadd.f32 %v7990, %v7984
      %7992 = vadd.xlane.f32.xlu0 %v7991
      %v7993 = vpop.xlane.xlu0 %7992
      %v7994 = vadd.f32 %v7985, %v7986
      %v7995 = vadd.f32 %v7994, %v7987
      %v7996 = vadd.f32 %v7995, %v7988
      %7997 = vadd.xlane.f32.xlu0 %v7996
      %v7998 = vpop.xlane.xlu0 %7997
      %v7999 = vmul.f32 %v7993, %v1407
      %v8000 = vmul.f32 %v7998, %v1407
      %v8001 = vsub.f32 %v7981, %v7999
      %v8002 = vsub.f32 %v7982, %v7999
      %v8003 = vsub.f32 %v7983, %v7999
      %v8004 = vsub.f32 %v7984, %v7999
      %v8005 = vsub.f32 %v7985, %v8000
      %v8006 = vsub.f32 %v7986, %v8000
      %v8007 = vsub.f32 %v7987, %v8000
      %v8008 = vsub.f32 %v7988, %v8000
      %v8009 = vmul.f32 %v8001, %v8001
      %v8010 = vmul.f32 %v8002, %v8002
      %v8011 = vmul.f32 %v8003, %v8003
      %v8012 = vmul.f32 %v8004, %v8004
      %v8013 = vmul.f32 %v8005, %v8005
      %v8014 = vmul.f32 %v8006, %v8006
      %v8015 = vmul.f32 %v8007, %v8007
      %v8016 = vmul.f32 %v8008, %v8008
      %v8017 = vadd.f32 %v8009, %v8010
      %v8018 = vadd.f32 %v8017, %v8011
      %v8019 = vadd.f32 %v8018, %v8012
      %8020 = vadd.xlane.f32.xlu0 %v8019
      %v8021 = vpop.xlane.xlu0 %8020
      %v8022 = vadd.f32 %v8013, %v8014
      %v8023 = vadd.f32 %v8022, %v8015
      %v8024 = vadd.f32 %v8023, %v8016
      %8025 = vadd.xlane.f32.xlu0 %v8024
      %v8026 = vpop.xlane.xlu0 %8025
      %v8027 = vmul.f32 %v8021, %v1407
      %v8028 = vmul.f32 %v8026, %v1407
      %v8029 = vadd.f32 %v8027, 1e-05
      %v8030 = vadd.f32 %v8028, 1e-05
      %v8031 = vrsqrt.pop %v8029
      %v8032 = vrsqrt.pop %v8030
      %v8033 = vmul.f32 %v8001, %v8031
      %v8034 = vmul.f32 %v8002, %v8031
      %v8035 = vmul.f32 %v8003, %v8031
      %v8036 = vmul.f32 %v8004, %v8031
      %v8037 = vmul.f32 %v8005, %v8032
      %v8038 = vmul.f32 %v8006, %v8032
      %v8039 = vmul.f32 %v8007, %v8032
      %v8040 = vmul.f32 %v8008, %v8032
      %v8041 = vmul.f32 %v8033, %v1454
      %v8042 = vmul.f32 %v8034, %v1458
      %v8043 = vmul.f32 %v8035, %v1462
      %v8044 = vmul.f32 %v8036, %v1466
      %v8045 = vmul.f32 %v8037, %v1454
      %v8046 = vmul.f32 %v8038, %v1458
      %v8047 = vmul.f32 %v8039, %v1462
      %v8048 = vmul.f32 %v8040, %v1466
      %v8049 = vadd.f32 %v8041, %v1483
      %v8050 = vadd.f32 %v8042, %v1487
      %v8051 = vadd.f32 %v8043, %v1491
      %v8052 = vadd.f32 %v8044, %v1495
      %v8053 = vadd.f32 %v8045, %v1483
      %v8054 = vadd.f32 %v8046, %v1487
      %v8055 = vadd.f32 %v8047, %v1491
      %v8056 = vadd.f32 %v8048, %v1495
      %v8057 = vmul.f32 %v8049, 0.5
      %v8058 = vmul.f32 %v8050, 0.5
      %v8059 = vmul.f32 %v8051, 0.5
      %v8060 = vmul.f32 %v8052, 0.5
      %v8061 = vmul.f32 %v8053, 0.5
      %v8062 = vmul.f32 %v8054, 0.5
      %v8063 = vmul.f32 %v8055, 0.5
      %v8064 = vmul.f32 %v8056, 0.5
      %v8065 = vmul.f32 %v8049, 0.70710677
      %v8066 = vmul.f32 %v8050, 0.70710677
      %v8067 = vmul.f32 %v8051, 0.70710677
      %v8068 = vmul.f32 %v8052, 0.70710677
      %v8069 = vmul.f32 %v8053, 0.70710677
      %v8070 = vmul.f32 %v8054, 0.70710677
      %v8071 = vmul.f32 %v8055, 0.70710677
      %v8072 = vmul.f32 %v8056, 0.70710677
      %v8073 = verf.f32.pop %v8065
      %v8074 = verf.f32.pop %v8066
      %v8075 = verf.f32.pop %v8067
      %v8076 = verf.f32.pop %v8068
      %v8077 = verf.f32.pop %v8069
      %v8078 = verf.f32.pop %v8070
      %v8079 = verf.f32.pop %v8071
      %v8080 = verf.f32.pop %v8072
      %v8081 = vadd.f32 %v8073, 1.0
      %v8082 = vadd.f32 %v8074, 1.0
      %v8083 = vadd.f32 %v8075, 1.0
      %v8084 = vadd.f32 %v8076, 1.0
      %v8085 = vadd.f32 %v8077, 1.0
      %v8086 = vadd.f32 %v8078, 1.0
      %v8087 = vadd.f32 %v8079, 1.0
      %v8088 = vadd.f32 %v8080, 1.0
      %v8089 = vmul.f32 %v8057, %v8081
      %v8090 = vmul.f32 %v8058, %v8082
      %v8091 = vmul.f32 %v8059, %v8083
      %v8092 = vmul.f32 %v8060, %v8084
      %v8093 = vmul.f32 %v8061, %v8085
      %v8094 = vmul.f32 %v8062, %v8086
      %v8095 = vmul.f32 %v8063, %v8087
      %v8096 = vmul.f32 %v8064, %v8088
      %v8097 = vtanh.pop %v8089
      %v8098 = vtanh.pop %v8090
      %v8099 = vtanh.pop %v8091
      %v8100 = vtanh.pop %v8092
      %v8101 = vtanh.pop %v8093
      %v8102 = vtanh.pop %v8094
      %v8103 = vtanh.pop %v8095
      %v8104 = vtanh.pop %v8096
      %s8105 = scalar_lea.vmem %s204, 320
      %8106 = vst [vmem:[%s8105] sm:$0xff] %v8097
      %8107 = vst [vmem:[%s8105 + $0x8] sm:$0xff] %v8098
      %8108 = vst [vmem:[%s8105 + $0x10] sm:$0xff] %v8099
      %8109 = vst [vmem:[%s8105 + $0x18] sm:$0xff] %v8100
      %8110 = vst [vmem:[%s8105 + $0x20] sm:$0xff] %v8101
      %8111 = vst [vmem:[%s8105 + $0x28] sm:$0xff] %v8102
      %8112 = vst [vmem:[%s8105 + $0x30] sm:$0xff] %v8103
      %8113 = vst [vmem:[%s8105 + $0x38] sm:$0xff] %v8104
      %s8114 = scalar_lea.vmem %s197, 1824
      %v8115 = vld [vmem:[%s8114] sm:$0xff]
      %v8116 = vld [vmem:[%s8114 + $0x8] sm:$0xff]
      %v8117 = vld [vmem:[%s8114 + $0x10] sm:$0xff]
      %v8118 = vld [vmem:[%s8114 + $0x18] sm:$0xff]
      %v8119 = vld [vmem:[%s8114 + $0x20] sm:$0xff]
      %v8120 = vld [vmem:[%s8114 + $0x28] sm:$0xff]
      %v8121 = vld [vmem:[%s8114 + $0x30] sm:$0xff]
      %v8122 = vld [vmem:[%s8114 + $0x38] sm:$0xff]
      %v8123 = vld [vmem:[%s8114 + $0x40] sm:$0xff]
      %v8124 = vld [vmem:[%s8114 + $0x48] sm:$0xff]
      %v8125 = vld [vmem:[%s8114 + $0x50] sm:$0xff]
      %v8126 = vld [vmem:[%s8114 + $0x58] sm:$0xff]
      %v8127 = vld [vmem:[%s8114 + $0x60] sm:$0xff]
      %v8128 = vld [vmem:[%s8114 + $0x68] sm:$0xff]
      %v8129 = vld [vmem:[%s8114 + $0x70] sm:$0xff]
      %v8130 = vld [vmem:[%s8114 + $0x78] sm:$0xff]
      %v8131 = vld [vmem:[%s8114 + $0x80] sm:$0xff]
      %v8132 = vld [vmem:[%s8114 + $0x88] sm:$0xff]
      %v8133 = vld [vmem:[%s8114 + $0x90] sm:$0xff]
      %v8134 = vld [vmem:[%s8114 + $0x98] sm:$0xff]
      %v8135 = vld [vmem:[%s8114 + $0xa0] sm:$0xff]
      %v8136 = vld [vmem:[%s8114 + $0xa8] sm:$0xff]
      %v8137 = vld [vmem:[%s8114 + $0xb0] sm:$0xff]
      %v8138 = vld [vmem:[%s8114 + $0xb8] sm:$0xff]
      %v8139 = vld [vmem:[%s8114 + $0xc0] sm:$0xff]
      %v8140 = vld [vmem:[%s8114 + $0xc8] sm:$0xff]
      %v8141 = vld [vmem:[%s8114 + $0xd0] sm:$0xff]
      %v8142 = vld [vmem:[%s8114 + $0xd8] sm:$0xff]
      %v8143 = vld [vmem:[%s8114 + $0xe0] sm:$0xff]
      %v8144 = vld [vmem:[%s8114 + $0xe8] sm:$0xff]
      %v8145 = vld [vmem:[%s8114 + $0xf0] sm:$0xff]
      %v8146 = vld [vmem:[%s8114 + $0xf8] sm:$0xff]
      %v8147 = vld [vmem:[%s8114 + $0x100] sm:$0xff]
      %v8148 = vld [vmem:[%s8114 + $0x108] sm:$0xff]
      %v8149 = vld [vmem:[%s8114 + $0x110] sm:$0xff]
      %v8150 = vld [vmem:[%s8114 + $0x118] sm:$0xff]
      %v8151 = vld [vmem:[%s8114 + $0x120] sm:$0x11]
      %v8152 = vld [vmem:[%s8114 + $0x128] sm:$0x11]
      %v8153 = vld [vmem:[%s1] sm:$0xff]
      %v8154 = vld [vmem:[%s1 + $0x8] sm:$0xff]
      %v8155 = vld [vmem:[%s1 + $0x10] sm:$0xff]
      %v8156 = vld [vmem:[%s1 + $0x18] sm:$0xff]
      %v8157 = vld [vmem:[%s1 + $0x20] sm:$0xff]
      %v8158 = vld [vmem:[%s1 + $0x28] sm:$0xff]
      %v8159 = vld [vmem:[%s1 + $0x30] sm:$0xff]
      %v8160 = vld [vmem:[%s1 + $0x38] sm:$0xff]
      %v8169 = vunpack.c.l.b16 %v8153
      %v8170 = vunpack.c.h.b16 %v8153
      %v8171 = vunpack.c.l.b16 %v8154
      %v8172 = vunpack.c.h.b16 %v8154
      %v8173 = vunpack.c.l.b16 %v8155
      %v8174 = vunpack.c.h.b16 %v8155
      %v8175 = vunpack.c.l.b16 %v8156
      %v8176 = vunpack.c.h.b16 %v8156
      %v8177 = vunpack.c.l.b16 %v8157
      %v8178 = vunpack.c.h.b16 %v8157
      %v8179 = vunpack.c.l.b16 %v8158
      %v8180 = vunpack.c.h.b16 %v8158
      %v8181 = vunpack.c.l.b16 %v8159
      %v8182 = vunpack.c.h.b16 %v8159
      %v8183 = vunpack.c.l.b16 %v8160
      %v8184 = vunpack.c.h.b16 %v8160
      %v8185 = vpack.c.b16 %v8171, %v8169
      %v8186 = vpack.c.b16 %v8172, %v8170
      %v8187 = vpack.c.b16 %v8175, %v8173
      %v8188 = vpack.c.b16 %v8176, %v8174
      %v8189 = vpack.c.b16 %v8179, %v8177
      %v8190 = vpack.c.b16 %v8180, %v8178
      %v8191 = vpack.c.b16 %v8183, %v8181
      %v8192 = vpack.c.b16 %v8184, %v8182
      %v8235 = vunpack.c.l.b16 %v8115
      %v8236 = vunpack.c.h.b16 %v8115
      %v8237 = vunpack.c.l.b16 %v8116
      %v8238 = vunpack.c.h.b16 %v8116
      %v8239 = vunpack.c.l.b16 %v8117
      %v8240 = vunpack.c.h.b16 %v8117
      %v8241 = vunpack.c.l.b16 %v8118
      %v8242 = vunpack.c.h.b16 %v8118
      %v8243 = vunpack.c.l.b16 %v8119
      %v8244 = vunpack.c.h.b16 %v8119
      %v8245 = vunpack.c.l.b16 %v8120
      %v8246 = vunpack.c.h.b16 %v8120
      %v8247 = vunpack.c.l.b16 %v8121
      %v8248 = vunpack.c.h.b16 %v8121
      %v8249 = vunpack.c.l.b16 %v8122
      %v8250 = vunpack.c.h.b16 %v8122
      %v8251 = vunpack.c.l.b16 %v8123
      %v8252 = vunpack.c.h.b16 %v8123
      %v8253 = vunpack.c.l.b16 %v8124
      %v8254 = vunpack.c.h.b16 %v8124
      %v8255 = vunpack.c.l.b16 %v8125
      %v8256 = vunpack.c.h.b16 %v8125
      %v8257 = vunpack.c.l.b16 %v8126
      %v8258 = vunpack.c.h.b16 %v8126
      %v8259 = vunpack.c.l.b16 %v8127
      %v8260 = vunpack.c.h.b16 %v8127
      %v8261 = vunpack.c.l.b16 %v8128
      %v8262 = vunpack.c.h.b16 %v8128
      %v8263 = vunpack.c.l.b16 %v8129
      %v8264 = vunpack.c.h.b16 %v8129
      %v8265 = vunpack.c.l.b16 %v8130
      %v8266 = vunpack.c.h.b16 %v8130
      %v8267 = vunpack.c.l.b16 %v8131
      %v8268 = vunpack.c.h.b16 %v8131
      %v8269 = vunpack.c.l.b16 %v8132
      %v8270 = vunpack.c.h.b16 %v8132
      %v8271 = vunpack.c.l.b16 %v8133
      %v8272 = vunpack.c.h.b16 %v8133
      %v8273 = vunpack.c.l.b16 %v8134
      %v8274 = vunpack.c.h.b16 %v8134
      %v8275 = vunpack.c.l.b16 %v8135
      %v8276 = vunpack.c.h.b16 %v8135
      %v8277 = vunpack.c.l.b16 %v8136
      %v8278 = vunpack.c.h.b16 %v8136
      %v8279 = vunpack.c.l.b16 %v8137
      %v8280 = vunpack.c.h.b16 %v8137
      %v8281 = vunpack.c.l.b16 %v8138
      %v8282 = vunpack.c.h.b16 %v8138
      %v8283 = vunpack.c.l.b16 %v8139
      %v8284 = vunpack.c.h.b16 %v8139
      %v8285 = vunpack.c.l.b16 %v8140
      %v8286 = vunpack.c.h.b16 %v8140
      %v8287 = vunpack.c.l.b16 %v8141
      %v8288 = vunpack.c.h.b16 %v8141
      %v8289 = vunpack.c.l.b16 %v8142
      %v8290 = vunpack.c.h.b16 %v8142
      %v8291 = vunpack.c.l.b16 %v8143
      %v8292 = vunpack.c.h.b16 %v8143
      %v8293 = vunpack.c.l.b16 %v8144
      %v8294 = vunpack.c.h.b16 %v8144
      %v8295 = vunpack.c.l.b16 %v8145
      %v8296 = vunpack.c.h.b16 %v8145
      %v8297 = vunpack.c.l.b16 %v8146
      %v8298 = vunpack.c.h.b16 %v8146
      %v8299 = vunpack.c.l.b16 %v8147
      %v8300 = vunpack.c.h.b16 %v8147
      %v8301 = vunpack.c.l.b16 %v8148
      %v8302 = vunpack.c.h.b16 %v8148
      %v8303 = vunpack.c.l.b16 %v8149
      %v8304 = vunpack.c.h.b16 %v8149
      %v8305 = vunpack.c.l.b16 %v8150
      %v8306 = vunpack.c.h.b16 %v8150
      %v8307 = vunpack.c.l.b16 %v8151
      %v8308 = vunpack.c.h.b16 %v8151
      %v8309 = vunpack.c.l.b16 %v8152
      %v8310 = vunpack.c.h.b16 %v8152
      %v8311 = vpack.c.b16 %v8239, %v8235
      %v8312 = vpack.c.b16 %v8240, %v8236
      %v8313 = vpack.c.b16 %v8241, %v8237
      %v8314 = vpack.c.b16 %v8242, %v8238
      %v8315 = vpack.c.b16 %v8247, %v8243
      %v8316 = vpack.c.b16 %v8248, %v8244
      %v8317 = vpack.c.b16 %v8249, %v8245
      %v8318 = vpack.c.b16 %v8250, %v8246
      %v8319 = vpack.c.b16 %v8255, %v8251
      %v8320 = vpack.c.b16 %v8256, %v8252
      %v8321 = vpack.c.b16 %v8257, %v8253
      %v8322 = vpack.c.b16 %v8258, %v8254
      %v8323 = vpack.c.b16 %v8263, %v8259
      %v8324 = vpack.c.b16 %v8264, %v8260
      %v8325 = vpack.c.b16 %v8265, %v8261
      %v8326 = vpack.c.b16 %v8266, %v8262
      %v8327 = vpack.c.b16 %v8271, %v8267
      %v8328 = vpack.c.b16 %v8272, %v8268
      %v8329 = vpack.c.b16 %v8273, %v8269
      %v8330 = vpack.c.b16 %v8274, %v8270
      %v8331 = vpack.c.b16 %v8279, %v8275
      %v8332 = vpack.c.b16 %v8280, %v8276
      %v8333 = vpack.c.b16 %v8281, %v8277
      %v8334 = vpack.c.b16 %v8282, %v8278
      %v8335 = vpack.c.b16 %v8287, %v8283
      %v8336 = vpack.c.b16 %v8288, %v8284
      %v8337 = vpack.c.b16 %v8289, %v8285
      %v8338 = vpack.c.b16 %v8290, %v8286
      %v8339 = vpack.c.b16 %v8295, %v8291
      %v8340 = vpack.c.b16 %v8296, %v8292
      %v8341 = vpack.c.b16 %v8297, %v8293
      %v8342 = vpack.c.b16 %v8298, %v8294
      %v8343 = vpack.c.b16 %v8303, %v8299
      %v8344 = vpack.c.b16 %v8304, %v8300
      %v8345 = vpack.c.b16 %v8305, %v8301
      %v8346 = vpack.c.b16 %v8306, %v8302
      %v8347 = vpack.c.b16 %v8307, %v8307
      %v8348 = vpack.c.b16 %v8308, %v8308
      %v8349 = vpack.c.b16 %v8309, %v8309
      %v8350 = vpack.c.b16 %v8310, %v8310
      %v8388 = vsel %vm481, %v8186, 0
      %v8391 = vsel %vm481, %v8188, 0
      %v8394 = vsel %vm481, %v8190, 0
      %v8397 = vsel %vm481, %v8192, 0
      %v8400 = vand.u32 %v8347, %v496
      %v8403 = vand.u32 %v8348, %v496
      %v8406 = vand.u32 %v8349, %v496
      %v8409 = vand.u32 %v8350, %v496
      %8411 = vmatprep.subr.bf16.mxu0 %v8312
      %8412 = vmatpush1.bf16.msra.mxu0 %v8311
      %8413 = vmatprep.subr.bf16.mxu0 %v8316
      %8414 = vmatpush1.bf16.msra.mxu0 %v8315
      %8415 = vmatprep.subr.bf16.mxu0 %v8320
      %8416 = vmatpush1.bf16.msra.mxu0 %v8319
      %8417 = vmatprep.subr.bf16.mxu0 %v8324
      %8418 = vmatpush1.bf16.msra.mxu0 %v8323
      %8419 = vmatprep.subr.bf16.mxu0 %v8328
      %8420 = vmatpush1.bf16.msra.mxu0 %v8327
      %8421 = vmatprep.subr.bf16.mxu0 %v8332
      %8422 = vmatpush1.bf16.msra.mxu0 %v8331
      %8423 = vmatprep.subr.bf16.mxu0 %v8336
      %8424 = vmatpush1.bf16.msra.mxu0 %v8335
      %8425 = vmatprep.subr.bf16.mxu0 %v8340
      %8426 = vmatpush1.bf16.msra.mxu0 %v8339
      %8427 = vmatprep.subr.bf16.mxu0 %v8344
      %8428 = vmatpush1.bf16.msra.mxu0 %v8343
      %8429 = vmatprep.subr.bf16.mxu0 %v8403
      %8430 = vmatpush1.bf16.msra.mxu0 %v8400
      %8431 = vmatprep.subr.bf16.mxu0 0
      %8432 = vmatpush1.bf16.msra.mxu0 0
      %8433 = vmatprep.subr.bf16.mxu0 0
      %8434 = vmatpush1.bf16.msra.mxu0 0
      %8435 = vmatprep.subr.bf16.mxu0 0
      %8436 = vmatpush1.bf16.msra.mxu0 0
      %8437 = vmatprep.subr.bf16.mxu0 0
      %8438 = vmatpush1.bf16.msra.mxu0 0
      %8439 = vmatprep.subr.bf16.mxu0 0
      %8440 = vmatpush1.bf16.msra.mxu0 0
      %8441 = vmatprep.subr.bf16.mxu0 0
      %8442 = vmatpush1.bf16.msra.mxu0 0
      %8443 = vmatprep.mubr.bf16.mxu0 %v8388
      %8444 = vmatmul.mubr.bf16.gmra.mrb[0].mxu0 %v8185
      %v8445 = vpop.f32.mrb[0].mxu0
      %v8446 = vadd.f32 0.0, %v8445
      %v8447 = vpop.f32.mrb[0].mxu0
      %v8448 = vadd.f32 0.0, %v8447
      %v8449 = vpop.f32.mrb[0].mxu0
      %v8450 = vadd.f32 0.0, %v8449
      %v8451 = vpop.f32.mrb[0].mxu0
      %v8452 = vadd.f32 0.0, %v8451
      %8453 = vmatprep.mubr.bf16.mxu0 %v8391
      %8454 = vmatmul.mubr.bf16.gmra.mrb[0].mxu0 %v8187
      %v8455 = vpop.f32.mrb[0].mxu0
      %v8456 = vadd.f32 0.0, %v8455
      %v8457 = vpop.f32.mrb[0].mxu0
      %v8458 = vadd.f32 0.0, %v8457
      %v8459 = vpop.f32.mrb[0].mxu0
      %v8460 = vadd.f32 0.0, %v8459
      %v8461 = vpop.f32.mrb[0].mxu0
      %v8462 = vadd.f32 0.0, %v8461
      %8463 = vmatprep.mubr.bf16.mxu0 %v8394
      %8464 = vmatmul.mubr.bf16.gmra.mrb[0].mxu0 %v8189
      %v8465 = vpop.f32.mrb[0].mxu0
      %v8466 = vadd.f32 0.0, %v8465
      %v8467 = vpop.f32.mrb[0].mxu0
      %v8468 = vadd.f32 0.0, %v8467
      %v8469 = vpop.f32.mrb[0].mxu0
      %v8470 = vadd.f32 0.0, %v8469
      %v8471 = vpop.f32.mrb[0].mxu0
      %v8472 = vadd.f32 0.0, %v8471
      %8473 = vmatprep.mubr.bf16.mxu0 %v8397
      %8474 = vmatmul.mubr.bf16.gmra.mrb[0].mxu0 %v8191
      %v8475 = vpop.f32.mrb[0].mxu0
      %v8476 = vadd.f32 0.0, %v8475
      %v8477 = vpop.f32.mrb[0].mxu0
      %v8478 = vadd.f32 0.0, %v8477
      %v8479 = vpop.f32.mrb[0].mxu0
      %v8480 = vadd.f32 0.0, %v8479
      %v8481 = vpop.f32.mrb[0].mxu0
      %v8482 = vadd.f32 0.0, %v8481
      %8483 = vdwg.mxu0
      %8484 = vmatprep.subr.bf16.mxu0 %v8314
      %8485 = vmatpush1.bf16.msra.mxu0 %v8313
      %8486 = vmatprep.subr.bf16.mxu0 %v8318
      %8487 = vmatpush1.bf16.msra.mxu0 %v8317
      %8488 = vmatprep.subr.bf16.mxu0 %v8322
      %8489 = vmatpush1.bf16.msra.mxu0 %v8321
      %8490 = vmatprep.subr.bf16.mxu0 %v8326
      %8491 = vmatpush1.bf16.msra.mxu0 %v8325
      %8492 = vmatprep.subr.bf16.mxu0 %v8330
      %8493 = vmatpush1.bf16.msra.mxu0 %v8329
      %8494 = vmatprep.subr.bf16.mxu0 %v8334
      %8495 = vmatpush1.bf16.msra.mxu0 %v8333
      %8496 = vmatprep.subr.bf16.mxu0 %v8338
      %8497 = vmatpush1.bf16.msra.mxu0 %v8337
      %8498 = vmatprep.subr.bf16.mxu0 %v8342
      %8499 = vmatpush1.bf16.msra.mxu0 %v8341
      %8500 = vmatprep.subr.bf16.mxu0 %v8346
      %8501 = vmatpush1.bf16.msra.mxu0 %v8345
      %8502 = vmatprep.subr.bf16.mxu0 %v8409
      %8503 = vmatpush1.bf16.msra.mxu0 %v8406
      %8504 = vmatprep.subr.bf16.mxu0 0
      %8505 = vmatpush1.bf16.msra.mxu0 0
      %8506 = vmatprep.subr.bf16.mxu0 0
      %8507 = vmatpush1.bf16.msra.mxu0 0
      %8508 = vmatprep.subr.bf16.mxu0 0
      %8509 = vmatpush1.bf16.msra.mxu0 0
      %8510 = vmatprep.subr.bf16.mxu0 0
      %8511 = vmatpush1.bf16.msra.mxu0 0
      %8512 = vmatprep.subr.bf16.mxu0 0
      %8513 = vmatpush1.bf16.msra.mxu0 0
      %8514 = vmatprep.subr.bf16.mxu0 0
      %8515 = vmatpush1.bf16.msra.mxu0 0
      %8516 = vmatprep.mubr.bf16.mxu0 %v8388
      %8517 = vmatmul.mubr.bf16.gmra.mrb[0].mxu0 %v8185
      %v8518 = vpop.f32.mrb[0].mxu0
      %v8519 = vadd.f32 0.0, %v8518
      %v8520 = vpop.f32.mrb[0].mxu0
      %v8521 = vadd.f32 0.0, %v8520
      %v8522 = vpop.f32.mrb[0].mxu0
      %v8523 = vadd.f32 0.0, %v8522
      %v8524 = vpop.f32.mrb[0].mxu0
      %v8525 = vadd.f32 0.0, %v8524
      %8526 = vmatprep.mubr.bf16.mxu0 %v8391
      %8527 = vmatmul.mubr.bf16.gmra.mrb[0].mxu0 %v8187
      %v8528 = vpop.f32.mrb[0].mxu0
      %v8529 = vadd.f32 0.0, %v8528
      %v8530 = vpop.f32.mrb[0].mxu0
      %v8531 = vadd.f32 0.0, %v8530
      %v8532 = vpop.f32.mrb[0].mxu0
      %v8533 = vadd.f32 0.0, %v8532
      %v8534 = vpop.f32.mrb[0].mxu0
      %v8535 = vadd.f32 0.0, %v8534
      %8536 = vmatprep.mubr.bf16.mxu0 %v8394
      %8537 = vmatmul.mubr.bf16.gmra.mrb[0].mxu0 %v8189
      %v8538 = vpop.f32.mrb[0].mxu0
      %v8539 = vadd.f32 0.0, %v8538
      %v8540 = vpop.f32.mrb[0].mxu0
      %v8541 = vadd.f32 0.0, %v8540
      %v8542 = vpop.f32.mrb[0].mxu0
      %v8543 = vadd.f32 0.0, %v8542
      %v8544 = vpop.f32.mrb[0].mxu0
      %v8545 = vadd.f32 0.0, %v8544
      %8546 = vmatprep.mubr.bf16.mxu0 %v8397
      %8547 = vmatmul.mubr.bf16.gmra.mrb[0].mxu0 %v8191
      %v8548 = vpop.f32.mrb[0].mxu0
      %v8549 = vadd.f32 0.0, %v8548
      %v8550 = vpop.f32.mrb[0].mxu0
      %v8551 = vadd.f32 0.0, %v8550
      %v8552 = vpop.f32.mrb[0].mxu0
      %v8553 = vadd.f32 0.0, %v8552
      %v8554 = vpop.f32.mrb[0].mxu0
      %v8555 = vadd.f32 0.0, %v8554
      %8556 = vdwg.mxu0
      %v8557 = vmax.f32 %v8446, %v8466
      %v8558 = vmax.f32 %v8448, %v8468
      %v8559 = vmax.f32 %v8519, %v8539
      %v8560 = vmax.f32 %v8521, %v8541
      %v8561 = vmax.f32 %v8450, %v8470
      %v8562 = vmax.f32 %v8452, %v8472
      %v8563 = vmax.f32 %v8523, %v8543
      %v8564 = vmax.f32 %v8525, %v8545
      %v8565 = vmax.f32 %v8456, %v8476
      %v8566 = vmax.f32 %v8458, %v8478
      %v8567 = vmax.f32 %v8529, %v8549
      %v8568 = vmax.f32 %v8531, %v8551
      %v8569 = vmax.f32 %v8460, %v8480
      %v8570 = vmax.f32 %v8462, %v8482
      %v8571 = vmax.f32 %v8533, %v8553
      %v8572 = vmax.f32 %v8535, %v8555
      %v8573 = vmax.f32 %v8557, %v8565
      %v8574 = vmax.f32 %v8558, %v8566
      %v8575 = vmax.f32 %v8559, %v8567
      %v8576 = vmax.f32 %v8560, %v8568
      %v8577 = vmax.f32 %v8561, %v8569
      %v8578 = vmax.f32 %v8562, %v8570
      %v8579 = vmax.f32 %v8563, %v8571
      %v8580 = vmax.f32 %v8564, %v8572
      %v8581 = vld [vmem:[%s1 + $0x40] sm:$0xff]
      %v8582 = vld [vmem:[%s1 + $0x48] sm:$0xff]
      %v8583 = vld [vmem:[%s1 + $0x50] sm:$0xff]
      %v8584 = vld [vmem:[%s1 + $0x58] sm:$0xff]
      %v8585 = vld [vmem:[%s1 + $0x60] sm:$0xff]
      %v8586 = vld [vmem:[%s1 + $0x68] sm:$0xff]
      %v8587 = vld [vmem:[%s1 + $0x70] sm:$0xff]
      %v8588 = vld [vmem:[%s1 + $0x78] sm:$0xff]
      %v8597 = vunpack.c.l.b16 %v8581
      %v8598 = vunpack.c.h.b16 %v8581
      %v8599 = vunpack.c.l.b16 %v8582
      %v8600 = vunpack.c.h.b16 %v8582
      %v8601 = vunpack.c.l.b16 %v8583
      %v8602 = vunpack.c.h.b16 %v8583
      %v8603 = vunpack.c.l.b16 %v8584
      %v8604 = vunpack.c.h.b16 %v8584
      %v8605 = vunpack.c.l.b16 %v8585
      %v8606 = vunpack.c.h.b16 %v8585
      %v8607 = vunpack.c.l.b16 %v8586
      %v8608 = vunpack.c.h.b16 %v8586
      %v8609 = vunpack.c.l.b16 %v8587
      %v8610 = vunpack.c.h.b16 %v8587
      %v8611 = vunpack.c.l.b16 %v8588
      %v8612 = vunpack.c.h.b16 %v8588
      %v8613 = vpack.c.b16 %v8599, %v8597
      %v8614 = vpack.c.b16 %v8600, %v8598
      %v8615 = vpack.c.b16 %v8603, %v8601
      %v8616 = vpack.c.b16 %v8604, %v8602
      %v8617 = vpack.c.b16 %v8607, %v8605
      %v8618 = vpack.c.b16 %v8608, %v8606
      %v8619 = vpack.c.b16 %v8611, %v8609
      %v8620 = vpack.c.b16 %v8612, %v8610
      %v8626 = vsel %vm481, %v8614, 0
      %v8629 = vsel %vm481, %v8616, 0
      %v8632 = vsel %vm481, %v8618, 0
      %v8635 = vsel %vm481, %v8620, 0
      %8637 = vmatprep.subr.bf16.mxu0 %v8312
      %8638 = vmatpush1.bf16.msra.mxu0 %v8311
      %8639 = vmatprep.subr.bf16.mxu0 %v8316
      %8640 = vmatpush1.bf16.msra.mxu0 %v8315
      %8641 = vmatprep.subr.bf16.mxu0 %v8320
      %8642 = vmatpush1.bf16.msra.mxu0 %v8319
      %8643 = vmatprep.subr.bf16.mxu0 %v8324
      %8644 = vmatpush1.bf16.msra.mxu0 %v8323
      %8645 = vmatprep.subr.bf16.mxu0 %v8328
      %8646 = vmatpush1.bf16.msra.mxu0 %v8327
      %8647 = vmatprep.subr.bf16.mxu0 %v8332
      %8648 = vmatpush1.bf16.msra.mxu0 %v8331
      %8649 = vmatprep.subr.bf16.mxu0 %v8336
      %8650 = vmatpush1.bf16.msra.mxu0 %v8335
      %8651 = vmatprep.subr.bf16.mxu0 %v8340
      %8652 = vmatpush1.bf16.msra.mxu0 %v8339
      %8653 = vmatprep.subr.bf16.mxu0 %v8344
      %8654 = vmatpush1.bf16.msra.mxu0 %v8343
      %8655 = vmatprep.subr.bf16.mxu0 %v8403
      %8656 = vmatpush1.bf16.msra.mxu0 %v8400
      %8657 = vmatprep.subr.bf16.mxu0 0
      %8658 = vmatpush1.bf16.msra.mxu0 0
      %8659 = vmatprep.subr.bf16.mxu0 0
      %8660 = vmatpush1.bf16.msra.mxu0 0
      %8661 = vmatprep.subr.bf16.mxu0 0
      %8662 = vmatpush1.bf16.msra.mxu0 0
      %8663 = vmatprep.subr.bf16.mxu0 0
      %8664 = vmatpush1.bf16.msra.mxu0 0
      %8665 = vmatprep.subr.bf16.mxu0 0
      %8666 = vmatpush1.bf16.msra.mxu0 0
      %8667 = vmatprep.subr.bf16.mxu0 0
      %8668 = vmatpush1.bf16.msra.mxu0 0
      %8669 = vmatprep.mubr.bf16.mxu0 %v8626
      %8670 = vmatmul.mubr.bf16.gmra.mrb[0].mxu0 %v8613
      %v8671 = vpop.f32.mrb[0].mxu0
      %v8672 = vadd.f32 0.0, %v8671
      %v8673 = vpop.f32.mrb[0].mxu0
      %v8674 = vadd.f32 0.0, %v8673
      %v8675 = vpop.f32.mrb[0].mxu0
      %v8676 = vadd.f32 0.0, %v8675
      %v8677 = vpop.f32.mrb[0].mxu0
      %v8678 = vadd.f32 0.0, %v8677
      %8679 = vmatprep.mubr.bf16.mxu0 %v8629
      %8680 = vmatmul.mubr.bf16.gmra.mrb[0].mxu0 %v8615
      %v8681 = vpop.f32.mrb[0].mxu0
      %v8682 = vadd.f32 0.0, %v8681
      %v8683 = vpop.f32.mrb[0].mxu0
      %v8684 = vadd.f32 0.0, %v8683
      %v8685 = vpop.f32.mrb[0].mxu0
      %v8686 = vadd.f32 0.0, %v8685
      %v8687 = vpop.f32.mrb[0].mxu0
      %v8688 = vadd.f32 0.0, %v8687
      %8689 = vmatprep.mubr.bf16.mxu0 %v8632
      %8690 = vmatmul.mubr.bf16.gmra.mrb[0].mxu0 %v8617
      %v8691 = vpop.f32.mrb[0].mxu0
      %v8692 = vadd.f32 0.0, %v8691
      %v8693 = vpop.f32.mrb[0].mxu0
      %v8694 = vadd.f32 0.0, %v8693
      %v8695 = vpop.f32.mrb[0].mxu0
      %v8696 = vadd.f32 0.0, %v8695
      %v8697 = vpop.f32.mrb[0].mxu0
      %v8698 = vadd.f32 0.0, %v8697
      %8699 = vmatprep.mubr.bf16.mxu0 %v8635
      %8700 = vmatmul.mubr.bf16.gmra.mrb[0].mxu0 %v8619
      %v8701 = vpop.f32.mrb[0].mxu0
      %v8702 = vadd.f32 0.0, %v8701
      %v8703 = vpop.f32.mrb[0].mxu0
      %v8704 = vadd.f32 0.0, %v8703
      %v8705 = vpop.f32.mrb[0].mxu0
      %v8706 = vadd.f32 0.0, %v8705
      %v8707 = vpop.f32.mrb[0].mxu0
      %v8708 = vadd.f32 0.0, %v8707
      %8709 = vdwg.mxu0
      %8710 = vmatprep.subr.bf16.mxu0 %v8314
      %8711 = vmatpush1.bf16.msra.mxu0 %v8313
      %8712 = vmatprep.subr.bf16.mxu0 %v8318
      %8713 = vmatpush1.bf16.msra.mxu0 %v8317
      %8714 = vmatprep.subr.bf16.mxu0 %v8322
      %8715 = vmatpush1.bf16.msra.mxu0 %v8321
      %8716 = vmatprep.subr.bf16.mxu0 %v8326
      %8717 = vmatpush1.bf16.msra.mxu0 %v8325
      %8718 = vmatprep.subr.bf16.mxu0 %v8330
      %8719 = vmatpush1.bf16.msra.mxu0 %v8329
      %8720 = vmatprep.subr.bf16.mxu0 %v8334
      %8721 = vmatpush1.bf16.msra.mxu0 %v8333
      %8722 = vmatprep.subr.bf16.mxu0 %v8338
      %8723 = vmatpush1.bf16.msra.mxu0 %v8337
      %8724 = vmatprep.subr.bf16.mxu0 %v8342
      %8725 = vmatpush1.bf16.msra.mxu0 %v8341
      %8726 = vmatprep.subr.bf16.mxu0 %v8346
      %8727 = vmatpush1.bf16.msra.mxu0 %v8345
      %8728 = vmatprep.subr.bf16.mxu0 %v8409
      %8729 = vmatpush1.bf16.msra.mxu0 %v8406
      %8730 = vmatprep.subr.bf16.mxu0 0
      %8731 = vmatpush1.bf16.msra.mxu0 0
      %8732 = vmatprep.subr.bf16.mxu0 0
      %8733 = vmatpush1.bf16.msra.mxu0 0
      %8734 = vmatprep.subr.bf16.mxu0 0
      %8735 = vmatpush1.bf16.msra.mxu0 0
      %8736 = vmatprep.subr.bf16.mxu0 0
      %8737 = vmatpush1.bf16.msra.mxu0 0
      %8738 = vmatprep.subr.bf16.mxu0 0
      %8739 = vmatpush1.bf16.msra.mxu0 0
      %8740 = vmatprep.subr.bf16.mxu0 0
      %8741 = vmatpush1.bf16.msra.mxu0 0
      %8742 = vmatprep.mubr.bf16.mxu0 %v8626
      %8743 = vmatmul.mubr.bf16.gmra.mrb[0].mxu0 %v8613
      %v8744 = vpop.f32.mrb[0].mxu0
      %v8745 = vadd.f32 0.0, %v8744
      %v8746 = vpop.f32.mrb[0].mxu0
      %v8747 = vadd.f32 0.0, %v8746
      %v8748 = vpop.f32.mrb[0].mxu0
      %v8749 = vadd.f32 0.0, %v8748
      %v8750 = vpop.f32.mrb[0].mxu0
      %v8751 = vadd.f32 0.0, %v8750
      %8752 = vmatprep.mubr.bf16.mxu0 %v8629
      %8753 = vmatmul.mubr.bf16.gmra.mrb[0].mxu0 %v8615
      %v8754 = vpop.f32.mrb[0].mxu0
      %v8755 = vadd.f32 0.0, %v8754
      %v8756 = vpop.f32.mrb[0].mxu0
      %v8757 = vadd.f32 0.0, %v8756
      %v8758 = vpop.f32.mrb[0].mxu0
      %v8759 = vadd.f32 0.0, %v8758
      %v8760 = vpop.f32.mrb[0].mxu0
      %v8761 = vadd.f32 0.0, %v8760
      %8762 = vmatprep.mubr.bf16.mxu0 %v8632
      %8763 = vmatmul.mubr.bf16.gmra.mrb[0].mxu0 %v8617
      %v8764 = vpop.f32.mrb[0].mxu0
      %v8765 = vadd.f32 0.0, %v8764
      %v8766 = vpop.f32.mrb[0].mxu0
      %v8767 = vadd.f32 0.0, %v8766
      %v8768 = vpop.f32.mrb[0].mxu0
      %v8769 = vadd.f32 0.0, %v8768
      %v8770 = vpop.f32.mrb[0].mxu0
      %v8771 = vadd.f32 0.0, %v8770
      %8772 = vmatprep.mubr.bf16.mxu0 %v8635
      %8773 = vmatmul.mubr.bf16.gmra.mrb[0].mxu0 %v8619
      %v8774 = vpop.f32.mrb[0].mxu0
      %v8775 = vadd.f32 0.0, %v8774
      %v8776 = vpop.f32.mrb[0].mxu0
      %v8777 = vadd.f32 0.0, %v8776
      %v8778 = vpop.f32.mrb[0].mxu0
      %v8779 = vadd.f32 0.0, %v8778
      %v8780 = vpop.f32.mrb[0].mxu0
      %v8781 = vadd.f32 0.0, %v8780
      %8782 = vdwg.mxu0
      %v8783 = vmax.f32 %v8672, %v8692
      %v8784 = vmax.f32 %v8674, %v8694
      %v8785 = vmax.f32 %v8745, %v8765
      %v8786 = vmax.f32 %v8747, %v8767
      %v8787 = vmax.f32 %v8676, %v8696
      %v8788 = vmax.f32 %v8678, %v8698
      %v8789 = vmax.f32 %v8749, %v8769
      %v8790 = vmax.f32 %v8751, %v8771
      %v8791 = vmax.f32 %v8682, %v8702
      %v8792 = vmax.f32 %v8684, %v8704
      %v8793 = vmax.f32 %v8755, %v8775
      %v8794 = vmax.f32 %v8757, %v8777
      %v8795 = vmax.f32 %v8686, %v8706
      %v8796 = vmax.f32 %v8688, %v8708
      %v8797 = vmax.f32 %v8759, %v8779
      %v8798 = vmax.f32 %v8761, %v8781
      %v8799 = vmax.f32 %v8783, %v8791
      %v8800 = vmax.f32 %v8784, %v8792
      %v8801 = vmax.f32 %v8785, %v8793
      %v8802 = vmax.f32 %v8786, %v8794
      %v8803 = vmax.f32 %v8787, %v8795
      %v8804 = vmax.f32 %v8788, %v8796
      %v8805 = vmax.f32 %v8789, %v8797
      %v8806 = vmax.f32 %v8790, %v8798
      %v8807 = vmax.f32 %v8573, %v8799
      %v8808 = vmax.f32 %v8574, %v8800
      %v8809 = vmax.f32 %v8575, %v8801
      %v8810 = vmax.f32 %v8576, %v8802
      %v8811 = vmax.f32 %v8577, %v8803
      %v8812 = vmax.f32 %v8578, %v8804
      %v8813 = vmax.f32 %v8579, %v8805
      %v8814 = vmax.f32 %v8580, %v8806
      %v8815 = vld [vmem:[%s1 + $0x80] sm:$0xff]
      %v8816 = vld [vmem:[%s1 + $0x88] sm:$0xff]
      %v8817 = vld [vmem:[%s1 + $0x90] sm:$0xff]
      %v8818 = vld [vmem:[%s1 + $0x98] sm:$0xff]
      %v8819 = vld [vmem:[%s1 + $0xa0] sm:$0xff]
      %v8820 = vld [vmem:[%s1 + $0xa8] sm:$0xff]
      %v8821 = vld [vmem:[%s1 + $0xb0] sm:$0xff]
      %v8822 = vld [vmem:[%s1 + $0xb8] sm:$0xff]
      %v8831 = vunpack.c.l.b16 %v8815
      %v8832 = vunpack.c.h.b16 %v8815
      %v8833 = vunpack.c.l.b16 %v8816
      %v8834 = vunpack.c.h.b16 %v8816
      %v8835 = vunpack.c.l.b16 %v8817
      %v8836 = vunpack.c.h.b16 %v8817
      %v8837 = vunpack.c.l.b16 %v8818
      %v8838 = vunpack.c.h.b16 %v8818
      %v8839 = vunpack.c.l.b16 %v8819
      %v8840 = vunpack.c.h.b16 %v8819
      %v8841 = vunpack.c.l.b16 %v8820
      %v8842 = vunpack.c.h.b16 %v8820
      %v8843 = vunpack.c.l.b16 %v8821
      %v8844 = vunpack.c.h.b16 %v8821
      %v8845 = vunpack.c.l.b16 %v8822
      %v8846 = vunpack.c.h.b16 %v8822
      %v8847 = vpack.c.b16 %v8833, %v8831
      %v8848 = vpack.c.b16 %v8834, %v8832
      %v8849 = vpack.c.b16 %v8837, %v8835
      %v8850 = vpack.c.b16 %v8838, %v8836
      %v8851 = vpack.c.b16 %v8841, %v8839
      %v8852 = vpack.c.b16 %v8842, %v8840
      %v8853 = vpack.c.b16 %v8845, %v8843
      %v8854 = vpack.c.b16 %v8846, %v8844
      %v8860 = vsel %vm481, %v8848, 0
      %v8863 = vsel %vm481, %v8850, 0
      %v8866 = vsel %vm481, %v8852, 0
      %v8869 = vsel %vm481, %v8854, 0
      %8871 = vmatprep.subr.bf16.mxu0 %v8312
      %8872 = vmatpush1.bf16.msra.mxu0 %v8311
      %8873 = vmatprep.subr.bf16.mxu0 %v8316
      %8874 = vmatpush1.bf16.msra.mxu0 %v8315
      %8875 = vmatprep.subr.bf16.mxu0 %v8320
      %8876 = vmatpush1.bf16.msra.mxu0 %v8319
      %8877 = vmatprep.subr.bf16.mxu0 %v8324
      %8878 = vmatpush1.bf16.msra.mxu0 %v8323
      %8879 = vmatprep.subr.bf16.mxu0 %v8328
      %8880 = vmatpush1.bf16.msra.mxu0 %v8327
      %8881 = vmatprep.subr.bf16.mxu0 %v8332
      %8882 = vmatpush1.bf16.msra.mxu0 %v8331
      %8883 = vmatprep.subr.bf16.mxu0 %v8336
      %8884 = vmatpush1.bf16.msra.mxu0 %v8335
      %8885 = vmatprep.subr.bf16.mxu0 %v8340
      %8886 = vmatpush1.bf16.msra.mxu0 %v8339
      %8887 = vmatprep.subr.bf16.mxu0 %v8344
      %8888 = vmatpush1.bf16.msra.mxu0 %v8343
      %8889 = vmatprep.subr.bf16.mxu0 %v8403
      %8890 = vmatpush1.bf16.msra.mxu0 %v8400
      %8891 = vmatprep.subr.bf16.mxu0 0
      %8892 = vmatpush1.bf16.msra.mxu0 0
      %8893 = vmatprep.subr.bf16.mxu0 0
      %8894 = vmatpush1.bf16.msra.mxu0 0
      %8895 = vmatprep.subr.bf16.mxu0 0
      %8896 = vmatpush1.bf16.msra.mxu0 0
      %8897 = vmatprep.subr.bf16.mxu0 0
      %8898 = vmatpush1.bf16.msra.mxu0 0
      %8899 = vmatprep.subr.bf16.mxu0 0
      %8900 = vmatpush1.bf16.msra.mxu0 0
      %8901 = vmatprep.subr.bf16.mxu0 0
      %8902 = vmatpush1.bf16.msra.mxu0 0
      %8903 = vmatprep.mubr.bf16.mxu0 %v8860
      %8904 = vmatmul.mubr.bf16.gmra.mrb[0].mxu0 %v8847
      %v8905 = vpop.f32.mrb[0].mxu0
      %v8906 = vadd.f32 0.0, %v8905
      %v8907 = vpop.f32.mrb[0].mxu0
      %v8908 = vadd.f32 0.0, %v8907
      %v8909 = vpop.f32.mrb[0].mxu0
      %v8910 = vadd.f32 0.0, %v8909
      %v8911 = vpop.f32.mrb[0].mxu0
      %v8912 = vadd.f32 0.0, %v8911
      %8913 = vmatprep.mubr.bf16.mxu0 %v8863
      %8914 = vmatmul.mubr.bf16.gmra.mrb[0].mxu0 %v8849
      %v8915 = vpop.f32.mrb[0].mxu0
      %v8916 = vadd.f32 0.0, %v8915
      %v8917 = vpop.f32.mrb[0].mxu0
      %v8918 = vadd.f32 0.0, %v8917
      %v8919 = vpop.f32.mrb[0].mxu0
      %v8920 = vadd.f32 0.0, %v8919
      %v8921 = vpop.f32.mrb[0].mxu0
      %v8922 = vadd.f32 0.0, %v8921
      %8923 = vmatprep.mubr.bf16.mxu0 %v8866
      %8924 = vmatmul.mubr.bf16.gmra.mrb[0].mxu0 %v8851
      %v8925 = vpop.f32.mrb[0].mxu0
      %v8926 = vadd.f32 0.0, %v8925
      %v8927 = vpop.f32.mrb[0].mxu0
      %v8928 = vadd.f32 0.0, %v8927
      %v8929 = vpop.f32.mrb[0].mxu0
      %v8930 = vadd.f32 0.0, %v8929
      %v8931 = vpop.f32.mrb[0].mxu0
      %v8932 = vadd.f32 0.0, %v8931
      %8933 = vmatprep.mubr.bf16.mxu0 %v8869
      %8934 = vmatmul.mubr.bf16.gmra.mrb[0].mxu0 %v8853
      %v8935 = vpop.f32.mrb[0].mxu0
      %v8936 = vadd.f32 0.0, %v8935
      %v8937 = vpop.f32.mrb[0].mxu0
      %v8938 = vadd.f32 0.0, %v8937
      %v8939 = vpop.f32.mrb[0].mxu0
      %v8940 = vadd.f32 0.0, %v8939
      %v8941 = vpop.f32.mrb[0].mxu0
      %v8942 = vadd.f32 0.0, %v8941
      %8943 = vdwg.mxu0
      %8944 = vmatprep.subr.bf16.mxu0 %v8314
      %8945 = vmatpush1.bf16.msra.mxu0 %v8313
      %8946 = vmatprep.subr.bf16.mxu0 %v8318
      %8947 = vmatpush1.bf16.msra.mxu0 %v8317
      %8948 = vmatprep.subr.bf16.mxu0 %v8322
      %8949 = vmatpush1.bf16.msra.mxu0 %v8321
      %8950 = vmatprep.subr.bf16.mxu0 %v8326
      %8951 = vmatpush1.bf16.msra.mxu0 %v8325
      %8952 = vmatprep.subr.bf16.mxu0 %v8330
      %8953 = vmatpush1.bf16.msra.mxu0 %v8329
      %8954 = vmatprep.subr.bf16.mxu0 %v8334
      %8955 = vmatpush1.bf16.msra.mxu0 %v8333
      %8956 = vmatprep.subr.bf16.mxu0 %v8338
      %8957 = vmatpush1.bf16.msra.mxu0 %v8337
      %8958 = vmatprep.subr.bf16.mxu0 %v8342
      %8959 = vmatpush1.bf16.msra.mxu0 %v8341
      %8960 = vmatprep.subr.bf16.mxu0 %v8346
      %8961 = vmatpush1.bf16.msra.mxu0 %v8345
      %8962 = vmatprep.subr.bf16.mxu0 %v8409
      %8963 = vmatpush1.bf16.msra.mxu0 %v8406
      %8964 = vmatprep.subr.bf16.mxu0 0
      %8965 = vmatpush1.bf16.msra.mxu0 0
      %8966 = vmatprep.subr.bf16.mxu0 0
      %8967 = vmatpush1.bf16.msra.mxu0 0
      %8968 = vmatprep.subr.bf16.mxu0 0
      %8969 = vmatpush1.bf16.msra.mxu0 0
      %8970 = vmatprep.subr.bf16.mxu0 0
      %8971 = vmatpush1.bf16.msra.mxu0 0
      %8972 = vmatprep.subr.bf16.mxu0 0
      %8973 = vmatpush1.bf16.msra.mxu0 0
      %8974 = vmatprep.subr.bf16.mxu0 0
      %8975 = vmatpush1.bf16.msra.mxu0 0
      %8976 = vmatprep.mubr.bf16.mxu0 %v8860
      %8977 = vmatmul.mubr.bf16.gmra.mrb[0].mxu0 %v8847
      %v8978 = vpop.f32.mrb[0].mxu0
      %v8979 = vadd.f32 0.0, %v8978
      %v8980 = vpop.f32.mrb[0].mxu0
      %v8981 = vadd.f32 0.0, %v8980
      %v8982 = vpop.f32.mrb[0].mxu0
      %v8983 = vadd.f32 0.0, %v8982
      %v8984 = vpop.f32.mrb[0].mxu0
      %v8985 = vadd.f32 0.0, %v8984
      %8986 = vmatprep.mubr.bf16.mxu0 %v8863
      %8987 = vmatmul.mubr.bf16.gmra.mrb[0].mxu0 %v8849
      %v8988 = vpop.f32.mrb[0].mxu0
      %v8989 = vadd.f32 0.0, %v8988
      %v8990 = vpop.f32.mrb[0].mxu0
      %v8991 = vadd.f32 0.0, %v8990
      %v8992 = vpop.f32.mrb[0].mxu0
      %v8993 = vadd.f32 0.0, %v8992
      %v8994 = vpop.f32.mrb[0].mxu0
      %v8995 = vadd.f32 0.0, %v8994
      %8996 = vmatprep.mubr.bf16.mxu0 %v8866
      %8997 = vmatmul.mubr.bf16.gmra.mrb[0].mxu0 %v8851
      %v8998 = vpop.f32.mrb[0].mxu0
      %v8999 = vadd.f32 0.0, %v8998
      %v9000 = vpop.f32.mrb[0].mxu0
      %v9001 = vadd.f32 0.0, %v9000
      %v9002 = vpop.f32.mrb[0].mxu0
      %v9003 = vadd.f32 0.0, %v9002
      %v9004 = vpop.f32.mrb[0].mxu0
      %v9005 = vadd.f32 0.0, %v9004
      %9006 = vmatprep.mubr.bf16.mxu0 %v8869
      %9007 = vmatmul.mubr.bf16.gmra.mrb[0].mxu0 %v8853
      %v9008 = vpop.f32.mrb[0].mxu0
      %v9009 = vadd.f32 0.0, %v9008
      %v9010 = vpop.f32.mrb[0].mxu0
      %v9011 = vadd.f32 0.0, %v9010
      %v9012 = vpop.f32.mrb[0].mxu0
      %v9013 = vadd.f32 0.0, %v9012
      %v9014 = vpop.f32.mrb[0].mxu0
      %v9015 = vadd.f32 0.0, %v9014
      %9016 = vdwg.mxu0
      %v9017 = vmax.f32 %v8906, %v8926
      %v9018 = vmax.f32 %v8908, %v8928
      %v9019 = vmax.f32 %v8979, %v8999
      %v9020 = vmax.f32 %v8981, %v9001
      %v9021 = vmax.f32 %v8910, %v8930
      %v9022 = vmax.f32 %v8912, %v8932
      %v9023 = vmax.f32 %v8983, %v9003
      %v9024 = vmax.f32 %v8985, %v9005
      %v9025 = vmax.f32 %v8916, %v8936
      %v9026 = vmax.f32 %v8918, %v8938
      %v9027 = vmax.f32 %v8989, %v9009
      %v9028 = vmax.f32 %v8991, %v9011
      %v9029 = vmax.f32 %v8920, %v8940
      %v9030 = vmax.f32 %v8922, %v8942
      %v9031 = vmax.f32 %v8993, %v9013
      %v9032 = vmax.f32 %v8995, %v9015
      %v9033 = vmax.f32 %v9017, %v9025
      %v9034 = vmax.f32 %v9018, %v9026
      %v9035 = vmax.f32 %v9019, %v9027
      %v9036 = vmax.f32 %v9020, %v9028
      %v9037 = vmax.f32 %v9021, %v9029
      %v9038 = vmax.f32 %v9022, %v9030
      %v9039 = vmax.f32 %v9023, %v9031
      %v9040 = vmax.f32 %v9024, %v9032
      %v9041 = vmax.f32 %v8807, %v9033
      %v9042 = vmax.f32 %v8808, %v9034
      %v9043 = vmax.f32 %v8809, %v9035
      %v9044 = vmax.f32 %v8810, %v9036
      %v9045 = vmax.f32 %v8811, %v9037
      %v9046 = vmax.f32 %v8812, %v9038
      %v9047 = vmax.f32 %v8813, %v9039
      %v9048 = vmax.f32 %v8814, %v9040
      %v9049 = vld [vmem:[%s1 + $0xc0] sm:$0xff]
      %v9050 = vld [vmem:[%s1 + $0xc8] sm:$0xff]
      %v9051 = vld [vmem:[%s1 + $0xd0] sm:$0xff]
      %v9052 = vld [vmem:[%s1 + $0xd8] sm:$0xff]
      %v9053 = vld [vmem:[%s1 + $0xe0] sm:$0xff]
      %v9054 = vld [vmem:[%s1 + $0xe8] sm:$0xff]
      %v9055 = vld [vmem:[%s1 + $0xf0] sm:$0xff]
      %v9056 = vld [vmem:[%s1 + $0xf8] sm:$0xff]
      %v9065 = vunpack.c.l.b16 %v9049
      %v9066 = vunpack.c.h.b16 %v9049
      %v9067 = vunpack.c.l.b16 %v9050
      %v9068 = vunpack.c.h.b16 %v9050
      %v9069 = vunpack.c.l.b16 %v9051
      %v9070 = vunpack.c.h.b16 %v9051
      %v9071 = vunpack.c.l.b16 %v9052
      %v9072 = vunpack.c.h.b16 %v9052
      %v9073 = vunpack.c.l.b16 %v9053
      %v9074 = vunpack.c.h.b16 %v9053
      %v9075 = vunpack.c.l.b16 %v9054
      %v9076 = vunpack.c.h.b16 %v9054
      %v9077 = vunpack.c.l.b16 %v9055
      %v9078 = vunpack.c.h.b16 %v9055
      %v9079 = vunpack.c.l.b16 %v9056
      %v9080 = vunpack.c.h.b16 %v9056
      %v9081 = vpack.c.b16 %v9067, %v9065
      %v9082 = vpack.c.b16 %v9068, %v9066
      %v9083 = vpack.c.b16 %v9071, %v9069
      %v9084 = vpack.c.b16 %v9072, %v9070
      %v9085 = vpack.c.b16 %v9075, %v9073
      %v9086 = vpack.c.b16 %v9076, %v9074
      %v9087 = vpack.c.b16 %v9079, %v9077
      %v9088 = vpack.c.b16 %v9080, %v9078
      %v9094 = vsel %vm481, %v9082, 0
      %v9097 = vsel %vm481, %v9084, 0
      %v9100 = vsel %vm481, %v9086, 0
      %v9103 = vsel %vm481, %v9088, 0
      %9105 = vmatprep.subr.bf16.mxu0 %v8312
      %9106 = vmatpush1.bf16.msra.mxu0 %v8311
      %9107 = vmatprep.subr.bf16.mxu0 %v8316
      %9108 = vmatpush1.bf16.msra.mxu0 %v8315
      %9109 = vmatprep.subr.bf16.mxu0 %v8320
      %9110 = vmatpush1.bf16.msra.mxu0 %v8319
      %9111 = vmatprep.subr.bf16.mxu0 %v8324
      %9112 = vmatpush1.bf16.msra.mxu0 %v8323
      %9113 = vmatprep.subr.bf16.mxu0 %v8328
      %9114 = vmatpush1.bf16.msra.mxu0 %v8327
      %9115 = vmatprep.subr.bf16.mxu0 %v8332
      %9116 = vmatpush1.bf16.msra.mxu0 %v8331
      %9117 = vmatprep.subr.bf16.mxu0 %v8336
      %9118 = vmatpush1.bf16.msra.mxu0 %v8335
      %9119 = vmatprep.subr.bf16.mxu0 %v8340
      %9120 = vmatpush1.bf16.msra.mxu0 %v8339
      %9121 = vmatprep.subr.bf16.mxu0 %v8344
      %9122 = vmatpush1.bf16.msra.mxu0 %v8343
      %9123 = vmatprep.subr.bf16.mxu0 %v8403
      %9124 = vmatpush1.bf16.msra.mxu0 %v8400
      %9125 = vmatprep.subr.bf16.mxu0 0
      %9126 = vmatpush1.bf16.msra.mxu0 0
      %9127 = vmatprep.subr.bf16.mxu0 0
      %9128 = vmatpush1.bf16.msra.mxu0 0
      %9129 = vmatprep.subr.bf16.mxu0 0
      %9130 = vmatpush1.bf16.msra.mxu0 0
      %9131 = vmatprep.subr.bf16.mxu0 0
      %9132 = vmatpush1.bf16.msra.mxu0 0
      %9133 = vmatprep.subr.bf16.mxu0 0
      %9134 = vmatpush1.bf16.msra.mxu0 0
      %9135 = vmatprep.subr.bf16.mxu0 0
      %9136 = vmatpush1.bf16.msra.mxu0 0
      %9137 = vmatprep.mubr.bf16.mxu0 %v9094
      %9138 = vmatmul.mubr.bf16.gmra.mrb[0].mxu0 %v9081
      %v9139 = vpop.f32.mrb[0].mxu0
      %v9140 = vadd.f32 0.0, %v9139
      %v9141 = vpop.f32.mrb[0].mxu0
      %v9142 = vadd.f32 0.0, %v9141
      %v9143 = vpop.f32.mrb[0].mxu0
      %v9144 = vadd.f32 0.0, %v9143
      %v9145 = vpop.f32.mrb[0].mxu0
      %v9146 = vadd.f32 0.0, %v9145
      %9147 = vmatprep.mubr.bf16.mxu0 %v9097
      %9148 = vmatmul.mubr.bf16.gmra.mrb[0].mxu0 %v9083
      %v9149 = vpop.f32.mrb[0].mxu0
      %v9150 = vadd.f32 0.0, %v9149
      %v9151 = vpop.f32.mrb[0].mxu0
      %v9152 = vadd.f32 0.0, %v9151
      %v9153 = vpop.f32.mrb[0].mxu0
      %v9154 = vadd.f32 0.0, %v9153
      %v9155 = vpop.f32.mrb[0].mxu0
      %v9156 = vadd.f32 0.0, %v9155
      %9157 = vmatprep.mubr.bf16.mxu0 %v9100
      %9158 = vmatmul.mubr.bf16.gmra.mrb[0].mxu0 %v9085
      %v9159 = vpop.f32.mrb[0].mxu0
      %v9160 = vadd.f32 0.0, %v9159
      %v9161 = vpop.f32.mrb[0].mxu0
      %v9162 = vadd.f32 0.0, %v9161
      %v9163 = vpop.f32.mrb[0].mxu0
      %v9164 = vadd.f32 0.0, %v9163
      %v9165 = vpop.f32.mrb[0].mxu0
      %v9166 = vadd.f32 0.0, %v9165
      %9167 = vmatprep.mubr.bf16.mxu0 %v9103
      %9168 = vmatmul.mubr.bf16.gmra.mrb[0].mxu0 %v9087
      %v9169 = vpop.f32.mrb[0].mxu0
      %v9170 = vadd.f32 0.0, %v9169
      %v9171 = vpop.f32.mrb[0].mxu0
      %v9172 = vadd.f32 0.0, %v9171
      %v9173 = vpop.f32.mrb[0].mxu0
      %v9174 = vadd.f32 0.0, %v9173
      %v9175 = vpop.f32.mrb[0].mxu0
      %v9176 = vadd.f32 0.0, %v9175
      %9177 = vdwg.mxu0
      %9178 = vmatprep.subr.bf16.mxu0 %v8314
      %9179 = vmatpush1.bf16.msra.mxu0 %v8313
      %9180 = vmatprep.subr.bf16.mxu0 %v8318
      %9181 = vmatpush1.bf16.msra.mxu0 %v8317
      %9182 = vmatprep.subr.bf16.mxu0 %v8322
      %9183 = vmatpush1.bf16.msra.mxu0 %v8321
      %9184 = vmatprep.subr.bf16.mxu0 %v8326
      %9185 = vmatpush1.bf16.msra.mxu0 %v8325
      %9186 = vmatprep.subr.bf16.mxu0 %v8330
      %9187 = vmatpush1.bf16.msra.mxu0 %v8329
      %9188 = vmatprep.subr.bf16.mxu0 %v8334
      %9189 = vmatpush1.bf16.msra.mxu0 %v8333
      %9190 = vmatprep.subr.bf16.mxu0 %v8338
      %9191 = vmatpush1.bf16.msra.mxu0 %v8337
      %9192 = vmatprep.subr.bf16.mxu0 %v8342
      %9193 = vmatpush1.bf16.msra.mxu0 %v8341
      %9194 = vmatprep.subr.bf16.mxu0 %v8346
      %9195 = vmatpush1.bf16.msra.mxu0 %v8345
      %9196 = vmatprep.subr.bf16.mxu0 %v8409
      %9197 = vmatpush1.bf16.msra.mxu0 %v8406
      %9198 = vmatprep.subr.bf16.mxu0 0
      %9199 = vmatpush1.bf16.msra.mxu0 0
      %9200 = vmatprep.subr.bf16.mxu0 0
      %9201 = vmatpush1.bf16.msra.mxu0 0
      %9202 = vmatprep.subr.bf16.mxu0 0
      %9203 = vmatpush1.bf16.msra.mxu0 0
      %9204 = vmatprep.subr.bf16.mxu0 0
      %9205 = vmatpush1.bf16.msra.mxu0 0
      %9206 = vmatprep.subr.bf16.mxu0 0
      %9207 = vmatpush1.bf16.msra.mxu0 0
      %9208 = vmatprep.subr.bf16.mxu0 0
      %9209 = vmatpush1.bf16.msra.mxu0 0
      %9210 = vmatprep.mubr.bf16.mxu0 %v9094
      %9211 = vmatmul.mubr.bf16.gmra.mrb[0].mxu0 %v9081
      %v9212 = vpop.f32.mrb[0].mxu0
      %v9213 = vadd.f32 0.0, %v9212
      %v9214 = vpop.f32.mrb[0].mxu0
      %v9215 = vadd.f32 0.0, %v9214
      %v9216 = vpop.f32.mrb[0].mxu0
      %v9217 = vadd.f32 0.0, %v9216
      %v9218 = vpop.f32.mrb[0].mxu0
      %v9219 = vadd.f32 0.0, %v9218
      %9220 = vmatprep.mubr.bf16.mxu0 %v9097
      %9221 = vmatmul.mubr.bf16.gmra.mrb[0].mxu0 %v9083
      %v9222 = vpop.f32.mrb[0].mxu0
      %v9223 = vadd.f32 0.0, %v9222
      %v9224 = vpop.f32.mrb[0].mxu0
      %v9225 = vadd.f32 0.0, %v9224
      %v9226 = vpop.f32.mrb[0].mxu0
      %v9227 = vadd.f32 0.0, %v9226
      %v9228 = vpop.f32.mrb[0].mxu0
      %v9229 = vadd.f32 0.0, %v9228
      %9230 = vmatprep.mubr.bf16.mxu0 %v9100
      %9231 = vmatmul.mubr.bf16.gmra.mrb[0].mxu0 %v9085
      %v9232 = vpop.f32.mrb[0].mxu0
      %v9233 = vadd.f32 0.0, %v9232
      %v9234 = vpop.f32.mrb[0].mxu0
      %v9235 = vadd.f32 0.0, %v9234
      %v9236 = vpop.f32.mrb[0].mxu0
      %v9237 = vadd.f32 0.0, %v9236
      %v9238 = vpop.f32.mrb[0].mxu0
      %v9239 = vadd.f32 0.0, %v9238
      %9240 = vmatprep.mubr.bf16.mxu0 %v9103
      %9241 = vmatmul.mubr.bf16.gmra.mrb[0].mxu0 %v9087
      %v9242 = vpop.f32.mrb[0].mxu0
      %v9243 = vadd.f32 0.0, %v9242
      %v9244 = vpop.f32.mrb[0].mxu0
      %v9245 = vadd.f32 0.0, %v9244
      %v9246 = vpop.f32.mrb[0].mxu0
      %v9247 = vadd.f32 0.0, %v9246
      %v9248 = vpop.f32.mrb[0].mxu0
      %v9249 = vadd.f32 0.0, %v9248
      %9250 = vdwg.mxu0
      %v9251 = vmax.f32 %v9140, %v9160
      %v9252 = vmax.f32 %v9142, %v9162
      %v9253 = vmax.f32 %v9213, %v9233
      %v9254 = vmax.f32 %v9215, %v9235
      %v9255 = vmax.f32 %v9144, %v9164
      %v9256 = vmax.f32 %v9146, %v9166
      %v9257 = vmax.f32 %v9217, %v9237
      %v9258 = vmax.f32 %v9219, %v9239
      %v9259 = vmax.f32 %v9150, %v9170
      %v9260 = vmax.f32 %v9152, %v9172
      %v9261 = vmax.f32 %v9223, %v9243
      %v9262 = vmax.f32 %v9225, %v9245
      %v9263 = vmax.f32 %v9154, %v9174
      %v9264 = vmax.f32 %v9156, %v9176
      %v9265 = vmax.f32 %v9227, %v9247
      %v9266 = vmax.f32 %v9229, %v9249
      %v9267 = vmax.f32 %v9251, %v9259
      %v9268 = vmax.f32 %v9252, %v9260
      %v9269 = vmax.f32 %v9253, %v9261
      %v9270 = vmax.f32 %v9254, %v9262
      %v9271 = vmax.f32 %v9255, %v9263
      %v9272 = vmax.f32 %v9256, %v9264
      %v9273 = vmax.f32 %v9257, %v9265
      %v9274 = vmax.f32 %v9258, %v9266
      %v9275 = vmax.f32 %v9041, %v9267
      %v9276 = vmax.f32 %v9042, %v9268
      %v9277 = vmax.f32 %v9043, %v9269
      %v9278 = vmax.f32 %v9044, %v9270
      %v9279 = vmax.f32 %v9045, %v9271
      %v9280 = vmax.f32 %v9046, %v9272
      %v9281 = vmax.f32 %v9047, %v9273
      %v9282 = vmax.f32 %v9048, %v9274
      %v9283 = vmax.f32 %v9275, 0.0
      %v9284 = vmax.f32 %v9276, 0.0
      %v9285 = vmax.f32 %v9277, 0.0
      %v9286 = vmax.f32 %v9278, 0.0
      %v9287 = vmax.f32 %v9279, 0.0
      %v9288 = vmax.f32 %v9280, 0.0
      %v9289 = vmax.f32 %v9281, 0.0
      %v9290 = vmax.f32 %v9282, 0.0
      %v9291 = vmin.f32 %v9283, 6.0
      %v9292 = vmin.f32 %v9284, 6.0
      %v9293 = vmin.f32 %v9285, 6.0
      %v9294 = vmin.f32 %v9286, 6.0
      %v9295 = vmin.f32 %v9287, 6.0
      %v9296 = vmin.f32 %v9288, 6.0
      %v9297 = vmin.f32 %v9289, 6.0
      %v9298 = vmin.f32 %v9290, 6.0
      %v9299 = vadd.f32 %v9291, %v9292
      %v9300 = vadd.f32 %v9299, %v9293
      %v9301 = vadd.f32 %v9300, %v9294
      %9302 = vadd.xlane.f32.xlu0 %v9301
      %v9303 = vpop.xlane.xlu0 %9302
      %v9304 = vadd.f32 %v9295, %v9296
      %v9305 = vadd.f32 %v9304, %v9297
      %v9306 = vadd.f32 %v9305, %v9298
      %9307 = vadd.xlane.f32.xlu0 %v9306
      %v9308 = vpop.xlane.xlu0 %9307
      %v9309 = vmul.f32 %v9303, %v1407
      %v9310 = vmul.f32 %v9308, %v1407
      %v9311 = vsub.f32 %v9291, %v9309
      %v9312 = vsub.f32 %v9292, %v9309
      %v9313 = vsub.f32 %v9293, %v9309
      %v9314 = vsub.f32 %v9294, %v9309
      %v9315 = vsub.f32 %v9295, %v9310
      %v9316 = vsub.f32 %v9296, %v9310
      %v9317 = vsub.f32 %v9297, %v9310
      %v9318 = vsub.f32 %v9298, %v9310
      %v9319 = vmul.f32 %v9311, %v9311
      %v9320 = vmul.f32 %v9312, %v9312
      %v9321 = vmul.f32 %v9313, %v9313
      %v9322 = vmul.f32 %v9314, %v9314
      %v9323 = vmul.f32 %v9315, %v9315
      %v9324 = vmul.f32 %v9316, %v9316
      %v9325 = vmul.f32 %v9317, %v9317
      %v9326 = vmul.f32 %v9318, %v9318
      %v9327 = vadd.f32 %v9319, %v9320
      %v9328 = vadd.f32 %v9327, %v9321
      %v9329 = vadd.f32 %v9328, %v9322
      %9330 = vadd.xlane.f32.xlu0 %v9329
      %v9331 = vpop.xlane.xlu0 %9330
      %v9332 = vadd.f32 %v9323, %v9324
      %v9333 = vadd.f32 %v9332, %v9325
      %v9334 = vadd.f32 %v9333, %v9326
      %9335 = vadd.xlane.f32.xlu0 %v9334
      %v9336 = vpop.xlane.xlu0 %9335
      %v9337 = vmul.f32 %v9331, %v1407
      %v9338 = vmul.f32 %v9336, %v1407
      %v9339 = vadd.f32 %v9337, 1e-05
      %v9340 = vadd.f32 %v9338, 1e-05
      %v9341 = vrsqrt.pop %v9339
      %v9342 = vrsqrt.pop %v9340
      %v9343 = vmul.f32 %v9311, %v9341
      %v9344 = vmul.f32 %v9312, %v9341
      %v9345 = vmul.f32 %v9313, %v9341
      %v9346 = vmul.f32 %v9314, %v9341
      %v9347 = vmul.f32 %v9315, %v9342
      %v9348 = vmul.f32 %v9316, %v9342
      %v9349 = vmul.f32 %v9317, %v9342
      %v9350 = vmul.f32 %v9318, %v9342
      %v9351 = vmul.f32 %v9343, %v1454
      %v9352 = vmul.f32 %v9344, %v1458
      %v9353 = vmul.f32 %v9345, %v1462
      %v9354 = vmul.f32 %v9346, %v1466
      %v9355 = vmul.f32 %v9347, %v1454
      %v9356 = vmul.f32 %v9348, %v1458
      %v9357 = vmul.f32 %v9349, %v1462
      %v9358 = vmul.f32 %v9350, %v1466
      %v9359 = vadd.f32 %v9351, %v1483
      %v9360 = vadd.f32 %v9352, %v1487
      %v9361 = vadd.f32 %v9353, %v1491
      %v9362 = vadd.f32 %v9354, %v1495
      %v9363 = vadd.f32 %v9355, %v1483
      %v9364 = vadd.f32 %v9356, %v1487
      %v9365 = vadd.f32 %v9357, %v1491
      %v9366 = vadd.f32 %v9358, %v1495
      %v9367 = vmul.f32 %v9359, 0.5
      %v9368 = vmul.f32 %v9360, 0.5
      %v9369 = vmul.f32 %v9361, 0.5
      %v9370 = vmul.f32 %v9362, 0.5
      %v9371 = vmul.f32 %v9363, 0.5
      %v9372 = vmul.f32 %v9364, 0.5
      %v9373 = vmul.f32 %v9365, 0.5
      %v9374 = vmul.f32 %v9366, 0.5
      %v9375 = vmul.f32 %v9359, 0.70710677
      %v9376 = vmul.f32 %v9360, 0.70710677
      %v9377 = vmul.f32 %v9361, 0.70710677
      %v9378 = vmul.f32 %v9362, 0.70710677
      %v9379 = vmul.f32 %v9363, 0.70710677
      %v9380 = vmul.f32 %v9364, 0.70710677
      %v9381 = vmul.f32 %v9365, 0.70710677
      %v9382 = vmul.f32 %v9366, 0.70710677
      %v9383 = verf.f32.pop %v9375
      %v9384 = verf.f32.pop %v9376
      %v9385 = verf.f32.pop %v9377
      %v9386 = verf.f32.pop %v9378
      %v9387 = verf.f32.pop %v9379
      %v9388 = verf.f32.pop %v9380
      %v9389 = verf.f32.pop %v9381
      %v9390 = verf.f32.pop %v9382
      %v9391 = vadd.f32 %v9383, 1.0
      %v9392 = vadd.f32 %v9384, 1.0
      %v9393 = vadd.f32 %v9385, 1.0
      %v9394 = vadd.f32 %v9386, 1.0
      %v9395 = vadd.f32 %v9387, 1.0
      %v9396 = vadd.f32 %v9388, 1.0
      %v9397 = vadd.f32 %v9389, 1.0
      %v9398 = vadd.f32 %v9390, 1.0
      %v9399 = vmul.f32 %v9367, %v9391
      %v9400 = vmul.f32 %v9368, %v9392
      %v9401 = vmul.f32 %v9369, %v9393
      %v9402 = vmul.f32 %v9370, %v9394
      %v9403 = vmul.f32 %v9371, %v9395
      %v9404 = vmul.f32 %v9372, %v9396
      %v9405 = vmul.f32 %v9373, %v9397
      %v9406 = vmul.f32 %v9374, %v9398
      %v9407 = vtanh.pop %v9399
      %v9408 = vtanh.pop %v9400
      %v9409 = vtanh.pop %v9401
      %v9410 = vtanh.pop %v9402
      %v9411 = vtanh.pop %v9403
      %v9412 = vtanh.pop %v9404
      %v9413 = vtanh.pop %v9405
      %v9414 = vtanh.pop %v9406
      %s9415 = scalar_lea.vmem %s204, 384
      %9416 = vst [vmem:[%s9415] sm:$0xff] %v9407
      %9417 = vst [vmem:[%s9415 + $0x8] sm:$0xff] %v9408
      %9418 = vst [vmem:[%s9415 + $0x10] sm:$0xff] %v9409
      %9419 = vst [vmem:[%s9415 + $0x18] sm:$0xff] %v9410
      %9420 = vst [vmem:[%s9415 + $0x20] sm:$0xff] %v9411
      %9421 = vst [vmem:[%s9415 + $0x28] sm:$0xff] %v9412
      %9422 = vst [vmem:[%s9415 + $0x30] sm:$0xff] %v9413
      %9423 = vst [vmem:[%s9415 + $0x38] sm:$0xff] %v9414
      %s9424 = scalar_lea.vmem %s197, 2128
      %v9425 = vld [vmem:[%s9424] sm:$0xff]
      %v9426 = vld [vmem:[%s9424 + $0x8] sm:$0xff]
      %v9427 = vld [vmem:[%s9424 + $0x10] sm:$0xff]
      %v9428 = vld [vmem:[%s9424 + $0x18] sm:$0xff]
      %v9429 = vld [vmem:[%s9424 + $0x20] sm:$0xff]
      %v9430 = vld [vmem:[%s9424 + $0x28] sm:$0xff]
      %v9431 = vld [vmem:[%s9424 + $0x30] sm:$0xff]
      %v9432 = vld [vmem:[%s9424 + $0x38] sm:$0xff]
      %v9433 = vld [vmem:[%s9424 + $0x40] sm:$0xff]
      %v9434 = vld [vmem:[%s9424 + $0x48] sm:$0xff]
      %v9435 = vld [vmem:[%s9424 + $0x50] sm:$0xff]
      %v9436 = vld [vmem:[%s9424 + $0x58] sm:$0xff]
      %v9437 = vld [vmem:[%s9424 + $0x60] sm:$0xff]
      %v9438 = vld [vmem:[%s9424 + $0x68] sm:$0xff]
      %v9439 = vld [vmem:[%s9424 + $0x70] sm:$0xff]
      %v9440 = vld [vmem:[%s9424 + $0x78] sm:$0xff]
      %v9441 = vld [vmem:[%s9424 + $0x80] sm:$0xff]
      %v9442 = vld [vmem:[%s9424 + $0x88] sm:$0xff]
      %v9443 = vld [vmem:[%s9424 + $0x90] sm:$0xff]
      %v9444 = vld [vmem:[%s9424 + $0x98] sm:$0xff]
      %v9445 = vld [vmem:[%s9424 + $0xa0] sm:$0xff]
      %v9446 = vld [vmem:[%s9424 + $0xa8] sm:$0xff]
      %v9447 = vld [vmem:[%s9424 + $0xb0] sm:$0xff]
      %v9448 = vld [vmem:[%s9424 + $0xb8] sm:$0xff]
      %v9449 = vld [vmem:[%s9424 + $0xc0] sm:$0xff]
      %v9450 = vld [vmem:[%s9424 + $0xc8] sm:$0xff]
      %v9451 = vld [vmem:[%s9424 + $0xd0] sm:$0xff]
      %v9452 = vld [vmem:[%s9424 + $0xd8] sm:$0xff]
      %v9453 = vld [vmem:[%s9424 + $0xe0] sm:$0xff]
      %v9454 = vld [vmem:[%s9424 + $0xe8] sm:$0xff]
      %v9455 = vld [vmem:[%s9424 + $0xf0] sm:$0xff]
      %v9456 = vld [vmem:[%s9424 + $0xf8] sm:$0xff]
      %v9457 = vld [vmem:[%s9424 + $0x100] sm:$0xff]
      %v9458 = vld [vmem:[%s9424 + $0x108] sm:$0xff]
      %v9459 = vld [vmem:[%s9424 + $0x110] sm:$0xff]
      %v9460 = vld [vmem:[%s9424 + $0x118] sm:$0xff]
      %v9461 = vld [vmem:[%s9424 + $0x120] sm:$0x11]
      %v9462 = vld [vmem:[%s9424 + $0x128] sm:$0x11]
      %v9463 = vld [vmem:[%s1] sm:$0xff]
      %v9464 = vld [vmem:[%s1 + $0x8] sm:$0xff]
      %v9465 = vld [vmem:[%s1 + $0x10] sm:$0xff]
      %v9466 = vld [vmem:[%s1 + $0x18] sm:$0xff]
      %v9467 = vld [vmem:[%s1 + $0x20] sm:$0xff]
      %v9468 = vld [vmem:[%s1 + $0x28] sm:$0xff]
      %v9469 = vld [vmem:[%s1 + $0x30] sm:$0xff]
      %v9470 = vld [vmem:[%s1 + $0x38] sm:$0xff]
      %v9479 = vunpack.c.l.b16 %v9463
      %v9480 = vunpack.c.h.b16 %v9463
      %v9481 = vunpack.c.l.b16 %v9464
      %v9482 = vunpack.c.h.b16 %v9464
      %v9483 = vunpack.c.l.b16 %v9465
      %v9484 = vunpack.c.h.b16 %v9465
      %v9485 = vunpack.c.l.b16 %v9466
      %v9486 = vunpack.c.h.b16 %v9466
      %v9487 = vunpack.c.l.b16 %v9467
      %v9488 = vunpack.c.h.b16 %v9467
      %v9489 = vunpack.c.l.b16 %v9468
      %v9490 = vunpack.c.h.b16 %v9468
      %v9491 = vunpack.c.l.b16 %v9469
      %v9492 = vunpack.c.h.b16 %v9469
      %v9493 = vunpack.c.l.b16 %v9470
      %v9494 = vunpack.c.h.b16 %v9470
      %v9495 = vpack.c.b16 %v9481, %v9479
      %v9496 = vpack.c.b16 %v9482, %v9480
      %v9497 = vpack.c.b16 %v9485, %v9483
      %v9498 = vpack.c.b16 %v9486, %v9484
      %v9499 = vpack.c.b16 %v9489, %v9487
      %v9500 = vpack.c.b16 %v9490, %v9488
      %v9501 = vpack.c.b16 %v9493, %v9491
      %v9502 = vpack.c.b16 %v9494, %v9492
      %v9545 = vunpack.c.l.b16 %v9425
      %v9546 = vunpack.c.h.b16 %v9425
      %v9547 = vunpack.c.l.b16 %v9426
      %v9548 = vunpack.c.h.b16 %v9426
      %v9549 = vunpack.c.l.b16 %v9427
      %v9550 = vunpack.c.h.b16 %v9427
      %v9551 = vunpack.c.l.b16 %v9428
      %v9552 = vunpack.c.h.b16 %v9428
      %v9553 = vunpack.c.l.b16 %v9429
      %v9554 = vunpack.c.h.b16 %v9429
      %v9555 = vunpack.c.l.b16 %v9430
      %v9556 = vunpack.c.h.b16 %v9430
      %v9557 = vunpack.c.l.b16 %v9431
      %v9558 = vunpack.c.h.b16 %v9431
      %v9559 = vunpack.c.l.b16 %v9432
      %v9560 = vunpack.c.h.b16 %v9432
      %v9561 = vunpack.c.l.b16 %v9433
      %v9562 = vunpack.c.h.b16 %v9433
      %v9563 = vunpack.c.l.b16 %v9434
      %v9564 = vunpack.c.h.b16 %v9434
      %v9565 = vunpack.c.l.b16 %v9435
      %v9566 = vunpack.c.h.b16 %v9435
      %v9567 = vunpack.c.l.b16 %v9436
      %v9568 = vunpack.c.h.b16 %v9436
      %v9569 = vunpack.c.l.b16 %v9437
      %v9570 = vunpack.c.h.b16 %v9437
      %v9571 = vunpack.c.l.b16 %v9438
      %v9572 = vunpack.c.h.b16 %v9438
      %v9573 = vunpack.c.l.b16 %v9439
      %v9574 = vunpack.c.h.b16 %v9439
      %v9575 = vunpack.c.l.b16 %v9440
      %v9576 = vunpack.c.h.b16 %v9440
      %v9577 = vunpack.c.l.b16 %v9441
      %v9578 = vunpack.c.h.b16 %v9441
      %v9579 = vunpack.c.l.b16 %v9442
      %v9580 = vunpack.c.h.b16 %v9442
      %v9581 = vunpack.c.l.b16 %v9443
      %v9582 = vunpack.c.h.b16 %v9443
      %v9583 = vunpack.c.l.b16 %v9444
      %v9584 = vunpack.c.h.b16 %v9444
      %v9585 = vunpack.c.l.b16 %v9445
      %v9586 = vunpack.c.h.b16 %v9445
      %v9587 = vunpack.c.l.b16 %v9446
      %v9588 = vunpack.c.h.b16 %v9446
      %v9589 = vunpack.c.l.b16 %v9447
      %v9590 = vunpack.c.h.b16 %v9447
      %v9591 = vunpack.c.l.b16 %v9448
      %v9592 = vunpack.c.h.b16 %v9448
      %v9593 = vunpack.c.l.b16 %v9449
      %v9594 = vunpack.c.h.b16 %v9449
      %v9595 = vunpack.c.l.b16 %v9450
      %v9596 = vunpack.c.h.b16 %v9450
      %v9597 = vunpack.c.l.b16 %v9451
      %v9598 = vunpack.c.h.b16 %v9451
      %v9599 = vunpack.c.l.b16 %v9452
      %v9600 = vunpack.c.h.b16 %v9452
      %v9601 = vunpack.c.l.b16 %v9453
      %v9602 = vunpack.c.h.b16 %v9453
      %v9603 = vunpack.c.l.b16 %v9454
      %v9604 = vunpack.c.h.b16 %v9454
      %v9605 = vunpack.c.l.b16 %v9455
      %v9606 = vunpack.c.h.b16 %v9455
      %v9607 = vunpack.c.l.b16 %v9456
      %v9608 = vunpack.c.h.b16 %v9456
      %v9609 = vunpack.c.l.b16 %v9457
      %v9610 = vunpack.c.h.b16 %v9457
      %v9611 = vunpack.c.l.b16 %v9458
      %v9612 = vunpack.c.h.b16 %v9458
      %v9613 = vunpack.c.l.b16 %v9459
      %v9614 = vunpack.c.h.b16 %v9459
      %v9615 = vunpack.c.l.b16 %v9460
      %v9616 = vunpack.c.h.b16 %v9460
      %v9617 = vunpack.c.l.b16 %v9461
      %v9618 = vunpack.c.h.b16 %v9461
      %v9619 = vunpack.c.l.b16 %v9462
      %v9620 = vunpack.c.h.b16 %v9462
      %v9621 = vpack.c.b16 %v9549, %v9545
      %v9622 = vpack.c.b16 %v9550, %v9546
      %v9623 = vpack.c.b16 %v9551, %v9547
      %v9624 = vpack.c.b16 %v9552, %v9548
      %v9625 = vpack.c.b16 %v9557, %v9553
      %v9626 = vpack.c.b16 %v9558, %v9554
      %v9627 = vpack.c.b16 %v9559, %v9555
      %v9628 = vpack.c.b16 %v9560, %v9556
      %v9629 = vpack.c.b16 %v9565, %v9561
      %v9630 = vpack.c.b16 %v9566, %v9562
      %v9631 = vpack.c.b16 %v9567, %v9563
      %v9632 = vpack.c.b16 %v9568, %v9564
      %v9633 = vpack.c.b16 %v9573, %v9569
      %v9634 = vpack.c.b16 %v9574, %v9570
      %v9635 = vpack.c.b16 %v9575, %v9571
      %v9636 = vpack.c.b16 %v9576, %v9572
      %v9637 = vpack.c.b16 %v9581, %v9577
      %v9638 = vpack.c.b16 %v9582, %v9578
      %v9639 = vpack.c.b16 %v9583, %v9579
      %v9640 = vpack.c.b16 %v9584, %v9580
      %v9641 = vpack.c.b16 %v9589, %v9585
      %v9642 = vpack.c.b16 %v9590, %v9586
      %v9643 = vpack.c.b16 %v9591, %v9587
      %v9644 = vpack.c.b16 %v9592, %v9588
      %v9645 = vpack.c.b16 %v9597, %v9593
      %v9646 = vpack.c.b16 %v9598, %v9594
      %v9647 = vpack.c.b16 %v9599, %v9595
      %v9648 = vpack.c.b16 %v9600, %v9596
      %v9649 = vpack.c.b16 %v9605, %v9601
      %v9650 = vpack.c.b16 %v9606, %v9602
      %v9651 = vpack.c.b16 %v9607, %v9603
      %v9652 = vpack.c.b16 %v9608, %v9604
      %v9653 = vpack.c.b16 %v9613, %v9609
      %v9654 = vpack.c.b16 %v9614, %v9610
      %v9655 = vpack.c.b16 %v9615, %v9611
      %v9656 = vpack.c.b16 %v9616, %v9612
      %v9657 = vpack.c.b16 %v9617, %v9617
      %v9658 = vpack.c.b16 %v9618, %v9618
      %v9659 = vpack.c.b16 %v9619, %v9619
      %v9660 = vpack.c.b16 %v9620, %v9620
      %v9698 = vsel %vm481, %v9496, 0
      %v9701 = vsel %vm481, %v9498, 0
      %v9704 = vsel %vm481, %v9500, 0
      %v9707 = vsel %vm481, %v9502, 0
      %v9710 = vand.u32 %v9657, %v496
      %v9713 = vand.u32 %v9658, %v496
      %v9716 = vand.u32 %v9659, %v496
      %v9719 = vand.u32 %v9660, %v496
      %9721 = vmatprep.subr.bf16.mxu0 %v9622
      %9722 = vmatpush1.bf16.msra.mxu0 %v9621
      %9723 = vmatprep.subr.bf16.mxu0 %v9626
      %9724 = vmatpush1.bf16.msra.mxu0 %v9625
      %9725 = vmatprep.subr.bf16.mxu0 %v9630
      %9726 = vmatpush1.bf16.msra.mxu0 %v9629
      %9727 = vmatprep.subr.bf16.mxu0 %v9634
      %9728 = vmatpush1.bf16.msra.mxu0 %v9633
      %9729 = vmatprep.subr.bf16.mxu0 %v9638
      %9730 = vmatpush1.bf16.msra.mxu0 %v9637
      %9731 = vmatprep.subr.bf16.mxu0 %v9642
      %9732 = vmatpush1.bf16.msra.mxu0 %v9641
      %9733 = vmatprep.subr.bf16.mxu0 %v9646
      %9734 = vmatpush1.bf16.msra.mxu0 %v9645
      %9735 = vmatprep.subr.bf16.mxu0 %v9650
      %9736 = vmatpush1.bf16.msra.mxu0 %v9649
      %9737 = vmatprep.subr.bf16.mxu0 %v9654
      %9738 = vmatpush1.bf16.msra.mxu0 %v9653
      %9739 = vmatprep.subr.bf16.mxu0 %v9713
      %9740 = vmatpush1.bf16.msra.mxu0 %v9710
      %9741 = vmatprep.subr.bf16.mxu0 0
      %9742 = vmatpush1.bf16.msra.mxu0 0
      %9743 = vmatprep.subr.bf16.mxu0 0
      %9744 = vmatpush1.bf16.msra.mxu0 0
      %9745 = vmatprep.subr.bf16.mxu0 0
      %9746 = vmatpush1.bf16.msra.mxu0 0
      %9747 = vmatprep.subr.bf16.mxu0 0
      %9748 = vmatpush1.bf16.msra.mxu0 0
      %9749 = vmatprep.subr.bf16.mxu0 0
      %9750 = vmatpush1.bf16.msra.mxu0 0
      %9751 = vmatprep.subr.bf16.mxu0 0
      %9752 = vmatpush1.bf16.msra.mxu0 0
      %9753 = vmatprep.mubr.bf16.mxu0 %v9698
      %9754 = vmatmul.mubr.bf16.gmra.mrb[0].mxu0 %v9495
      %v9755 = vpop.f32.mrb[0].mxu0
      %v9756 = vadd.f32 0.0, %v9755
      %v9757 = vpop.f32.mrb[0].mxu0
      %v9758 = vadd.f32 0.0, %v9757
      %v9759 = vpop.f32.mrb[0].mxu0
      %v9760 = vadd.f32 0.0, %v9759
      %v9761 = vpop.f32.mrb[0].mxu0
      %v9762 = vadd.f32 0.0, %v9761
      %9763 = vmatprep.mubr.bf16.mxu0 %v9701
      %9764 = vmatmul.mubr.bf16.gmra.mrb[0].mxu0 %v9497
      %v9765 = vpop.f32.mrb[0].mxu0
      %v9766 = vadd.f32 0.0, %v9765
      %v9767 = vpop.f32.mrb[0].mxu0
      %v9768 = vadd.f32 0.0, %v9767
      %v9769 = vpop.f32.mrb[0].mxu0
      %v9770 = vadd.f32 0.0, %v9769
      %v9771 = vpop.f32.mrb[0].mxu0
      %v9772 = vadd.f32 0.0, %v9771
      %9773 = vmatprep.mubr.bf16.mxu0 %v9704
      %9774 = vmatmul.mubr.bf16.gmra.mrb[0].mxu0 %v9499
      %v9775 = vpop.f32.mrb[0].mxu0
      %v9776 = vadd.f32 0.0, %v9775
      %v9777 = vpop.f32.mrb[0].mxu0
      %v9778 = vadd.f32 0.0, %v9777
      %v9779 = vpop.f32.mrb[0].mxu0
      %v9780 = vadd.f32 0.0, %v9779
      %v9781 = vpop.f32.mrb[0].mxu0
      %v9782 = vadd.f32 0.0, %v9781
      %9783 = vmatprep.mubr.bf16.mxu0 %v9707
      %9784 = vmatmul.mubr.bf16.gmra.mrb[0].mxu0 %v9501
      %v9785 = vpop.f32.mrb[0].mxu0
      %v9786 = vadd.f32 0.0, %v9785
      %v9787 = vpop.f32.mrb[0].mxu0
      %v9788 = vadd.f32 0.0, %v9787
      %v9789 = vpop.f32.mrb[0].mxu0
      %v9790 = vadd.f32 0.0, %v9789
      %v9791 = vpop.f32.mrb[0].mxu0
      %v9792 = vadd.f32 0.0, %v9791
      %9793 = vdwg.mxu0
      %9794 = vmatprep.subr.bf16.mxu0 %v9624
      %9795 = vmatpush1.bf16.msra.mxu0 %v9623
      %9796 = vmatprep.subr.bf16.mxu0 %v9628
      %9797 = vmatpush1.bf16.msra.mxu0 %v9627
      %9798 = vmatprep.subr.bf16.mxu0 %v9632
      %9799 = vmatpush1.bf16.msra.mxu0 %v9631
      %9800 = vmatprep.subr.bf16.mxu0 %v9636
      %9801 = vmatpush1.bf16.msra.mxu0 %v9635
      %9802 = vmatprep.subr.bf16.mxu0 %v9640
      %9803 = vmatpush1.bf16.msra.mxu0 %v9639
      %9804 = vmatprep.subr.bf16.mxu0 %v9644
      %9805 = vmatpush1.bf16.msra.mxu0 %v9643
      %9806 = vmatprep.subr.bf16.mxu0 %v9648
      %9807 = vmatpush1.bf16.msra.mxu0 %v9647
      %9808 = vmatprep.subr.bf16.mxu0 %v9652
      %9809 = vmatpush1.bf16.msra.mxu0 %v9651
      %9810 = vmatprep.subr.bf16.mxu0 %v9656
      %9811 = vmatpush1.bf16.msra.mxu0 %v9655
      %9812 = vmatprep.subr.bf16.mxu0 %v9719
      %9813 = vmatpush1.bf16.msra.mxu0 %v9716
      %9814 = vmatprep.subr.bf16.mxu0 0
      %9815 = vmatpush1.bf16.msra.mxu0 0
      %9816 = vmatprep.subr.bf16.mxu0 0
      %9817 = vmatpush1.bf16.msra.mxu0 0
      %9818 = vmatprep.subr.bf16.mxu0 0
      %9819 = vmatpush1.bf16.msra.mxu0 0
      %9820 = vmatprep.subr.bf16.mxu0 0
      %9821 = vmatpush1.bf16.msra.mxu0 0
      %9822 = vmatprep.subr.bf16.mxu0 0
      %9823 = vmatpush1.bf16.msra.mxu0 0
      %9824 = vmatprep.subr.bf16.mxu0 0
      %9825 = vmatpush1.bf16.msra.mxu0 0
      %9826 = vmatprep.mubr.bf16.mxu0 %v9698
      %9827 = vmatmul.mubr.bf16.gmra.mrb[0].mxu0 %v9495
      %v9828 = vpop.f32.mrb[0].mxu0
      %v9829 = vadd.f32 0.0, %v9828
      %v9830 = vpop.f32.mrb[0].mxu0
      %v9831 = vadd.f32 0.0, %v9830
      %v9832 = vpop.f32.mrb[0].mxu0
      %v9833 = vadd.f32 0.0, %v9832
      %v9834 = vpop.f32.mrb[0].mxu0
      %v9835 = vadd.f32 0.0, %v9834
      %9836 = vmatprep.mubr.bf16.mxu0 %v9701
      %9837 = vmatmul.mubr.bf16.gmra.mrb[0].mxu0 %v9497
      %v9838 = vpop.f32.mrb[0].mxu0
      %v9839 = vadd.f32 0.0, %v9838
      %v9840 = vpop.f32.mrb[0].mxu0
      %v9841 = vadd.f32 0.0, %v9840
      %v9842 = vpop.f32.mrb[0].mxu0
      %v9843 = vadd.f32 0.0, %v9842
      %v9844 = vpop.f32.mrb[0].mxu0
      %v9845 = vadd.f32 0.0, %v9844
      %9846 = vmatprep.mubr.bf16.mxu0 %v9704
      %9847 = vmatmul.mubr.bf16.gmra.mrb[0].mxu0 %v9499
      %v9848 = vpop.f32.mrb[0].mxu0
      %v9849 = vadd.f32 0.0, %v9848
      %v9850 = vpop.f32.mrb[0].mxu0
      %v9851 = vadd.f32 0.0, %v9850
      %v9852 = vpop.f32.mrb[0].mxu0
      %v9853 = vadd.f32 0.0, %v9852
      %v9854 = vpop.f32.mrb[0].mxu0
      %v9855 = vadd.f32 0.0, %v9854
      %9856 = vmatprep.mubr.bf16.mxu0 %v9707
      %9857 = vmatmul.mubr.bf16.gmra.mrb[0].mxu0 %v9501
      %v9858 = vpop.f32.mrb[0].mxu0
      %v9859 = vadd.f32 0.0, %v9858
      %v9860 = vpop.f32.mrb[0].mxu0
      %v9861 = vadd.f32 0.0, %v9860
      %v9862 = vpop.f32.mrb[0].mxu0
      %v9863 = vadd.f32 0.0, %v9862
      %v9864 = vpop.f32.mrb[0].mxu0
      %v9865 = vadd.f32 0.0, %v9864
      %9866 = vdwg.mxu0
      %v9867 = vmax.f32 %v9756, %v9776
      %v9868 = vmax.f32 %v9758, %v9778
      %v9869 = vmax.f32 %v9829, %v9849
      %v9870 = vmax.f32 %v9831, %v9851
      %v9871 = vmax.f32 %v9760, %v9780
      %v9872 = vmax.f32 %v9762, %v9782
      %v9873 = vmax.f32 %v9833, %v9853
      %v9874 = vmax.f32 %v9835, %v9855
      %v9875 = vmax.f32 %v9766, %v9786
      %v9876 = vmax.f32 %v9768, %v9788
      %v9877 = vmax.f32 %v9839, %v9859
      %v9878 = vmax.f32 %v9841, %v9861
      %v9879 = vmax.f32 %v9770, %v9790
      %v9880 = vmax.f32 %v9772, %v9792
      %v9881 = vmax.f32 %v9843, %v9863
      %v9882 = vmax.f32 %v9845, %v9865
      %v9883 = vmax.f32 %v9867, %v9875
      %v9884 = vmax.f32 %v9868, %v9876
      %v9885 = vmax.f32 %v9869, %v9877
      %v9886 = vmax.f32 %v9870, %v9878
      %v9887 = vmax.f32 %v9871, %v9879
      %v9888 = vmax.f32 %v9872, %v9880
      %v9889 = vmax.f32 %v9873, %v9881
      %v9890 = vmax.f32 %v9874, %v9882
      %v9891 = vld [vmem:[%s1 + $0x40] sm:$0xff]
      %v9892 = vld [vmem:[%s1 + $0x48] sm:$0xff]
      %v9893 = vld [vmem:[%s1 + $0x50] sm:$0xff]
      %v9894 = vld [vmem:[%s1 + $0x58] sm:$0xff]
      %v9895 = vld [vmem:[%s1 + $0x60] sm:$0xff]
      %v9896 = vld [vmem:[%s1 + $0x68] sm:$0xff]
      %v9897 = vld [vmem:[%s1 + $0x70] sm:$0xff]
      %v9898 = vld [vmem:[%s1 + $0x78] sm:$0xff]
      %v9907 = vunpack.c.l.b16 %v9891
      %v9908 = vunpack.c.h.b16 %v9891
      %v9909 = vunpack.c.l.b16 %v9892
      %v9910 = vunpack.c.h.b16 %v9892
      %v9911 = vunpack.c.l.b16 %v9893
      %v9912 = vunpack.c.h.b16 %v9893
      %v9913 = vunpack.c.l.b16 %v9894
      %v9914 = vunpack.c.h.b16 %v9894
      %v9915 = vunpack.c.l.b16 %v9895
      %v9916 = vunpack.c.h.b16 %v9895
      %v9917 = vunpack.c.l.b16 %v9896
      %v9918 = vunpack.c.h.b16 %v9896
      %v9919 = vunpack.c.l.b16 %v9897
      %v9920 = vunpack.c.h.b16 %v9897
      %v9921 = vunpack.c.l.b16 %v9898
      %v9922 = vunpack.c.h.b16 %v9898
      %v9923 = vpack.c.b16 %v9909, %v9907
      %v9924 = vpack.c.b16 %v9910, %v9908
      %v9925 = vpack.c.b16 %v9913, %v9911
      %v9926 = vpack.c.b16 %v9914, %v9912
      %v9927 = vpack.c.b16 %v9917, %v9915
      %v9928 = vpack.c.b16 %v9918, %v9916
      %v9929 = vpack.c.b16 %v9921, %v9919
      %v9930 = vpack.c.b16 %v9922, %v9920
      %v9936 = vsel %vm481, %v9924, 0
      %v9939 = vsel %vm481, %v9926, 0
      %v9942 = vsel %vm481, %v9928, 0
      %v9945 = vsel %vm481, %v9930, 0
      %9947 = vmatprep.subr.bf16.mxu0 %v9622
      %9948 = vmatpush1.bf16.msra.mxu0 %v9621
      %9949 = vmatprep.subr.bf16.mxu0 %v9626
      %9950 = vmatpush1.bf16.msra.mxu0 %v9625
      %9951 = vmatprep.subr.bf16.mxu0 %v9630
      %9952 = vmatpush1.bf16.msra.mxu0 %v9629
      %9953 = vmatprep.subr.bf16.mxu0 %v9634
      %9954 = vmatpush1.bf16.msra.mxu0 %v9633
      %9955 = vmatprep.subr.bf16.mxu0 %v9638
      %9956 = vmatpush1.bf16.msra.mxu0 %v9637
      %9957 = vmatprep.subr.bf16.mxu0 %v9642
      %9958 = vmatpush1.bf16.msra.mxu0 %v9641
      %9959 = vmatprep.subr.bf16.mxu0 %v9646
      %9960 = vmatpush1.bf16.msra.mxu0 %v9645
      %9961 = vmatprep.subr.bf16.mxu0 %v9650
      %9962 = vmatpush1.bf16.msra.mxu0 %v9649
      %9963 = vmatprep.subr.bf16.mxu0 %v9654
      %9964 = vmatpush1.bf16.msra.mxu0 %v9653
      %9965 = vmatprep.subr.bf16.mxu0 %v9713
      %9966 = vmatpush1.bf16.msra.mxu0 %v9710
      %9967 = vmatprep.subr.bf16.mxu0 0
      %9968 = vmatpush1.bf16.msra.mxu0 0
      %9969 = vmatprep.subr.bf16.mxu0 0
      %9970 = vmatpush1.bf16.msra.mxu0 0
      %9971 = vmatprep.subr.bf16.mxu0 0
      %9972 = vmatpush1.bf16.msra.mxu0 0
      %9973 = vmatprep.subr.bf16.mxu0 0
      %9974 = vmatpush1.bf16.msra.mxu0 0
      %9975 = vmatprep.subr.bf16.mxu0 0
      %9976 = vmatpush1.bf16.msra.mxu0 0
      %9977 = vmatprep.subr.bf16.mxu0 0
      %9978 = vmatpush1.bf16.msra.mxu0 0
      %9979 = vmatprep.mubr.bf16.mxu0 %v9936
      %9980 = vmatmul.mubr.bf16.gmra.mrb[0].mxu0 %v9923
      %v9981 = vpop.f32.mrb[0].mxu0
      %v9982 = vadd.f32 0.0, %v9981
      %v9983 = vpop.f32.mrb[0].mxu0
      %v9984 = vadd.f32 0.0, %v9983
      %v9985 = vpop.f32.mrb[0].mxu0
      %v9986 = vadd.f32 0.0, %v9985
      %v9987 = vpop.f32.mrb[0].mxu0
      %v9988 = vadd.f32 0.0, %v9987
      %9989 = vmatprep.mubr.bf16.mxu0 %v9939
      %9990 = vmatmul.mubr.bf16.gmra.mrb[0].mxu0 %v9925
      %v9991 = vpop.f32.mrb[0].mxu0
      %v9992 = vadd.f32 0.0, %v9991
      %v9993 = vpop.f32.mrb[0].mxu0
      %v9994 = vadd.f32 0.0, %v9993
      %v9995 = vpop.f32.mrb[0].mxu0
      %v9996 = vadd.f32 0.0, %v9995
      %v9997 = vpop.f32.mrb[0].mxu0
      %v9998 = vadd.f32 0.0, %v9997
      %9999 = vmatprep.mubr.bf16.mxu0 %v9942
      %10000 = vmatmul.mubr.bf16.gmra.mrb[0].mxu0 %v9927
      %v10001 = vpop.f32.mrb[0].mxu0
      %v10002 = vadd.f32 0.0, %v10001
      %v10003 = vpop.f32.mrb[0].mxu0
      %v10004 = vadd.f32 0.0, %v10003
      %v10005 = vpop.f32.mrb[0].mxu0
      %v10006 = vadd.f32 0.0, %v10005
      %v10007 = vpop.f32.mrb[0].mxu0
      %v10008 = vadd.f32 0.0, %v10007
      %10009 = vmatprep.mubr.bf16.mxu0 %v9945
      %10010 = vmatmul.mubr.bf16.gmra.mrb[0].mxu0 %v9929
      %v10011 = vpop.f32.mrb[0].mxu0
      %v10012 = vadd.f32 0.0, %v10011
      %v10013 = vpop.f32.mrb[0].mxu0
      %v10014 = vadd.f32 0.0, %v10013
      %v10015 = vpop.f32.mrb[0].mxu0
      %v10016 = vadd.f32 0.0, %v10015
      %v10017 = vpop.f32.mrb[0].mxu0
      %v10018 = vadd.f32 0.0, %v10017
      %10019 = vdwg.mxu0
      %10020 = vmatprep.subr.bf16.mxu0 %v9624
      %10021 = vmatpush1.bf16.msra.mxu0 %v9623
      %10022 = vmatprep.subr.bf16.mxu0 %v9628
      %10023 = vmatpush1.bf16.msra.mxu0 %v9627
      %10024 = vmatprep.subr.bf16.mxu0 %v9632
      %10025 = vmatpush1.bf16.msra.mxu0 %v9631
      %10026 = vmatprep.subr.bf16.mxu0 %v9636
      %10027 = vmatpush1.bf16.msra.mxu0 %v9635
      %10028 = vmatprep.subr.bf16.mxu0 %v9640
      %10029 = vmatpush1.bf16.msra.mxu0 %v9639
      %10030 = vmatprep.subr.bf16.mxu0 %v9644
      %10031 = vmatpush1.bf16.msra.mxu0 %v9643
      %10032 = vmatprep.subr.bf16.mxu0 %v9648
      %10033 = vmatpush1.bf16.msra.mxu0 %v9647
      %10034 = vmatprep.subr.bf16.mxu0 %v9652
      %10035 = vmatpush1.bf16.msra.mxu0 %v9651
      %10036 = vmatprep.subr.bf16.mxu0 %v9656
      %10037 = vmatpush1.bf16.msra.mxu0 %v9655
      %10038 = vmatprep.subr.bf16.mxu0 %v9719
      %10039 = vmatpush1.bf16.msra.mxu0 %v9716
      %10040 = vmatprep.subr.bf16.mxu0 0
      %10041 = vmatpush1.bf16.msra.mxu0 0
      %10042 = vmatprep.subr.bf16.mxu0 0
      %10043 = vmatpush1.bf16.msra.mxu0 0
      %10044 = vmatprep.subr.bf16.mxu0 0
      %10045 = vmatpush1.bf16.msra.mxu0 0
      %10046 = vmatprep.subr.bf16.mxu0 0
      %10047 = vmatpush1.bf16.msra.mxu0 0
      %10048 = vmatprep.subr.bf16.mxu0 0
      %10049 = vmatpush1.bf16.msra.mxu0 0
      %10050 = vmatprep.subr.bf16.mxu0 0
      %10051 = vmatpush1.bf16.msra.mxu0 0
      %10052 = vmatprep.mubr.bf16.mxu0 %v9936
      %10053 = vmatmul.mubr.bf16.gmra.mrb[0].mxu0 %v9923
      %v10054 = vpop.f32.mrb[0].mxu0
      %v10055 = vadd.f32 0.0, %v10054
      %v10056 = vpop.f32.mrb[0].mxu0
      %v10057 = vadd.f32 0.0, %v10056
      %v10058 = vpop.f32.mrb[0].mxu0
      %v10059 = vadd.f32 0.0, %v10058
      %v10060 = vpop.f32.mrb[0].mxu0
      %v10061 = vadd.f32 0.0, %v10060
      %10062 = vmatprep.mubr.bf16.mxu0 %v9939
      %10063 = vmatmul.mubr.bf16.gmra.mrb[0].mxu0 %v9925
      %v10064 = vpop.f32.mrb[0].mxu0
      %v10065 = vadd.f32 0.0, %v10064
      %v10066 = vpop.f32.mrb[0].mxu0
      %v10067 = vadd.f32 0.0, %v10066
      %v10068 = vpop.f32.mrb[0].mxu0
      %v10069 = vadd.f32 0.0, %v10068
      %v10070 = vpop.f32.mrb[0].mxu0
      %v10071 = vadd.f32 0.0, %v10070
      %10072 = vmatprep.mubr.bf16.mxu0 %v9942
      %10073 = vmatmul.mubr.bf16.gmra.mrb[0].mxu0 %v9927
      %v10074 = vpop.f32.mrb[0].mxu0
      %v10075 = vadd.f32 0.0, %v10074
      %v10076 = vpop.f32.mrb[0].mxu0
      %v10077 = vadd.f32 0.0, %v10076
      %v10078 = vpop.f32.mrb[0].mxu0
      %v10079 = vadd.f32 0.0, %v10078
      %v10080 = vpop.f32.mrb[0].mxu0
      %v10081 = vadd.f32 0.0, %v10080
      %10082 = vmatprep.mubr.bf16.mxu0 %v9945
      %10083 = vmatmul.mubr.bf16.gmra.mrb[0].mxu0 %v9929
      %v10084 = vpop.f32.mrb[0].mxu0
      %v10085 = vadd.f32 0.0, %v10084
      %v10086 = vpop.f32.mrb[0].mxu0
      %v10087 = vadd.f32 0.0, %v10086
      %v10088 = vpop.f32.mrb[0].mxu0
      %v10089 = vadd.f32 0.0, %v10088
      %v10090 = vpop.f32.mrb[0].mxu0
      %v10091 = vadd.f32 0.0, %v10090
      %10092 = vdwg.mxu0
      %v10093 = vmax.f32 %v9982, %v10002
      %v10094 = vmax.f32 %v9984, %v10004
      %v10095 = vmax.f32 %v10055, %v10075
      %v10096 = vmax.f32 %v10057, %v10077
      %v10097 = vmax.f32 %v9986, %v10006
      %v10098 = vmax.f32 %v9988, %v10008
      %v10099 = vmax.f32 %v10059, %v10079
      %v10100 = vmax.f32 %v10061, %v10081
      %v10101 = vmax.f32 %v9992, %v10012
      %v10102 = vmax.f32 %v9994, %v10014
      %v10103 = vmax.f32 %v10065, %v10085
      %v10104 = vmax.f32 %v10067, %v10087
      %v10105 = vmax.f32 %v9996, %v10016
      %v10106 = vmax.f32 %v9998, %v10018
      %v10107 = vmax.f32 %v10069, %v10089
      %v10108 = vmax.f32 %v10071, %v10091
      %v10109 = vmax.f32 %v10093, %v10101
      %v10110 = vmax.f32 %v10094, %v10102
      %v10111 = vmax.f32 %v10095, %v10103
      %v10112 = vmax.f32 %v10096, %v10104
      %v10113 = vmax.f32 %v10097, %v10105
      %v10114 = vmax.f32 %v10098, %v10106
      %v10115 = vmax.f32 %v10099, %v10107
      %v10116 = vmax.f32 %v10100, %v10108
      %v10117 = vmax.f32 %v9883, %v10109
      %v10118 = vmax.f32 %v9884, %v10110
      %v10119 = vmax.f32 %v9885, %v10111
      %v10120 = vmax.f32 %v9886, %v10112
      %v10121 = vmax.f32 %v9887, %v10113
      %v10122 = vmax.f32 %v9888, %v10114
      %v10123 = vmax.f32 %v9889, %v10115
      %v10124 = vmax.f32 %v9890, %v10116
      %v10125 = vld [vmem:[%s1 + $0x80] sm:$0xff]
      %v10126 = vld [vmem:[%s1 + $0x88] sm:$0xff]
      %v10127 = vld [vmem:[%s1 + $0x90] sm:$0xff]
      %v10128 = vld [vmem:[%s1 + $0x98] sm:$0xff]
      %v10129 = vld [vmem:[%s1 + $0xa0] sm:$0xff]
      %v10130 = vld [vmem:[%s1 + $0xa8] sm:$0xff]
      %v10131 = vld [vmem:[%s1 + $0xb0] sm:$0xff]
      %v10132 = vld [vmem:[%s1 + $0xb8] sm:$0xff]
      %v10141 = vunpack.c.l.b16 %v10125
      %v10142 = vunpack.c.h.b16 %v10125
      %v10143 = vunpack.c.l.b16 %v10126
      %v10144 = vunpack.c.h.b16 %v10126
      %v10145 = vunpack.c.l.b16 %v10127
      %v10146 = vunpack.c.h.b16 %v10127
      %v10147 = vunpack.c.l.b16 %v10128
      %v10148 = vunpack.c.h.b16 %v10128
      %v10149 = vunpack.c.l.b16 %v10129
      %v10150 = vunpack.c.h.b16 %v10129
      %v10151 = vunpack.c.l.b16 %v10130
      %v10152 = vunpack.c.h.b16 %v10130
      %v10153 = vunpack.c.l.b16 %v10131
      %v10154 = vunpack.c.h.b16 %v10131
      %v10155 = vunpack.c.l.b16 %v10132
      %v10156 = vunpack.c.h.b16 %v10132
      %v10157 = vpack.c.b16 %v10143, %v10141
      %v10158 = vpack.c.b16 %v10144, %v10142
      %v10159 = vpack.c.b16 %v10147, %v10145
      %v10160 = vpack.c.b16 %v10148, %v10146
      %v10161 = vpack.c.b16 %v10151, %v10149
      %v10162 = vpack.c.b16 %v10152, %v10150
      %v10163 = vpack.c.b16 %v10155, %v10153
      %v10164 = vpack.c.b16 %v10156, %v10154
      %v10170 = vsel %vm481, %v10158, 0
      %v10173 = vsel %vm481, %v10160, 0
      %v10176 = vsel %vm481, %v10162, 0
      %v10179 = vsel %vm481, %v10164, 0
      %10181 = vmatprep.subr.bf16.mxu0 %v9622
      %10182 = vmatpush1.bf16.msra.mxu0 %v9621
      %10183 = vmatprep.subr.bf16.mxu0 %v9626
      %10184 = vmatpush1.bf16.msra.mxu0 %v9625
      %10185 = vmatprep.subr.bf16.mxu0 %v9630
      %10186 = vmatpush1.bf16.msra.mxu0 %v9629
      %10187 = vmatprep.subr.bf16.mxu0 %v9634
      %10188 = vmatpush1.bf16.msra.mxu0 %v9633
      %10189 = vmatprep.subr.bf16.mxu0 %v9638
      %10190 = vmatpush1.bf16.msra.mxu0 %v9637
      %10191 = vmatprep.subr.bf16.mxu0 %v9642
      %10192 = vmatpush1.bf16.msra.mxu0 %v9641
      %10193 = vmatprep.subr.bf16.mxu0 %v9646
      %10194 = vmatpush1.bf16.msra.mxu0 %v9645
      %10195 = vmatprep.subr.bf16.mxu0 %v9650
      %10196 = vmatpush1.bf16.msra.mxu0 %v9649
      %10197 = vmatprep.subr.bf16.mxu0 %v9654
      %10198 = vmatpush1.bf16.msra.mxu0 %v9653
      %10199 = vmatprep.subr.bf16.mxu0 %v9713
      %10200 = vmatpush1.bf16.msra.mxu0 %v9710
      %10201 = vmatprep.subr.bf16.mxu0 0
      %10202 = vmatpush1.bf16.msra.mxu0 0
      %10203 = vmatprep.subr.bf16.mxu0 0
      %10204 = vmatpush1.bf16.msra.mxu0 0
      %10205 = vmatprep.subr.bf16.mxu0 0
      %10206 = vmatpush1.bf16.msra.mxu0 0
      %10207 = vmatprep.subr.bf16.mxu0 0
      %10208 = vmatpush1.bf16.msra.mxu0 0
      %10209 = vmatprep.subr.bf16.mxu0 0
      %10210 = vmatpush1.bf16.msra.mxu0 0
      %10211 = vmatprep.subr.bf16.mxu0 0
      %10212 = vmatpush1.bf16.msra.mxu0 0
      %10213 = vmatprep.mubr.bf16.mxu0 %v10170
      %10214 = vmatmul.mubr.bf16.gmra.mrb[0].mxu0 %v10157
      %v10215 = vpop.f32.mrb[0].mxu0
      %v10216 = vadd.f32 0.0, %v10215
      %v10217 = vpop.f32.mrb[0].mxu0
      %v10218 = vadd.f32 0.0, %v10217
      %v10219 = vpop.f32.mrb[0].mxu0
      %v10220 = vadd.f32 0.0, %v10219
      %v10221 = vpop.f32.mrb[0].mxu0
      %v10222 = vadd.f32 0.0, %v10221
      %10223 = vmatprep.mubr.bf16.mxu0 %v10173
      %10224 = vmatmul.mubr.bf16.gmra.mrb[0].mxu0 %v10159
      %v10225 = vpop.f32.mrb[0].mxu0
      %v10226 = vadd.f32 0.0, %v10225
      %v10227 = vpop.f32.mrb[0].mxu0
      %v10228 = vadd.f32 0.0, %v10227
      %v10229 = vpop.f32.mrb[0].mxu0
      %v10230 = vadd.f32 0.0, %v10229
      %v10231 = vpop.f32.mrb[0].mxu0
      %v10232 = vadd.f32 0.0, %v10231
      %10233 = vmatprep.mubr.bf16.mxu0 %v10176
      %10234 = vmatmul.mubr.bf16.gmra.mrb[0].mxu0 %v10161
      %v10235 = vpop.f32.mrb[0].mxu0
      %v10236 = vadd.f32 0.0, %v10235
      %v10237 = vpop.f32.mrb[0].mxu0
      %v10238 = vadd.f32 0.0, %v10237
      %v10239 = vpop.f32.mrb[0].mxu0
      %v10240 = vadd.f32 0.0, %v10239
      %v10241 = vpop.f32.mrb[0].mxu0
      %v10242 = vadd.f32 0.0, %v10241
      %10243 = vmatprep.mubr.bf16.mxu0 %v10179
      %10244 = vmatmul.mubr.bf16.gmra.mrb[0].mxu0 %v10163
      %v10245 = vpop.f32.mrb[0].mxu0
      %v10246 = vadd.f32 0.0, %v10245
      %v10247 = vpop.f32.mrb[0].mxu0
      %v10248 = vadd.f32 0.0, %v10247
      %v10249 = vpop.f32.mrb[0].mxu0
      %v10250 = vadd.f32 0.0, %v10249
      %v10251 = vpop.f32.mrb[0].mxu0
      %v10252 = vadd.f32 0.0, %v10251
      %10253 = vdwg.mxu0
      %10254 = vmatprep.subr.bf16.mxu0 %v9624
      %10255 = vmatpush1.bf16.msra.mxu0 %v9623
      %10256 = vmatprep.subr.bf16.mxu0 %v9628
      %10257 = vmatpush1.bf16.msra.mxu0 %v9627
      %10258 = vmatprep.subr.bf16.mxu0 %v9632
      %10259 = vmatpush1.bf16.msra.mxu0 %v9631
      %10260 = vmatprep.subr.bf16.mxu0 %v9636
      %10261 = vmatpush1.bf16.msra.mxu0 %v9635
      %10262 = vmatprep.subr.bf16.mxu0 %v9640
      %10263 = vmatpush1.bf16.msra.mxu0 %v9639
      %10264 = vmatprep.subr.bf16.mxu0 %v9644
      %10265 = vmatpush1.bf16.msra.mxu0 %v9643
      %10266 = vmatprep.subr.bf16.mxu0 %v9648
      %10267 = vmatpush1.bf16.msra.mxu0 %v9647
      %10268 = vmatprep.subr.bf16.mxu0 %v9652
      %10269 = vmatpush1.bf16.msra.mxu0 %v9651
      %10270 = vmatprep.subr.bf16.mxu0 %v9656
      %10271 = vmatpush1.bf16.msra.mxu0 %v9655
      %10272 = vmatprep.subr.bf16.mxu0 %v9719
      %10273 = vmatpush1.bf16.msra.mxu0 %v9716
      %10274 = vmatprep.subr.bf16.mxu0 0
      %10275 = vmatpush1.bf16.msra.mxu0 0
      %10276 = vmatprep.subr.bf16.mxu0 0
      %10277 = vmatpush1.bf16.msra.mxu0 0
      %10278 = vmatprep.subr.bf16.mxu0 0
      %10279 = vmatpush1.bf16.msra.mxu0 0
      %10280 = vmatprep.subr.bf16.mxu0 0
      %10281 = vmatpush1.bf16.msra.mxu0 0
      %10282 = vmatprep.subr.bf16.mxu0 0
      %10283 = vmatpush1.bf16.msra.mxu0 0
      %10284 = vmatprep.subr.bf16.mxu0 0
      %10285 = vmatpush1.bf16.msra.mxu0 0
      %10286 = vmatprep.mubr.bf16.mxu0 %v10170
      %10287 = vmatmul.mubr.bf16.gmra.mrb[0].mxu0 %v10157
      %v10288 = vpop.f32.mrb[0].mxu0
      %v10289 = vadd.f32 0.0, %v10288
      %v10290 = vpop.f32.mrb[0].mxu0
      %v10291 = vadd.f32 0.0, %v10290
      %v10292 = vpop.f32.mrb[0].mxu0
      %v10293 = vadd.f32 0.0, %v10292
      %v10294 = vpop.f32.mrb[0].mxu0
      %v10295 = vadd.f32 0.0, %v10294
      %10296 = vmatprep.mubr.bf16.mxu0 %v10173
      %10297 = vmatmul.mubr.bf16.gmra.mrb[0].mxu0 %v10159
      %v10298 = vpop.f32.mrb[0].mxu0
      %v10299 = vadd.f32 0.0, %v10298
      %v10300 = vpop.f32.mrb[0].mxu0
      %v10301 = vadd.f32 0.0, %v10300
      %v10302 = vpop.f32.mrb[0].mxu0
      %v10303 = vadd.f32 0.0, %v10302
      %v10304 = vpop.f32.mrb[0].mxu0
      %v10305 = vadd.f32 0.0, %v10304
      %10306 = vmatprep.mubr.bf16.mxu0 %v10176
      %10307 = vmatmul.mubr.bf16.gmra.mrb[0].mxu0 %v10161
      %v10308 = vpop.f32.mrb[0].mxu0
      %v10309 = vadd.f32 0.0, %v10308
      %v10310 = vpop.f32.mrb[0].mxu0
      %v10311 = vadd.f32 0.0, %v10310
      %v10312 = vpop.f32.mrb[0].mxu0
      %v10313 = vadd.f32 0.0, %v10312
      %v10314 = vpop.f32.mrb[0].mxu0
      %v10315 = vadd.f32 0.0, %v10314
      %10316 = vmatprep.mubr.bf16.mxu0 %v10179
      %10317 = vmatmul.mubr.bf16.gmra.mrb[0].mxu0 %v10163
      %v10318 = vpop.f32.mrb[0].mxu0
      %v10319 = vadd.f32 0.0, %v10318
      %v10320 = vpop.f32.mrb[0].mxu0
      %v10321 = vadd.f32 0.0, %v10320
      %v10322 = vpop.f32.mrb[0].mxu0
      %v10323 = vadd.f32 0.0, %v10322
      %v10324 = vpop.f32.mrb[0].mxu0
      %v10325 = vadd.f32 0.0, %v10324
      %10326 = vdwg.mxu0
      %v10327 = vmax.f32 %v10216, %v10236
      %v10328 = vmax.f32 %v10218, %v10238
      %v10329 = vmax.f32 %v10289, %v10309
      %v10330 = vmax.f32 %v10291, %v10311
      %v10331 = vmax.f32 %v10220, %v10240
      %v10332 = vmax.f32 %v10222, %v10242
      %v10333 = vmax.f32 %v10293, %v10313
      %v10334 = vmax.f32 %v10295, %v10315
      %v10335 = vmax.f32 %v10226, %v10246
      %v10336 = vmax.f32 %v10228, %v10248
      %v10337 = vmax.f32 %v10299, %v10319
      %v10338 = vmax.f32 %v10301, %v10321
      %v10339 = vmax.f32 %v10230, %v10250
      %v10340 = vmax.f32 %v10232, %v10252
      %v10341 = vmax.f32 %v10303, %v10323
      %v10342 = vmax.f32 %v10305, %v10325
      %v10343 = vmax.f32 %v10327, %v10335
      %v10344 = vmax.f32 %v10328, %v10336
      %v10345 = vmax.f32 %v10329, %v10337
      %v10346 = vmax.f32 %v10330, %v10338
      %v10347 = vmax.f32 %v10331, %v10339
      %v10348 = vmax.f32 %v10332, %v10340
      %v10349 = vmax.f32 %v10333, %v10341
      %v10350 = vmax.f32 %v10334, %v10342
      %v10351 = vmax.f32 %v10117, %v10343
      %v10352 = vmax.f32 %v10118, %v10344
      %v10353 = vmax.f32 %v10119, %v10345
      %v10354 = vmax.f32 %v10120, %v10346
      %v10355 = vmax.f32 %v10121, %v10347
      %v10356 = vmax.f32 %v10122, %v10348
      %v10357 = vmax.f32 %v10123, %v10349
      %v10358 = vmax.f32 %v10124, %v10350
      %v10359 = vld [vmem:[%s1 + $0xc0] sm:$0xff]
      %v10360 = vld [vmem:[%s1 + $0xc8] sm:$0xff]
      %v10361 = vld [vmem:[%s1 + $0xd0] sm:$0xff]
      %v10362 = vld [vmem:[%s1 + $0xd8] sm:$0xff]
      %v10363 = vld [vmem:[%s1 + $0xe0] sm:$0xff]
      %v10364 = vld [vmem:[%s1 + $0xe8] sm:$0xff]
      %v10365 = vld [vmem:[%s1 + $0xf0] sm:$0xff]
      %v10366 = vld [vmem:[%s1 + $0xf8] sm:$0xff]
      %v10375 = vunpack.c.l.b16 %v10359
      %v10376 = vunpack.c.h.b16 %v10359
      %v10377 = vunpack.c.l.b16 %v10360
      %v10378 = vunpack.c.h.b16 %v10360
      %v10379 = vunpack.c.l.b16 %v10361
      %v10380 = vunpack.c.h.b16 %v10361
      %v10381 = vunpack.c.l.b16 %v10362
      %v10382 = vunpack.c.h.b16 %v10362
      %v10383 = vunpack.c.l.b16 %v10363
      %v10384 = vunpack.c.h.b16 %v10363
      %v10385 = vunpack.c.l.b16 %v10364
      %v10386 = vunpack.c.h.b16 %v10364
      %v10387 = vunpack.c.l.b16 %v10365
      %v10388 = vunpack.c.h.b16 %v10365
      %v10389 = vunpack.c.l.b16 %v10366
      %v10390 = vunpack.c.h.b16 %v10366
      %v10391 = vpack.c.b16 %v10377, %v10375
      %v10392 = vpack.c.b16 %v10378, %v10376
      %v10393 = vpack.c.b16 %v10381, %v10379
      %v10394 = vpack.c.b16 %v10382, %v10380
      %v10395 = vpack.c.b16 %v10385, %v10383
      %v10396 = vpack.c.b16 %v10386, %v10384
      %v10397 = vpack.c.b16 %v10389, %v10387
      %v10398 = vpack.c.b16 %v10390, %v10388
      %v10404 = vsel %vm481, %v10392, 0
      %v10407 = vsel %vm481, %v10394, 0
      %v10410 = vsel %vm481, %v10396, 0
      %v10413 = vsel %vm481, %v10398, 0
      %10415 = vmatprep.subr.bf16.mxu0 %v9622
      %10416 = vmatpush1.bf16.msra.mxu0 %v9621
      %10417 = vmatprep.subr.bf16.mxu0 %v9626
      %10418 = vmatpush1.bf16.msra.mxu0 %v9625
      %10419 = vmatprep.subr.bf16.mxu0 %v9630
      %10420 = vmatpush1.bf16.msra.mxu0 %v9629
      %10421 = vmatprep.subr.bf16.mxu0 %v9634
      %10422 = vmatpush1.bf16.msra.mxu0 %v9633
      %10423 = vmatprep.subr.bf16.mxu0 %v9638
      %10424 = vmatpush1.bf16.msra.mxu0 %v9637
      %10425 = vmatprep.subr.bf16.mxu0 %v9642
      %10426 = vmatpush1.bf16.msra.mxu0 %v9641
      %10427 = vmatprep.subr.bf16.mxu0 %v9646
      %10428 = vmatpush1.bf16.msra.mxu0 %v9645
      %10429 = vmatprep.subr.bf16.mxu0 %v9650
      %10430 = vmatpush1.bf16.msra.mxu0 %v9649
      %10431 = vmatprep.subr.bf16.mxu0 %v9654
      %10432 = vmatpush1.bf16.msra.mxu0 %v9653
      %10433 = vmatprep.subr.bf16.mxu0 %v9713
      %10434 = vmatpush1.bf16.msra.mxu0 %v9710
      %10435 = vmatprep.subr.bf16.mxu0 0
      %10436 = vmatpush1.bf16.msra.mxu0 0
      %10437 = vmatprep.subr.bf16.mxu0 0
      %10438 = vmatpush1.bf16.msra.mxu0 0
      %10439 = vmatprep.subr.bf16.mxu0 0
      %10440 = vmatpush1.bf16.msra.mxu0 0
      %10441 = vmatprep.subr.bf16.mxu0 0
      %10442 = vmatpush1.bf16.msra.mxu0 0
      %10443 = vmatprep.subr.bf16.mxu0 0
      %10444 = vmatpush1.bf16.msra.mxu0 0
      %10445 = vmatprep.subr.bf16.mxu0 0
      %10446 = vmatpush1.bf16.msra.mxu0 0
      %10447 = vmatprep.mubr.bf16.mxu0 %v10404
      %10448 = vmatmul.mubr.bf16.gmra.mrb[0].mxu0 %v10391
      %v10449 = vpop.f32.mrb[0].mxu0
      %v10450 = vadd.f32 0.0, %v10449
      %v10451 = vpop.f32.mrb[0].mxu0
      %v10452 = vadd.f32 0.0, %v10451
      %v10453 = vpop.f32.mrb[0].mxu0
      %v10454 = vadd.f32 0.0, %v10453
      %v10455 = vpop.f32.mrb[0].mxu0
      %v10456 = vadd.f32 0.0, %v10455
      %10457 = vmatprep.mubr.bf16.mxu0 %v10407
      %10458 = vmatmul.mubr.bf16.gmra.mrb[0].mxu0 %v10393
      %v10459 = vpop.f32.mrb[0].mxu0
      %v10460 = vadd.f32 0.0, %v10459
      %v10461 = vpop.f32.mrb[0].mxu0
      %v10462 = vadd.f32 0.0, %v10461
      %v10463 = vpop.f32.mrb[0].mxu0
      %v10464 = vadd.f32 0.0, %v10463
      %v10465 = vpop.f32.mrb[0].mxu0
      %v10466 = vadd.f32 0.0, %v10465
      %10467 = vmatprep.mubr.bf16.mxu0 %v10410
      %10468 = vmatmul.mubr.bf16.gmra.mrb[0].mxu0 %v10395
      %v10469 = vpop.f32.mrb[0].mxu0
      %v10470 = vadd.f32 0.0, %v10469
      %v10471 = vpop.f32.mrb[0].mxu0
      %v10472 = vadd.f32 0.0, %v10471
      %v10473 = vpop.f32.mrb[0].mxu0
      %v10474 = vadd.f32 0.0, %v10473
      %v10475 = vpop.f32.mrb[0].mxu0
      %v10476 = vadd.f32 0.0, %v10475
      %10477 = vmatprep.mubr.bf16.mxu0 %v10413
      %10478 = vmatmul.mubr.bf16.gmra.mrb[0].mxu0 %v10397
      %v10479 = vpop.f32.mrb[0].mxu0
      %v10480 = vadd.f32 0.0, %v10479
      %v10481 = vpop.f32.mrb[0].mxu0
      %v10482 = vadd.f32 0.0, %v10481
      %v10483 = vpop.f32.mrb[0].mxu0
      %v10484 = vadd.f32 0.0, %v10483
      %v10485 = vpop.f32.mrb[0].mxu0
      %v10486 = vadd.f32 0.0, %v10485
      %10487 = vdwg.mxu0
      %10488 = vmatprep.subr.bf16.mxu0 %v9624
      %10489 = vmatpush1.bf16.msra.mxu0 %v9623
      %10490 = vmatprep.subr.bf16.mxu0 %v9628
      %10491 = vmatpush1.bf16.msra.mxu0 %v9627
      %10492 = vmatprep.subr.bf16.mxu0 %v9632
      %10493 = vmatpush1.bf16.msra.mxu0 %v9631
      %10494 = vmatprep.subr.bf16.mxu0 %v9636
      %10495 = vmatpush1.bf16.msra.mxu0 %v9635
      %10496 = vmatprep.subr.bf16.mxu0 %v9640
      %10497 = vmatpush1.bf16.msra.mxu0 %v9639
      %10498 = vmatprep.subr.bf16.mxu0 %v9644
      %10499 = vmatpush1.bf16.msra.mxu0 %v9643
      %10500 = vmatprep.subr.bf16.mxu0 %v9648
      %10501 = vmatpush1.bf16.msra.mxu0 %v9647
      %10502 = vmatprep.subr.bf16.mxu0 %v9652
      %10503 = vmatpush1.bf16.msra.mxu0 %v9651
      %10504 = vmatprep.subr.bf16.mxu0 %v9656
      %10505 = vmatpush1.bf16.msra.mxu0 %v9655
      %10506 = vmatprep.subr.bf16.mxu0 %v9719
      %10507 = vmatpush1.bf16.msra.mxu0 %v9716
      %10508 = vmatprep.subr.bf16.mxu0 0
      %10509 = vmatpush1.bf16.msra.mxu0 0
      %10510 = vmatprep.subr.bf16.mxu0 0
      %10511 = vmatpush1.bf16.msra.mxu0 0
      %10512 = vmatprep.subr.bf16.mxu0 0
      %10513 = vmatpush1.bf16.msra.mxu0 0
      %10514 = vmatprep.subr.bf16.mxu0 0
      %10515 = vmatpush1.bf16.msra.mxu0 0
      %10516 = vmatprep.subr.bf16.mxu0 0
      %10517 = vmatpush1.bf16.msra.mxu0 0
      %10518 = vmatprep.subr.bf16.mxu0 0
      %10519 = vmatpush1.bf16.msra.mxu0 0
      %10520 = vmatprep.mubr.bf16.mxu0 %v10404
      %10521 = vmatmul.mubr.bf16.gmra.mrb[0].mxu0 %v10391
      %v10522 = vpop.f32.mrb[0].mxu0
      %v10523 = vadd.f32 0.0, %v10522
      %v10524 = vpop.f32.mrb[0].mxu0
      %v10525 = vadd.f32 0.0, %v10524
      %v10526 = vpop.f32.mrb[0].mxu0
      %v10527 = vadd.f32 0.0, %v10526
      %v10528 = vpop.f32.mrb[0].mxu0
      %v10529 = vadd.f32 0.0, %v10528
      %10530 = vmatprep.mubr.bf16.mxu0 %v10407
      %10531 = vmatmul.mubr.bf16.gmra.mrb[0].mxu0 %v10393
      %v10532 = vpop.f32.mrb[0].mxu0
      %v10533 = vadd.f32 0.0, %v10532
      %v10534 = vpop.f32.mrb[0].mxu0
      %v10535 = vadd.f32 0.0, %v10534
      %v10536 = vpop.f32.mrb[0].mxu0
      %v10537 = vadd.f32 0.0, %v10536
      %v10538 = vpop.f32.mrb[0].mxu0
      %v10539 = vadd.f32 0.0, %v10538
      %10540 = vmatprep.mubr.bf16.mxu0 %v10410
      %10541 = vmatmul.mubr.bf16.gmra.mrb[0].mxu0 %v10395
      %v10542 = vpop.f32.mrb[0].mxu0
      %v10543 = vadd.f32 0.0, %v10542
      %v10544 = vpop.f32.mrb[0].mxu0
      %v10545 = vadd.f32 0.0, %v10544
      %v10546 = vpop.f32.mrb[0].mxu0
      %v10547 = vadd.f32 0.0, %v10546
      %v10548 = vpop.f32.mrb[0].mxu0
      %v10549 = vadd.f32 0.0, %v10548
      %10550 = vmatprep.mubr.bf16.mxu0 %v10413
      %10551 = vmatmul.mubr.bf16.gmra.mrb[0].mxu0 %v10397
      %v10552 = vpop.f32.mrb[0].mxu0
      %v10553 = vadd.f32 0.0, %v10552
      %v10554 = vpop.f32.mrb[0].mxu0
      %v10555 = vadd.f32 0.0, %v10554
      %v10556 = vpop.f32.mrb[0].mxu0
      %v10557 = vadd.f32 0.0, %v10556
      %v10558 = vpop.f32.mrb[0].mxu0
      %v10559 = vadd.f32 0.0, %v10558
      %10560 = vdwg.mxu0
      %v10561 = vmax.f32 %v10450, %v10470
      %v10562 = vmax.f32 %v10452, %v10472
      %v10563 = vmax.f32 %v10523, %v10543
      %v10564 = vmax.f32 %v10525, %v10545
      %v10565 = vmax.f32 %v10454, %v10474
      %v10566 = vmax.f32 %v10456, %v10476
      %v10567 = vmax.f32 %v10527, %v10547
      %v10568 = vmax.f32 %v10529, %v10549
      %v10569 = vmax.f32 %v10460, %v10480
      %v10570 = vmax.f32 %v10462, %v10482
      %v10571 = vmax.f32 %v10533, %v10553
      %v10572 = vmax.f32 %v10535, %v10555
      %v10573 = vmax.f32 %v10464, %v10484
      %v10574 = vmax.f32 %v10466, %v10486
      %v10575 = vmax.f32 %v10537, %v10557
      %v10576 = vmax.f32 %v10539, %v10559
      %v10577 = vmax.f32 %v10561, %v10569
      %v10578 = vmax.f32 %v10562, %v10570
      %v10579 = vmax.f32 %v10563, %v10571
      %v10580 = vmax.f32 %v10564, %v10572
      %v10581 = vmax.f32 %v10565, %v10573
      %v10582 = vmax.f32 %v10566, %v10574
      %v10583 = vmax.f32 %v10567, %v10575
      %v10584 = vmax.f32 %v10568, %v10576
      %v10585 = vmax.f32 %v10351, %v10577
      %v10586 = vmax.f32 %v10352, %v10578
      %v10587 = vmax.f32 %v10353, %v10579
      %v10588 = vmax.f32 %v10354, %v10580
      %v10589 = vmax.f32 %v10355, %v10581
      %v10590 = vmax.f32 %v10356, %v10582
      %v10591 = vmax.f32 %v10357, %v10583
      %v10592 = vmax.f32 %v10358, %v10584
      %v10593 = vmax.f32 %v10585, 0.0
      %v10594 = vmax.f32 %v10586, 0.0
      %v10595 = vmax.f32 %v10587, 0.0
      %v10596 = vmax.f32 %v10588, 0.0
      %v10597 = vmax.f32 %v10589, 0.0
      %v10598 = vmax.f32 %v10590, 0.0
      %v10599 = vmax.f32 %v10591, 0.0
      %v10600 = vmax.f32 %v10592, 0.0
      %v10601 = vmin.f32 %v10593, 6.0
      %v10602 = vmin.f32 %v10594, 6.0
      %v10603 = vmin.f32 %v10595, 6.0
      %v10604 = vmin.f32 %v10596, 6.0
      %v10605 = vmin.f32 %v10597, 6.0
      %v10606 = vmin.f32 %v10598, 6.0
      %v10607 = vmin.f32 %v10599, 6.0
      %v10608 = vmin.f32 %v10600, 6.0
      %v10609 = vadd.f32 %v10601, %v10602
      %v10610 = vadd.f32 %v10609, %v10603
      %v10611 = vadd.f32 %v10610, %v10604
      %10612 = vadd.xlane.f32.xlu0 %v10611
      %v10613 = vpop.xlane.xlu0 %10612
      %v10614 = vadd.f32 %v10605, %v10606
      %v10615 = vadd.f32 %v10614, %v10607
      %v10616 = vadd.f32 %v10615, %v10608
      %10617 = vadd.xlane.f32.xlu0 %v10616
      %v10618 = vpop.xlane.xlu0 %10617
      %v10619 = vmul.f32 %v10613, %v1407
      %v10620 = vmul.f32 %v10618, %v1407
      %v10621 = vsub.f32 %v10601, %v10619
      %v10622 = vsub.f32 %v10602, %v10619
      %v10623 = vsub.f32 %v10603, %v10619
      %v10624 = vsub.f32 %v10604, %v10619
      %v10625 = vsub.f32 %v10605, %v10620
      %v10626 = vsub.f32 %v10606, %v10620
      %v10627 = vsub.f32 %v10607, %v10620
      %v10628 = vsub.f32 %v10608, %v10620
      %v10629 = vmul.f32 %v10621, %v10621
      %v10630 = vmul.f32 %v10622, %v10622
      %v10631 = vmul.f32 %v10623, %v10623
      %v10632 = vmul.f32 %v10624, %v10624
      %v10633 = vmul.f32 %v10625, %v10625
      %v10634 = vmul.f32 %v10626, %v10626
      %v10635 = vmul.f32 %v10627, %v10627
      %v10636 = vmul.f32 %v10628, %v10628
      %v10637 = vadd.f32 %v10629, %v10630
      %v10638 = vadd.f32 %v10637, %v10631
      %v10639 = vadd.f32 %v10638, %v10632
      %10640 = vadd.xlane.f32.xlu0 %v10639
      %v10641 = vpop.xlane.xlu0 %10640
      %v10642 = vadd.f32 %v10633, %v10634
      %v10643 = vadd.f32 %v10642, %v10635
      %v10644 = vadd.f32 %v10643, %v10636
      %10645 = vadd.xlane.f32.xlu0 %v10644
      %v10646 = vpop.xlane.xlu0 %10645
      %v10647 = vmul.f32 %v10641, %v1407
      %v10648 = vmul.f32 %v10646, %v1407
      %v10649 = vadd.f32 %v10647, 1e-05
      %v10650 = vadd.f32 %v10648, 1e-05
      %v10651 = vrsqrt.pop %v10649
      %v10652 = vrsqrt.pop %v10650
      %v10653 = vmul.f32 %v10621, %v10651
      %v10654 = vmul.f32 %v10622, %v10651
      %v10655 = vmul.f32 %v10623, %v10651
      %v10656 = vmul.f32 %v10624, %v10651
      %v10657 = vmul.f32 %v10625, %v10652
      %v10658 = vmul.f32 %v10626, %v10652
      %v10659 = vmul.f32 %v10627, %v10652
      %v10660 = vmul.f32 %v10628, %v10652
      %v10661 = vmul.f32 %v10653, %v1454
      %v10662 = vmul.f32 %v10654, %v1458
      %v10663 = vmul.f32 %v10655, %v1462
      %v10664 = vmul.f32 %v10656, %v1466
      %v10665 = vmul.f32 %v10657, %v1454
      %v10666 = vmul.f32 %v10658, %v1458
      %v10667 = vmul.f32 %v10659, %v1462
      %v10668 = vmul.f32 %v10660, %v1466
      %v10669 = vadd.f32 %v10661, %v1483
      %v10670 = vadd.f32 %v10662, %v1487
      %v10671 = vadd.f32 %v10663, %v1491
      %v10672 = vadd.f32 %v10664, %v1495
      %v10673 = vadd.f32 %v10665, %v1483
      %v10674 = vadd.f32 %v10666, %v1487
      %v10675 = vadd.f32 %v10667, %v1491
      %v10676 = vadd.f32 %v10668, %v1495
      %v10677 = vmul.f32 %v10669, 0.5
      %v10678 = vmul.f32 %v10670, 0.5
      %v10679 = vmul.f32 %v10671, 0.5
      %v10680 = vmul.f32 %v10672, 0.5
      %v10681 = vmul.f32 %v10673, 0.5
      %v10682 = vmul.f32 %v10674, 0.5
      %v10683 = vmul.f32 %v10675, 0.5
      %v10684 = vmul.f32 %v10676, 0.5
      %v10685 = vmul.f32 %v10669, 0.70710677
      %v10686 = vmul.f32 %v10670, 0.70710677
      %v10687 = vmul.f32 %v10671, 0.70710677
      %v10688 = vmul.f32 %v10672, 0.70710677
      %v10689 = vmul.f32 %v10673, 0.70710677
      %v10690 = vmul.f32 %v10674, 0.70710677
      %v10691 = vmul.f32 %v10675, 0.70710677
      %v10692 = vmul.f32 %v10676, 0.70710677
      %v10693 = verf.f32.pop %v10685
      %v10694 = verf.f32.pop %v10686
      %v10695 = verf.f32.pop %v10687
      %v10696 = verf.f32.pop %v10688
      %v10697 = verf.f32.pop %v10689
      %v10698 = verf.f32.pop %v10690
      %v10699 = verf.f32.pop %v10691
      %v10700 = verf.f32.pop %v10692
      %v10701 = vadd.f32 %v10693, 1.0
      %v10702 = vadd.f32 %v10694, 1.0
      %v10703 = vadd.f32 %v10695, 1.0
      %v10704 = vadd.f32 %v10696, 1.0
      %v10705 = vadd.f32 %v10697, 1.0
      %v10706 = vadd.f32 %v10698, 1.0
      %v10707 = vadd.f32 %v10699, 1.0
      %v10708 = vadd.f32 %v10700, 1.0
      %v10709 = vmul.f32 %v10677, %v10701
      %v10710 = vmul.f32 %v10678, %v10702
      %v10711 = vmul.f32 %v10679, %v10703
      %v10712 = vmul.f32 %v10680, %v10704
      %v10713 = vmul.f32 %v10681, %v10705
      %v10714 = vmul.f32 %v10682, %v10706
      %v10715 = vmul.f32 %v10683, %v10707
      %v10716 = vmul.f32 %v10684, %v10708
      %v10717 = vtanh.pop %v10709
      %v10718 = vtanh.pop %v10710
      %v10719 = vtanh.pop %v10711
      %v10720 = vtanh.pop %v10712
      %v10721 = vtanh.pop %v10713
      %v10722 = vtanh.pop %v10714
      %v10723 = vtanh.pop %v10715
      %v10724 = vtanh.pop %v10716
      %s10725 = scalar_lea.vmem %s204, 448
      %10726 = vst [vmem:[%s10725] sm:$0xff] %v10717
      %10727 = vst [vmem:[%s10725 + $0x8] sm:$0xff] %v10718
      %10728 = vst [vmem:[%s10725 + $0x10] sm:$0xff] %v10719
      %10729 = vst [vmem:[%s10725 + $0x18] sm:$0xff] %v10720
      %10730 = vst [vmem:[%s10725 + $0x20] sm:$0xff] %v10721
      %10731 = vst [vmem:[%s10725 + $0x28] sm:$0xff] %v10722
      %10732 = vst [vmem:[%s10725 + $0x30] sm:$0xff] %v10723
      %10733 = vst [vmem:[%s10725 + $0x38] sm:$0xff] %v10724
      %s10734 = smul.u32 8, %s15
      %p10735 = scmp.lt.s32.totalorder %s10734, 15
      %s10736 = scalar_select %p10735, %s10734, 15
      %s10737 = smul.addr %s10736, 8
      %s10738 = smul.addr %s10737, 8
      %s10739 = scalar_lea.vmem %s4, %s10738
      // Predicated region
      $region37: #{model_tanh.1} parent=35 // pred_check
        %p10740 = pneg %p122
      $region38: #{model_tanh.1} parent=35 // pred_check_branch
        %10742 = sbr.rel (%p10740) target = $region40
      $region39: #{model_tanh.1} parent=35 // pred_region
        %s10743 = smul.u32 8, %s15
      $region40: #{model_tanh.1} parent=35 // pred_fallthru
        _
    $region36: #{model_tanh.1} parent=5 // pred_fallthru
      _
    %p10744 = scmp.le.s32.totalorder 2, %s10
    // Predicated region
    $region41: #{model_tanh.1} parent=5 // pred_check
      %p10745 = pneg %p10744
    $region42: #{model_tanh.1} parent=5 // pred_check_branch
      %10747 = sbr.rel (%p10745) target = $region44
    $region43: #{model_tanh.1} parent=5 // pred_region
      %s10748 = ssub.s32 %s10, 2
      // Predicated region
      $region45: #{model_tanh.1} parent=43 // pred_check
        %p10749 = pneg %p128
      $region46: #{model_tanh.1} parent=43 // pred_check_branch
        %10751 = sbr.rel (%p10749) target = $region48
      $region47: #{model_tanh.1} parent=43 // pred_region
        %s10752 = smul.u32 8, %s16
        %p10753 = scmp.lt.s32.totalorder %s10752, 15
        %s10754 = scalar_select %p10753, %s10752, 15
        %s10755 = smul.addr %s10754, 8
        %s10756 = smul.addr %s10755, 8
        %s10757 = scalar_lea.vmem %s4, %s10756
      $region48: #{model_tanh.1} parent=43 // pred_fallthru
        _
    $region44: #{model_tanh.1} parent=5 // pred_fallthru
      _
  $region6: #{model_tanh.1} parent=0 // loop_footer
    %s14 = sadd.s32 1, %s10
  $region7: #{model_tanh.1} parent=0 // loop_footer_branch
    %9 = sbr.rel target = $region3
  $region8: #{model_tanh.1} parent=0 // loop_exit
    _

</llo_original>
